<compile_context>
chip_gen: v7x
topology: tpu7x:2x2x1
jax: 0.10.0
libtpu: 0.0.40
codegen_flags: <defaults>
</compile_context>

<pallas_src>
import jax
import jax.numpy as jnp
from jax.experimental import pallas as pl
from jax.experimental.pallas import tpu as pltpu

EMBED_LEN = 128        # embed_len in the PyTorch module
MAX_TOKENS = 50        # max_tokens in the PyTorch module
VOCAB = 64             # synthetic vocab size (len(self.data.vocab))
OC = 32                # conv out channels
K = 7                  # conv kernel size
PAD = K // 2           # padding='same'  -> 3 each side
T_PAD = 64             # padded time length used inside the kernel (3 left, 11 right zeros)
NUM_CLASSES = 4
LIN_PAD = 8            # linear output rows padded 4 -> 8 (sublane-friendly)


def _round_up(x, m):
    return ((x + m - 1) // m) * m


def _pick_b_blk(batch):
    """128 by default (safe for v7x 64 MiB VMEM); 256 on 128 MiB-VMEM chips at large batch."""
    b_blk = 128
    try:
        info = pltpu.get_tpu_info()
        vmem = getattr(info, "vmem_capacity_bytes", None)
        if vmem is not None and vmem >= 100 * 1024 * 1024 and batch >= 2 * 256:
            b_blk = 256          # v5e / v6e: halves per-step overhead, still >= 2 grid steps
    except Exception:
        pass
    return b_blk


def conv_pool_linear_kernel(x_ref, w_ref, bc_ref, lw_ref, lb_ref, out_ref):
    """Fused Conv1d('same') + ReLU + global max-pool + Linear for one batch block.

    x_ref  : (128, 64*b_blk) bf16   rows = embed channel, cols = t_pad*b_blk + b (batch minor)
    w_ref  : (224, 128)      bf16   conv weight, row j = k*32 + o, col = channel
    bc_ref : (32, 1)         f32    conv bias
    lw_ref : (8, 32)         f32    linear weight zero-padded to 8 output rows
    lb_ref : (8, 1)          f32    linear bias zero-padded
    out_ref: (8, b_blk)      f32    logits (rows 0..3 valid), batch on lanes (lane-dense)
    """
    b_blk = x_ref.shape[1] // T_PAD

    # One MXU matmul covering all 7 taps and the whole batch block:
    #   z[k*32+o, tp*b_blk + b] = sum_c conv_w[o, c, k] * x_pad[b, c, tp]
    z = jnp.dot(w_ref[...], x_ref[...], preferred_element_type=jnp.float32)  # (224, 64*b_blk)

    # Fused tap-sum + max-pool over time.  All slices below are (8,128)-tile aligned,
    # and the running (32, b_blk) accumulators stay register-resident.
    pooled = None
    for t in range(MAX_TOKENS):                       # static, unrolled
        base = t * b_blk
        conv_t = z[0:OC, base:base + b_blk]
        for k in range(1, K):
            conv_t = conv_t + z[k * OC:(k + 1) * OC,
                                base + k * b_blk: base + (k + 1) * b_blk]
        pooled = conv_t if t == 0 else jnp.maximum(pooled, conv_t)

    # Bias after the pool (bias is time-constant and ReLU is monotone), then ReLU.
    feat = jnp.maximum(pooled + bc_ref[...], 0.0)                            # (32, b_blk)

    # Fused 32 -> 4 (padded to 8) linear; output batch-on-lanes -> lane-dense store.
    out_ref[...] = (jnp.dot(lw_ref[...], feat, preferred_element_type=jnp.float32)
                    + lb_ref[...])


def cnn_forward(tokens, embed_table, conv_w, conv_b, lin_w, lin_b):
    """tokens: (B, MAX_TOKENS) int32 -> logits (B, NUM_CLASSES) float32."""
    B = tokens.shape[0]
    b_blk = _pick_b_blk(B)
    b_pad = _round_up(B, b_blk)
    G = b_pad // b_blk

    # --- host glue (plain XLA, all bf16 after the gather) -------------------------------
    # bf16 gather straight from a bf16 table (halves gather HBM traffic), then the
    # PyTorch-exact raw reshape, time padding for 'same' conv, and the layout transpose
    # into (channel, time, batch-minor) -- a single bf16 copy fusion.
    emb = jnp.take(embed_table.astype(jnp.bfloat16), tokens, axis=0)       # (B, 50, 128) bf16
    xr = emb.reshape(B, EMBED_LEN, MAX_TOKENS)                             # raw reshape (view)
    xp = jnp.pad(xr, ((0, b_pad - B), (0, 0),
                      (PAD, T_PAD - MAX_TOKENS - PAD)))                    # (b_pad, 128, 64)
    xt = jnp.transpose(xp, (1, 2, 0))                                      # (128, 64, b_pad)
    xh = (xt.reshape(EMBED_LEN, T_PAD, G, b_blk)
            .transpose(2, 0, 1, 3)
            .reshape(G * EMBED_LEN, T_PAD * b_blk))                        # (G*128, 64*b_blk)

    # Conv weight (32, 128, 7) -> (224, 128) with row index k*32 + o; bf16.
    w_t = jnp.transpose(conv_w, (2, 0, 1)).reshape(K * OC, EMBED_LEN).astype(jnp.bfloat16)
    bc = conv_b.reshape(OC, 1).astype(jnp.float32)
    lw = jnp.zeros((LIN_PAD, OC), jnp.float32).at[:NUM_CLASSES].set(lin_w.astype(jnp.float32))
    lb = jnp.zeros((LIN_PAD, 1), jnp.float32).at[:NUM_CLASSES, 0].set(lin_b.astype(jnp.float32))

    # NOTE(v7x): b_blk=128 keeps per-block VMEM (~13 MiB incl. the 7.3 MiB f32 z) well under
    # the 64 MiB/TC budget, and any B >= 256 yields >= 2 "parallel" grid steps for the 2 TCs.
    # If profiling ever shows exposed DMA, set pipeline_mode=pl.Buffered(3) on in_specs[0].
    out = pl.pallas_call(
        conv_pool_linear_kernel,
        out_shape=jax.ShapeDtypeStruct((LIN_PAD, b_pad), jnp.float32),
        grid_spec=pltpu.PrefetchScalarGridSpec(
            num_scalar_prefetch=0,
            grid=(G,),
            in_specs=[
                pl.BlockSpec((EMBED_LEN, T_PAD * b_blk), lambda i: (i, 0)),
                pl.BlockSpec((K * OC, EMBED_LEN), lambda i: (0, 0)),
                pl.BlockSpec((OC, 1), lambda i: (0, 0)),
                pl.BlockSpec((LIN_PAD, OC), lambda i: (0, 0)),
                pl.BlockSpec((LIN_PAD, 1), lambda i: (0, 0)),
            ],
            out_specs=pl.BlockSpec((LIN_PAD, b_blk), lambda i: (0, i)),
        ),
        compiler_params=pltpu.CompilerParams(
            dimension_semantics=("parallel",),
            vmem_limit_bytes=(96 if b_blk >= 256 else 40) * 1024 * 1024,
        ),
    )(xh, w_t, bc, lw, lb)

    # Drop the padded classes / padded batch; tiny transpose.
    return out[:NUM_CLASSES, :B].T


def reference_forward(tokens, embed_table, conv_w, conv_b, lin_w, lin_b):
    """Pure-jnp f32 reference mirroring the PyTorch forward."""
    B = tokens.shape[0]
    x = jnp.take(embed_table, tokens, axis=0).reshape(B, EMBED_LEN, MAX_TOKENS)
    xp = jnp.pad(x, ((0, 0), (0, 0), (PAD, PAD)))
    conv = jnp.zeros((B, OC, MAX_TOKENS), jnp.float32)
    for k in range(K):
        conv = conv + jnp.einsum('oc,bct->bot',
                                 conv_w[:, :, k], xp[:, :, k:k + MAX_TOKENS])
    conv = conv + conv_b[None, :, None]
    conv = jnp.maximum(conv, 0.0)
    pooled = jnp.max(conv, axis=-1)                                        # (B, 32)
    return pooled @ lin_w.T + lin_b[None, :]


if __name__ == "__main__":
    key = jax.random.PRNGKey(0)
    k_tok, k_emb, k_cw, k_cb, k_lw, k_lb = jax.random.split(key, 6)

    B = 2
    tokens = jax.random.randint(k_tok, (B, MAX_TOKENS), 0, VOCAB, dtype=jnp.int32)

    # Deterministic synthetic parameters (shapes match the PyTorch module).
    embed_table = jax.random.normal(k_emb, (VOCAB, EMBED_LEN), jnp.float32) * 0.1
    conv_w = jax.random.normal(k_cw, (OC, EMBED_LEN, K), jnp.float32) * 0.05
    conv_b = jax.random.normal(k_cb, (OC,), jnp.float32) * 0.05
    lin_w = jax.random.normal(k_lw, (NUM_CLASSES, OC), jnp.float32) * 0.1
    lin_b = jax.random.normal(k_lb, (NUM_CLASSES,), jnp.float32) * 0.1

    out = jax.jit(cnn_forward)(tokens, embed_table, conv_w, conv_b, lin_w, lin_b)
    out = jax.block_until_ready(out)

    ref = reference_forward(tokens, embed_table, conv_w, conv_b, lin_w, lin_b)
    assert out.shape == (B, NUM_CLASSES)
    # bf16 embeddings / conv weights with f32 accumulation vs. pure-f32 reference.
    assert jnp.allclose(out, ref, atol=1e-2, rtol=1e-2), (out, ref)

    print("KERNEL_OK")
</pallas_src>

<mosaic_0001>
module attributes {stable_mosaic.version = 11 : i64} {
  func.func @conv_pool_linear_kernel(%arg0: i32, %arg1: memref<128x8192xbf16, #tpu.memory_space<vmem>>, %arg2: memref<224x128xbf16, #tpu.memory_space<vmem>>, %arg3: memref<32x1xf32, #tpu.memory_space<vmem>>, %arg4: memref<8x32xf32, #tpu.memory_space<vmem>>, %arg5: memref<8x1xf32, #tpu.memory_space<vmem>>, %arg6: memref<8x128xf32, #tpu.memory_space<vmem>>) attributes {dimension_semantics = [#tpu.dimension_semantics<parallel>], iteration_bounds = array<i64: 1>, scalar_prefetch = 0 : i64, scratch_operands = 0 : i64, tpu.core_type = #tpu.core_type<tc>, window_params = [{transform_indices = @transform_0, window_bounds = array<i64: 128, 8192>}, {pipeline_mode = #tpu.pipeline_mode<synchronous>, transform_indices = @transform_1, window_bounds = array<i64: 224, 128>}, {pipeline_mode = #tpu.pipeline_mode<synchronous>, transform_indices = @transform_2, window_bounds = array<i64: 32, 1>}, {pipeline_mode = #tpu.pipeline_mode<synchronous>, transform_indices = @transform_3, window_bounds = array<i64: 8, 32>}, {pipeline_mode = #tpu.pipeline_mode<synchronous>, transform_indices = @transform_4, window_bounds = array<i64: 8, 1>}, {transform_indices = @transform_5, window_bounds = array<i64: 8, 128>}]} {
    %c0 = arith.constant 0 : index
    %c0_0 = arith.constant 0 : index
    %0 = vector.load %arg2[%c0, %c0_0] : memref<224x128xbf16, #tpu.memory_space<vmem>>, vector<224x128xbf16>
    %c0_1 = arith.constant 0 : index
    %c0_2 = arith.constant 0 : index
    %1 = vector.load %arg1[%c0_1, %c0_2] : memref<128x8192xbf16, #tpu.memory_space<vmem>>, vector<128x8192xbf16>
    %cst = arith.constant dense<0.000000e+00> : vector<224x8192xf32>
    %2 = tpu.matmul %0, %1, %cst {dimension_numbers = #tpu.dot_dimension_numbers<[1], [0], [0], [1], [0, 0, 1, 1], [], []>} : vector<224x128xbf16>, vector<128x8192xbf16>, vector<224x8192xf32> -> vector<224x8192xf32>
    %3 = vector.extract_strided_slice %2 {offsets = [0, 0], sizes = [32, 128], strides = [1, 1]} : vector<224x8192xf32> to vector<32x128xf32>
    %4 = vector.extract_strided_slice %2 {offsets = [32, 128], sizes = [32, 128], strides = [1, 1]} : vector<224x8192xf32> to vector<32x128xf32>
    %5 = arith.addf %3, %4 : vector<32x128xf32>
    %6 = vector.extract_strided_slice %2 {offsets = [64, 256], sizes = [32, 128], strides = [1, 1]} : vector<224x8192xf32> to vector<32x128xf32>
    %7 = arith.addf %5, %6 : vector<32x128xf32>
    %8 = vector.extract_strided_slice %2 {offsets = [96, 384], sizes = [32, 128], strides = [1, 1]} : vector<224x8192xf32> to vector<32x128xf32>
    %9 = arith.addf %7, %8 : vector<32x128xf32>
    %10 = vector.extract_strided_slice %2 {offsets = [128, 512], sizes = [32, 128], strides = [1, 1]} : vector<224x8192xf32> to vector<32x128xf32>
    %11 = arith.addf %9, %10 : vector<32x128xf32>
    %12 = vector.extract_strided_slice %2 {offsets = [160, 640], sizes = [32, 128], strides = [1, 1]} : vector<224x8192xf32> to vector<32x128xf32>
    %13 = arith.addf %11, %12 : vector<32x128xf32>
    %14 = vector.extract_strided_slice %2 {offsets = [192, 768], sizes = [32, 128], strides = [1, 1]} : vector<224x8192xf32> to vector<32x128xf32>
    %15 = arith.addf %13, %14 : vector<32x128xf32>
    %16 = vector.extract_strided_slice %2 {offsets = [0, 128], sizes = [32, 128], strides = [1, 1]} : vector<224x8192xf32> to vector<32x128xf32>
    %17 = vector.extract_strided_slice %2 {offsets = [32, 256], sizes = [32, 128], strides = [1, 1]} : vector<224x8192xf32> to vector<32x128xf32>
    %18 = arith.addf %16, %17 : vector<32x128xf32>
    %19 = vector.extract_strided_slice %2 {offsets = [64, 384], sizes = [32, 128], strides = [1, 1]} : vector<224x8192xf32> to vector<32x128xf32>
    %20 = arith.addf %18, %19 : vector<32x128xf32>
    %21 = vector.extract_strided_slice %2 {offsets = [96, 512], sizes = [32, 128], strides = [1, 1]} : vector<224x8192xf32> to vector<32x128xf32>
    %22 = arith.addf %20, %21 : vector<32x128xf32>
    %23 = vector.extract_strided_slice %2 {offsets = [128, 640], sizes = [32, 128], strides = [1, 1]} : vector<224x8192xf32> to vector<32x128xf32>
    %24 = arith.addf %22, %23 : vector<32x128xf32>
    %25 = vector.extract_strided_slice %2 {offsets = [160, 768], sizes = [32, 128], strides = [1, 1]} : vector<224x8192xf32> to vector<32x128xf32>
    %26 = arith.addf %24, %25 : vector<32x128xf32>
    %27 = vector.extract_strided_slice %2 {offsets = [192, 896], sizes = [32, 128], strides = [1, 1]} : vector<224x8192xf32> to vector<32x128xf32>
    %28 = arith.addf %26, %27 : vector<32x128xf32>
    %29 = arith.maximumf %15, %28 : vector<32x128xf32>
    %30 = vector.extract_strided_slice %2 {offsets = [0, 256], sizes = [32, 128], strides = [1, 1]} : vector<224x8192xf32> to vector<32x128xf32>
    %31 = vector.extract_strided_slice %2 {offsets = [32, 384], sizes = [32, 128], strides = [1, 1]} : vector<224x8192xf32> to vector<32x128xf32>
    %32 = arith.addf %30, %31 : vector<32x128xf32>
    %33 = vector.extract_strided_slice %2 {offsets = [64, 512], sizes = [32, 128], strides = [1, 1]} : vector<224x8192xf32> to vector<32x128xf32>
    %34 = arith.addf %32, %33 : vector<32x128xf32>
    %35 = vector.extract_strided_slice %2 {offsets = [96, 640], sizes = [32, 128], strides = [1, 1]} : vector<224x8192xf32> to vector<32x128xf32>
    %36 = arith.addf %34, %35 : vector<32x128xf32>
    %37 = vector.extract_strided_slice %2 {offsets = [128, 768], sizes = [32, 128], strides = [1, 1]} : vector<224x8192xf32> to vector<32x128xf32>
    %38 = arith.addf %36, %37 : vector<32x128xf32>
    %39 = vector.extract_strided_slice %2 {offsets = [160, 896], sizes = [32, 128], strides = [1, 1]} : vector<224x8192xf32> to vector<32x128xf32>
    %40 = arith.addf %38, %39 : vector<32x128xf32>
    %41 = vector.extract_strided_slice %2 {offsets = [192, 1024], sizes = [32, 128], strides = [1, 1]} : vector<224x8192xf32> to vector<32x128xf32>
    %42 = arith.addf %40, %41 : vector<32x128xf32>
    %43 = arith.maximumf %29, %42 : vector<32x128xf32>
    %44 = vector.extract_strided_slice %2 {offsets = [0, 384], sizes = [32, 128], strides = [1, 1]} : vector<224x8192xf32> to vector<32x128xf32>
    %45 = vector.extract_strided_slice %2 {offsets = [32, 512], sizes = [32, 128], strides = [1, 1]} : vector<224x8192xf32> to vector<32x128xf32>
    %46 = arith.addf %44, %45 : vector<32x128xf32>
    %47 = vector.extract_strided_slice %2 {offsets = [64, 640], sizes = [32, 128], strides = [1, 1]} : vector<224x8192xf32> to vector<32x128xf32>
    %48 = arith.addf %46, %47 : vector<32x128xf32>
    %49 = vector.extract_strided_slice %2 {offsets = [96, 768], sizes = [32, 128], strides = [1, 1]} : vector<224x8192xf32> to vector<32x128xf32>
    %50 = arith.addf %48, %49 : vector<32x128xf32>
    %51 = vector.extract_strided_slice %2 {offsets = [128, 896], sizes = [32, 128], strides = [1, 1]} : vector<224x8192xf32> to vector<32x128xf32>
    %52 = arith.addf %50, %51 : vector<32x128xf32>
    %53 = vector.extract_strided_slice %2 {offsets = [160, 1024], sizes = [32, 128], strides = [1, 1]} : vector<224x8192xf32> to vector<32x128xf32>
    %54 = arith.addf %52, %53 : vector<32x128xf32>
    %55 = vector.extract_strided_slice %2 {offsets = [192, 1152], sizes = [32, 128], strides = [1, 1]} : vector<224x8192xf32> to vector<32x128xf32>
    %56 = arith.addf %54, %55 : vector<32x128xf32>
    %57 = arith.maximumf %43, %56 : vector<32x128xf32>
    %58 = vector.extract_strided_slice %2 {offsets = [0, 512], sizes = [32, 128], strides = [1, 1]} : vector<224x8192xf32> to vector<32x128xf32>
    %59 = vector.extract_strided_slice %2 {offsets = [32, 640], sizes = [32, 128], strides = [1, 1]} : vector<224x8192xf32> to vector<32x128xf32>
    %60 = arith.addf %58, %59 : vector<32x128xf32>
    %61 = vector.extract_strided_slice %2 {offsets = [64, 768], sizes = [32, 128], strides = [1, 1]} : vector<224x8192xf32> to vector<32x128xf32>
    %62 = arith.addf %60, %61 : vector<32x128xf32>
    %63 = vector.extract_strided_slice %2 {offsets = [96, 896], sizes = [32, 128], strides = [1, 1]} : vector<224x8192xf32> to vector<32x128xf32>
    %64 = arith.addf %62, %63 : vector<32x128xf32>
    %65 = vector.extract_strided_slice %2 {offsets = [128, 1024], sizes = [32, 128], strides = [1, 1]} : vector<224x8192xf32> to vector<32x128xf32>
    %66 = arith.addf %64, %65 : vector<32x128xf32>
    %67 = vector.extract_strided_slice %2 {offsets = [160, 1152], sizes = [32, 128], strides = [1, 1]} : vector<224x8192xf32> to vector<32x128xf32>
    %68 = arith.addf %66, %67 : vector<32x128xf32>
    %69 = vector.extract_strided_slice %2 {offsets = [192, 1280], sizes = [32, 128], strides = [1, 1]} : vector<224x8192xf32> to vector<32x128xf32>
    %70 = arith.addf %68, %69 : vector<32x128xf32>
    %71 = arith.maximumf %57, %70 : vector<32x128xf32>
    %72 = vector.extract_strided_slice %2 {offsets = [0, 640], sizes = [32, 128], strides = [1, 1]} : vector<224x8192xf32> to vector<32x128xf32>
    %73 = vector.extract_strided_slice %2 {offsets = [32, 768], sizes = [32, 128], strides = [1, 1]} : vector<224x8192xf32> to vector<32x128xf32>
    %74 = arith.addf %72, %73 : vector<32x128xf32>
    %75 = vector.extract_strided_slice %2 {offsets = [64, 896], sizes = [32, 128], strides = [1, 1]} : vector<224x8192xf32> to vector<32x128xf32>
    %76 = arith.addf %74, %75 : vector<32x128xf32>
    %77 = vector.extract_strided_slice %2 {offsets = [96, 1024], sizes = [32, 128], strides = [1, 1]} : vector<224x8192xf32> to vector<32x128xf32>
    %78 = arith.addf %76, %77 : vector<32x128xf32>
    %79 = vector.extract_strided_slice %2 {offsets = [128, 1152], sizes = [32, 128], strides = [1, 1]} : vector<224x8192xf32> to vector<32x128xf32>
    %80 = arith.addf %78, %79 : vector<32x128xf32>
    %81 = vector.extract_strided_slice %2 {offsets = [160, 1280], sizes = [32, 128], strides = [1, 1]} : vector<224x8192xf32> to vector<32x128xf32>
    %82 = arith.addf %80, %81 : vector<32x128xf32>
    %83 = vector.extract_strided_slice %2 {offsets = [192, 1408], sizes = [32, 128], strides = [1, 1]} : vector<224x8192xf32> to vector<32x128xf32>
    %84 = arith.addf %82, %83 : vector<32x128xf32>
    %85 = arith.maximumf %71, %84 : vector<32x128xf32>
    %86 = vector.extract_strided_slice %2 {offsets = [0, 768], sizes = [32, 128], strides = [1, 1]} : vector<224x8192xf32> to vector<32x128xf32>
    %87 = vector.extract_strided_slice %2 {offsets = [32, 896], sizes = [32, 128], strides = [1, 1]} : vector<224x8192xf32> to vector<32x128xf32>
    %88 = arith.addf %86, %87 : vector<32x128xf32>
    %89 = vector.extract_strided_slice %2 {offsets = [64, 1024], sizes = [32, 128], strides = [1, 1]} : vector<224x8192xf32> to vector<32x128xf32>
    %90 = arith.addf %88, %89 : vector<32x128xf32>
    %91 = vector.extract_strided_slice %2 {offsets = [96, 1152], sizes = [32, 128], strides = [1, 1]} : vector<224x8192xf32> to vector<32x128xf32>
    %92 = arith.addf %90, %91 : vector<32x128xf32>
    %93 = vector.extract_strided_slice %2 {offsets = [128, 1280], sizes = [32, 128], strides = [1, 1]} : vector<224x8192xf32> to vector<32x128xf32>
    %94 = arith.addf %92, %93 : vector<32x128xf32>
    %95 = vector.extract_strided_slice %2 {offsets = [160, 1408], sizes = [32, 128], strides = [1, 1]} : vector<224x8192xf32> to vector<32x128xf32>
    %96 = arith.addf %94, %95 : vector<32x128xf32>
    %97 = vector.extract_strided_slice %2 {offsets = [192, 1536], sizes = [32, 128], strides = [1, 1]} : vector<224x8192xf32> to vector<32x128xf32>
    %98 = arith.addf %96, %97 : vector<32x128xf32>
    %99 = arith.maximumf %85, %98 : vector<32x128xf32>
    %100 = vector.extract_strided_slice %2 {offsets = [0, 896], sizes = [32, 128], strides = [1, 1]} : vector<224x8192xf32> to vector<32x128xf32>
    %101 = vector.extract_strided_slice %2 {offsets = [32, 1024], sizes = [32, 128], strides = [1, 1]} : vector<224x8192xf32> to vector<32x128xf32>
    %102 = arith.addf %100, %101 : vector<32x128xf32>
    %103 = vector.extract_strided_slice %2 {offsets = [64, 1152], sizes = [32, 128], strides = [1, 1]} : vector<224x8192xf32> to vector<32x128xf32>
    %104 = arith.addf %102, %103 : vector<32x128xf32>
    %105 = vector.extract_strided_slice %2 {offsets = [96, 1280], sizes = [32, 128], strides = [1, 1]} : vector<224x8192xf32> to vector<32x128xf32>
    %106 = arith.addf %104, %105 : vector<32x128xf32>
    %107 = vector.extract_strided_slice %2 {offsets = [128, 1408], sizes = [32, 128], strides = [1, 1]} : vector<224x8192xf32> to vector<32x128xf32>
    %108 = arith.addf %106, %107 : vector<32x128xf32>
    %109 = vector.extract_strided_slice %2 {offsets = [160, 1536], sizes = [32, 128], strides = [1, 1]} : vector<224x8192xf32> to vector<32x128xf32>
    %110 = arith.addf %108, %109 : vector<32x128xf32>
    %111 = vector.extract_strided_slice %2 {offsets = [192, 1664], sizes = [32, 128], strides = [1, 1]} : vector<224x8192xf32> to vector<32x128xf32>
    %112 = arith.addf %110, %111 : vector<32x128xf32>
    %113 = arith.maximumf %99, %112 : vector<32x128xf32>
    %114 = vector.extract_strided_slice %2 {offsets = [0, 1024], sizes = [32, 128], strides = [1, 1]} : vector<224x8192xf32> to vector<32x128xf32>
    %115 = vector.extract_strided_slice %2 {offsets = [32, 1152], sizes = [32, 128], strides = [1, 1]} : vector<224x8192xf32> to vector<32x128xf32>
    %116 = arith.addf %114, %115 : vector<32x128xf32>
    %117 = vector.extract_strided_slice %2 {offsets = [64, 1280], sizes = [32, 128], strides = [1, 1]} : vector<224x8192xf32> to vector<32x128xf32>
    %118 = arith.addf %116, %117 : vector<32x128xf32>
    %119 = vector.extract_strided_slice %2 {offsets = [96, 1408], sizes = [32, 128], strides = [1, 1]} : vector<224x8192xf32> to vector<32x128xf32>
    %120 = arith.addf %118, %119 : vector<32x128xf32>
    %121 = vector.extract_strided_slice %2 {offsets = [128, 1536], sizes = [32, 128], strides = [1, 1]} : vector<224x8192xf32> to vector<32x128xf32>
    %122 = arith.addf %120, %121 : vector<32x128xf32>
    %123 = vector.extract_strided_slice %2 {offsets = [160, 1664], sizes = [32, 128], strides = [1, 1]} : vector<224x8192xf32> to vector<32x128xf32>
    %124 = arith.addf %122, %123 : vector<32x128xf32>
    %125 = vector.extract_strided_slice %2 {offsets = [192, 1792], sizes = [32, 128], strides = [1, 1]} : vector<224x8192xf32> to vector<32x128xf32>
    %126 = arith.addf %124, %125 : vector<32x128xf32>
    %127 = arith.maximumf %113, %126 : vector<32x128xf32>
    %128 = vector.extract_strided_slice %2 {offsets = [0, 1152], sizes = [32, 128], strides = [1, 1]} : vector<224x8192xf32> to vector<32x128xf32>
    %129 = vector.extract_strided_slice %2 {offsets = [32, 1280], sizes = [32, 128], strides = [1, 1]} : vector<224x8192xf32> to vector<32x128xf32>
    %130 = arith.addf %128, %129 : vector<32x128xf32>
    %131 = vector.extract_strided_slice %2 {offsets = [64, 1408], sizes = [32, 128], strides = [1, 1]} : vector<224x8192xf32> to vector<32x128xf32>
    %132 = arith.addf %130, %131 : vector<32x128xf32>
    %133 = vector.extract_strided_slice %2 {offsets = [96, 1536], sizes = [32, 128], strides = [1, 1]} : vector<224x8192xf32> to vector<32x128xf32>
    %134 = arith.addf %132, %133 : vector<32x128xf32>
    %135 = vector.extract_strided_slice %2 {offsets = [128, 1664], sizes = [32, 128], strides = [1, 1]} : vector<224x8192xf32> to vector<32x128xf32>
    %136 = arith.addf %134, %135 : vector<32x128xf32>
    %137 = vector.extract_strided_slice %2 {offsets = [160, 1792], sizes = [32, 128], strides = [1, 1]} : vector<224x8192xf32> to vector<32x128xf32>
    %138 = arith.addf %136, %137 : vector<32x128xf32>
    %139 = vector.extract_strided_slice %2 {offsets = [192, 1920], sizes = [32, 128], strides = [1, 1]} : vector<224x8192xf32> to vector<32x128xf32>
    %140 = arith.addf %138, %139 : vector<32x128xf32>
    %141 = arith.maximumf %127, %140 : vector<32x128xf32>
    %142 = vector.extract_strided_slice %2 {offsets = [0, 1280], sizes = [32, 128], strides = [1, 1]} : vector<224x8192xf32> to vector<32x128xf32>
    %143 = vector.extract_strided_slice %2 {offsets = [32, 1408], sizes = [32, 128], strides = [1, 1]} : vector<224x8192xf32> to vector<32x128xf32>
    %144 = arith.addf %142, %143 : vector<32x128xf32>
    %145 = vector.extract_strided_slice %2 {offsets = [64, 1536], sizes = [32, 128], strides = [1, 1]} : vector<224x8192xf32> to vector<32x128xf32>
    %146 = arith.addf %144, %145 : vector<32x128xf32>
    %147 = vector.extract_strided_slice %2 {offsets = [96, 1664], sizes = [32, 128], strides = [1, 1]} : vector<224x8192xf32> to vector<32x128xf32>
    %148 = arith.addf %146, %147 : vector<32x128xf32>
    %149 = vector.extract_strided_slice %2 {offsets = [128, 1792], sizes = [32, 128], strides = [1, 1]} : vector<224x8192xf32> to vector<32x128xf32>
    %150 = arith.addf %148, %149 : vector<32x128xf32>
    %151 = vector.extract_strided_slice %2 {offsets = [160, 1920], sizes = [32, 128], strides = [1, 1]} : vector<224x8192xf32> to vector<32x128xf32>
    %152 = arith.addf %150, %151 : vector<32x128xf32>
    %153 = vector.extract_strided_slice %2 {offsets = [192, 2048], sizes = [32, 128], strides = [1, 1]} : vector<224x8192xf32> to vector<32x128xf32>
    %154 = arith.addf %152, %153 : vector<32x128xf32>
    %155 = arith.maximumf %141, %154 : vector<32x128xf32>
    %156 = vector.extract_strided_slice %2 {offsets = [0, 1408], sizes = [32, 128], strides = [1, 1]} : vector<224x8192xf32> to vector<32x128xf32>
    %157 = vector.extract_strided_slice %2 {offsets = [32, 1536], sizes = [32, 128], strides = [1, 1]} : vector<224x8192xf32> to vector<32x128xf32>
    %158 = arith.addf %156, %157 : vector<32x128xf32>
    %159 = vector.extract_strided_slice %2 {offsets = [64, 1664], sizes = [32, 128], strides = [1, 1]} : vector<224x8192xf32> to vector<32x128xf32>
    %160 = arith.addf %158, %159 : vector<32x128xf32>
    %161 = vector.extract_strided_slice %2 {offsets = [96, 1792], sizes = [32, 128], strides = [1, 1]} : vector<224x8192xf32> to vector<32x128xf32>
    %162 = arith.addf %160, %161 : vector<32x128xf32>
    %163 = vector.extract_strided_slice %2 {offsets = [128, 1920], sizes = [32, 128], strides = [1, 1]} : vector<224x8192xf32> to vector<32x128xf32>
    %164 = arith.addf %162, %163 : vector<32x128xf32>
    %165 = vector.extract_strided_slice %2 {offsets = [160, 2048], sizes = [32, 128], strides = [1, 1]} : vector<224x8192xf32> to vector<32x128xf32>
    %166 = arith.addf %164, %165 : vector<32x128xf32>
    %167 = vector.extract_strided_slice %2 {offsets = [192, 2176], sizes = [32, 128], strides = [1, 1]} : vector<224x8192xf32> to vector<32x128xf32>
    %168 = arith.addf %166, %167 : vector<32x128xf32>
    %169 = arith.maximumf %155, %168 : vector<32x128xf32>
    %170 = vector.extract_strided_slice %2 {offsets = [0, 1536], sizes = [32, 128], strides = [1, 1]} : vector<224x8192xf32> to vector<32x128xf32>
    %171 = vector.extract_strided_slice %2 {offsets = [32, 1664], sizes = [32, 128], strides = [1, 1]} : vector<224x8192xf32> to vector<32x128xf32>
    %172 = arith.addf %170, %171 : vector<32x128xf32>
    %173 = vector.extract_strided_slice %2 {offsets = [64, 1792], sizes = [32, 128], strides = [1, 1]} : vector<224x8192xf32> to vector<32x128xf32>
    %174 = arith.addf %172, %173 : vector<32x128xf32>
    %175 = vector.extract_strided_slice %2 {offsets = [96, 1920], sizes = [32, 128], strides = [1, 1]} : vector<224x8192xf32> to vector<32x128xf32>
    %176 = arith.addf %174, %175 : vector<32x128xf32>
    %177 = vector.extract_strided_slice %2 {offsets = [128, 2048], sizes = [32, 128], strides = [1, 1]} : vector<224x8192xf32> to vector<32x128xf32>
    %178 = arith.addf %176, %177 : vector<32x128xf32>
    %179 = vector.extract_strided_slice %2 {offsets = [160, 2176], sizes = [32, 128], strides = [1, 1]} : vector<224x8192xf32> to vector<32x128xf32>
    %180 = arith.addf %178, %179 : vector<32x128xf32>
    %181 = vector.extract_strided_slice %2 {offsets = [192, 2304], sizes = [32, 128], strides = [1, 1]} : vector<224x8192xf32> to vector<32x128xf32>
    %182 = arith.addf %180, %181 : vector<32x128xf32>
    %183 = arith.maximumf %169, %182 : vector<32x128xf32>
    %184 = vector.extract_strided_slice %2 {offsets = [0, 1664], sizes = [32, 128], strides = [1, 1]} : vector<224x8192xf32> to vector<32x128xf32>
    %185 = vector.extract_strided_slice %2 {offsets = [32, 1792], sizes = [32, 128], strides = [1, 1]} : vector<224x8192xf32> to vector<32x128xf32>
    %186 = arith.addf %184, %185 : vector<32x128xf32>
    %187 = vector.extract_strided_slice %2 {offsets = [64, 1920], sizes = [32, 128], strides = [1, 1]} : vector<224x8192xf32> to vector<32x128xf32>
    %188 = arith.addf %186, %187 : vector<32x128xf32>
    %189 = vector.extract_strided_slice %2 {offsets = [96, 2048], sizes = [32, 128], strides = [1, 1]} : vector<224x8192xf32> to vector<32x128xf32>
    %190 = arith.addf %188, %189 : vector<32x128xf32>
    %191 = vector.extract_strided_slice %2 {offsets = [128, 2176], sizes = [32, 128], strides = [1, 1]} : vector<224x8192xf32> to vector<32x128xf32>
    %192 = arith.addf %190, %191 : vector<32x128xf32>
    %193 = vector.extract_strided_slice %2 {offsets = [160, 2304], sizes = [32, 128], strides = [1, 1]} : vector<224x8192xf32> to vector<32x128xf32>
    %194 = arith.addf %192, %193 : vector<32x128xf32>
    %195 = vector.extract_strided_slice %2 {offsets = [192, 2432], sizes = [32, 128], strides = [1, 1]} : vector<224x8192xf32> to vector<32x128xf32>
    %196 = arith.addf %194, %195 : vector<32x128xf32>
    %197 = arith.maximumf %183, %196 : vector<32x128xf32>
    %198 = vector.extract_strided_slice %2 {offsets = [0, 1792], sizes = [32, 128], strides = [1, 1]} : vector<224x8192xf32> to vector<32x128xf32>
    %199 = vector.extract_strided_slice %2 {offsets = [32, 1920], sizes = [32, 128], strides = [1, 1]} : vector<224x8192xf32> to vector<32x128xf32>
    %200 = arith.addf %198, %199 : vector<32x128xf32>
    %201 = vector.extract_strided_slice %2 {offsets = [64, 2048], sizes = [32, 128], strides = [1, 1]} : vector<224x8192xf32> to vector<32x128xf32>
    %202 = arith.addf %200, %201 : vector<32x128xf32>
    %203 = vector.extract_strided_slice %2 {offsets = [96, 2176], sizes = [32, 128], strides = [1, 1]} : vector<224x8192xf32> to vector<32x128xf32>
    %204 = arith.addf %202, %203 : vector<32x128xf32>
    %205 = vector.extract_strided_slice %2 {offsets = [128, 2304], sizes = [32, 128], strides = [1, 1]} : vector<224x8192xf32> to vector<32x128xf32>
    %206 = arith.addf %204, %205 : vector<32x128xf32>
    %207 = vector.extract_strided_slice %2 {offsets = [160, 2432], sizes = [32, 128], strides = [1, 1]} : vector<224x8192xf32> to vector<32x128xf32>
    %208 = arith.addf %206, %207 : vector<32x128xf32>
    %209 = vector.extract_strided_slice %2 {offsets = [192, 2560], sizes = [32, 128], strides = [1, 1]} : vector<224x8192xf32> to vector<32x128xf32>
    %210 = arith.addf %208, %209 : vector<32x128xf32>
    %211 = arith.maximumf %197, %210 : vector<32x128xf32>
    %212 = vector.extract_strided_slice %2 {offsets = [0, 1920], sizes = [32, 128], strides = [1, 1]} : vector<224x8192xf32> to vector<32x128xf32>
    %213 = vector.extract_strided_slice %2 {offsets = [32, 2048], sizes = [32, 128], strides = [1, 1]} : vector<224x8192xf32> to vector<32x128xf32>
    %214 = arith.addf %212, %213 : vector<32x128xf32>
    %215 = vector.extract_strided_slice %2 {offsets = [64, 2176], sizes = [32, 128], strides = [1, 1]} : vector<224x8192xf32> to vector<32x128xf32>
    %216 = arith.addf %214, %215 : vector<32x128xf32>
    %217 = vector.extract_strided_slice %2 {offsets = [96, 2304], sizes = [32, 128], strides = [1, 1]} : vector<224x8192xf32> to vector<32x128xf32>
    %218 = arith.addf %216, %217 : vector<32x128xf32>
    %219 = vector.extract_strided_slice %2 {offsets = [128, 2432], sizes = [32, 128], strides = [1, 1]} : vector<224x8192xf32> to vector<32x128xf32>
    %220 = arith.addf %218, %219 : vector<32x128xf32>
    %221 = vector.extract_strided_slice %2 {offsets = [160, 2560], sizes = [32, 128], strides = [1, 1]} : vector<224x8192xf32> to vector<32x128xf32>
    %222 = arith.addf %220, %221 : vector<32x128xf32>
    %223 = vector.extract_strided_slice %2 {offsets = [192, 2688], sizes = [32, 128], strides = [1, 1]} : vector<224x8192xf32> to vector<32x128xf32>
    %224 = arith.addf %222, %223 : vector<32x128xf32>
    %225 = arith.maximumf %211, %224 : vector<32x128xf32>
    %226 = vector.extract_strided_slice %2 {offsets = [0, 2048], sizes = [32, 128], strides = [1, 1]} : vector<224x8192xf32> to vector<32x128xf32>
    %227 = vector.extract_strided_slice %2 {offsets = [32, 2176], sizes = [32, 128], strides = [1, 1]} : vector<224x8192xf32> to vector<32x128xf32>
    %228 = arith.addf %226, %227 : vector<32x128xf32>
    %229 = vector.extract_strided_slice %2 {offsets = [64, 2304], sizes = [32, 128], strides = [1, 1]} : vector<224x8192xf32> to vector<32x128xf32>
    %230 = arith.addf %228, %229 : vector<32x128xf32>
    %231 = vector.extract_strided_slice %2 {offsets = [96, 2432], sizes = [32, 128], strides = [1, 1]} : vector<224x8192xf32> to vector<32x128xf32>
    %232 = arith.addf %230, %231 : vector<32x128xf32>
    %233 = vector.extract_strided_slice %2 {offsets = [128, 2560], sizes = [32, 128], strides = [1, 1]} : vector<224x8192xf32> to vector<32x128xf32>
    %234 = arith.addf %232, %233 : vector<32x128xf32>
    %235 = vector.extract_strided_slice %2 {offsets = [160, 2688], sizes = [32, 128], strides = [1, 1]} : vector<224x8192xf32> to vector<32x128xf32>
    %236 = arith.addf %234, %235 : vector<32x128xf32>
    %237 = vector.extract_strided_slice %2 {offsets = [192, 2816], sizes = [32, 128], strides = [1, 1]} : vector<224x8192xf32> to vector<32x128xf32>
    %238 = arith.addf %236, %237 : vector<32x128xf32>
    %239 = arith.maximumf %225, %238 : vector<32x128xf32>
    %240 = vector.extract_strided_slice %2 {offsets = [0, 2176], sizes = [32, 128], strides = [1, 1]} : vector<224x8192xf32> to vector<32x128xf32>
    %241 = vector.extract_strided_slice %2 {offsets = [32, 2304], sizes = [32, 128], strides = [1, 1]} : vector<224x8192xf32> to vector<32x128xf32>
    %242 = arith.addf %240, %241 : vector<32x128xf32>
    %243 = vector.extract_strided_slice %2 {offsets = [64, 2432], sizes = [32, 128], strides = [1, 1]} : vector<224x8192xf32> to vector<32x128xf32>
    %244 = arith.addf %242, %243 : vector<32x128xf32>
    %245 = vector.extract_strided_slice %2 {offsets = [96, 2560], sizes = [32, 128], strides = [1, 1]} : vector<224x8192xf32> to vector<32x128xf32>
    %246 = arith.addf %244, %245 : vector<32x128xf32>
    %247 = vector.extract_strided_slice %2 {offsets = [128, 2688], sizes = [32, 128], strides = [1, 1]} : vector<224x8192xf32> to vector<32x128xf32>
    %248 = arith.addf %246, %247 : vector<32x128xf32>
    %249 = vector.extract_strided_slice %2 {offsets = [160, 2816], sizes = [32, 128], strides = [1, 1]} : vector<224x8192xf32> to vector<32x128xf32>
    %250 = arith.addf %248, %249 : vector<32x128xf32>
    %251 = vector.extract_strided_slice %2 {offsets = [192, 2944], sizes = [32, 128], strides = [1, 1]} : vector<224x8192xf32> to vector<32x128xf32>
    %252 = arith.addf %250, %251 : vector<32x128xf32>
    %253 = arith.maximumf %239, %252 : vector<32x128xf32>
    %254 = vector.extract_strided_slice %2 {offsets = [0, 2304], sizes = [32, 128], strides = [1, 1]} : vector<224x8192xf32> to vector<32x128xf32>
    %255 = vector.extract_strided_slice %2 {offsets = [32, 2432], sizes = [32, 128], strides = [1, 1]} : vector<224x8192xf32> to vector<32x128xf32>
    %256 = arith.addf %254, %255 : vector<32x128xf32>
    %257 = vector.extract_strided_slice %2 {offsets = [64, 2560], sizes = [32, 128], strides = [1, 1]} : vector<224x8192xf32> to vector<32x128xf32>
    %258 = arith.addf %256, %257 : vector<32x128xf32>
    %259 = vector.extract_strided_slice %2 {offsets = [96, 2688], sizes = [32, 128], strides = [1, 1]} : vector<224x8192xf32> to vector<32x128xf32>
    %260 = arith.addf %258, %259 : vector<32x128xf32>
    %261 = vector.extract_strided_slice %2 {offsets = [128, 2816], sizes = [32, 128], strides = [1, 1]} : vector<224x8192xf32> to vector<32x128xf32>
    %262 = arith.addf %260, %261 : vector<32x128xf32>
    %263 = vector.extract_strided_slice %2 {offsets = [160, 2944], sizes = [32, 128], strides = [1, 1]} : vector<224x8192xf32> to vector<32x128xf32>
    %264 = arith.addf %262, %263 : vector<32x128xf32>
    %265 = vector.extract_strided_slice %2 {offsets = [192, 3072], sizes = [32, 128], strides = [1, 1]} : vector<224x8192xf32> to vector<32x128xf32>
    %266 = arith.addf %264, %265 : vector<32x128xf32>
    %267 = arith.maximumf %253, %266 : vector<32x128xf32>
    %268 = vector.extract_strided_slice %2 {offsets = [0, 2432], sizes = [32, 128], strides = [1, 1]} : vector<224x8192xf32> to vector<32x128xf32>
    %269 = vector.extract_strided_slice %2 {offsets = [32, 2560], sizes = [32, 128], strides = [1, 1]} : vector<224x8192xf32> to vector<32x128xf32>
    %270 = arith.addf %268, %269 : vector<32x128xf32>
    %271 = vector.extract_strided_slice %2 {offsets = [64, 2688], sizes = [32, 128], strides = [1, 1]} : vector<224x8192xf32> to vector<32x128xf32>
    %272 = arith.addf %270, %271 : vector<32x128xf32>
    %273 = vector.extract_strided_slice %2 {offsets = [96, 2816], sizes = [32, 128], strides = [1, 1]} : vector<224x8192xf32> to vector<32x128xf32>
    %274 = arith.addf %272, %273 : vector<32x128xf32>
    %275 = vector.extract_strided_slice %2 {offsets = [128, 2944], sizes = [32, 128], strides = [1, 1]} : vector<224x8192xf32> to vector<32x128xf32>
    %276 = arith.addf %274, %275 : vector<32x128xf32>
    %277 = vector.extract_strided_slice %2 {offsets = [160, 3072], sizes = [32, 128], strides = [1, 1]} : vector<224x8192xf32> to vector<32x128xf32>
    %278 = arith.addf %276, %277 : vector<32x128xf32>
    %279 = vector.extract_strided_slice %2 {offsets = [192, 3200], sizes = [32, 128], strides = [1, 1]} : vector<224x8192xf32> to vector<32x128xf32>
    %280 = arith.addf %278, %279 : vector<32x128xf32>
    %281 = arith.maximumf %267, %280 : vector<32x128xf32>
    %282 = vector.extract_strided_slice %2 {offsets = [0, 2560], sizes = [32, 128], strides = [1, 1]} : vector<224x8192xf32> to vector<32x128xf32>
    %283 = vector.extract_strided_slice %2 {offsets = [32, 2688], sizes = [32, 128], strides = [1, 1]} : vector<224x8192xf32> to vector<32x128xf32>
    %284 = arith.addf %282, %283 : vector<32x128xf32>
    %285 = vector.extract_strided_slice %2 {offsets = [64, 2816], sizes = [32, 128], strides = [1, 1]} : vector<224x8192xf32> to vector<32x128xf32>
    %286 = arith.addf %284, %285 : vector<32x128xf32>
    %287 = vector.extract_strided_slice %2 {offsets = [96, 2944], sizes = [32, 128], strides = [1, 1]} : vector<224x8192xf32> to vector<32x128xf32>
    %288 = arith.addf %286, %287 : vector<32x128xf32>
    %289 = vector.extract_strided_slice %2 {offsets = [128, 3072], sizes = [32, 128], strides = [1, 1]} : vector<224x8192xf32> to vector<32x128xf32>
    %290 = arith.addf %288, %289 : vector<32x128xf32>
    %291 = vector.extract_strided_slice %2 {offsets = [160, 3200], sizes = [32, 128], strides = [1, 1]} : vector<224x8192xf32> to vector<32x128xf32>
    %292 = arith.addf %290, %291 : vector<32x128xf32>
    %293 = vector.extract_strided_slice %2 {offsets = [192, 3328], sizes = [32, 128], strides = [1, 1]} : vector<224x8192xf32> to vector<32x128xf32>
    %294 = arith.addf %292, %293 : vector<32x128xf32>
    %295 = arith.maximumf %281, %294 : vector<32x128xf32>
    %296 = vector.extract_strided_slice %2 {offsets = [0, 2688], sizes = [32, 128], strides = [1, 1]} : vector<224x8192xf32> to vector<32x128xf32>
    %297 = vector.extract_strided_slice %2 {offsets = [32, 2816], sizes = [32, 128], strides = [1, 1]} : vector<224x8192xf32> to vector<32x128xf32>
    %298 = arith.addf %296, %297 : vector<32x128xf32>
    %299 = vector.extract_strided_slice %2 {offsets = [64, 2944], sizes = [32, 128], strides = [1, 1]} : vector<224x8192xf32> to vector<32x128xf32>
    %300 = arith.addf %298, %299 : vector<32x128xf32>
    %301 = vector.extract_strided_slice %2 {offsets = [96, 3072], sizes = [32, 128], strides = [1, 1]} : vector<224x8192xf32> to vector<32x128xf32>
    %302 = arith.addf %300, %301 : vector<32x128xf32>
    %303 = vector.extract_strided_slice %2 {offsets = [128, 3200], sizes = [32, 128], strides = [1, 1]} : vector<224x8192xf32> to vector<32x128xf32>
    %304 = arith.addf %302, %303 : vector<32x128xf32>
    %305 = vector.extract_strided_slice %2 {offsets = [160, 3328], sizes = [32, 128], strides = [1, 1]} : vector<224x8192xf32> to vector<32x128xf32>
    %306 = arith.addf %304, %305 : vector<32x128xf32>
    %307 = vector.extract_strided_slice %2 {offsets = [192, 3456], sizes = [32, 128], strides = [1, 1]} : vector<224x8192xf32> to vector<32x128xf32>
    %308 = arith.addf %306, %307 : vector<32x128xf32>
    %309 = arith.maximumf %295, %308 : vector<32x128xf32>
    %310 = vector.extract_strided_slice %2 {offsets = [0, 2816], sizes = [32, 128], strides = [1, 1]} : vector<224x8192xf32> to vector<32x128xf32>
    %311 = vector.extract_strided_slice %2 {offsets = [32, 2944], sizes = [32, 128], strides = [1, 1]} : vector<224x8192xf32> to vector<32x128xf32>
    %312 = arith.addf %310, %311 : vector<32x128xf32>
    %313 = vector.extract_strided_slice %2 {offsets = [64, 3072], sizes = [32, 128], strides = [1, 1]} : vector<224x8192xf32> to vector<32x128xf32>
    %314 = arith.addf %312, %313 : vector<32x128xf32>
    %315 = vector.extract_strided_slice %2 {offsets = [96, 3200], sizes = [32, 128], strides = [1, 1]} : vector<224x8192xf32> to vector<32x128xf32>
    %316 = arith.addf %314, %315 : vector<32x128xf32>
    %317 = vector.extract_strided_slice %2 {offsets = [128, 3328], sizes = [32, 128], strides = [1, 1]} : vector<224x8192xf32> to vector<32x128xf32>
    %318 = arith.addf %316, %317 : vector<32x128xf32>
    %319 = vector.extract_strided_slice %2 {offsets = [160, 3456], sizes = [32, 128], strides = [1, 1]} : vector<224x8192xf32> to vector<32x128xf32>
    %320 = arith.addf %318, %319 : vector<32x128xf32>
    %321 = vector.extract_strided_slice %2 {offsets = [192, 3584], sizes = [32, 128], strides = [1, 1]} : vector<224x8192xf32> to vector<32x128xf32>
    %322 = arith.addf %320, %321 : vector<32x128xf32>
    %323 = arith.maximumf %309, %322 : vector<32x128xf32>
    %324 = vector.extract_strided_slice %2 {offsets = [0, 2944], sizes = [32, 128], strides = [1, 1]} : vector<224x8192xf32> to vector<32x128xf32>
    %325 = vector.extract_strided_slice %2 {offsets = [32, 3072], sizes = [32, 128], strides = [1, 1]} : vector<224x8192xf32> to vector<32x128xf32>
    %326 = arith.addf %324, %325 : vector<32x128xf32>
    %327 = vector.extract_strided_slice %2 {offsets = [64, 3200], sizes = [32, 128], strides = [1, 1]} : vector<224x8192xf32> to vector<32x128xf32>
    %328 = arith.addf %326, %327 : vector<32x128xf32>
    %329 = vector.extract_strided_slice %2 {offsets = [96, 3328], sizes = [32, 128], strides = [1, 1]} : vector<224x8192xf32> to vector<32x128xf32>
    %330 = arith.addf %328, %329 : vector<32x128xf32>
    %331 = vector.extract_strided_slice %2 {offsets = [128, 3456], sizes = [32, 128], strides = [1, 1]} : vector<224x8192xf32> to vector<32x128xf32>
    %332 = arith.addf %330, %331 : vector<32x128xf32>
    %333 = vector.extract_strided_slice %2 {offsets = [160, 3584], sizes = [32, 128], strides = [1, 1]} : vector<224x8192xf32> to vector<32x128xf32>
    %334 = arith.addf %332, %333 : vector<32x128xf32>
    %335 = vector.extract_strided_slice %2 {offsets = [192, 3712], sizes = [32, 128], strides = [1, 1]} : vector<224x8192xf32> to vector<32x128xf32>
    %336 = arith.addf %334, %335 : vector<32x128xf32>
    %337 = arith.maximumf %323, %336 : vector<32x128xf32>
    %338 = vector.extract_strided_slice %2 {offsets = [0, 3072], sizes = [32, 128], strides = [1, 1]} : vector<224x8192xf32> to vector<32x128xf32>
    %339 = vector.extract_strided_slice %2 {offsets = [32, 3200], sizes = [32, 128], strides = [1, 1]} : vector<224x8192xf32> to vector<32x128xf32>
    %340 = arith.addf %338, %339 : vector<32x128xf32>
    %341 = vector.extract_strided_slice %2 {offsets = [64, 3328], sizes = [32, 128], strides = [1, 1]} : vector<224x8192xf32> to vector<32x128xf32>
    %342 = arith.addf %340, %341 : vector<32x128xf32>
    %343 = vector.extract_strided_slice %2 {offsets = [96, 3456], sizes = [32, 128], strides = [1, 1]} : vector<224x8192xf32> to vector<32x128xf32>
    %344 = arith.addf %342, %343 : vector<32x128xf32>
    %345 = vector.extract_strided_slice %2 {offsets = [128, 3584], sizes = [32, 128], strides = [1, 1]} : vector<224x8192xf32> to vector<32x128xf32>
    %346 = arith.addf %344, %345 : vector<32x128xf32>
    %347 = vector.extract_strided_slice %2 {offsets = [160, 3712], sizes = [32, 128], strides = [1, 1]} : vector<224x8192xf32> to vector<32x128xf32>
    %348 = arith.addf %346, %347 : vector<32x128xf32>
    %349 = vector.extract_strided_slice %2 {offsets = [192, 3840], sizes = [32, 128], strides = [1, 1]} : vector<224x8192xf32> to vector<32x128xf32>
    %350 = arith.addf %348, %349 : vector<32x128xf32>
    %351 = arith.maximumf %337, %350 : vector<32x128xf32>
    %352 = vector.extract_strided_slice %2 {offsets = [0, 3200], sizes = [32, 128], strides = [1, 1]} : vector<224x8192xf32> to vector<32x128xf32>
    %353 = vector.extract_strided_slice %2 {offsets = [32, 3328], sizes = [32, 128], strides = [1, 1]} : vector<224x8192xf32> to vector<32x128xf32>
    %354 = arith.addf %352, %353 : vector<32x128xf32>
    %355 = vector.extract_strided_slice %2 {offsets = [64, 3456], sizes = [32, 128], strides = [1, 1]} : vector<224x8192xf32> to vector<32x128xf32>
    %356 = arith.addf %354, %355 : vector<32x128xf32>
    %357 = vector.extract_strided_slice %2 {offsets = [96, 3584], sizes = [32, 128], strides = [1, 1]} : vector<224x8192xf32> to vector<32x128xf32>
    %358 = arith.addf %356, %357 : vector<32x128xf32>
    %359 = vector.extract_strided_slice %2 {offsets = [128, 3712], sizes = [32, 128], strides = [1, 1]} : vector<224x8192xf32> to vector<32x128xf32>
    %360 = arith.addf %358, %359 : vector<32x128xf32>
    %361 = vector.extract_strided_slice %2 {offsets = [160, 3840], sizes = [32, 128], strides = [1, 1]} : vector<224x8192xf32> to vector<32x128xf32>
    %362 = arith.addf %360, %361 : vector<32x128xf32>
    %363 = vector.extract_strided_slice %2 {offsets = [192, 3968], sizes = [32, 128], strides = [1, 1]} : vector<224x8192xf32> to vector<32x128xf32>
    %364 = arith.addf %362, %363 : vector<32x128xf32>
    %365 = arith.maximumf %351, %364 : vector<32x128xf32>
    %366 = vector.extract_strided_slice %2 {offsets = [0, 3328], sizes = [32, 128], strides = [1, 1]} : vector<224x8192xf32> to vector<32x128xf32>
    %367 = vector.extract_strided_slice %2 {offsets = [32, 3456], sizes = [32, 128], strides = [1, 1]} : vector<224x8192xf32> to vector<32x128xf32>
    %368 = arith.addf %366, %367 : vector<32x128xf32>
    %369 = vector.extract_strided_slice %2 {offsets = [64, 3584], sizes = [32, 128], strides = [1, 1]} : vector<224x8192xf32> to vector<32x128xf32>
    %370 = arith.addf %368, %369 : vector<32x128xf32>
    %371 = vector.extract_strided_slice %2 {offsets = [96, 3712], sizes = [32, 128], strides = [1, 1]} : vector<224x8192xf32> to vector<32x128xf32>
    %372 = arith.addf %370, %371 : vector<32x128xf32>
    %373 = vector.extract_strided_slice %2 {offsets = [128, 3840], sizes = [32, 128], strides = [1, 1]} : vector<224x8192xf32> to vector<32x128xf32>
    %374 = arith.addf %372, %373 : vector<32x128xf32>
    %375 = vector.extract_strided_slice %2 {offsets = [160, 3968], sizes = [32, 128], strides = [1, 1]} : vector<224x8192xf32> to vector<32x128xf32>
    %376 = arith.addf %374, %375 : vector<32x128xf32>
    %377 = vector.extract_strided_slice %2 {offsets = [192, 4096], sizes = [32, 128], strides = [1, 1]} : vector<224x8192xf32> to vector<32x128xf32>
    %378 = arith.addf %376, %377 : vector<32x128xf32>
    %379 = arith.maximumf %365, %378 : vector<32x128xf32>
    %380 = vector.extract_strided_slice %2 {offsets = [0, 3456], sizes = [32, 128], strides = [1, 1]} : vector<224x8192xf32> to vector<32x128xf32>
    %381 = vector.extract_strided_slice %2 {offsets = [32, 3584], sizes = [32, 128], strides = [1, 1]} : vector<224x8192xf32> to vector<32x128xf32>
    %382 = arith.addf %380, %381 : vector<32x128xf32>
    %383 = vector.extract_strided_slice %2 {offsets = [64, 3712], sizes = [32, 128], strides = [1, 1]} : vector<224x8192xf32> to vector<32x128xf32>
    %384 = arith.addf %382, %383 : vector<32x128xf32>
    %385 = vector.extract_strided_slice %2 {offsets = [96, 3840], sizes = [32, 128], strides = [1, 1]} : vector<224x8192xf32> to vector<32x128xf32>
    %386 = arith.addf %384, %385 : vector<32x128xf32>
    %387 = vector.extract_strided_slice %2 {offsets = [128, 3968], sizes = [32, 128], strides = [1, 1]} : vector<224x8192xf32> to vector<32x128xf32>
    %388 = arith.addf %386, %387 : vector<32x128xf32>
    %389 = vector.extract_strided_slice %2 {offsets = [160, 4096], sizes = [32, 128], strides = [1, 1]} : vector<224x8192xf32> to vector<32x128xf32>
    %390 = arith.addf %388, %389 : vector<32x128xf32>
    %391 = vector.extract_strided_slice %2 {offsets = [192, 4224], sizes = [32, 128], strides = [1, 1]} : vector<224x8192xf32> to vector<32x128xf32>
    %392 = arith.addf %390, %391 : vector<32x128xf32>
    %393 = arith.maximumf %379, %392 : vector<32x128xf32>
    %394 = vector.extract_strided_slice %2 {offsets = [0, 3584], sizes = [32, 128], strides = [1, 1]} : vector<224x8192xf32> to vector<32x128xf32>
    %395 = vector.extract_strided_slice %2 {offsets = [32, 3712], sizes = [32, 128], strides = [1, 1]} : vector<224x8192xf32> to vector<32x128xf32>
    %396 = arith.addf %394, %395 : vector<32x128xf32>
    %397 = vector.extract_strided_slice %2 {offsets = [64, 3840], sizes = [32, 128], strides = [1, 1]} : vector<224x8192xf32> to vector<32x128xf32>
    %398 = arith.addf %396, %397 : vector<32x128xf32>
    %399 = vector.extract_strided_slice %2 {offsets = [96, 3968], sizes = [32, 128], strides = [1, 1]} : vector<224x8192xf32> to vector<32x128xf32>
    %400 = arith.addf %398, %399 : vector<32x128xf32>
    %401 = vector.extract_strided_slice %2 {offsets = [128, 4096], sizes = [32, 128], strides = [1, 1]} : vector<224x8192xf32> to vector<32x128xf32>
    %402 = arith.addf %400, %401 : vector<32x128xf32>
    %403 = vector.extract_strided_slice %2 {offsets = [160, 4224], sizes = [32, 128], strides = [1, 1]} : vector<224x8192xf32> to vector<32x128xf32>
    %404 = arith.addf %402, %403 : vector<32x128xf32>
    %405 = vector.extract_strided_slice %2 {offsets = [192, 4352], sizes = [32, 128], strides = [1, 1]} : vector<224x8192xf32> to vector<32x128xf32>
    %406 = arith.addf %404, %405 : vector<32x128xf32>
    %407 = arith.maximumf %393, %406 : vector<32x128xf32>
    %408 = vector.extract_strided_slice %2 {offsets = [0, 3712], sizes = [32, 128], strides = [1, 1]} : vector<224x8192xf32> to vector<32x128xf32>
    %409 = vector.extract_strided_slice %2 {offsets = [32, 3840], sizes = [32, 128], strides = [1, 1]} : vector<224x8192xf32> to vector<32x128xf32>
    %410 = arith.addf %408, %409 : vector<32x128xf32>
    %411 = vector.extract_strided_slice %2 {offsets = [64, 3968], sizes = [32, 128], strides = [1, 1]} : vector<224x8192xf32> to vector<32x128xf32>
    %412 = arith.addf %410, %411 : vector<32x128xf32>
    %413 = vector.extract_strided_slice %2 {offsets = [96, 4096], sizes = [32, 128], strides = [1, 1]} : vector<224x8192xf32> to vector<32x128xf32>
    %414 = arith.addf %412, %413 : vector<32x128xf32>
    %415 = vector.extract_strided_slice %2 {offsets = [128, 4224], sizes = [32, 128], strides = [1, 1]} : vector<224x8192xf32> to vector<32x128xf32>
    %416 = arith.addf %414, %415 : vector<32x128xf32>
    %417 = vector.extract_strided_slice %2 {offsets = [160, 4352], sizes = [32, 128], strides = [1, 1]} : vector<224x8192xf32> to vector<32x128xf32>
    %418 = arith.addf %416, %417 : vector<32x128xf32>
    %419 = vector.extract_strided_slice %2 {offsets = [192, 4480], sizes = [32, 128], strides = [1, 1]} : vector<224x8192xf32> to vector<32x128xf32>
    %420 = arith.addf %418, %419 : vector<32x128xf32>
    %421 = arith.maximumf %407, %420 : vector<32x128xf32>
    %422 = vector.extract_strided_slice %2 {offsets = [0, 3840], sizes = [32, 128], strides = [1, 1]} : vector<224x8192xf32> to vector<32x128xf32>
    %423 = vector.extract_strided_slice %2 {offsets = [32, 3968], sizes = [32, 128], strides = [1, 1]} : vector<224x8192xf32> to vector<32x128xf32>
    %424 = arith.addf %422, %423 : vector<32x128xf32>
    %425 = vector.extract_strided_slice %2 {offsets = [64, 4096], sizes = [32, 128], strides = [1, 1]} : vector<224x8192xf32> to vector<32x128xf32>
    %426 = arith.addf %424, %425 : vector<32x128xf32>
    %427 = vector.extract_strided_slice %2 {offsets = [96, 4224], sizes = [32, 128], strides = [1, 1]} : vector<224x8192xf32> to vector<32x128xf32>
    %428 = arith.addf %426, %427 : vector<32x128xf32>
    %429 = vector.extract_strided_slice %2 {offsets = [128, 4352], sizes = [32, 128], strides = [1, 1]} : vector<224x8192xf32> to vector<32x128xf32>
    %430 = arith.addf %428, %429 : vector<32x128xf32>
    %431 = vector.extract_strided_slice %2 {offsets = [160, 4480], sizes = [32, 128], strides = [1, 1]} : vector<224x8192xf32> to vector<32x128xf32>
    %432 = arith.addf %430, %431 : vector<32x128xf32>
    %433 = vector.extract_strided_slice %2 {offsets = [192, 4608], sizes = [32, 128], strides = [1, 1]} : vector<224x8192xf32> to vector<32x128xf32>
    %434 = arith.addf %432, %433 : vector<32x128xf32>
    %435 = arith.maximumf %421, %434 : vector<32x128xf32>
    %436 = vector.extract_strided_slice %2 {offsets = [0, 3968], sizes = [32, 128], strides = [1, 1]} : vector<224x8192xf32> to vector<32x128xf32>
    %437 = vector.extract_strided_slice %2 {offsets = [32, 4096], sizes = [32, 128], strides = [1, 1]} : vector<224x8192xf32> to vector<32x128xf32>
    %438 = arith.addf %436, %437 : vector<32x128xf32>
    %439 = vector.extract_strided_slice %2 {offsets = [64, 4224], sizes = [32, 128], strides = [1, 1]} : vector<224x8192xf32> to vector<32x128xf32>
    %440 = arith.addf %438, %439 : vector<32x128xf32>
    %441 = vector.extract_strided_slice %2 {offsets = [96, 4352], sizes = [32, 128], strides = [1, 1]} : vector<224x8192xf32> to vector<32x128xf32>
    %442 = arith.addf %440, %441 : vector<32x128xf32>
    %443 = vector.extract_strided_slice %2 {offsets = [128, 4480], sizes = [32, 128], strides = [1, 1]} : vector<224x8192xf32> to vector<32x128xf32>
    %444 = arith.addf %442, %443 : vector<32x128xf32>
    %445 = vector.extract_strided_slice %2 {offsets = [160, 4608], sizes = [32, 128], strides = [1, 1]} : vector<224x8192xf32> to vector<32x128xf32>
    %446 = arith.addf %444, %445 : vector<32x128xf32>
    %447 = vector.extract_strided_slice %2 {offsets = [192, 4736], sizes = [32, 128], strides = [1, 1]} : vector<224x8192xf32> to vector<32x128xf32>
    %448 = arith.addf %446, %447 : vector<32x128xf32>
    %449 = arith.maximumf %435, %448 : vector<32x128xf32>
    %450 = vector.extract_strided_slice %2 {offsets = [0, 4096], sizes = [32, 128], strides = [1, 1]} : vector<224x8192xf32> to vector<32x128xf32>
    %451 = vector.extract_strided_slice %2 {offsets = [32, 4224], sizes = [32, 128], strides = [1, 1]} : vector<224x8192xf32> to vector<32x128xf32>
    %452 = arith.addf %450, %451 : vector<32x128xf32>
    %453 = vector.extract_strided_slice %2 {offsets = [64, 4352], sizes = [32, 128], strides = [1, 1]} : vector<224x8192xf32> to vector<32x128xf32>
    %454 = arith.addf %452, %453 : vector<32x128xf32>
    %455 = vector.extract_strided_slice %2 {offsets = [96, 4480], sizes = [32, 128], strides = [1, 1]} : vector<224x8192xf32> to vector<32x128xf32>
    %456 = arith.addf %454, %455 : vector<32x128xf32>
    %457 = vector.extract_strided_slice %2 {offsets = [128, 4608], sizes = [32, 128], strides = [1, 1]} : vector<224x8192xf32> to vector<32x128xf32>
    %458 = arith.addf %456, %457 : vector<32x128xf32>
    %459 = vector.extract_strided_slice %2 {offsets = [160, 4736], sizes = [32, 128], strides = [1, 1]} : vector<224x8192xf32> to vector<32x128xf32>
    %460 = arith.addf %458, %459 : vector<32x128xf32>
    %461 = vector.extract_strided_slice %2 {offsets = [192, 4864], sizes = [32, 128], strides = [1, 1]} : vector<224x8192xf32> to vector<32x128xf32>
    %462 = arith.addf %460, %461 : vector<32x128xf32>
    %463 = arith.maximumf %449, %462 : vector<32x128xf32>
    %464 = vector.extract_strided_slice %2 {offsets = [0, 4224], sizes = [32, 128], strides = [1, 1]} : vector<224x8192xf32> to vector<32x128xf32>
    %465 = vector.extract_strided_slice %2 {offsets = [32, 4352], sizes = [32, 128], strides = [1, 1]} : vector<224x8192xf32> to vector<32x128xf32>
    %466 = arith.addf %464, %465 : vector<32x128xf32>
    %467 = vector.extract_strided_slice %2 {offsets = [64, 4480], sizes = [32, 128], strides = [1, 1]} : vector<224x8192xf32> to vector<32x128xf32>
    %468 = arith.addf %466, %467 : vector<32x128xf32>
    %469 = vector.extract_strided_slice %2 {offsets = [96, 4608], sizes = [32, 128], strides = [1, 1]} : vector<224x8192xf32> to vector<32x128xf32>
    %470 = arith.addf %468, %469 : vector<32x128xf32>
    %471 = vector.extract_strided_slice %2 {offsets = [128, 4736], sizes = [32, 128], strides = [1, 1]} : vector<224x8192xf32> to vector<32x128xf32>
    %472 = arith.addf %470, %471 : vector<32x128xf32>
    %473 = vector.extract_strided_slice %2 {offsets = [160, 4864], sizes = [32, 128], strides = [1, 1]} : vector<224x8192xf32> to vector<32x128xf32>
    %474 = arith.addf %472, %473 : vector<32x128xf32>
    %475 = vector.extract_strided_slice %2 {offsets = [192, 4992], sizes = [32, 128], strides = [1, 1]} : vector<224x8192xf32> to vector<32x128xf32>
    %476 = arith.addf %474, %475 : vector<32x128xf32>
    %477 = arith.maximumf %463, %476 : vector<32x128xf32>
    %478 = vector.extract_strided_slice %2 {offsets = [0, 4352], sizes = [32, 128], strides = [1, 1]} : vector<224x8192xf32> to vector<32x128xf32>
    %479 = vector.extract_strided_slice %2 {offsets = [32, 4480], sizes = [32, 128], strides = [1, 1]} : vector<224x8192xf32> to vector<32x128xf32>
    %480 = arith.addf %478, %479 : vector<32x128xf32>
    %481 = vector.extract_strided_slice %2 {offsets = [64, 4608], sizes = [32, 128], strides = [1, 1]} : vector<224x8192xf32> to vector<32x128xf32>
    %482 = arith.addf %480, %481 : vector<32x128xf32>
    %483 = vector.extract_strided_slice %2 {offsets = [96, 4736], sizes = [32, 128], strides = [1, 1]} : vector<224x8192xf32> to vector<32x128xf32>
    %484 = arith.addf %482, %483 : vector<32x128xf32>
    %485 = vector.extract_strided_slice %2 {offsets = [128, 4864], sizes = [32, 128], strides = [1, 1]} : vector<224x8192xf32> to vector<32x128xf32>
    %486 = arith.addf %484, %485 : vector<32x128xf32>
    %487 = vector.extract_strided_slice %2 {offsets = [160, 4992], sizes = [32, 128], strides = [1, 1]} : vector<224x8192xf32> to vector<32x128xf32>
    %488 = arith.addf %486, %487 : vector<32x128xf32>
    %489 = vector.extract_strided_slice %2 {offsets = [192, 5120], sizes = [32, 128], strides = [1, 1]} : vector<224x8192xf32> to vector<32x128xf32>
    %490 = arith.addf %488, %489 : vector<32x128xf32>
    %491 = arith.maximumf %477, %490 : vector<32x128xf32>
    %492 = vector.extract_strided_slice %2 {offsets = [0, 4480], sizes = [32, 128], strides = [1, 1]} : vector<224x8192xf32> to vector<32x128xf32>
    %493 = vector.extract_strided_slice %2 {offsets = [32, 4608], sizes = [32, 128], strides = [1, 1]} : vector<224x8192xf32> to vector<32x128xf32>
    %494 = arith.addf %492, %493 : vector<32x128xf32>
    %495 = vector.extract_strided_slice %2 {offsets = [64, 4736], sizes = [32, 128], strides = [1, 1]} : vector<224x8192xf32> to vector<32x128xf32>
    %496 = arith.addf %494, %495 : vector<32x128xf32>
    %497 = vector.extract_strided_slice %2 {offsets = [96, 4864], sizes = [32, 128], strides = [1, 1]} : vector<224x8192xf32> to vector<32x128xf32>
    %498 = arith.addf %496, %497 : vector<32x128xf32>
    %499 = vector.extract_strided_slice %2 {offsets = [128, 4992], sizes = [32, 128], strides = [1, 1]} : vector<224x8192xf32> to vector<32x128xf32>
    %500 = arith.addf %498, %499 : vector<32x128xf32>
    %501 = vector.extract_strided_slice %2 {offsets = [160, 5120], sizes = [32, 128], strides = [1, 1]} : vector<224x8192xf32> to vector<32x128xf32>
    %502 = arith.addf %500, %501 : vector<32x128xf32>
    %503 = vector.extract_strided_slice %2 {offsets = [192, 5248], sizes = [32, 128], strides = [1, 1]} : vector<224x8192xf32> to vector<32x128xf32>
    %504 = arith.addf %502, %503 : vector<32x128xf32>
    %505 = arith.maximumf %491, %504 : vector<32x128xf32>
    %506 = vector.extract_strided_slice %2 {offsets = [0, 4608], sizes = [32, 128], strides = [1, 1]} : vector<224x8192xf32> to vector<32x128xf32>
    %507 = vector.extract_strided_slice %2 {offsets = [32, 4736], sizes = [32, 128], strides = [1, 1]} : vector<224x8192xf32> to vector<32x128xf32>
    %508 = arith.addf %506, %507 : vector<32x128xf32>
    %509 = vector.extract_strided_slice %2 {offsets = [64, 4864], sizes = [32, 128], strides = [1, 1]} : vector<224x8192xf32> to vector<32x128xf32>
    %510 = arith.addf %508, %509 : vector<32x128xf32>
    %511 = vector.extract_strided_slice %2 {offsets = [96, 4992], sizes = [32, 128], strides = [1, 1]} : vector<224x8192xf32> to vector<32x128xf32>
    %512 = arith.addf %510, %511 : vector<32x128xf32>
    %513 = vector.extract_strided_slice %2 {offsets = [128, 5120], sizes = [32, 128], strides = [1, 1]} : vector<224x8192xf32> to vector<32x128xf32>
    %514 = arith.addf %512, %513 : vector<32x128xf32>
    %515 = vector.extract_strided_slice %2 {offsets = [160, 5248], sizes = [32, 128], strides = [1, 1]} : vector<224x8192xf32> to vector<32x128xf32>
    %516 = arith.addf %514, %515 : vector<32x128xf32>
    %517 = vector.extract_strided_slice %2 {offsets = [192, 5376], sizes = [32, 128], strides = [1, 1]} : vector<224x8192xf32> to vector<32x128xf32>
    %518 = arith.addf %516, %517 : vector<32x128xf32>
    %519 = arith.maximumf %505, %518 : vector<32x128xf32>
    %520 = vector.extract_strided_slice %2 {offsets = [0, 4736], sizes = [32, 128], strides = [1, 1]} : vector<224x8192xf32> to vector<32x128xf32>
    %521 = vector.extract_strided_slice %2 {offsets = [32, 4864], sizes = [32, 128], strides = [1, 1]} : vector<224x8192xf32> to vector<32x128xf32>
    %522 = arith.addf %520, %521 : vector<32x128xf32>
    %523 = vector.extract_strided_slice %2 {offsets = [64, 4992], sizes = [32, 128], strides = [1, 1]} : vector<224x8192xf32> to vector<32x128xf32>
    %524 = arith.addf %522, %523 : vector<32x128xf32>
    %525 = vector.extract_strided_slice %2 {offsets = [96, 5120], sizes = [32, 128], strides = [1, 1]} : vector<224x8192xf32> to vector<32x128xf32>
    %526 = arith.addf %524, %525 : vector<32x128xf32>
    %527 = vector.extract_strided_slice %2 {offsets = [128, 5248], sizes = [32, 128], strides = [1, 1]} : vector<224x8192xf32> to vector<32x128xf32>
    %528 = arith.addf %526, %527 : vector<32x128xf32>
    %529 = vector.extract_strided_slice %2 {offsets = [160, 5376], sizes = [32, 128], strides = [1, 1]} : vector<224x8192xf32> to vector<32x128xf32>
    %530 = arith.addf %528, %529 : vector<32x128xf32>
    %531 = vector.extract_strided_slice %2 {offsets = [192, 5504], sizes = [32, 128], strides = [1, 1]} : vector<224x8192xf32> to vector<32x128xf32>
    %532 = arith.addf %530, %531 : vector<32x128xf32>
    %533 = arith.maximumf %519, %532 : vector<32x128xf32>
    %534 = vector.extract_strided_slice %2 {offsets = [0, 4864], sizes = [32, 128], strides = [1, 1]} : vector<224x8192xf32> to vector<32x128xf32>
    %535 = vector.extract_strided_slice %2 {offsets = [32, 4992], sizes = [32, 128], strides = [1, 1]} : vector<224x8192xf32> to vector<32x128xf32>
    %536 = arith.addf %534, %535 : vector<32x128xf32>
    %537 = vector.extract_strided_slice %2 {offsets = [64, 5120], sizes = [32, 128], strides = [1, 1]} : vector<224x8192xf32> to vector<32x128xf32>
    %538 = arith.addf %536, %537 : vector<32x128xf32>
    %539 = vector.extract_strided_slice %2 {offsets = [96, 5248], sizes = [32, 128], strides = [1, 1]} : vector<224x8192xf32> to vector<32x128xf32>
    %540 = arith.addf %538, %539 : vector<32x128xf32>
    %541 = vector.extract_strided_slice %2 {offsets = [128, 5376], sizes = [32, 128], strides = [1, 1]} : vector<224x8192xf32> to vector<32x128xf32>
    %542 = arith.addf %540, %541 : vector<32x128xf32>
    %543 = vector.extract_strided_slice %2 {offsets = [160, 5504], sizes = [32, 128], strides = [1, 1]} : vector<224x8192xf32> to vector<32x128xf32>
    %544 = arith.addf %542, %543 : vector<32x128xf32>
    %545 = vector.extract_strided_slice %2 {offsets = [192, 5632], sizes = [32, 128], strides = [1, 1]} : vector<224x8192xf32> to vector<32x128xf32>
    %546 = arith.addf %544, %545 : vector<32x128xf32>
    %547 = arith.maximumf %533, %546 : vector<32x128xf32>
    %548 = vector.extract_strided_slice %2 {offsets = [0, 4992], sizes = [32, 128], strides = [1, 1]} : vector<224x8192xf32> to vector<32x128xf32>
    %549 = vector.extract_strided_slice %2 {offsets = [32, 5120], sizes = [32, 128], strides = [1, 1]} : vector<224x8192xf32> to vector<32x128xf32>
    %550 = arith.addf %548, %549 : vector<32x128xf32>
    %551 = vector.extract_strided_slice %2 {offsets = [64, 5248], sizes = [32, 128], strides = [1, 1]} : vector<224x8192xf32> to vector<32x128xf32>
    %552 = arith.addf %550, %551 : vector<32x128xf32>
    %553 = vector.extract_strided_slice %2 {offsets = [96, 5376], sizes = [32, 128], strides = [1, 1]} : vector<224x8192xf32> to vector<32x128xf32>
    %554 = arith.addf %552, %553 : vector<32x128xf32>
    %555 = vector.extract_strided_slice %2 {offsets = [128, 5504], sizes = [32, 128], strides = [1, 1]} : vector<224x8192xf32> to vector<32x128xf32>
    %556 = arith.addf %554, %555 : vector<32x128xf32>
    %557 = vector.extract_strided_slice %2 {offsets = [160, 5632], sizes = [32, 128], strides = [1, 1]} : vector<224x8192xf32> to vector<32x128xf32>
    %558 = arith.addf %556, %557 : vector<32x128xf32>
    %559 = vector.extract_strided_slice %2 {offsets = [192, 5760], sizes = [32, 128], strides = [1, 1]} : vector<224x8192xf32> to vector<32x128xf32>
    %560 = arith.addf %558, %559 : vector<32x128xf32>
    %561 = arith.maximumf %547, %560 : vector<32x128xf32>
    %562 = vector.extract_strided_slice %2 {offsets = [0, 5120], sizes = [32, 128], strides = [1, 1]} : vector<224x8192xf32> to vector<32x128xf32>
    %563 = vector.extract_strided_slice %2 {offsets = [32, 5248], sizes = [32, 128], strides = [1, 1]} : vector<224x8192xf32> to vector<32x128xf32>
    %564 = arith.addf %562, %563 : vector<32x128xf32>
    %565 = vector.extract_strided_slice %2 {offsets = [64, 5376], sizes = [32, 128], strides = [1, 1]} : vector<224x8192xf32> to vector<32x128xf32>
    %566 = arith.addf %564, %565 : vector<32x128xf32>
    %567 = vector.extract_strided_slice %2 {offsets = [96, 5504], sizes = [32, 128], strides = [1, 1]} : vector<224x8192xf32> to vector<32x128xf32>
    %568 = arith.addf %566, %567 : vector<32x128xf32>
    %569 = vector.extract_strided_slice %2 {offsets = [128, 5632], sizes = [32, 128], strides = [1, 1]} : vector<224x8192xf32> to vector<32x128xf32>
    %570 = arith.addf %568, %569 : vector<32x128xf32>
    %571 = vector.extract_strided_slice %2 {offsets = [160, 5760], sizes = [32, 128], strides = [1, 1]} : vector<224x8192xf32> to vector<32x128xf32>
    %572 = arith.addf %570, %571 : vector<32x128xf32>
    %573 = vector.extract_strided_slice %2 {offsets = [192, 5888], sizes = [32, 128], strides = [1, 1]} : vector<224x8192xf32> to vector<32x128xf32>
    %574 = arith.addf %572, %573 : vector<32x128xf32>
    %575 = arith.maximumf %561, %574 : vector<32x128xf32>
    %576 = vector.extract_strided_slice %2 {offsets = [0, 5248], sizes = [32, 128], strides = [1, 1]} : vector<224x8192xf32> to vector<32x128xf32>
    %577 = vector.extract_strided_slice %2 {offsets = [32, 5376], sizes = [32, 128], strides = [1, 1]} : vector<224x8192xf32> to vector<32x128xf32>
    %578 = arith.addf %576, %577 : vector<32x128xf32>
    %579 = vector.extract_strided_slice %2 {offsets = [64, 5504], sizes = [32, 128], strides = [1, 1]} : vector<224x8192xf32> to vector<32x128xf32>
    %580 = arith.addf %578, %579 : vector<32x128xf32>
    %581 = vector.extract_strided_slice %2 {offsets = [96, 5632], sizes = [32, 128], strides = [1, 1]} : vector<224x8192xf32> to vector<32x128xf32>
    %582 = arith.addf %580, %581 : vector<32x128xf32>
    %583 = vector.extract_strided_slice %2 {offsets = [128, 5760], sizes = [32, 128], strides = [1, 1]} : vector<224x8192xf32> to vector<32x128xf32>
    %584 = arith.addf %582, %583 : vector<32x128xf32>
    %585 = vector.extract_strided_slice %2 {offsets = [160, 5888], sizes = [32, 128], strides = [1, 1]} : vector<224x8192xf32> to vector<32x128xf32>
    %586 = arith.addf %584, %585 : vector<32x128xf32>
    %587 = vector.extract_strided_slice %2 {offsets = [192, 6016], sizes = [32, 128], strides = [1, 1]} : vector<224x8192xf32> to vector<32x128xf32>
    %588 = arith.addf %586, %587 : vector<32x128xf32>
    %589 = arith.maximumf %575, %588 : vector<32x128xf32>
    %590 = vector.extract_strided_slice %2 {offsets = [0, 5376], sizes = [32, 128], strides = [1, 1]} : vector<224x8192xf32> to vector<32x128xf32>
    %591 = vector.extract_strided_slice %2 {offsets = [32, 5504], sizes = [32, 128], strides = [1, 1]} : vector<224x8192xf32> to vector<32x128xf32>
    %592 = arith.addf %590, %591 : vector<32x128xf32>
    %593 = vector.extract_strided_slice %2 {offsets = [64, 5632], sizes = [32, 128], strides = [1, 1]} : vector<224x8192xf32> to vector<32x128xf32>
    %594 = arith.addf %592, %593 : vector<32x128xf32>
    %595 = vector.extract_strided_slice %2 {offsets = [96, 5760], sizes = [32, 128], strides = [1, 1]} : vector<224x8192xf32> to vector<32x128xf32>
    %596 = arith.addf %594, %595 : vector<32x128xf32>
    %597 = vector.extract_strided_slice %2 {offsets = [128, 5888], sizes = [32, 128], strides = [1, 1]} : vector<224x8192xf32> to vector<32x128xf32>
    %598 = arith.addf %596, %597 : vector<32x128xf32>
    %599 = vector.extract_strided_slice %2 {offsets = [160, 6016], sizes = [32, 128], strides = [1, 1]} : vector<224x8192xf32> to vector<32x128xf32>
    %600 = arith.addf %598, %599 : vector<32x128xf32>
    %601 = vector.extract_strided_slice %2 {offsets = [192, 6144], sizes = [32, 128], strides = [1, 1]} : vector<224x8192xf32> to vector<32x128xf32>
    %602 = arith.addf %600, %601 : vector<32x128xf32>
    %603 = arith.maximumf %589, %602 : vector<32x128xf32>
    %604 = vector.extract_strided_slice %2 {offsets = [0, 5504], sizes = [32, 128], strides = [1, 1]} : vector<224x8192xf32> to vector<32x128xf32>
    %605 = vector.extract_strided_slice %2 {offsets = [32, 5632], sizes = [32, 128], strides = [1, 1]} : vector<224x8192xf32> to vector<32x128xf32>
    %606 = arith.addf %604, %605 : vector<32x128xf32>
    %607 = vector.extract_strided_slice %2 {offsets = [64, 5760], sizes = [32, 128], strides = [1, 1]} : vector<224x8192xf32> to vector<32x128xf32>
    %608 = arith.addf %606, %607 : vector<32x128xf32>
    %609 = vector.extract_strided_slice %2 {offsets = [96, 5888], sizes = [32, 128], strides = [1, 1]} : vector<224x8192xf32> to vector<32x128xf32>
    %610 = arith.addf %608, %609 : vector<32x128xf32>
    %611 = vector.extract_strided_slice %2 {offsets = [128, 6016], sizes = [32, 128], strides = [1, 1]} : vector<224x8192xf32> to vector<32x128xf32>
    %612 = arith.addf %610, %611 : vector<32x128xf32>
    %613 = vector.extract_strided_slice %2 {offsets = [160, 6144], sizes = [32, 128], strides = [1, 1]} : vector<224x8192xf32> to vector<32x128xf32>
    %614 = arith.addf %612, %613 : vector<32x128xf32>
    %615 = vector.extract_strided_slice %2 {offsets = [192, 6272], sizes = [32, 128], strides = [1, 1]} : vector<224x8192xf32> to vector<32x128xf32>
    %616 = arith.addf %614, %615 : vector<32x128xf32>
    %617 = arith.maximumf %603, %616 : vector<32x128xf32>
    %618 = vector.extract_strided_slice %2 {offsets = [0, 5632], sizes = [32, 128], strides = [1, 1]} : vector<224x8192xf32> to vector<32x128xf32>
    %619 = vector.extract_strided_slice %2 {offsets = [32, 5760], sizes = [32, 128], strides = [1, 1]} : vector<224x8192xf32> to vector<32x128xf32>
    %620 = arith.addf %618, %619 : vector<32x128xf32>
    %621 = vector.extract_strided_slice %2 {offsets = [64, 5888], sizes = [32, 128], strides = [1, 1]} : vector<224x8192xf32> to vector<32x128xf32>
    %622 = arith.addf %620, %621 : vector<32x128xf32>
    %623 = vector.extract_strided_slice %2 {offsets = [96, 6016], sizes = [32, 128], strides = [1, 1]} : vector<224x8192xf32> to vector<32x128xf32>
    %624 = arith.addf %622, %623 : vector<32x128xf32>
    %625 = vector.extract_strided_slice %2 {offsets = [128, 6144], sizes = [32, 128], strides = [1, 1]} : vector<224x8192xf32> to vector<32x128xf32>
    %626 = arith.addf %624, %625 : vector<32x128xf32>
    %627 = vector.extract_strided_slice %2 {offsets = [160, 6272], sizes = [32, 128], strides = [1, 1]} : vector<224x8192xf32> to vector<32x128xf32>
    %628 = arith.addf %626, %627 : vector<32x128xf32>
    %629 = vector.extract_strided_slice %2 {offsets = [192, 6400], sizes = [32, 128], strides = [1, 1]} : vector<224x8192xf32> to vector<32x128xf32>
    %630 = arith.addf %628, %629 : vector<32x128xf32>
    %631 = arith.maximumf %617, %630 : vector<32x128xf32>
    %632 = vector.extract_strided_slice %2 {offsets = [0, 5760], sizes = [32, 128], strides = [1, 1]} : vector<224x8192xf32> to vector<32x128xf32>
    %633 = vector.extract_strided_slice %2 {offsets = [32, 5888], sizes = [32, 128], strides = [1, 1]} : vector<224x8192xf32> to vector<32x128xf32>
    %634 = arith.addf %632, %633 : vector<32x128xf32>
    %635 = vector.extract_strided_slice %2 {offsets = [64, 6016], sizes = [32, 128], strides = [1, 1]} : vector<224x8192xf32> to vector<32x128xf32>
    %636 = arith.addf %634, %635 : vector<32x128xf32>
    %637 = vector.extract_strided_slice %2 {offsets = [96, 6144], sizes = [32, 128], strides = [1, 1]} : vector<224x8192xf32> to vector<32x128xf32>
    %638 = arith.addf %636, %637 : vector<32x128xf32>
    %639 = vector.extract_strided_slice %2 {offsets = [128, 6272], sizes = [32, 128], strides = [1, 1]} : vector<224x8192xf32> to vector<32x128xf32>
    %640 = arith.addf %638, %639 : vector<32x128xf32>
    %641 = vector.extract_strided_slice %2 {offsets = [160, 6400], sizes = [32, 128], strides = [1, 1]} : vector<224x8192xf32> to vector<32x128xf32>
    %642 = arith.addf %640, %641 : vector<32x128xf32>
    %643 = vector.extract_strided_slice %2 {offsets = [192, 6528], sizes = [32, 128], strides = [1, 1]} : vector<224x8192xf32> to vector<32x128xf32>
    %644 = arith.addf %642, %643 : vector<32x128xf32>
    %645 = arith.maximumf %631, %644 : vector<32x128xf32>
    %646 = vector.extract_strided_slice %2 {offsets = [0, 5888], sizes = [32, 128], strides = [1, 1]} : vector<224x8192xf32> to vector<32x128xf32>
    %647 = vector.extract_strided_slice %2 {offsets = [32, 6016], sizes = [32, 128], strides = [1, 1]} : vector<224x8192xf32> to vector<32x128xf32>
    %648 = arith.addf %646, %647 : vector<32x128xf32>
    %649 = vector.extract_strided_slice %2 {offsets = [64, 6144], sizes = [32, 128], strides = [1, 1]} : vector<224x8192xf32> to vector<32x128xf32>
    %650 = arith.addf %648, %649 : vector<32x128xf32>
    %651 = vector.extract_strided_slice %2 {offsets = [96, 6272], sizes = [32, 128], strides = [1, 1]} : vector<224x8192xf32> to vector<32x128xf32>
    %652 = arith.addf %650, %651 : vector<32x128xf32>
    %653 = vector.extract_strided_slice %2 {offsets = [128, 6400], sizes = [32, 128], strides = [1, 1]} : vector<224x8192xf32> to vector<32x128xf32>
    %654 = arith.addf %652, %653 : vector<32x128xf32>
    %655 = vector.extract_strided_slice %2 {offsets = [160, 6528], sizes = [32, 128], strides = [1, 1]} : vector<224x8192xf32> to vector<32x128xf32>
    %656 = arith.addf %654, %655 : vector<32x128xf32>
    %657 = vector.extract_strided_slice %2 {offsets = [192, 6656], sizes = [32, 128], strides = [1, 1]} : vector<224x8192xf32> to vector<32x128xf32>
    %658 = arith.addf %656, %657 : vector<32x128xf32>
    %659 = arith.maximumf %645, %658 : vector<32x128xf32>
    %660 = vector.extract_strided_slice %2 {offsets = [0, 6016], sizes = [32, 128], strides = [1, 1]} : vector<224x8192xf32> to vector<32x128xf32>
    %661 = vector.extract_strided_slice %2 {offsets = [32, 6144], sizes = [32, 128], strides = [1, 1]} : vector<224x8192xf32> to vector<32x128xf32>
    %662 = arith.addf %660, %661 : vector<32x128xf32>
    %663 = vector.extract_strided_slice %2 {offsets = [64, 6272], sizes = [32, 128], strides = [1, 1]} : vector<224x8192xf32> to vector<32x128xf32>
    %664 = arith.addf %662, %663 : vector<32x128xf32>
    %665 = vector.extract_strided_slice %2 {offsets = [96, 6400], sizes = [32, 128], strides = [1, 1]} : vector<224x8192xf32> to vector<32x128xf32>
    %666 = arith.addf %664, %665 : vector<32x128xf32>
    %667 = vector.extract_strided_slice %2 {offsets = [128, 6528], sizes = [32, 128], strides = [1, 1]} : vector<224x8192xf32> to vector<32x128xf32>
    %668 = arith.addf %666, %667 : vector<32x128xf32>
    %669 = vector.extract_strided_slice %2 {offsets = [160, 6656], sizes = [32, 128], strides = [1, 1]} : vector<224x8192xf32> to vector<32x128xf32>
    %670 = arith.addf %668, %669 : vector<32x128xf32>
    %671 = vector.extract_strided_slice %2 {offsets = [192, 6784], sizes = [32, 128], strides = [1, 1]} : vector<224x8192xf32> to vector<32x128xf32>
    %672 = arith.addf %670, %671 : vector<32x128xf32>
    %673 = arith.maximumf %659, %672 : vector<32x128xf32>
    %674 = vector.extract_strided_slice %2 {offsets = [0, 6144], sizes = [32, 128], strides = [1, 1]} : vector<224x8192xf32> to vector<32x128xf32>
    %675 = vector.extract_strided_slice %2 {offsets = [32, 6272], sizes = [32, 128], strides = [1, 1]} : vector<224x8192xf32> to vector<32x128xf32>
    %676 = arith.addf %674, %675 : vector<32x128xf32>
    %677 = vector.extract_strided_slice %2 {offsets = [64, 6400], sizes = [32, 128], strides = [1, 1]} : vector<224x8192xf32> to vector<32x128xf32>
    %678 = arith.addf %676, %677 : vector<32x128xf32>
    %679 = vector.extract_strided_slice %2 {offsets = [96, 6528], sizes = [32, 128], strides = [1, 1]} : vector<224x8192xf32> to vector<32x128xf32>
    %680 = arith.addf %678, %679 : vector<32x128xf32>
    %681 = vector.extract_strided_slice %2 {offsets = [128, 6656], sizes = [32, 128], strides = [1, 1]} : vector<224x8192xf32> to vector<32x128xf32>
    %682 = arith.addf %680, %681 : vector<32x128xf32>
    %683 = vector.extract_strided_slice %2 {offsets = [160, 6784], sizes = [32, 128], strides = [1, 1]} : vector<224x8192xf32> to vector<32x128xf32>
    %684 = arith.addf %682, %683 : vector<32x128xf32>
    %685 = vector.extract_strided_slice %2 {offsets = [192, 6912], sizes = [32, 128], strides = [1, 1]} : vector<224x8192xf32> to vector<32x128xf32>
    %686 = arith.addf %684, %685 : vector<32x128xf32>
    %687 = arith.maximumf %673, %686 : vector<32x128xf32>
    %688 = vector.extract_strided_slice %2 {offsets = [0, 6272], sizes = [32, 128], strides = [1, 1]} : vector<224x8192xf32> to vector<32x128xf32>
    %689 = vector.extract_strided_slice %2 {offsets = [32, 6400], sizes = [32, 128], strides = [1, 1]} : vector<224x8192xf32> to vector<32x128xf32>
    %690 = arith.addf %688, %689 : vector<32x128xf32>
    %691 = vector.extract_strided_slice %2 {offsets = [64, 6528], sizes = [32, 128], strides = [1, 1]} : vector<224x8192xf32> to vector<32x128xf32>
    %692 = arith.addf %690, %691 : vector<32x128xf32>
    %693 = vector.extract_strided_slice %2 {offsets = [96, 6656], sizes = [32, 128], strides = [1, 1]} : vector<224x8192xf32> to vector<32x128xf32>
    %694 = arith.addf %692, %693 : vector<32x128xf32>
    %695 = vector.extract_strided_slice %2 {offsets = [128, 6784], sizes = [32, 128], strides = [1, 1]} : vector<224x8192xf32> to vector<32x128xf32>
    %696 = arith.addf %694, %695 : vector<32x128xf32>
    %697 = vector.extract_strided_slice %2 {offsets = [160, 6912], sizes = [32, 128], strides = [1, 1]} : vector<224x8192xf32> to vector<32x128xf32>
    %698 = arith.addf %696, %697 : vector<32x128xf32>
    %699 = vector.extract_strided_slice %2 {offsets = [192, 7040], sizes = [32, 128], strides = [1, 1]} : vector<224x8192xf32> to vector<32x128xf32>
    %700 = arith.addf %698, %699 : vector<32x128xf32>
    %701 = arith.maximumf %687, %700 : vector<32x128xf32>
    %c0_3 = arith.constant 0 : index
    %c0_4 = arith.constant 0 : index
    %702 = vector.load %arg3[%c0_3, %c0_4] : memref<32x1xf32, #tpu.memory_space<vmem>>, vector<32x1xf32>
    %703 = vector.broadcast %702 : vector<32x1xf32> to vector<32x128xf32>
    %704 = arith.addf %701, %703 : vector<32x128xf32>
    %cst_5 = arith.constant 0.000000e+00 : f32
    %705 = vector.broadcast %cst_5 : f32 to vector<32x128xf32>
    %706 = arith.maximumf %704, %705 : vector<32x128xf32>
    %c0_6 = arith.constant 0 : index
    %c0_7 = arith.constant 0 : index
    %707 = vector.load %arg4[%c0_6, %c0_7] : memref<8x32xf32, #tpu.memory_space<vmem>>, vector<8x32xf32>
    %cst_8 = arith.constant dense<0.000000e+00> : vector<8x128xf32>
    %708 = tpu.matmul %707, %706, %cst_8 {dimension_numbers = #tpu.dot_dimension_numbers<[1], [0], [0], [1], [0, 0, 1, 1], [], []>} : vector<8x32xf32>, vector<32x128xf32>, vector<8x128xf32> -> vector<8x128xf32>
    %c0_9 = arith.constant 0 : index
    %c0_10 = arith.constant 0 : index
    %709 = vector.load %arg5[%c0_9, %c0_10] : memref<8x1xf32, #tpu.memory_space<vmem>>, vector<8x1xf32>
    %710 = vector.broadcast %709 : vector<8x1xf32> to vector<8x128xf32>
    %711 = arith.addf %708, %710 : vector<8x128xf32>
    %c0_11 = arith.constant 0 : index
    %c0_12 = arith.constant 0 : index
    %712 = vector.load %arg6[%c0_11, %c0_12] : memref<8x128xf32, #tpu.memory_space<vmem>>, vector<8x128xf32>
    tpu.vector_store %arg6[%c0_11, %c0_12], %711 {strides = array<i32>} : memref<8x128xf32, #tpu.memory_space<vmem>>, vector<8x128xf32>,
    return
  }
  func.func @transform_0(%arg0: i32) -> (i32, i32) {
    %c0_i32 = arith.constant 0 : i32
    %c0_i32_0 = arith.constant 0 : i32
    return %arg0, %c0_i32 : i32, i32
  }
  func.func @transform_1(%arg0: i32) -> (i32, i32) {
    %c0_i32 = arith.constant 0 : i32
    %c0_i32_0 = arith.constant 0 : i32
    %c0_i32_1 = arith.constant 0 : i32
    return %c0_i32, %c0_i32_0 : i32, i32
  }
  func.func @transform_2(%arg0: i32) -> (i32, i32) {
    %c0_i32 = arith.constant 0 : i32
    %c0_i32_0 = arith.constant 0 : i32
    %c0_i32_1 = arith.constant 0 : i32
    return %c0_i32, %c0_i32_0 : i32, i32
  }
  func.func @transform_3(%arg0: i32) -> (i32, i32) {
    %c0_i32 = arith.constant 0 : i32
    %c0_i32_0 = arith.constant 0 : i32
    %c0_i32_1 = arith.constant 0 : i32
    return %c0_i32, %c0_i32_0 : i32, i32
  }
  func.func @transform_4(%arg0: i32) -> (i32, i32) {
    %c0_i32 = arith.constant 0 : i32
    %c0_i32_0 = arith.constant 0 : i32
    %c0_i32_1 = arith.constant 0 : i32
    return %c0_i32, %c0_i32_0 : i32, i32
  }
  func.func @transform_5(%arg0: i32) -> (i32, i32) {
    %c0_i32 = arith.constant 0 : i32
    %c0_i32_0 = arith.constant 0 : i32
    return %c0_i32, %arg0 : i32, i32
  }
}

</mosaic_0001>

<llo_original>
// kernel: cnn_forward.1
$region0: #{cnn_forward.1}
  #allocation0 [shape = 'u32[]', space=smem, size = 0x4, offset = 0x4, fixed_abs, tag = 'smem constant byte address 0x4 - core index']
  #allocation1 [shape = 'u32[144,128]{1,0:T(1,128)}', space=vmem, size = 0x12000, scoped, tag = 'internal scratch']
  %s0 = inlined_call_operand.vmem [shape: bf16[128,8192], index: 0, kind: input, shape index: {}]
  %s1 = inlined_call_operand.vmem [shape: bf16[224,128], index: 1, kind: input, shape index: {}]
  %s2 = inlined_call_operand.vmem [shape: f32[32,1], index: 2, kind: input, shape index: {}]
  %s3 = inlined_call_operand.vmem [shape: f32[8,32], index: 3, kind: input, shape index: {}]
  %s4 = inlined_call_operand.vmem [shape: f32[8,1], index: 4, kind: input, shape index: {}]
  %s5 = inlined_call_operand.vmem [shape: f32[8,128], index: 5, kind: output, shape index: {}]
  %s6 = sld [smem:[#allocation0]]
  $region30: #{cnn_forward.1} parent=0
    _
  %s8 = ssub.s32 1, %s6
  %s9 = scalar_select 0, %s8, %s6
  // Predicated region
  $region2: #{cnn_forward.1} parent=0 // pred_check
    _
  $region3: #{cnn_forward.1} parent=0 // pred_check_branch
    %11 = sbr.rel (0) target = $region5
  $region4: #{cnn_forward.1} parent=0 // pred_region
    _
  $region5: #{cnn_forward.1} parent=0 // pred_fallthru
    _
  // Predicated region
  $region6: #{cnn_forward.1} parent=0 // pred_check
    _
  $region7: #{cnn_forward.1} parent=0 // pred_check_branch
    %13 = sbr.rel (0) target = $region9
  $region8: #{cnn_forward.1} parent=0 // pred_region
    _
  $region9: #{cnn_forward.1} parent=0 // pred_fallthru
    _
  // Predicated region
  $region10: #{cnn_forward.1} parent=0 // pred_check
    _
  $region11: #{cnn_forward.1} parent=0 // pred_check_branch
    %15 = sbr.rel (0) target = $region13
  $region12: #{cnn_forward.1} parent=0 // pred_region
    _
  $region13: #{cnn_forward.1} parent=0 // pred_fallthru
    _
  // Predicated region
  $region14: #{cnn_forward.1} parent=0 // pred_check
    _
  $region15: #{cnn_forward.1} parent=0 // pred_check_branch
    %17 = sbr.rel (0) target = $region17
  $region16: #{cnn_forward.1} parent=0 // pred_region
    _
  $region17: #{cnn_forward.1} parent=0 // pred_fallthru
    _
  // Predicated region
  $region18: #{cnn_forward.1} parent=0 // pred_check
    _
  $region19: #{cnn_forward.1} parent=0 // pred_check_branch
    %19 = sbr.rel (0) target = $region21
  $region20: #{cnn_forward.1} parent=0 // pred_region
    _
  $region21: #{cnn_forward.1} parent=0 // pred_fallthru
    _
  %v21 = vld [vmem:[%s1] sm:$0xf]
  %v22 = vld [vmem:[%s1 + $0x4] sm:$0xf]
  %v23 = vld [vmem:[%s1 + $0x8] sm:$0xf]
  %v24 = vld [vmem:[%s1 + $0xc] sm:$0xf]
  %v25 = vld [vmem:[%s1 + $0x10] sm:$0xf]
  %v26 = vld [vmem:[%s1 + $0x14] sm:$0xf]
  %v27 = vld [vmem:[%s1 + $0x18] sm:$0xf]
  %v28 = vld [vmem:[%s1 + $0x1c] sm:$0xf]
  %v29 = vld [vmem:[%s1 + $0x20] sm:$0xf]
  %v30 = vld [vmem:[%s1 + $0x24] sm:$0xf]
  %v31 = vld [vmem:[%s1 + $0x28] sm:$0xf]
  %v32 = vld [vmem:[%s1 + $0x2c] sm:$0xf]
  %v33 = vld [vmem:[%s1 + $0x30] sm:$0xf]
  %v34 = vld [vmem:[%s1 + $0x34] sm:$0xf]
  %v35 = vld [vmem:[%s1 + $0x38] sm:$0xf]
  %v36 = vld [vmem:[%s1 + $0x3c] sm:$0xf]
  %v37 = vld [vmem:[%s1 + $0x40] sm:$0xf]
  %v38 = vld [vmem:[%s1 + $0x44] sm:$0xf]
  %v39 = vld [vmem:[%s1 + $0x48] sm:$0xf]
  %v40 = vld [vmem:[%s1 + $0x4c] sm:$0xf]
  %v41 = vld [vmem:[%s1 + $0x50] sm:$0xf]
  %v42 = vld [vmem:[%s1 + $0x54] sm:$0xf]
  %v43 = vld [vmem:[%s1 + $0x58] sm:$0xf]
  %v44 = vld [vmem:[%s1 + $0x5c] sm:$0xf]
  %v45 = vld [vmem:[%s1 + $0x60] sm:$0xf]
  %v46 = vld [vmem:[%s1 + $0x64] sm:$0xf]
  %v47 = vld [vmem:[%s1 + $0x68] sm:$0xf]
  %v48 = vld [vmem:[%s1 + $0x6c] sm:$0xf]
  %v49 = vld [vmem:[%s0] sm:$0xff]
  %v50 = vld [vmem:[%s0 + $0x8] sm:$0xff]
  %v51 = vld [vmem:[%s0 + $0x10] sm:$0xff]
  %v52 = vld [vmem:[%s0 + $0x18] sm:$0xff]
  %v53 = vld [vmem:[%s0 + $0x20] sm:$0xff]
  %v54 = vld [vmem:[%s0 + $0x28] sm:$0xff]
  %v55 = vld [vmem:[%s0 + $0x30] sm:$0xff]
  %v56 = vld [vmem:[%s0 + $0x38] sm:$0xff]
  %v57 = vld [vmem:[%s0 + $0x40] sm:$0xff]
  %v58 = vld [vmem:[%s0 + $0x48] sm:$0xff]
  %v59 = vld [vmem:[%s0 + $0x50] sm:$0xff]
  %v60 = vld [vmem:[%s0 + $0x58] sm:$0xff]
  %v61 = vld [vmem:[%s0 + $0x60] sm:$0xff]
  %v62 = vld [vmem:[%s0 + $0x68] sm:$0xff]
  %v63 = vld [vmem:[%s0 + $0x70] sm:$0xff]
  %v64 = vld [vmem:[%s0 + $0x78] sm:$0xff]
  %v65 = vld [vmem:[%s0 + $0x80] sm:$0xff]
  %v66 = vld [vmem:[%s0 + $0x88] sm:$0xff]
  %v67 = vld [vmem:[%s0 + $0x90] sm:$0xff]
  %v68 = vld [vmem:[%s0 + $0x98] sm:$0xff]
  %v69 = vld [vmem:[%s0 + $0xa0] sm:$0xff]
  %v70 = vld [vmem:[%s0 + $0xa8] sm:$0xff]
  %v71 = vld [vmem:[%s0 + $0xb0] sm:$0xff]
  %v72 = vld [vmem:[%s0 + $0xb8] sm:$0xff]
  %v73 = vld [vmem:[%s0 + $0xc0] sm:$0xff]
  %v74 = vld [vmem:[%s0 + $0xc8] sm:$0xff]
  %v75 = vld [vmem:[%s0 + $0xd0] sm:$0xff]
  %v76 = vld [vmem:[%s0 + $0xd8] sm:$0xff]
  %v77 = vld [vmem:[%s0 + $0x100] sm:$0xff]
  %v78 = vld [vmem:[%s0 + $0x108] sm:$0xff]
  %v79 = vld [vmem:[%s0 + $0x110] sm:$0xff]
  %v80 = vld [vmem:[%s0 + $0x118] sm:$0xff]
  %v81 = vld [vmem:[%s0 + $0x120] sm:$0xff]
  %v82 = vld [vmem:[%s0 + $0x128] sm:$0xff]
  %v83 = vld [vmem:[%s0 + $0x130] sm:$0xff]
  %v84 = vld [vmem:[%s0 + $0x138] sm:$0xff]
  %v85 = vld [vmem:[%s0 + $0x140] sm:$0xff]
  %v86 = vld [vmem:[%s0 + $0x148] sm:$0xff]
  %v87 = vld [vmem:[%s0 + $0x150] sm:$0xff]
  %v88 = vld [vmem:[%s0 + $0x158] sm:$0xff]
  %v89 = vld [vmem:[%s0 + $0x160] sm:$0xff]
  %v90 = vld [vmem:[%s0 + $0x168] sm:$0xff]
  %v91 = vld [vmem:[%s0 + $0x170] sm:$0xff]
  %v92 = vld [vmem:[%s0 + $0x178] sm:$0xff]
  %v93 = vld [vmem:[%s0 + $0x180] sm:$0xff]
  %v94 = vld [vmem:[%s0 + $0x188] sm:$0xff]
  %v95 = vld [vmem:[%s0 + $0x190] sm:$0xff]
  %v96 = vld [vmem:[%s0 + $0x198] sm:$0xff]
  %v97 = vld [vmem:[%s0 + $0x1a0] sm:$0xff]
  %v98 = vld [vmem:[%s0 + $0x1a8] sm:$0xff]
  %v99 = vld [vmem:[%s0 + $0x1b0] sm:$0xff]
  %v100 = vld [vmem:[%s0 + $0x1b8] sm:$0xff]
  %v101 = vld [vmem:[%s0 + $0x1c0] sm:$0xff]
  %v102 = vld [vmem:[%s0 + $0x1c8] sm:$0xff]
  %v103 = vld [vmem:[%s0 + $0x1d0] sm:$0xff]
  %v104 = vld [vmem:[%s0 + $0x1d8] sm:$0xff]
  %v105 = vld [vmem:[%s0 + $0x200] sm:$0xff]
  %v106 = vld [vmem:[%s0 + $0x208] sm:$0xff]
  %v107 = vld [vmem:[%s0 + $0x210] sm:$0xff]
  %v108 = vld [vmem:[%s0 + $0x218] sm:$0xff]
  %v109 = vld [vmem:[%s0 + $0x220] sm:$0xff]
  %v110 = vld [vmem:[%s0 + $0x228] sm:$0xff]
  %v111 = vld [vmem:[%s0 + $0x230] sm:$0xff]
  %v112 = vld [vmem:[%s0 + $0x238] sm:$0xff]
  %v113 = vld [vmem:[%s0 + $0x240] sm:$0xff]
  %v114 = vld [vmem:[%s0 + $0x248] sm:$0xff]
  %v115 = vld [vmem:[%s0 + $0x250] sm:$0xff]
  %v116 = vld [vmem:[%s0 + $0x258] sm:$0xff]
  %v117 = vld [vmem:[%s0 + $0x260] sm:$0xff]
  %v118 = vld [vmem:[%s0 + $0x268] sm:$0xff]
  %v119 = vld [vmem:[%s0 + $0x270] sm:$0xff]
  %v120 = vld [vmem:[%s0 + $0x278] sm:$0xff]
  %v121 = vld [vmem:[%s0 + $0x280] sm:$0xff]
  %v122 = vld [vmem:[%s0 + $0x288] sm:$0xff]
  %v123 = vld [vmem:[%s0 + $0x290] sm:$0xff]
  %v124 = vld [vmem:[%s0 + $0x298] sm:$0xff]
  %v125 = vld [vmem:[%s0 + $0x2a0] sm:$0xff]
  %v126 = vld [vmem:[%s0 + $0x2a8] sm:$0xff]
  %v127 = vld [vmem:[%s0 + $0x2b0] sm:$0xff]
  %v128 = vld [vmem:[%s0 + $0x2b8] sm:$0xff]
  %v129 = vld [vmem:[%s0 + $0x2c0] sm:$0xff]
  %v130 = vld [vmem:[%s0 + $0x2c8] sm:$0xff]
  %v131 = vld [vmem:[%s0 + $0x2d0] sm:$0xff]
  %v132 = vld [vmem:[%s0 + $0x2d8] sm:$0xff]
  %v133 = vld [vmem:[%s0 + $0x300] sm:$0xff]
  %v134 = vld [vmem:[%s0 + $0x308] sm:$0xff]
  %v135 = vld [vmem:[%s0 + $0x310] sm:$0xff]
  %v136 = vld [vmem:[%s0 + $0x318] sm:$0xff]
  %v137 = vld [vmem:[%s0 + $0x320] sm:$0xff]
  %v138 = vld [vmem:[%s0 + $0x328] sm:$0xff]
  %v139 = vld [vmem:[%s0 + $0x330] sm:$0xff]
  %v140 = vld [vmem:[%s0 + $0x338] sm:$0xff]
  %v141 = vld [vmem:[%s0 + $0x340] sm:$0xff]
  %v142 = vld [vmem:[%s0 + $0x348] sm:$0xff]
  %v143 = vld [vmem:[%s0 + $0x350] sm:$0xff]
  %v144 = vld [vmem:[%s0 + $0x358] sm:$0xff]
  %v145 = vld [vmem:[%s0 + $0x360] sm:$0xff]
  %v146 = vld [vmem:[%s0 + $0x368] sm:$0xff]
  %v147 = vld [vmem:[%s0 + $0x370] sm:$0xff]
  %v148 = vld [vmem:[%s0 + $0x378] sm:$0xff]
  %v149 = vld [vmem:[%s0 + $0x380] sm:$0xff]
  %v150 = vld [vmem:[%s0 + $0x388] sm:$0xff]
  %v151 = vld [vmem:[%s0 + $0x390] sm:$0xff]
  %v152 = vld [vmem:[%s0 + $0x398] sm:$0xff]
  %v153 = vld [vmem:[%s0 + $0x3a0] sm:$0xff]
  %v154 = vld [vmem:[%s0 + $0x3a8] sm:$0xff]
  %v155 = vld [vmem:[%s0 + $0x3b0] sm:$0xff]
  %v156 = vld [vmem:[%s0 + $0x3b8] sm:$0xff]
  %v157 = vld [vmem:[%s0 + $0x3c0] sm:$0xff]
  %v158 = vld [vmem:[%s0 + $0x3c8] sm:$0xff]
  %v159 = vld [vmem:[%s0 + $0x3d0] sm:$0xff]
  %v160 = vld [vmem:[%s0 + $0x3d8] sm:$0xff]
  %v161 = vld [vmem:[%s0 + $0x400] sm:$0xff]
  %v162 = vld [vmem:[%s0 + $0x408] sm:$0xff]
  %v163 = vld [vmem:[%s0 + $0x410] sm:$0xff]
  %v164 = vld [vmem:[%s0 + $0x418] sm:$0xff]
  %v165 = vld [vmem:[%s0 + $0x420] sm:$0xff]
  %v166 = vld [vmem:[%s0 + $0x428] sm:$0xff]
  %v167 = vld [vmem:[%s0 + $0x430] sm:$0xff]
  %v168 = vld [vmem:[%s0 + $0x438] sm:$0xff]
  %v169 = vld [vmem:[%s0 + $0x440] sm:$0xff]
  %v170 = vld [vmem:[%s0 + $0x448] sm:$0xff]
  %v171 = vld [vmem:[%s0 + $0x450] sm:$0xff]
  %v172 = vld [vmem:[%s0 + $0x458] sm:$0xff]
  %v173 = vld [vmem:[%s0 + $0x460] sm:$0xff]
  %v174 = vld [vmem:[%s0 + $0x468] sm:$0xff]
  %v175 = vld [vmem:[%s0 + $0x470] sm:$0xff]
  %v176 = vld [vmem:[%s0 + $0x478] sm:$0xff]
  %v177 = vld [vmem:[%s0 + $0x480] sm:$0xff]
  %v178 = vld [vmem:[%s0 + $0x488] sm:$0xff]
  %v179 = vld [vmem:[%s0 + $0x490] sm:$0xff]
  %v180 = vld [vmem:[%s0 + $0x498] sm:$0xff]
  %v181 = vld [vmem:[%s0 + $0x4a0] sm:$0xff]
  %v182 = vld [vmem:[%s0 + $0x4a8] sm:$0xff]
  %v183 = vld [vmem:[%s0 + $0x4b0] sm:$0xff]
  %v184 = vld [vmem:[%s0 + $0x4b8] sm:$0xff]
  %v185 = vld [vmem:[%s0 + $0x4c0] sm:$0xff]
  %v186 = vld [vmem:[%s0 + $0x4c8] sm:$0xff]
  %v187 = vld [vmem:[%s0 + $0x4d0] sm:$0xff]
  %v188 = vld [vmem:[%s0 + $0x4d8] sm:$0xff]
  %v189 = vld [vmem:[%s0 + $0x500] sm:$0xff]
  %v190 = vld [vmem:[%s0 + $0x508] sm:$0xff]
  %v191 = vld [vmem:[%s0 + $0x510] sm:$0xff]
  %v192 = vld [vmem:[%s0 + $0x518] sm:$0xff]
  %v193 = vld [vmem:[%s0 + $0x520] sm:$0xff]
  %v194 = vld [vmem:[%s0 + $0x528] sm:$0xff]
  %v195 = vld [vmem:[%s0 + $0x530] sm:$0xff]
  %v196 = vld [vmem:[%s0 + $0x538] sm:$0xff]
  %v197 = vld [vmem:[%s0 + $0x540] sm:$0xff]
  %v198 = vld [vmem:[%s0 + $0x548] sm:$0xff]
  %v199 = vld [vmem:[%s0 + $0x550] sm:$0xff]
  %v200 = vld [vmem:[%s0 + $0x558] sm:$0xff]
  %v201 = vld [vmem:[%s0 + $0x560] sm:$0xff]
  %v202 = vld [vmem:[%s0 + $0x568] sm:$0xff]
  %v203 = vld [vmem:[%s0 + $0x570] sm:$0xff]
  %v204 = vld [vmem:[%s0 + $0x578] sm:$0xff]
  %v205 = vld [vmem:[%s0 + $0x580] sm:$0xff]
  %v206 = vld [vmem:[%s0 + $0x588] sm:$0xff]
  %v207 = vld [vmem:[%s0 + $0x590] sm:$0xff]
  %v208 = vld [vmem:[%s0 + $0x598] sm:$0xff]
  %v209 = vld [vmem:[%s0 + $0x5a0] sm:$0xff]
  %v210 = vld [vmem:[%s0 + $0x5a8] sm:$0xff]
  %v211 = vld [vmem:[%s0 + $0x5b0] sm:$0xff]
  %v212 = vld [vmem:[%s0 + $0x5b8] sm:$0xff]
  %v213 = vld [vmem:[%s0 + $0x5c0] sm:$0xff]
  %v214 = vld [vmem:[%s0 + $0x5c8] sm:$0xff]
  %v215 = vld [vmem:[%s0 + $0x5d0] sm:$0xff]
  %v216 = vld [vmem:[%s0 + $0x5d8] sm:$0xff]
  %v217 = vld [vmem:[%s0 + $0x600] sm:$0xff]
  %v218 = vld [vmem:[%s0 + $0x608] sm:$0xff]
  %v219 = vld [vmem:[%s0 + $0x610] sm:$0xff]
  %v220 = vld [vmem:[%s0 + $0x618] sm:$0xff]
  %v221 = vld [vmem:[%s0 + $0x620] sm:$0xff]
  %v222 = vld [vmem:[%s0 + $0x628] sm:$0xff]
  %v223 = vld [vmem:[%s0 + $0x630] sm:$0xff]
  %v224 = vld [vmem:[%s0 + $0x638] sm:$0xff]
  %v225 = vld [vmem:[%s0 + $0x640] sm:$0xff]
  %v226 = vld [vmem:[%s0 + $0x648] sm:$0xff]
  %v227 = vld [vmem:[%s0 + $0x650] sm:$0xff]
  %v228 = vld [vmem:[%s0 + $0x658] sm:$0xff]
  %v229 = vld [vmem:[%s0 + $0x660] sm:$0xff]
  %v230 = vld [vmem:[%s0 + $0x668] sm:$0xff]
  %v231 = vld [vmem:[%s0 + $0x670] sm:$0xff]
  %v232 = vld [vmem:[%s0 + $0x678] sm:$0xff]
  %v233 = vld [vmem:[%s0 + $0x680] sm:$0xff]
  %v234 = vld [vmem:[%s0 + $0x688] sm:$0xff]
  %v235 = vld [vmem:[%s0 + $0x690] sm:$0xff]
  %v236 = vld [vmem:[%s0 + $0x698] sm:$0xff]
  %v237 = vld [vmem:[%s0 + $0x6a0] sm:$0xff]
  %v238 = vld [vmem:[%s0 + $0x6a8] sm:$0xff]
  %v239 = vld [vmem:[%s0 + $0x6b0] sm:$0xff]
  %v240 = vld [vmem:[%s0 + $0x6b8] sm:$0xff]
  %v241 = vld [vmem:[%s0 + $0x6c0] sm:$0xff]
  %v242 = vld [vmem:[%s0 + $0x6c8] sm:$0xff]
  %v243 = vld [vmem:[%s0 + $0x6d0] sm:$0xff]
  %v244 = vld [vmem:[%s0 + $0x6d8] sm:$0xff]
  %v245 = vld [vmem:[%s0 + $0x700] sm:$0xff]
  %v246 = vld [vmem:[%s0 + $0x708] sm:$0xff]
  %v247 = vld [vmem:[%s0 + $0x710] sm:$0xff]
  %v248 = vld [vmem:[%s0 + $0x718] sm:$0xff]
  %v249 = vld [vmem:[%s0 + $0x720] sm:$0xff]
  %v250 = vld [vmem:[%s0 + $0x728] sm:$0xff]
  %v251 = vld [vmem:[%s0 + $0x730] sm:$0xff]
  %v252 = vld [vmem:[%s0 + $0x738] sm:$0xff]
  %v253 = vld [vmem:[%s0 + $0x740] sm:$0xff]
  %v254 = vld [vmem:[%s0 + $0x748] sm:$0xff]
  %v255 = vld [vmem:[%s0 + $0x750] sm:$0xff]
  %v256 = vld [vmem:[%s0 + $0x758] sm:$0xff]
  %v257 = vld [vmem:[%s0 + $0x760] sm:$0xff]
  %v258 = vld [vmem:[%s0 + $0x768] sm:$0xff]
  %v259 = vld [vmem:[%s0 + $0x770] sm:$0xff]
  %v260 = vld [vmem:[%s0 + $0x778] sm:$0xff]
  %v261 = vld [vmem:[%s0 + $0x780] sm:$0xff]
  %v262 = vld [vmem:[%s0 + $0x788] sm:$0xff]
  %v263 = vld [vmem:[%s0 + $0x790] sm:$0xff]
  %v264 = vld [vmem:[%s0 + $0x798] sm:$0xff]
  %v265 = vld [vmem:[%s0 + $0x7a0] sm:$0xff]
  %v266 = vld [vmem:[%s0 + $0x7a8] sm:$0xff]
  %v267 = vld [vmem:[%s0 + $0x7b0] sm:$0xff]
  %v268 = vld [vmem:[%s0 + $0x7b8] sm:$0xff]
  %v269 = vld [vmem:[%s0 + $0x7c0] sm:$0xff]
  %v270 = vld [vmem:[%s0 + $0x7c8] sm:$0xff]
  %v271 = vld [vmem:[%s0 + $0x7d0] sm:$0xff]
  %v272 = vld [vmem:[%s0 + $0x7d8] sm:$0xff]
  %v273 = vld [vmem:[%s0 + $0x800] sm:$0xff]
  %v274 = vld [vmem:[%s0 + $0x808] sm:$0xff]
  %v275 = vld [vmem:[%s0 + $0x810] sm:$0xff]
  %v276 = vld [vmem:[%s0 + $0x818] sm:$0xff]
  %v277 = vld [vmem:[%s0 + $0x820] sm:$0xff]
  %v278 = vld [vmem:[%s0 + $0x828] sm:$0xff]
  %v279 = vld [vmem:[%s0 + $0x830] sm:$0xff]
  %v280 = vld [vmem:[%s0 + $0x838] sm:$0xff]
  %v281 = vld [vmem:[%s0 + $0x840] sm:$0xff]
  %v282 = vld [vmem:[%s0 + $0x848] sm:$0xff]
  %v283 = vld [vmem:[%s0 + $0x850] sm:$0xff]
  %v284 = vld [vmem:[%s0 + $0x858] sm:$0xff]
  %v285 = vld [vmem:[%s0 + $0x860] sm:$0xff]
  %v286 = vld [vmem:[%s0 + $0x868] sm:$0xff]
  %v287 = vld [vmem:[%s0 + $0x870] sm:$0xff]
  %v288 = vld [vmem:[%s0 + $0x878] sm:$0xff]
  %v289 = vld [vmem:[%s0 + $0x880] sm:$0xff]
  %v290 = vld [vmem:[%s0 + $0x888] sm:$0xff]
  %v291 = vld [vmem:[%s0 + $0x890] sm:$0xff]
  %v292 = vld [vmem:[%s0 + $0x898] sm:$0xff]
  %v293 = vld [vmem:[%s0 + $0x8a0] sm:$0xff]
  %v294 = vld [vmem:[%s0 + $0x8a8] sm:$0xff]
  %v295 = vld [vmem:[%s0 + $0x8b0] sm:$0xff]
  %v296 = vld [vmem:[%s0 + $0x8b8] sm:$0xff]
  %v297 = vld [vmem:[%s0 + $0x8c0] sm:$0xff]
  %v298 = vld [vmem:[%s0 + $0x8c8] sm:$0xff]
  %v299 = vld [vmem:[%s0 + $0x8d0] sm:$0xff]
  %v300 = vld [vmem:[%s0 + $0x8d8] sm:$0xff]
  %v301 = vld [vmem:[%s0 + $0x900] sm:$0xff]
  %v302 = vld [vmem:[%s0 + $0x908] sm:$0xff]
  %v303 = vld [vmem:[%s0 + $0x910] sm:$0xff]
  %v304 = vld [vmem:[%s0 + $0x918] sm:$0xff]
  %v305 = vld [vmem:[%s0 + $0x920] sm:$0xff]
  %v306 = vld [vmem:[%s0 + $0x928] sm:$0xff]
  %v307 = vld [vmem:[%s0 + $0x930] sm:$0xff]
  %v308 = vld [vmem:[%s0 + $0x938] sm:$0xff]
  %v309 = vld [vmem:[%s0 + $0x940] sm:$0xff]
  %v310 = vld [vmem:[%s0 + $0x948] sm:$0xff]
  %v311 = vld [vmem:[%s0 + $0x950] sm:$0xff]
  %v312 = vld [vmem:[%s0 + $0x958] sm:$0xff]
  %v313 = vld [vmem:[%s0 + $0x960] sm:$0xff]
  %v314 = vld [vmem:[%s0 + $0x968] sm:$0xff]
  %v315 = vld [vmem:[%s0 + $0x970] sm:$0xff]
  %v316 = vld [vmem:[%s0 + $0x978] sm:$0xff]
  %v317 = vld [vmem:[%s0 + $0x980] sm:$0xff]
  %v318 = vld [vmem:[%s0 + $0x988] sm:$0xff]
  %v319 = vld [vmem:[%s0 + $0x990] sm:$0xff]
  %v320 = vld [vmem:[%s0 + $0x998] sm:$0xff]
  %v321 = vld [vmem:[%s0 + $0x9a0] sm:$0xff]
  %v322 = vld [vmem:[%s0 + $0x9a8] sm:$0xff]
  %v323 = vld [vmem:[%s0 + $0x9b0] sm:$0xff]
  %v324 = vld [vmem:[%s0 + $0x9b8] sm:$0xff]
  %v325 = vld [vmem:[%s0 + $0x9c0] sm:$0xff]
  %v326 = vld [vmem:[%s0 + $0x9c8] sm:$0xff]
  %v327 = vld [vmem:[%s0 + $0x9d0] sm:$0xff]
  %v328 = vld [vmem:[%s0 + $0x9d8] sm:$0xff]
  %v329 = vld [vmem:[%s0 + $0xa00] sm:$0xff]
  %v330 = vld [vmem:[%s0 + $0xa08] sm:$0xff]
  %v331 = vld [vmem:[%s0 + $0xa10] sm:$0xff]
  %v332 = vld [vmem:[%s0 + $0xa18] sm:$0xff]
  %v333 = vld [vmem:[%s0 + $0xa20] sm:$0xff]
  %v334 = vld [vmem:[%s0 + $0xa28] sm:$0xff]
  %v335 = vld [vmem:[%s0 + $0xa30] sm:$0xff]
  %v336 = vld [vmem:[%s0 + $0xa38] sm:$0xff]
  %v337 = vld [vmem:[%s0 + $0xa40] sm:$0xff]
  %v338 = vld [vmem:[%s0 + $0xa48] sm:$0xff]
  %v339 = vld [vmem:[%s0 + $0xa50] sm:$0xff]
  %v340 = vld [vmem:[%s0 + $0xa58] sm:$0xff]
  %v341 = vld [vmem:[%s0 + $0xa60] sm:$0xff]
  %v342 = vld [vmem:[%s0 + $0xa68] sm:$0xff]
  %v343 = vld [vmem:[%s0 + $0xa70] sm:$0xff]
  %v344 = vld [vmem:[%s0 + $0xa78] sm:$0xff]
  %v345 = vld [vmem:[%s0 + $0xa80] sm:$0xff]
  %v346 = vld [vmem:[%s0 + $0xa88] sm:$0xff]
  %v347 = vld [vmem:[%s0 + $0xa90] sm:$0xff]
  %v348 = vld [vmem:[%s0 + $0xa98] sm:$0xff]
  %v349 = vld [vmem:[%s0 + $0xaa0] sm:$0xff]
  %v350 = vld [vmem:[%s0 + $0xaa8] sm:$0xff]
  %v351 = vld [vmem:[%s0 + $0xab0] sm:$0xff]
  %v352 = vld [vmem:[%s0 + $0xab8] sm:$0xff]
  %v353 = vld [vmem:[%s0 + $0xac0] sm:$0xff]
  %v354 = vld [vmem:[%s0 + $0xac8] sm:$0xff]
  %v355 = vld [vmem:[%s0 + $0xad0] sm:$0xff]
  %v356 = vld [vmem:[%s0 + $0xad8] sm:$0xff]
  %v357 = vld [vmem:[%s0 + $0xb00] sm:$0xff]
  %v358 = vld [vmem:[%s0 + $0xb08] sm:$0xff]
  %v359 = vld [vmem:[%s0 + $0xb10] sm:$0xff]
  %v360 = vld [vmem:[%s0 + $0xb18] sm:$0xff]
  %v361 = vld [vmem:[%s0 + $0xb20] sm:$0xff]
  %v362 = vld [vmem:[%s0 + $0xb28] sm:$0xff]
  %v363 = vld [vmem:[%s0 + $0xb30] sm:$0xff]
  %v364 = vld [vmem:[%s0 + $0xb38] sm:$0xff]
  %v365 = vld [vmem:[%s0 + $0xb40] sm:$0xff]
  %v366 = vld [vmem:[%s0 + $0xb48] sm:$0xff]
  %v367 = vld [vmem:[%s0 + $0xb50] sm:$0xff]
  %v368 = vld [vmem:[%s0 + $0xb58] sm:$0xff]
  %v369 = vld [vmem:[%s0 + $0xb60] sm:$0xff]
  %v370 = vld [vmem:[%s0 + $0xb68] sm:$0xff]
  %v371 = vld [vmem:[%s0 + $0xb70] sm:$0xff]
  %v372 = vld [vmem:[%s0 + $0xb78] sm:$0xff]
  %v373 = vld [vmem:[%s0 + $0xb80] sm:$0xff]
  %v374 = vld [vmem:[%s0 + $0xb88] sm:$0xff]
  %v375 = vld [vmem:[%s0 + $0xb90] sm:$0xff]
  %v376 = vld [vmem:[%s0 + $0xb98] sm:$0xff]
  %v377 = vld [vmem:[%s0 + $0xba0] sm:$0xff]
  %v378 = vld [vmem:[%s0 + $0xba8] sm:$0xff]
  %v379 = vld [vmem:[%s0 + $0xbb0] sm:$0xff]
  %v380 = vld [vmem:[%s0 + $0xbb8] sm:$0xff]
  %v381 = vld [vmem:[%s0 + $0xbc0] sm:$0xff]
  %v382 = vld [vmem:[%s0 + $0xbc8] sm:$0xff]
  %v383 = vld [vmem:[%s0 + $0xbd0] sm:$0xff]
  %v384 = vld [vmem:[%s0 + $0xbd8] sm:$0xff]
  %v385 = vld [vmem:[%s0 + $0xc00] sm:$0xff]
  %v386 = vld [vmem:[%s0 + $0xc08] sm:$0xff]
  %v387 = vld [vmem:[%s0 + $0xc10] sm:$0xff]
  %v388 = vld [vmem:[%s0 + $0xc18] sm:$0xff]
  %v389 = vld [vmem:[%s0 + $0xc20] sm:$0xff]
  %v390 = vld [vmem:[%s0 + $0xc28] sm:$0xff]
  %v391 = vld [vmem:[%s0 + $0xc30] sm:$0xff]
  %v392 = vld [vmem:[%s0 + $0xc38] sm:$0xff]
  %v393 = vld [vmem:[%s0 + $0xc40] sm:$0xff]
  %v394 = vld [vmem:[%s0 + $0xc48] sm:$0xff]
  %v395 = vld [vmem:[%s0 + $0xc50] sm:$0xff]
  %v396 = vld [vmem:[%s0 + $0xc58] sm:$0xff]
  %v397 = vld [vmem:[%s0 + $0xc60] sm:$0xff]
  %v398 = vld [vmem:[%s0 + $0xc68] sm:$0xff]
  %v399 = vld [vmem:[%s0 + $0xc70] sm:$0xff]
  %v400 = vld [vmem:[%s0 + $0xc78] sm:$0xff]
  %v401 = vld [vmem:[%s0 + $0xc80] sm:$0xff]
  %v402 = vld [vmem:[%s0 + $0xc88] sm:$0xff]
  %v403 = vld [vmem:[%s0 + $0xc90] sm:$0xff]
  %v404 = vld [vmem:[%s0 + $0xc98] sm:$0xff]
  %v405 = vld [vmem:[%s0 + $0xca0] sm:$0xff]
  %v406 = vld [vmem:[%s0 + $0xca8] sm:$0xff]
  %v407 = vld [vmem:[%s0 + $0xcb0] sm:$0xff]
  %v408 = vld [vmem:[%s0 + $0xcb8] sm:$0xff]
  %v409 = vld [vmem:[%s0 + $0xcc0] sm:$0xff]
  %v410 = vld [vmem:[%s0 + $0xcc8] sm:$0xff]
  %v411 = vld [vmem:[%s0 + $0xcd0] sm:$0xff]
  %v412 = vld [vmem:[%s0 + $0xcd8] sm:$0xff]
  %v413 = vld [vmem:[%s0 + $0xd00] sm:$0xff]
  %v414 = vld [vmem:[%s0 + $0xd08] sm:$0xff]
  %v415 = vld [vmem:[%s0 + $0xd10] sm:$0xff]
  %v416 = vld [vmem:[%s0 + $0xd18] sm:$0xff]
  %v417 = vld [vmem:[%s0 + $0xd20] sm:$0xff]
  %v418 = vld [vmem:[%s0 + $0xd28] sm:$0xff]
  %v419 = vld [vmem:[%s0 + $0xd30] sm:$0xff]
  %v420 = vld [vmem:[%s0 + $0xd38] sm:$0xff]
  %v421 = vld [vmem:[%s0 + $0xd40] sm:$0xff]
  %v422 = vld [vmem:[%s0 + $0xd48] sm:$0xff]
  %v423 = vld [vmem:[%s0 + $0xd50] sm:$0xff]
  %v424 = vld [vmem:[%s0 + $0xd58] sm:$0xff]
  %v425 = vld [vmem:[%s0 + $0xd60] sm:$0xff]
  %v426 = vld [vmem:[%s0 + $0xd68] sm:$0xff]
  %v427 = vld [vmem:[%s0 + $0xd70] sm:$0xff]
  %v428 = vld [vmem:[%s0 + $0xd78] sm:$0xff]
  %v429 = vld [vmem:[%s0 + $0xd80] sm:$0xff]
  %v430 = vld [vmem:[%s0 + $0xd88] sm:$0xff]
  %v431 = vld [vmem:[%s0 + $0xd90] sm:$0xff]
  %v432 = vld [vmem:[%s0 + $0xd98] sm:$0xff]
  %v433 = vld [vmem:[%s0 + $0xda0] sm:$0xff]
  %v434 = vld [vmem:[%s0 + $0xda8] sm:$0xff]
  %v435 = vld [vmem:[%s0 + $0xdb0] sm:$0xff]
  %v436 = vld [vmem:[%s0 + $0xdb8] sm:$0xff]
  %v437 = vld [vmem:[%s0 + $0xdc0] sm:$0xff]
  %v438 = vld [vmem:[%s0 + $0xdc8] sm:$0xff]
  %v439 = vld [vmem:[%s0 + $0xdd0] sm:$0xff]
  %v440 = vld [vmem:[%s0 + $0xdd8] sm:$0xff]
  %v441 = vld [vmem:[%s0 + $0xe00] sm:$0xff]
  %v442 = vld [vmem:[%s0 + $0xe08] sm:$0xff]
  %v443 = vld [vmem:[%s0 + $0xe10] sm:$0xff]
  %v444 = vld [vmem:[%s0 + $0xe18] sm:$0xff]
  %v445 = vld [vmem:[%s0 + $0xe20] sm:$0xff]
  %v446 = vld [vmem:[%s0 + $0xe28] sm:$0xff]
  %v447 = vld [vmem:[%s0 + $0xe30] sm:$0xff]
  %v448 = vld [vmem:[%s0 + $0xe38] sm:$0xff]
  %v449 = vld [vmem:[%s0 + $0xe40] sm:$0xff]
  %v450 = vld [vmem:[%s0 + $0xe48] sm:$0xff]
  %v451 = vld [vmem:[%s0 + $0xe50] sm:$0xff]
  %v452 = vld [vmem:[%s0 + $0xe58] sm:$0xff]
  %v453 = vld [vmem:[%s0 + $0xe60] sm:$0xff]
  %v454 = vld [vmem:[%s0 + $0xe68] sm:$0xff]
  %v455 = vld [vmem:[%s0 + $0xe70] sm:$0xff]
  %v456 = vld [vmem:[%s0 + $0xe78] sm:$0xff]
  %v457 = vld [vmem:[%s0 + $0xe80] sm:$0xff]
  %v458 = vld [vmem:[%s0 + $0xe88] sm:$0xff]
  %v459 = vld [vmem:[%s0 + $0xe90] sm:$0xff]
  %v460 = vld [vmem:[%s0 + $0xe98] sm:$0xff]
  %v461 = vld [vmem:[%s0 + $0xea0] sm:$0xff]
  %v462 = vld [vmem:[%s0 + $0xea8] sm:$0xff]
  %v463 = vld [vmem:[%s0 + $0xeb0] sm:$0xff]
  %v464 = vld [vmem:[%s0 + $0xeb8] sm:$0xff]
  %v465 = vld [vmem:[%s0 + $0xec0] sm:$0xff]
  %v466 = vld [vmem:[%s0 + $0xec8] sm:$0xff]
  %v467 = vld [vmem:[%s0 + $0xed0] sm:$0xff]
  %v468 = vld [vmem:[%s0 + $0xed8] sm:$0xff]
  %v469 = vld [vmem:[%s0 + $0xf00] sm:$0xff]
  %v470 = vld [vmem:[%s0 + $0xf08] sm:$0xff]
  %v471 = vld [vmem:[%s0 + $0xf10] sm:$0xff]
  %v472 = vld [vmem:[%s0 + $0xf18] sm:$0xff]
  %v473 = vld [vmem:[%s0 + $0xf20] sm:$0xff]
  %v474 = vld [vmem:[%s0 + $0xf28] sm:$0xff]
  %v475 = vld [vmem:[%s0 + $0xf30] sm:$0xff]
  %v476 = vld [vmem:[%s0 + $0xf38] sm:$0xff]
  %v477 = vld [vmem:[%s0 + $0xf40] sm:$0xff]
  %v478 = vld [vmem:[%s0 + $0xf48] sm:$0xff]
  %v479 = vld [vmem:[%s0 + $0xf50] sm:$0xff]
  %v480 = vld [vmem:[%s0 + $0xf58] sm:$0xff]
  %v481 = vld [vmem:[%s0 + $0xf60] sm:$0xff]
  %v482 = vld [vmem:[%s0 + $0xf68] sm:$0xff]
  %v483 = vld [vmem:[%s0 + $0xf70] sm:$0xff]
  %v484 = vld [vmem:[%s0 + $0xf78] sm:$0xff]
  %v485 = vld [vmem:[%s0 + $0xf80] sm:$0xff]
  %v486 = vld [vmem:[%s0 + $0xf88] sm:$0xff]
  %v487 = vld [vmem:[%s0 + $0xf90] sm:$0xff]
  %v488 = vld [vmem:[%s0 + $0xf98] sm:$0xff]
  %v489 = vld [vmem:[%s0 + $0xfa0] sm:$0xff]
  %v490 = vld [vmem:[%s0 + $0xfa8] sm:$0xff]
  %v491 = vld [vmem:[%s0 + $0xfb0] sm:$0xff]
  %v492 = vld [vmem:[%s0 + $0xfb8] sm:$0xff]
  %v493 = vld [vmem:[%s0 + $0xfc0] sm:$0xff]
  %v494 = vld [vmem:[%s0 + $0xfc8] sm:$0xff]
  %v495 = vld [vmem:[%s0 + $0xfd0] sm:$0xff]
  %v496 = vld [vmem:[%s0 + $0xfd8] sm:$0xff]
  %v525 = vunpack.c.l.b16 %v21
  %v526 = vunpack.c.l.b16 %v22
  %v527 = vunpack.c.l.b16 %v23
  %v528 = vunpack.c.l.b16 %v24
  %v529 = vunpack.c.l.b16 %v25
  %v530 = vunpack.c.l.b16 %v26
  %v531 = vunpack.c.l.b16 %v27
  %v532 = vunpack.c.l.b16 %v28
  %v533 = vunpack.c.l.b16 %v29
  %v534 = vunpack.c.l.b16 %v30
  %v535 = vunpack.c.l.b16 %v31
  %v536 = vunpack.c.l.b16 %v32
  %v537 = vunpack.c.l.b16 %v33
  %v538 = vunpack.c.l.b16 %v34
  %v539 = vunpack.c.l.b16 %v35
  %v540 = vunpack.c.l.b16 %v36
  %v541 = vunpack.c.l.b16 %v37
  %v542 = vunpack.c.l.b16 %v38
  %v543 = vunpack.c.l.b16 %v39
  %v544 = vunpack.c.l.b16 %v40
  %v545 = vunpack.c.l.b16 %v41
  %v546 = vunpack.c.l.b16 %v42
  %v547 = vunpack.c.l.b16 %v43
  %v548 = vunpack.c.l.b16 %v44
  %v549 = vunpack.c.l.b16 %v45
  %v550 = vunpack.c.l.b16 %v46
  %v551 = vunpack.c.l.b16 %v47
  %v552 = vunpack.c.l.b16 %v48
  %v553 = vpack.c.b16 %v526, %v525
  %v554 = vpack.c.b16 %v528, %v527
  %v555 = vpack.c.b16 %v530, %v529
  %v556 = vpack.c.b16 %v532, %v531
  %v557 = vpack.c.b16 %v534, %v533
  %v558 = vpack.c.b16 %v536, %v535
  %v559 = vpack.c.b16 %v538, %v537
  %v560 = vpack.c.b16 %v540, %v539
  %v561 = vpack.c.b16 %v542, %v541
  %v562 = vpack.c.b16 %v544, %v543
  %v563 = vpack.c.b16 %v546, %v545
  %v564 = vpack.c.b16 %v548, %v547
  %v565 = vpack.c.b16 %v550, %v549
  %v566 = vpack.c.b16 %v552, %v551
  %v1029 = vunpack.c.l.b16 %v49
  %v1030 = vunpack.c.h.b16 %v49
  %v1031 = vunpack.c.l.b16 %v50
  %v1032 = vunpack.c.h.b16 %v50
  %v1033 = vunpack.c.l.b16 %v51
  %v1034 = vunpack.c.h.b16 %v51
  %v1035 = vunpack.c.l.b16 %v52
  %v1036 = vunpack.c.h.b16 %v52
  %v1037 = vunpack.c.l.b16 %v53
  %v1038 = vunpack.c.h.b16 %v53
  %v1039 = vunpack.c.l.b16 %v54
  %v1040 = vunpack.c.h.b16 %v54
  %v1041 = vunpack.c.l.b16 %v55
  %v1042 = vunpack.c.h.b16 %v55
  %v1043 = vunpack.c.l.b16 %v56
  %v1044 = vunpack.c.h.b16 %v56
  %v1045 = vunpack.c.l.b16 %v57
  %v1046 = vunpack.c.h.b16 %v57
  %v1047 = vunpack.c.l.b16 %v58
  %v1048 = vunpack.c.h.b16 %v58
  %v1049 = vunpack.c.l.b16 %v59
  %v1050 = vunpack.c.h.b16 %v59
  %v1051 = vunpack.c.l.b16 %v60
  %v1052 = vunpack.c.h.b16 %v60
  %v1053 = vunpack.c.l.b16 %v61
  %v1054 = vunpack.c.h.b16 %v61
  %v1055 = vunpack.c.l.b16 %v62
  %v1056 = vunpack.c.h.b16 %v62
  %v1057 = vunpack.c.l.b16 %v63
  %v1058 = vunpack.c.h.b16 %v63
  %v1059 = vunpack.c.l.b16 %v64
  %v1060 = vunpack.c.h.b16 %v64
  %v1061 = vunpack.c.l.b16 %v65
  %v1062 = vunpack.c.h.b16 %v65
  %v1063 = vunpack.c.l.b16 %v66
  %v1064 = vunpack.c.h.b16 %v66
  %v1065 = vunpack.c.l.b16 %v67
  %v1066 = vunpack.c.h.b16 %v67
  %v1067 = vunpack.c.l.b16 %v68
  %v1068 = vunpack.c.h.b16 %v68
  %v1069 = vunpack.c.l.b16 %v69
  %v1070 = vunpack.c.h.b16 %v69
  %v1071 = vunpack.c.l.b16 %v70
  %v1072 = vunpack.c.h.b16 %v70
  %v1073 = vunpack.c.l.b16 %v71
  %v1074 = vunpack.c.h.b16 %v71
  %v1075 = vunpack.c.l.b16 %v72
  %v1076 = vunpack.c.h.b16 %v72
  %v1077 = vunpack.c.l.b16 %v73
  %v1078 = vunpack.c.h.b16 %v73
  %v1079 = vunpack.c.l.b16 %v74
  %v1080 = vunpack.c.h.b16 %v74
  %v1081 = vunpack.c.l.b16 %v75
  %v1082 = vunpack.c.h.b16 %v75
  %v1083 = vunpack.c.l.b16 %v76
  %v1084 = vunpack.c.h.b16 %v76
  %v1085 = vunpack.c.l.b16 %v77
  %v1086 = vunpack.c.h.b16 %v77
  %v1087 = vunpack.c.l.b16 %v78
  %v1088 = vunpack.c.h.b16 %v78
  %v1089 = vunpack.c.l.b16 %v79
  %v1090 = vunpack.c.h.b16 %v79
  %v1091 = vunpack.c.l.b16 %v80
  %v1092 = vunpack.c.h.b16 %v80
  %v1093 = vunpack.c.l.b16 %v81
  %v1094 = vunpack.c.h.b16 %v81
  %v1095 = vunpack.c.l.b16 %v82
  %v1096 = vunpack.c.h.b16 %v82
  %v1097 = vunpack.c.l.b16 %v83
  %v1098 = vunpack.c.h.b16 %v83
  %v1099 = vunpack.c.l.b16 %v84
  %v1100 = vunpack.c.h.b16 %v84
  %v1101 = vunpack.c.l.b16 %v85
  %v1102 = vunpack.c.h.b16 %v85
  %v1103 = vunpack.c.l.b16 %v86
  %v1104 = vunpack.c.h.b16 %v86
  %v1105 = vunpack.c.l.b16 %v87
  %v1106 = vunpack.c.h.b16 %v87
  %v1107 = vunpack.c.l.b16 %v88
  %v1108 = vunpack.c.h.b16 %v88
  %v1109 = vunpack.c.l.b16 %v89
  %v1110 = vunpack.c.h.b16 %v89
  %v1111 = vunpack.c.l.b16 %v90
  %v1112 = vunpack.c.h.b16 %v90
  %v1113 = vunpack.c.l.b16 %v91
  %v1114 = vunpack.c.h.b16 %v91
  %v1115 = vunpack.c.l.b16 %v92
  %v1116 = vunpack.c.h.b16 %v92
  %v1117 = vunpack.c.l.b16 %v93
  %v1118 = vunpack.c.h.b16 %v93
  %v1119 = vunpack.c.l.b16 %v94
  %v1120 = vunpack.c.h.b16 %v94
  %v1121 = vunpack.c.l.b16 %v95
  %v1122 = vunpack.c.h.b16 %v95
  %v1123 = vunpack.c.l.b16 %v96
  %v1124 = vunpack.c.h.b16 %v96
  %v1125 = vunpack.c.l.b16 %v97
  %v1126 = vunpack.c.h.b16 %v97
  %v1127 = vunpack.c.l.b16 %v98
  %v1128 = vunpack.c.h.b16 %v98
  %v1129 = vunpack.c.l.b16 %v99
  %v1130 = vunpack.c.h.b16 %v99
  %v1131 = vunpack.c.l.b16 %v100
  %v1132 = vunpack.c.h.b16 %v100
  %v1133 = vunpack.c.l.b16 %v101
  %v1134 = vunpack.c.h.b16 %v101
  %v1135 = vunpack.c.l.b16 %v102
  %v1136 = vunpack.c.h.b16 %v102
  %v1137 = vunpack.c.l.b16 %v103
  %v1138 = vunpack.c.h.b16 %v103
  %v1139 = vunpack.c.l.b16 %v104
  %v1140 = vunpack.c.h.b16 %v104
  %v1141 = vunpack.c.l.b16 %v105
  %v1142 = vunpack.c.h.b16 %v105
  %v1143 = vunpack.c.l.b16 %v106
  %v1144 = vunpack.c.h.b16 %v106
  %v1145 = vunpack.c.l.b16 %v107
  %v1146 = vunpack.c.h.b16 %v107
  %v1147 = vunpack.c.l.b16 %v108
  %v1148 = vunpack.c.h.b16 %v108
  %v1149 = vunpack.c.l.b16 %v109
  %v1150 = vunpack.c.h.b16 %v109
  %v1151 = vunpack.c.l.b16 %v110
  %v1152 = vunpack.c.h.b16 %v110
  %v1153 = vunpack.c.l.b16 %v111
  %v1154 = vunpack.c.h.b16 %v111
  %v1155 = vunpack.c.l.b16 %v112
  %v1156 = vunpack.c.h.b16 %v112
  %v1157 = vunpack.c.l.b16 %v113
  %v1158 = vunpack.c.h.b16 %v113
  %v1159 = vunpack.c.l.b16 %v114
  %v1160 = vunpack.c.h.b16 %v114
  %v1161 = vunpack.c.l.b16 %v115
  %v1162 = vunpack.c.h.b16 %v115
  %v1163 = vunpack.c.l.b16 %v116
  %v1164 = vunpack.c.h.b16 %v116
  %v1165 = vunpack.c.l.b16 %v117
  %v1166 = vunpack.c.h.b16 %v117
  %v1167 = vunpack.c.l.b16 %v118
  %v1168 = vunpack.c.h.b16 %v118
  %v1169 = vunpack.c.l.b16 %v119
  %v1170 = vunpack.c.h.b16 %v119
  %v1171 = vunpack.c.l.b16 %v120
  %v1172 = vunpack.c.h.b16 %v120
  %v1173 = vunpack.c.l.b16 %v121
  %v1174 = vunpack.c.h.b16 %v121
  %v1175 = vunpack.c.l.b16 %v122
  %v1176 = vunpack.c.h.b16 %v122
  %v1177 = vunpack.c.l.b16 %v123
  %v1178 = vunpack.c.h.b16 %v123
  %v1179 = vunpack.c.l.b16 %v124
  %v1180 = vunpack.c.h.b16 %v124
  %v1181 = vunpack.c.l.b16 %v125
  %v1182 = vunpack.c.h.b16 %v125
  %v1183 = vunpack.c.l.b16 %v126
  %v1184 = vunpack.c.h.b16 %v126
  %v1185 = vunpack.c.l.b16 %v127
  %v1186 = vunpack.c.h.b16 %v127
  %v1187 = vunpack.c.l.b16 %v128
  %v1188 = vunpack.c.h.b16 %v128
  %v1189 = vunpack.c.l.b16 %v129
  %v1190 = vunpack.c.h.b16 %v129
  %v1191 = vunpack.c.l.b16 %v130
  %v1192 = vunpack.c.h.b16 %v130
  %v1193 = vunpack.c.l.b16 %v131
  %v1194 = vunpack.c.h.b16 %v131
  %v1195 = vunpack.c.l.b16 %v132
  %v1196 = vunpack.c.h.b16 %v132
  %v1197 = vunpack.c.l.b16 %v133
  %v1198 = vunpack.c.h.b16 %v133
  %v1199 = vunpack.c.l.b16 %v134
  %v1200 = vunpack.c.h.b16 %v134
  %v1201 = vunpack.c.l.b16 %v135
  %v1202 = vunpack.c.h.b16 %v135
  %v1203 = vunpack.c.l.b16 %v136
  %v1204 = vunpack.c.h.b16 %v136
  %v1205 = vunpack.c.l.b16 %v137
  %v1206 = vunpack.c.h.b16 %v137
  %v1207 = vunpack.c.l.b16 %v138
  %v1208 = vunpack.c.h.b16 %v138
  %v1209 = vunpack.c.l.b16 %v139
  %v1210 = vunpack.c.h.b16 %v139
  %v1211 = vunpack.c.l.b16 %v140
  %v1212 = vunpack.c.h.b16 %v140
  %v1213 = vunpack.c.l.b16 %v141
  %v1214 = vunpack.c.h.b16 %v141
  %v1215 = vunpack.c.l.b16 %v142
  %v1216 = vunpack.c.h.b16 %v142
  %v1217 = vunpack.c.l.b16 %v143
  %v1218 = vunpack.c.h.b16 %v143
  %v1219 = vunpack.c.l.b16 %v144
  %v1220 = vunpack.c.h.b16 %v144
  %v1221 = vunpack.c.l.b16 %v145
  %v1222 = vunpack.c.h.b16 %v145
  %v1223 = vunpack.c.l.b16 %v146
  %v1224 = vunpack.c.h.b16 %v146
  %v1225 = vunpack.c.l.b16 %v147
  %v1226 = vunpack.c.h.b16 %v147
  %v1227 = vunpack.c.l.b16 %v148
  %v1228 = vunpack.c.h.b16 %v148
  %v1229 = vunpack.c.l.b16 %v149
  %v1230 = vunpack.c.h.b16 %v149
  %v1231 = vunpack.c.l.b16 %v150
  %v1232 = vunpack.c.h.b16 %v150
  %v1233 = vunpack.c.l.b16 %v151
  %v1234 = vunpack.c.h.b16 %v151
  %v1235 = vunpack.c.l.b16 %v152
  %v1236 = vunpack.c.h.b16 %v152
  %v1237 = vunpack.c.l.b16 %v153
  %v1238 = vunpack.c.h.b16 %v153
  %v1239 = vunpack.c.l.b16 %v154
  %v1240 = vunpack.c.h.b16 %v154
  %v1241 = vunpack.c.l.b16 %v155
  %v1242 = vunpack.c.h.b16 %v155
  %v1243 = vunpack.c.l.b16 %v156
  %v1244 = vunpack.c.h.b16 %v156
  %v1245 = vunpack.c.l.b16 %v157
  %v1246 = vunpack.c.h.b16 %v157
  %v1247 = vunpack.c.l.b16 %v158
  %v1248 = vunpack.c.h.b16 %v158
  %v1249 = vunpack.c.l.b16 %v159
  %v1250 = vunpack.c.h.b16 %v159
  %v1251 = vunpack.c.l.b16 %v160
  %v1252 = vunpack.c.h.b16 %v160
  %v1253 = vunpack.c.l.b16 %v161
  %v1254 = vunpack.c.h.b16 %v161
  %v1255 = vunpack.c.l.b16 %v162
  %v1256 = vunpack.c.h.b16 %v162
  %v1257 = vunpack.c.l.b16 %v163
  %v1258 = vunpack.c.h.b16 %v163
  %v1259 = vunpack.c.l.b16 %v164
  %v1260 = vunpack.c.h.b16 %v164
  %v1261 = vunpack.c.l.b16 %v165
  %v1262 = vunpack.c.h.b16 %v165
  %v1263 = vunpack.c.l.b16 %v166
  %v1264 = vunpack.c.h.b16 %v166
  %v1265 = vunpack.c.l.b16 %v167
  %v1266 = vunpack.c.h.b16 %v167
  %v1267 = vunpack.c.l.b16 %v168
  %v1268 = vunpack.c.h.b16 %v168
  %v1269 = vunpack.c.l.b16 %v169
  %v1270 = vunpack.c.h.b16 %v169
  %v1271 = vunpack.c.l.b16 %v170
  %v1272 = vunpack.c.h.b16 %v170
  %v1273 = vunpack.c.l.b16 %v171
  %v1274 = vunpack.c.h.b16 %v171
  %v1275 = vunpack.c.l.b16 %v172
  %v1276 = vunpack.c.h.b16 %v172
  %v1277 = vunpack.c.l.b16 %v173
  %v1278 = vunpack.c.h.b16 %v173
  %v1279 = vunpack.c.l.b16 %v174
  %v1280 = vunpack.c.h.b16 %v174
  %v1281 = vunpack.c.l.b16 %v175
  %v1282 = vunpack.c.h.b16 %v175
  %v1283 = vunpack.c.l.b16 %v176
  %v1284 = vunpack.c.h.b16 %v176
  %v1285 = vunpack.c.l.b16 %v177
  %v1286 = vunpack.c.h.b16 %v177
  %v1287 = vunpack.c.l.b16 %v178
  %v1288 = vunpack.c.h.b16 %v178
  %v1289 = vunpack.c.l.b16 %v179
  %v1290 = vunpack.c.h.b16 %v179
  %v1291 = vunpack.c.l.b16 %v180
  %v1292 = vunpack.c.h.b16 %v180
  %v1293 = vunpack.c.l.b16 %v181
  %v1294 = vunpack.c.h.b16 %v181
  %v1295 = vunpack.c.l.b16 %v182
  %v1296 = vunpack.c.h.b16 %v182
  %v1297 = vunpack.c.l.b16 %v183
  %v1298 = vunpack.c.h.b16 %v183
  %v1299 = vunpack.c.l.b16 %v184
  %v1300 = vunpack.c.h.b16 %v184
  %v1301 = vunpack.c.l.b16 %v185
  %v1302 = vunpack.c.h.b16 %v185
  %v1303 = vunpack.c.l.b16 %v186
  %v1304 = vunpack.c.h.b16 %v186
  %v1305 = vunpack.c.l.b16 %v187
  %v1306 = vunpack.c.h.b16 %v187
  %v1307 = vunpack.c.l.b16 %v188
  %v1308 = vunpack.c.h.b16 %v188
  %v1309 = vunpack.c.l.b16 %v189
  %v1310 = vunpack.c.h.b16 %v189
  %v1311 = vunpack.c.l.b16 %v190
  %v1312 = vunpack.c.h.b16 %v190
  %v1313 = vunpack.c.l.b16 %v191
  %v1314 = vunpack.c.h.b16 %v191
  %v1315 = vunpack.c.l.b16 %v192
  %v1316 = vunpack.c.h.b16 %v192
  %v1317 = vunpack.c.l.b16 %v193
  %v1318 = vunpack.c.h.b16 %v193
  %v1319 = vunpack.c.l.b16 %v194
  %v1320 = vunpack.c.h.b16 %v194
  %v1321 = vunpack.c.l.b16 %v195
  %v1322 = vunpack.c.h.b16 %v195
  %v1323 = vunpack.c.l.b16 %v196
  %v1324 = vunpack.c.h.b16 %v196
  %v1325 = vunpack.c.l.b16 %v197
  %v1326 = vunpack.c.h.b16 %v197
  %v1327 = vunpack.c.l.b16 %v198
  %v1328 = vunpack.c.h.b16 %v198
  %v1329 = vunpack.c.l.b16 %v199
  %v1330 = vunpack.c.h.b16 %v199
  %v1331 = vunpack.c.l.b16 %v200
  %v1332 = vunpack.c.h.b16 %v200
  %v1333 = vunpack.c.l.b16 %v201
  %v1334 = vunpack.c.h.b16 %v201
  %v1335 = vunpack.c.l.b16 %v202
  %v1336 = vunpack.c.h.b16 %v202
  %v1337 = vunpack.c.l.b16 %v203
  %v1338 = vunpack.c.h.b16 %v203
  %v1339 = vunpack.c.l.b16 %v204
  %v1340 = vunpack.c.h.b16 %v204
  %v1341 = vunpack.c.l.b16 %v205
  %v1342 = vunpack.c.h.b16 %v205
  %v1343 = vunpack.c.l.b16 %v206
  %v1344 = vunpack.c.h.b16 %v206
  %v1345 = vunpack.c.l.b16 %v207
  %v1346 = vunpack.c.h.b16 %v207
  %v1347 = vunpack.c.l.b16 %v208
  %v1348 = vunpack.c.h.b16 %v208
  %v1349 = vunpack.c.l.b16 %v209
  %v1350 = vunpack.c.h.b16 %v209
  %v1351 = vunpack.c.l.b16 %v210
  %v1352 = vunpack.c.h.b16 %v210
  %v1353 = vunpack.c.l.b16 %v211
  %v1354 = vunpack.c.h.b16 %v211
  %v1355 = vunpack.c.l.b16 %v212
  %v1356 = vunpack.c.h.b16 %v212
  %v1357 = vunpack.c.l.b16 %v213
  %v1358 = vunpack.c.h.b16 %v213
  %v1359 = vunpack.c.l.b16 %v214
  %v1360 = vunpack.c.h.b16 %v214
  %v1361 = vunpack.c.l.b16 %v215
  %v1362 = vunpack.c.h.b16 %v215
  %v1363 = vunpack.c.l.b16 %v216
  %v1364 = vunpack.c.h.b16 %v216
  %v1365 = vunpack.c.l.b16 %v217
  %v1366 = vunpack.c.h.b16 %v217
  %v1367 = vunpack.c.l.b16 %v218
  %v1368 = vunpack.c.h.b16 %v218
  %v1369 = vunpack.c.l.b16 %v219
  %v1370 = vunpack.c.h.b16 %v219
  %v1371 = vunpack.c.l.b16 %v220
  %v1372 = vunpack.c.h.b16 %v220
  %v1373 = vunpack.c.l.b16 %v221
  %v1374 = vunpack.c.h.b16 %v221
  %v1375 = vunpack.c.l.b16 %v222
  %v1376 = vunpack.c.h.b16 %v222
  %v1377 = vunpack.c.l.b16 %v223
  %v1378 = vunpack.c.h.b16 %v223
  %v1379 = vunpack.c.l.b16 %v224
  %v1380 = vunpack.c.h.b16 %v224
  %v1381 = vunpack.c.l.b16 %v225
  %v1382 = vunpack.c.h.b16 %v225
  %v1383 = vunpack.c.l.b16 %v226
  %v1384 = vunpack.c.h.b16 %v226
  %v1385 = vunpack.c.l.b16 %v227
  %v1386 = vunpack.c.h.b16 %v227
  %v1387 = vunpack.c.l.b16 %v228
  %v1388 = vunpack.c.h.b16 %v228
  %v1389 = vunpack.c.l.b16 %v229
  %v1390 = vunpack.c.h.b16 %v229
  %v1391 = vunpack.c.l.b16 %v230
  %v1392 = vunpack.c.h.b16 %v230
  %v1393 = vunpack.c.l.b16 %v231
  %v1394 = vunpack.c.h.b16 %v231
  %v1395 = vunpack.c.l.b16 %v232
  %v1396 = vunpack.c.h.b16 %v232
  %v1397 = vunpack.c.l.b16 %v233
  %v1398 = vunpack.c.h.b16 %v233
  %v1399 = vunpack.c.l.b16 %v234
  %v1400 = vunpack.c.h.b16 %v234
  %v1401 = vunpack.c.l.b16 %v235
  %v1402 = vunpack.c.h.b16 %v235
  %v1403 = vunpack.c.l.b16 %v236
  %v1404 = vunpack.c.h.b16 %v236
  %v1405 = vunpack.c.l.b16 %v237
  %v1406 = vunpack.c.h.b16 %v237
  %v1407 = vunpack.c.l.b16 %v238
  %v1408 = vunpack.c.h.b16 %v238
  %v1409 = vunpack.c.l.b16 %v239
  %v1410 = vunpack.c.h.b16 %v239
  %v1411 = vunpack.c.l.b16 %v240
  %v1412 = vunpack.c.h.b16 %v240
  %v1413 = vunpack.c.l.b16 %v241
  %v1414 = vunpack.c.h.b16 %v241
  %v1415 = vunpack.c.l.b16 %v242
  %v1416 = vunpack.c.h.b16 %v242
  %v1417 = vunpack.c.l.b16 %v243
  %v1418 = vunpack.c.h.b16 %v243
  %v1419 = vunpack.c.l.b16 %v244
  %v1420 = vunpack.c.h.b16 %v244
  %v1421 = vunpack.c.l.b16 %v245
  %v1422 = vunpack.c.h.b16 %v245
  %v1423 = vunpack.c.l.b16 %v246
  %v1424 = vunpack.c.h.b16 %v246
  %v1425 = vunpack.c.l.b16 %v247
  %v1426 = vunpack.c.h.b16 %v247
  %v1427 = vunpack.c.l.b16 %v248
  %v1428 = vunpack.c.h.b16 %v248
  %v1429 = vunpack.c.l.b16 %v249
  %v1430 = vunpack.c.h.b16 %v249
  %v1431 = vunpack.c.l.b16 %v250
  %v1432 = vunpack.c.h.b16 %v250
  %v1433 = vunpack.c.l.b16 %v251
  %v1434 = vunpack.c.h.b16 %v251
  %v1435 = vunpack.c.l.b16 %v252
  %v1436 = vunpack.c.h.b16 %v252
  %v1437 = vunpack.c.l.b16 %v253
  %v1438 = vunpack.c.h.b16 %v253
  %v1439 = vunpack.c.l.b16 %v254
  %v1440 = vunpack.c.h.b16 %v254
  %v1441 = vunpack.c.l.b16 %v255
  %v1442 = vunpack.c.h.b16 %v255
  %v1443 = vunpack.c.l.b16 %v256
  %v1444 = vunpack.c.h.b16 %v256
  %v1445 = vunpack.c.l.b16 %v257
  %v1446 = vunpack.c.h.b16 %v257
  %v1447 = vunpack.c.l.b16 %v258
  %v1448 = vunpack.c.h.b16 %v258
  %v1449 = vunpack.c.l.b16 %v259
  %v1450 = vunpack.c.h.b16 %v259
  %v1451 = vunpack.c.l.b16 %v260
  %v1452 = vunpack.c.h.b16 %v260
  %v1453 = vunpack.c.l.b16 %v261
  %v1454 = vunpack.c.h.b16 %v261
  %v1455 = vunpack.c.l.b16 %v262
  %v1456 = vunpack.c.h.b16 %v262
  %v1457 = vunpack.c.l.b16 %v263
  %v1458 = vunpack.c.h.b16 %v263
  %v1459 = vunpack.c.l.b16 %v264
  %v1460 = vunpack.c.h.b16 %v264
  %v1461 = vunpack.c.l.b16 %v265
  %v1462 = vunpack.c.h.b16 %v265
  %v1463 = vunpack.c.l.b16 %v266
  %v1464 = vunpack.c.h.b16 %v266
  %v1465 = vunpack.c.l.b16 %v267
  %v1466 = vunpack.c.h.b16 %v267
  %v1467 = vunpack.c.l.b16 %v268
  %v1468 = vunpack.c.h.b16 %v268
  %v1469 = vunpack.c.l.b16 %v269
  %v1470 = vunpack.c.h.b16 %v269
  %v1471 = vunpack.c.l.b16 %v270
  %v1472 = vunpack.c.h.b16 %v270
  %v1473 = vunpack.c.l.b16 %v271
  %v1474 = vunpack.c.h.b16 %v271
  %v1475 = vunpack.c.l.b16 %v272
  %v1476 = vunpack.c.h.b16 %v272
  %v1477 = vunpack.c.l.b16 %v273
  %v1478 = vunpack.c.h.b16 %v273
  %v1479 = vunpack.c.l.b16 %v274
  %v1480 = vunpack.c.h.b16 %v274
  %v1481 = vunpack.c.l.b16 %v275
  %v1482 = vunpack.c.h.b16 %v275
  %v1483 = vunpack.c.l.b16 %v276
  %v1484 = vunpack.c.h.b16 %v276
  %v1485 = vunpack.c.l.b16 %v277
  %v1486 = vunpack.c.h.b16 %v277
  %v1487 = vunpack.c.l.b16 %v278
  %v1488 = vunpack.c.h.b16 %v278
  %v1489 = vunpack.c.l.b16 %v279
  %v1490 = vunpack.c.h.b16 %v279
  %v1491 = vunpack.c.l.b16 %v280
  %v1492 = vunpack.c.h.b16 %v280
  %v1493 = vunpack.c.l.b16 %v281
  %v1494 = vunpack.c.h.b16 %v281
  %v1495 = vunpack.c.l.b16 %v282
  %v1496 = vunpack.c.h.b16 %v282
  %v1497 = vunpack.c.l.b16 %v283
  %v1498 = vunpack.c.h.b16 %v283
  %v1499 = vunpack.c.l.b16 %v284
  %v1500 = vunpack.c.h.b16 %v284
  %v1501 = vunpack.c.l.b16 %v285
  %v1502 = vunpack.c.h.b16 %v285
  %v1503 = vunpack.c.l.b16 %v286
  %v1504 = vunpack.c.h.b16 %v286
  %v1505 = vunpack.c.l.b16 %v287
  %v1506 = vunpack.c.h.b16 %v287
  %v1507 = vunpack.c.l.b16 %v288
  %v1508 = vunpack.c.h.b16 %v288
  %v1509 = vunpack.c.l.b16 %v289
  %v1510 = vunpack.c.h.b16 %v289
  %v1511 = vunpack.c.l.b16 %v290
  %v1512 = vunpack.c.h.b16 %v290
  %v1513 = vunpack.c.l.b16 %v291
  %v1514 = vunpack.c.h.b16 %v291
  %v1515 = vunpack.c.l.b16 %v292
  %v1516 = vunpack.c.h.b16 %v292
  %v1517 = vunpack.c.l.b16 %v293
  %v1518 = vunpack.c.h.b16 %v293
  %v1519 = vunpack.c.l.b16 %v294
  %v1520 = vunpack.c.h.b16 %v294
  %v1521 = vunpack.c.l.b16 %v295
  %v1522 = vunpack.c.h.b16 %v295
  %v1523 = vunpack.c.l.b16 %v296
  %v1524 = vunpack.c.h.b16 %v296
  %v1525 = vunpack.c.l.b16 %v297
  %v1526 = vunpack.c.h.b16 %v297
  %v1527 = vunpack.c.l.b16 %v298
  %v1528 = vunpack.c.h.b16 %v298
  %v1529 = vunpack.c.l.b16 %v299
  %v1530 = vunpack.c.h.b16 %v299
  %v1531 = vunpack.c.l.b16 %v300
  %v1532 = vunpack.c.h.b16 %v300
  %v1533 = vunpack.c.l.b16 %v301
  %v1534 = vunpack.c.h.b16 %v301
  %v1535 = vunpack.c.l.b16 %v302
  %v1536 = vunpack.c.h.b16 %v302
  %v1537 = vunpack.c.l.b16 %v303
  %v1538 = vunpack.c.h.b16 %v303
  %v1539 = vunpack.c.l.b16 %v304
  %v1540 = vunpack.c.h.b16 %v304
  %v1541 = vunpack.c.l.b16 %v305
  %v1542 = vunpack.c.h.b16 %v305
  %v1543 = vunpack.c.l.b16 %v306
  %v1544 = vunpack.c.h.b16 %v306
  %v1545 = vunpack.c.l.b16 %v307
  %v1546 = vunpack.c.h.b16 %v307
  %v1547 = vunpack.c.l.b16 %v308
  %v1548 = vunpack.c.h.b16 %v308
  %v1549 = vunpack.c.l.b16 %v309
  %v1550 = vunpack.c.h.b16 %v309
  %v1551 = vunpack.c.l.b16 %v310
  %v1552 = vunpack.c.h.b16 %v310
  %v1553 = vunpack.c.l.b16 %v311
  %v1554 = vunpack.c.h.b16 %v311
  %v1555 = vunpack.c.l.b16 %v312
  %v1556 = vunpack.c.h.b16 %v312
  %v1557 = vunpack.c.l.b16 %v313
  %v1558 = vunpack.c.h.b16 %v313
  %v1559 = vunpack.c.l.b16 %v314
  %v1560 = vunpack.c.h.b16 %v314
  %v1561 = vunpack.c.l.b16 %v315
  %v1562 = vunpack.c.h.b16 %v315
  %v1563 = vunpack.c.l.b16 %v316
  %v1564 = vunpack.c.h.b16 %v316
  %v1565 = vunpack.c.l.b16 %v317
  %v1566 = vunpack.c.h.b16 %v317
  %v1567 = vunpack.c.l.b16 %v318
  %v1568 = vunpack.c.h.b16 %v318
  %v1569 = vunpack.c.l.b16 %v319
  %v1570 = vunpack.c.h.b16 %v319
  %v1571 = vunpack.c.l.b16 %v320
  %v1572 = vunpack.c.h.b16 %v320
  %v1573 = vunpack.c.l.b16 %v321
  %v1574 = vunpack.c.h.b16 %v321
  %v1575 = vunpack.c.l.b16 %v322
  %v1576 = vunpack.c.h.b16 %v322
  %v1577 = vunpack.c.l.b16 %v323
  %v1578 = vunpack.c.h.b16 %v323
  %v1579 = vunpack.c.l.b16 %v324
  %v1580 = vunpack.c.h.b16 %v324
  %v1581 = vunpack.c.l.b16 %v325
  %v1582 = vunpack.c.h.b16 %v325
  %v1583 = vunpack.c.l.b16 %v326
  %v1584 = vunpack.c.h.b16 %v326
  %v1585 = vunpack.c.l.b16 %v327
  %v1586 = vunpack.c.h.b16 %v327
  %v1587 = vunpack.c.l.b16 %v328
  %v1588 = vunpack.c.h.b16 %v328
  %v1589 = vunpack.c.l.b16 %v329
  %v1590 = vunpack.c.h.b16 %v329
  %v1591 = vunpack.c.l.b16 %v330
  %v1592 = vunpack.c.h.b16 %v330
  %v1593 = vunpack.c.l.b16 %v331
  %v1594 = vunpack.c.h.b16 %v331
  %v1595 = vunpack.c.l.b16 %v332
  %v1596 = vunpack.c.h.b16 %v332
  %v1597 = vunpack.c.l.b16 %v333
  %v1598 = vunpack.c.h.b16 %v333
  %v1599 = vunpack.c.l.b16 %v334
  %v1600 = vunpack.c.h.b16 %v334
  %v1601 = vunpack.c.l.b16 %v335
  %v1602 = vunpack.c.h.b16 %v335
  %v1603 = vunpack.c.l.b16 %v336
  %v1604 = vunpack.c.h.b16 %v336
  %v1605 = vunpack.c.l.b16 %v337
  %v1606 = vunpack.c.h.b16 %v337
  %v1607 = vunpack.c.l.b16 %v338
  %v1608 = vunpack.c.h.b16 %v338
  %v1609 = vunpack.c.l.b16 %v339
  %v1610 = vunpack.c.h.b16 %v339
  %v1611 = vunpack.c.l.b16 %v340
  %v1612 = vunpack.c.h.b16 %v340
  %v1613 = vunpack.c.l.b16 %v341
  %v1614 = vunpack.c.h.b16 %v341
  %v1615 = vunpack.c.l.b16 %v342
  %v1616 = vunpack.c.h.b16 %v342
  %v1617 = vunpack.c.l.b16 %v343
  %v1618 = vunpack.c.h.b16 %v343
  %v1619 = vunpack.c.l.b16 %v344
  %v1620 = vunpack.c.h.b16 %v344
  %v1621 = vunpack.c.l.b16 %v345
  %v1622 = vunpack.c.h.b16 %v345
  %v1623 = vunpack.c.l.b16 %v346
  %v1624 = vunpack.c.h.b16 %v346
  %v1625 = vunpack.c.l.b16 %v347
  %v1626 = vunpack.c.h.b16 %v347
  %v1627 = vunpack.c.l.b16 %v348
  %v1628 = vunpack.c.h.b16 %v348
  %v1629 = vunpack.c.l.b16 %v349
  %v1630 = vunpack.c.h.b16 %v349
  %v1631 = vunpack.c.l.b16 %v350
  %v1632 = vunpack.c.h.b16 %v350
  %v1633 = vunpack.c.l.b16 %v351
  %v1634 = vunpack.c.h.b16 %v351
  %v1635 = vunpack.c.l.b16 %v352
  %v1636 = vunpack.c.h.b16 %v352
  %v1637 = vunpack.c.l.b16 %v353
  %v1638 = vunpack.c.h.b16 %v353
  %v1639 = vunpack.c.l.b16 %v354
  %v1640 = vunpack.c.h.b16 %v354
  %v1641 = vunpack.c.l.b16 %v355
  %v1642 = vunpack.c.h.b16 %v355
  %v1643 = vunpack.c.l.b16 %v356
  %v1644 = vunpack.c.h.b16 %v356
  %v1645 = vunpack.c.l.b16 %v357
  %v1646 = vunpack.c.h.b16 %v357
  %v1647 = vunpack.c.l.b16 %v358
  %v1648 = vunpack.c.h.b16 %v358
  %v1649 = vunpack.c.l.b16 %v359
  %v1650 = vunpack.c.h.b16 %v359
  %v1651 = vunpack.c.l.b16 %v360
  %v1652 = vunpack.c.h.b16 %v360
  %v1653 = vunpack.c.l.b16 %v361
  %v1654 = vunpack.c.h.b16 %v361
  %v1655 = vunpack.c.l.b16 %v362
  %v1656 = vunpack.c.h.b16 %v362
  %v1657 = vunpack.c.l.b16 %v363
  %v1658 = vunpack.c.h.b16 %v363
  %v1659 = vunpack.c.l.b16 %v364
  %v1660 = vunpack.c.h.b16 %v364
  %v1661 = vunpack.c.l.b16 %v365
  %v1662 = vunpack.c.h.b16 %v365
  %v1663 = vunpack.c.l.b16 %v366
  %v1664 = vunpack.c.h.b16 %v366
  %v1665 = vunpack.c.l.b16 %v367
  %v1666 = vunpack.c.h.b16 %v367
  %v1667 = vunpack.c.l.b16 %v368
  %v1668 = vunpack.c.h.b16 %v368
  %v1669 = vunpack.c.l.b16 %v369
  %v1670 = vunpack.c.h.b16 %v369
  %v1671 = vunpack.c.l.b16 %v370
  %v1672 = vunpack.c.h.b16 %v370
  %v1673 = vunpack.c.l.b16 %v371
  %v1674 = vunpack.c.h.b16 %v371
  %v1675 = vunpack.c.l.b16 %v372
  %v1676 = vunpack.c.h.b16 %v372
  %v1677 = vunpack.c.l.b16 %v373
  %v1678 = vunpack.c.h.b16 %v373
  %v1679 = vunpack.c.l.b16 %v374
  %v1680 = vunpack.c.h.b16 %v374
  %v1681 = vunpack.c.l.b16 %v375
  %v1682 = vunpack.c.h.b16 %v375
  %v1683 = vunpack.c.l.b16 %v376
  %v1684 = vunpack.c.h.b16 %v376
  %v1685 = vunpack.c.l.b16 %v377
  %v1686 = vunpack.c.h.b16 %v377
  %v1687 = vunpack.c.l.b16 %v378
  %v1688 = vunpack.c.h.b16 %v378
  %v1689 = vunpack.c.l.b16 %v379
  %v1690 = vunpack.c.h.b16 %v379
  %v1691 = vunpack.c.l.b16 %v380
  %v1692 = vunpack.c.h.b16 %v380
  %v1693 = vunpack.c.l.b16 %v381
  %v1694 = vunpack.c.h.b16 %v381
  %v1695 = vunpack.c.l.b16 %v382
  %v1696 = vunpack.c.h.b16 %v382
  %v1697 = vunpack.c.l.b16 %v383
  %v1698 = vunpack.c.h.b16 %v383
  %v1699 = vunpack.c.l.b16 %v384
  %v1700 = vunpack.c.h.b16 %v384
  %v1701 = vunpack.c.l.b16 %v385
  %v1702 = vunpack.c.h.b16 %v385
  %v1703 = vunpack.c.l.b16 %v386
  %v1704 = vunpack.c.h.b16 %v386
  %v1705 = vunpack.c.l.b16 %v387
  %v1706 = vunpack.c.h.b16 %v387
  %v1707 = vunpack.c.l.b16 %v388
  %v1708 = vunpack.c.h.b16 %v388
  %v1709 = vunpack.c.l.b16 %v389
  %v1710 = vunpack.c.h.b16 %v389
  %v1711 = vunpack.c.l.b16 %v390
  %v1712 = vunpack.c.h.b16 %v390
  %v1713 = vunpack.c.l.b16 %v391
  %v1714 = vunpack.c.h.b16 %v391
  %v1715 = vunpack.c.l.b16 %v392
  %v1716 = vunpack.c.h.b16 %v392
  %v1717 = vunpack.c.l.b16 %v393
  %v1718 = vunpack.c.h.b16 %v393
  %v1719 = vunpack.c.l.b16 %v394
  %v1720 = vunpack.c.h.b16 %v394
  %v1721 = vunpack.c.l.b16 %v395
  %v1722 = vunpack.c.h.b16 %v395
  %v1723 = vunpack.c.l.b16 %v396
  %v1724 = vunpack.c.h.b16 %v396
  %v1725 = vunpack.c.l.b16 %v397
  %v1726 = vunpack.c.h.b16 %v397
  %v1727 = vunpack.c.l.b16 %v398
  %v1728 = vunpack.c.h.b16 %v398
  %v1729 = vunpack.c.l.b16 %v399
  %v1730 = vunpack.c.h.b16 %v399
  %v1731 = vunpack.c.l.b16 %v400
  %v1732 = vunpack.c.h.b16 %v400
  %v1733 = vunpack.c.l.b16 %v401
  %v1734 = vunpack.c.h.b16 %v401
  %v1735 = vunpack.c.l.b16 %v402
  %v1736 = vunpack.c.h.b16 %v402
  %v1737 = vunpack.c.l.b16 %v403
  %v1738 = vunpack.c.h.b16 %v403
  %v1739 = vunpack.c.l.b16 %v404
  %v1740 = vunpack.c.h.b16 %v404
  %v1741 = vunpack.c.l.b16 %v405
  %v1742 = vunpack.c.h.b16 %v405
  %v1743 = vunpack.c.l.b16 %v406
  %v1744 = vunpack.c.h.b16 %v406
  %v1745 = vunpack.c.l.b16 %v407
  %v1746 = vunpack.c.h.b16 %v407
  %v1747 = vunpack.c.l.b16 %v408
  %v1748 = vunpack.c.h.b16 %v408
  %v1749 = vunpack.c.l.b16 %v409
  %v1750 = vunpack.c.h.b16 %v409
  %v1751 = vunpack.c.l.b16 %v410
  %v1752 = vunpack.c.h.b16 %v410
  %v1753 = vunpack.c.l.b16 %v411
  %v1754 = vunpack.c.h.b16 %v411
  %v1755 = vunpack.c.l.b16 %v412
  %v1756 = vunpack.c.h.b16 %v412
  %v1757 = vunpack.c.l.b16 %v413
  %v1758 = vunpack.c.h.b16 %v413
  %v1759 = vunpack.c.l.b16 %v414
  %v1760 = vunpack.c.h.b16 %v414
  %v1761 = vunpack.c.l.b16 %v415
  %v1762 = vunpack.c.h.b16 %v415
  %v1763 = vunpack.c.l.b16 %v416
  %v1764 = vunpack.c.h.b16 %v416
  %v1765 = vunpack.c.l.b16 %v417
  %v1766 = vunpack.c.h.b16 %v417
  %v1767 = vunpack.c.l.b16 %v418
  %v1768 = vunpack.c.h.b16 %v418
  %v1769 = vunpack.c.l.b16 %v419
  %v1770 = vunpack.c.h.b16 %v419
  %v1771 = vunpack.c.l.b16 %v420
  %v1772 = vunpack.c.h.b16 %v420
  %v1773 = vunpack.c.l.b16 %v421
  %v1774 = vunpack.c.h.b16 %v421
  %v1775 = vunpack.c.l.b16 %v422
  %v1776 = vunpack.c.h.b16 %v422
  %v1777 = vunpack.c.l.b16 %v423
  %v1778 = vunpack.c.h.b16 %v423
  %v1779 = vunpack.c.l.b16 %v424
  %v1780 = vunpack.c.h.b16 %v424
  %v1781 = vunpack.c.l.b16 %v425
  %v1782 = vunpack.c.h.b16 %v425
  %v1783 = vunpack.c.l.b16 %v426
  %v1784 = vunpack.c.h.b16 %v426
  %v1785 = vunpack.c.l.b16 %v427
  %v1786 = vunpack.c.h.b16 %v427
  %v1787 = vunpack.c.l.b16 %v428
  %v1788 = vunpack.c.h.b16 %v428
  %v1789 = vunpack.c.l.b16 %v429
  %v1790 = vunpack.c.h.b16 %v429
  %v1791 = vunpack.c.l.b16 %v430
  %v1792 = vunpack.c.h.b16 %v430
  %v1793 = vunpack.c.l.b16 %v431
  %v1794 = vunpack.c.h.b16 %v431
  %v1795 = vunpack.c.l.b16 %v432
  %v1796 = vunpack.c.h.b16 %v432
  %v1797 = vunpack.c.l.b16 %v433
  %v1798 = vunpack.c.h.b16 %v433
  %v1799 = vunpack.c.l.b16 %v434
  %v1800 = vunpack.c.h.b16 %v434
  %v1801 = vunpack.c.l.b16 %v435
  %v1802 = vunpack.c.h.b16 %v435
  %v1803 = vunpack.c.l.b16 %v436
  %v1804 = vunpack.c.h.b16 %v436
  %v1805 = vunpack.c.l.b16 %v437
  %v1806 = vunpack.c.h.b16 %v437
  %v1807 = vunpack.c.l.b16 %v438
  %v1808 = vunpack.c.h.b16 %v438
  %v1809 = vunpack.c.l.b16 %v439
  %v1810 = vunpack.c.h.b16 %v439
  %v1811 = vunpack.c.l.b16 %v440
  %v1812 = vunpack.c.h.b16 %v440
  %v1813 = vunpack.c.l.b16 %v441
  %v1814 = vunpack.c.h.b16 %v441
  %v1815 = vunpack.c.l.b16 %v442
  %v1816 = vunpack.c.h.b16 %v442
  %v1817 = vunpack.c.l.b16 %v443
  %v1818 = vunpack.c.h.b16 %v443
  %v1819 = vunpack.c.l.b16 %v444
  %v1820 = vunpack.c.h.b16 %v444
  %v1821 = vunpack.c.l.b16 %v445
  %v1822 = vunpack.c.h.b16 %v445
  %v1823 = vunpack.c.l.b16 %v446
  %v1824 = vunpack.c.h.b16 %v446
  %v1825 = vunpack.c.l.b16 %v447
  %v1826 = vunpack.c.h.b16 %v447
  %v1827 = vunpack.c.l.b16 %v448
  %v1828 = vunpack.c.h.b16 %v448
  %v1829 = vunpack.c.l.b16 %v449
  %v1830 = vunpack.c.h.b16 %v449
  %v1831 = vunpack.c.l.b16 %v450
  %v1832 = vunpack.c.h.b16 %v450
  %v1833 = vunpack.c.l.b16 %v451
  %v1834 = vunpack.c.h.b16 %v451
  %v1835 = vunpack.c.l.b16 %v452
  %v1836 = vunpack.c.h.b16 %v452
  %v1837 = vunpack.c.l.b16 %v453
  %v1838 = vunpack.c.h.b16 %v453
  %v1839 = vunpack.c.l.b16 %v454
  %v1840 = vunpack.c.h.b16 %v454
  %v1841 = vunpack.c.l.b16 %v455
  %v1842 = vunpack.c.h.b16 %v455
  %v1843 = vunpack.c.l.b16 %v456
  %v1844 = vunpack.c.h.b16 %v456
  %v1845 = vunpack.c.l.b16 %v457
  %v1846 = vunpack.c.h.b16 %v457
  %v1847 = vunpack.c.l.b16 %v458
  %v1848 = vunpack.c.h.b16 %v458
  %v1849 = vunpack.c.l.b16 %v459
  %v1850 = vunpack.c.h.b16 %v459
  %v1851 = vunpack.c.l.b16 %v460
  %v1852 = vunpack.c.h.b16 %v460
  %v1853 = vunpack.c.l.b16 %v461
  %v1854 = vunpack.c.h.b16 %v461
  %v1855 = vunpack.c.l.b16 %v462
  %v1856 = vunpack.c.h.b16 %v462
  %v1857 = vunpack.c.l.b16 %v463
  %v1858 = vunpack.c.h.b16 %v463
  %v1859 = vunpack.c.l.b16 %v464
  %v1860 = vunpack.c.h.b16 %v464
  %v1861 = vunpack.c.l.b16 %v465
  %v1862 = vunpack.c.h.b16 %v465
  %v1863 = vunpack.c.l.b16 %v466
  %v1864 = vunpack.c.h.b16 %v466
  %v1865 = vunpack.c.l.b16 %v467
  %v1866 = vunpack.c.h.b16 %v467
  %v1867 = vunpack.c.l.b16 %v468
  %v1868 = vunpack.c.h.b16 %v468
  %v1869 = vunpack.c.l.b16 %v469
  %v1870 = vunpack.c.h.b16 %v469
  %v1871 = vunpack.c.l.b16 %v470
  %v1872 = vunpack.c.h.b16 %v470
  %v1873 = vunpack.c.l.b16 %v471
  %v1874 = vunpack.c.h.b16 %v471
  %v1875 = vunpack.c.l.b16 %v472
  %v1876 = vunpack.c.h.b16 %v472
  %v1877 = vunpack.c.l.b16 %v473
  %v1878 = vunpack.c.h.b16 %v473
  %v1879 = vunpack.c.l.b16 %v474
  %v1880 = vunpack.c.h.b16 %v474
  %v1881 = vunpack.c.l.b16 %v475
  %v1882 = vunpack.c.h.b16 %v475
  %v1883 = vunpack.c.l.b16 %v476
  %v1884 = vunpack.c.h.b16 %v476
  %v1885 = vunpack.c.l.b16 %v477
  %v1886 = vunpack.c.h.b16 %v477
  %v1887 = vunpack.c.l.b16 %v478
  %v1888 = vunpack.c.h.b16 %v478
  %v1889 = vunpack.c.l.b16 %v479
  %v1890 = vunpack.c.h.b16 %v479
  %v1891 = vunpack.c.l.b16 %v480
  %v1892 = vunpack.c.h.b16 %v480
  %v1893 = vunpack.c.l.b16 %v481
  %v1894 = vunpack.c.h.b16 %v481
  %v1895 = vunpack.c.l.b16 %v482
  %v1896 = vunpack.c.h.b16 %v482
  %v1897 = vunpack.c.l.b16 %v483
  %v1898 = vunpack.c.h.b16 %v483
  %v1899 = vunpack.c.l.b16 %v484
  %v1900 = vunpack.c.h.b16 %v484
  %v1901 = vunpack.c.l.b16 %v485
  %v1902 = vunpack.c.h.b16 %v485
  %v1903 = vunpack.c.l.b16 %v486
  %v1904 = vunpack.c.h.b16 %v486
  %v1905 = vunpack.c.l.b16 %v487
  %v1906 = vunpack.c.h.b16 %v487
  %v1907 = vunpack.c.l.b16 %v488
  %v1908 = vunpack.c.h.b16 %v488
  %v1909 = vunpack.c.l.b16 %v489
  %v1910 = vunpack.c.h.b16 %v489
  %v1911 = vunpack.c.l.b16 %v490
  %v1912 = vunpack.c.h.b16 %v490
  %v1913 = vunpack.c.l.b16 %v491
  %v1914 = vunpack.c.h.b16 %v491
  %v1915 = vunpack.c.l.b16 %v492
  %v1916 = vunpack.c.h.b16 %v492
  %v1917 = vunpack.c.l.b16 %v493
  %v1918 = vunpack.c.h.b16 %v493
  %v1919 = vunpack.c.l.b16 %v494
  %v1920 = vunpack.c.h.b16 %v494
  %v1921 = vunpack.c.l.b16 %v495
  %v1922 = vunpack.c.h.b16 %v495
  %v1923 = vunpack.c.l.b16 %v496
  %v1924 = vunpack.c.h.b16 %v496
  %v1925 = vpack.c.b16 %v1085, %v1029
  %v1926 = vpack.c.b16 %v1086, %v1030
  %v1927 = vpack.c.b16 %v1087, %v1031
  %v1928 = vpack.c.b16 %v1088, %v1032
  %v1929 = vpack.c.b16 %v1089, %v1033
  %v1930 = vpack.c.b16 %v1090, %v1034
  %v1931 = vpack.c.b16 %v1091, %v1035
  %v1932 = vpack.c.b16 %v1092, %v1036
  %v1933 = vpack.c.b16 %v1093, %v1037
  %v1934 = vpack.c.b16 %v1094, %v1038
  %v1935 = vpack.c.b16 %v1095, %v1039
  %v1936 = vpack.c.b16 %v1096, %v1040
  %v1937 = vpack.c.b16 %v1097, %v1041
  %v1938 = vpack.c.b16 %v1098, %v1042
  %v1939 = vpack.c.b16 %v1099, %v1043
  %v1940 = vpack.c.b16 %v1100, %v1044
  %v1941 = vpack.c.b16 %v1101, %v1045
  %v1942 = vpack.c.b16 %v1102, %v1046
  %v1943 = vpack.c.b16 %v1103, %v1047
  %v1944 = vpack.c.b16 %v1104, %v1048
  %v1945 = vpack.c.b16 %v1105, %v1049
  %v1946 = vpack.c.b16 %v1106, %v1050
  %v1947 = vpack.c.b16 %v1107, %v1051
  %v1948 = vpack.c.b16 %v1108, %v1052
  %v1949 = vpack.c.b16 %v1109, %v1053
  %v1950 = vpack.c.b16 %v1110, %v1054
  %v1951 = vpack.c.b16 %v1111, %v1055
  %v1952 = vpack.c.b16 %v1112, %v1056
  %v1953 = vpack.c.b16 %v1113, %v1057
  %v1954 = vpack.c.b16 %v1114, %v1058
  %v1955 = vpack.c.b16 %v1115, %v1059
  %v1956 = vpack.c.b16 %v1116, %v1060
  %v1957 = vpack.c.b16 %v1117, %v1061
  %v1958 = vpack.c.b16 %v1118, %v1062
  %v1959 = vpack.c.b16 %v1119, %v1063
  %v1960 = vpack.c.b16 %v1120, %v1064
  %v1961 = vpack.c.b16 %v1121, %v1065
  %v1962 = vpack.c.b16 %v1122, %v1066
  %v1963 = vpack.c.b16 %v1123, %v1067
  %v1964 = vpack.c.b16 %v1124, %v1068
  %v1965 = vpack.c.b16 %v1125, %v1069
  %v1966 = vpack.c.b16 %v1126, %v1070
  %v1967 = vpack.c.b16 %v1127, %v1071
  %v1968 = vpack.c.b16 %v1128, %v1072
  %v1969 = vpack.c.b16 %v1129, %v1073
  %v1970 = vpack.c.b16 %v1130, %v1074
  %v1971 = vpack.c.b16 %v1131, %v1075
  %v1972 = vpack.c.b16 %v1132, %v1076
  %v1973 = vpack.c.b16 %v1133, %v1077
  %v1974 = vpack.c.b16 %v1134, %v1078
  %v1975 = vpack.c.b16 %v1135, %v1079
  %v1976 = vpack.c.b16 %v1136, %v1080
  %v1977 = vpack.c.b16 %v1137, %v1081
  %v1978 = vpack.c.b16 %v1138, %v1082
  %v1979 = vpack.c.b16 %v1139, %v1083
  %v1980 = vpack.c.b16 %v1140, %v1084
  %v1981 = vpack.c.b16 %v1197, %v1141
  %v1982 = vpack.c.b16 %v1198, %v1142
  %v1983 = vpack.c.b16 %v1199, %v1143
  %v1984 = vpack.c.b16 %v1200, %v1144
  %v1985 = vpack.c.b16 %v1201, %v1145
  %v1986 = vpack.c.b16 %v1202, %v1146
  %v1987 = vpack.c.b16 %v1203, %v1147
  %v1988 = vpack.c.b16 %v1204, %v1148
  %v1989 = vpack.c.b16 %v1205, %v1149
  %v1990 = vpack.c.b16 %v1206, %v1150
  %v1991 = vpack.c.b16 %v1207, %v1151
  %v1992 = vpack.c.b16 %v1208, %v1152
  %v1993 = vpack.c.b16 %v1209, %v1153
  %v1994 = vpack.c.b16 %v1210, %v1154
  %v1995 = vpack.c.b16 %v1211, %v1155
  %v1996 = vpack.c.b16 %v1212, %v1156
  %v1997 = vpack.c.b16 %v1213, %v1157
  %v1998 = vpack.c.b16 %v1214, %v1158
  %v1999 = vpack.c.b16 %v1215, %v1159
  %v2000 = vpack.c.b16 %v1216, %v1160
  %v2001 = vpack.c.b16 %v1217, %v1161
  %v2002 = vpack.c.b16 %v1218, %v1162
  %v2003 = vpack.c.b16 %v1219, %v1163
  %v2004 = vpack.c.b16 %v1220, %v1164
  %v2005 = vpack.c.b16 %v1221, %v1165
  %v2006 = vpack.c.b16 %v1222, %v1166
  %v2007 = vpack.c.b16 %v1223, %v1167
  %v2008 = vpack.c.b16 %v1224, %v1168
  %v2009 = vpack.c.b16 %v1225, %v1169
  %v2010 = vpack.c.b16 %v1226, %v1170
  %v2011 = vpack.c.b16 %v1227, %v1171
  %v2012 = vpack.c.b16 %v1228, %v1172
  %v2013 = vpack.c.b16 %v1229, %v1173
  %v2014 = vpack.c.b16 %v1230, %v1174
  %v2015 = vpack.c.b16 %v1231, %v1175
  %v2016 = vpack.c.b16 %v1232, %v1176
  %v2017 = vpack.c.b16 %v1233, %v1177
  %v2018 = vpack.c.b16 %v1234, %v1178
  %v2019 = vpack.c.b16 %v1235, %v1179
  %v2020 = vpack.c.b16 %v1236, %v1180
  %v2021 = vpack.c.b16 %v1237, %v1181
  %v2022 = vpack.c.b16 %v1238, %v1182
  %v2023 = vpack.c.b16 %v1239, %v1183
  %v2024 = vpack.c.b16 %v1240, %v1184
  %v2025 = vpack.c.b16 %v1241, %v1185
  %v2026 = vpack.c.b16 %v1242, %v1186
  %v2027 = vpack.c.b16 %v1243, %v1187
  %v2028 = vpack.c.b16 %v1244, %v1188
  %v2029 = vpack.c.b16 %v1245, %v1189
  %v2030 = vpack.c.b16 %v1246, %v1190
  %v2031 = vpack.c.b16 %v1247, %v1191
  %v2032 = vpack.c.b16 %v1248, %v1192
  %v2033 = vpack.c.b16 %v1249, %v1193
  %v2034 = vpack.c.b16 %v1250, %v1194
  %v2035 = vpack.c.b16 %v1251, %v1195
  %v2036 = vpack.c.b16 %v1252, %v1196
  %v2037 = vpack.c.b16 %v1309, %v1253
  %v2038 = vpack.c.b16 %v1310, %v1254
  %v2039 = vpack.c.b16 %v1311, %v1255
  %v2040 = vpack.c.b16 %v1312, %v1256
  %v2041 = vpack.c.b16 %v1313, %v1257
  %v2042 = vpack.c.b16 %v1314, %v1258
  %v2043 = vpack.c.b16 %v1315, %v1259
  %v2044 = vpack.c.b16 %v1316, %v1260
  %v2045 = vpack.c.b16 %v1317, %v1261
  %v2046 = vpack.c.b16 %v1318, %v1262
  %v2047 = vpack.c.b16 %v1319, %v1263
  %v2048 = vpack.c.b16 %v1320, %v1264
  %v2049 = vpack.c.b16 %v1321, %v1265
  %v2050 = vpack.c.b16 %v1322, %v1266
  %v2051 = vpack.c.b16 %v1323, %v1267
  %v2052 = vpack.c.b16 %v1324, %v1268
  %v2053 = vpack.c.b16 %v1325, %v1269
  %v2054 = vpack.c.b16 %v1326, %v1270
  %v2055 = vpack.c.b16 %v1327, %v1271
  %v2056 = vpack.c.b16 %v1328, %v1272
  %v2057 = vpack.c.b16 %v1329, %v1273
  %v2058 = vpack.c.b16 %v1330, %v1274
  %v2059 = vpack.c.b16 %v1331, %v1275
  %v2060 = vpack.c.b16 %v1332, %v1276
  %v2061 = vpack.c.b16 %v1333, %v1277
  %v2062 = vpack.c.b16 %v1334, %v1278
  %v2063 = vpack.c.b16 %v1335, %v1279
  %v2064 = vpack.c.b16 %v1336, %v1280
  %v2065 = vpack.c.b16 %v1337, %v1281
  %v2066 = vpack.c.b16 %v1338, %v1282
  %v2067 = vpack.c.b16 %v1339, %v1283
  %v2068 = vpack.c.b16 %v1340, %v1284
  %v2069 = vpack.c.b16 %v1341, %v1285
  %v2070 = vpack.c.b16 %v1342, %v1286
  %v2071 = vpack.c.b16 %v1343, %v1287
  %v2072 = vpack.c.b16 %v1344, %v1288
  %v2073 = vpack.c.b16 %v1345, %v1289
  %v2074 = vpack.c.b16 %v1346, %v1290
  %v2075 = vpack.c.b16 %v1347, %v1291
  %v2076 = vpack.c.b16 %v1348, %v1292
  %v2077 = vpack.c.b16 %v1349, %v1293
  %v2078 = vpack.c.b16 %v1350, %v1294
  %v2079 = vpack.c.b16 %v1351, %v1295
  %v2080 = vpack.c.b16 %v1352, %v1296
  %v2081 = vpack.c.b16 %v1353, %v1297
  %v2082 = vpack.c.b16 %v1354, %v1298
  %v2083 = vpack.c.b16 %v1355, %v1299
  %v2084 = vpack.c.b16 %v1356, %v1300
  %v2085 = vpack.c.b16 %v1357, %v1301
  %v2086 = vpack.c.b16 %v1358, %v1302
  %v2087 = vpack.c.b16 %v1359, %v1303
  %v2088 = vpack.c.b16 %v1360, %v1304
  %v2089 = vpack.c.b16 %v1361, %v1305
  %v2090 = vpack.c.b16 %v1362, %v1306
  %v2091 = vpack.c.b16 %v1363, %v1307
  %v2092 = vpack.c.b16 %v1364, %v1308
  %v2093 = vpack.c.b16 %v1421, %v1365
  %v2094 = vpack.c.b16 %v1422, %v1366
  %v2095 = vpack.c.b16 %v1423, %v1367
  %v2096 = vpack.c.b16 %v1424, %v1368
  %v2097 = vpack.c.b16 %v1425, %v1369
  %v2098 = vpack.c.b16 %v1426, %v1370
  %v2099 = vpack.c.b16 %v1427, %v1371
  %v2100 = vpack.c.b16 %v1428, %v1372
  %v2101 = vpack.c.b16 %v1429, %v1373
  %v2102 = vpack.c.b16 %v1430, %v1374
  %v2103 = vpack.c.b16 %v1431, %v1375
  %v2104 = vpack.c.b16 %v1432, %v1376
  %v2105 = vpack.c.b16 %v1433, %v1377
  %v2106 = vpack.c.b16 %v1434, %v1378
  %v2107 = vpack.c.b16 %v1435, %v1379
  %v2108 = vpack.c.b16 %v1436, %v1380
  %v2109 = vpack.c.b16 %v1437, %v1381
  %v2110 = vpack.c.b16 %v1438, %v1382
  %v2111 = vpack.c.b16 %v1439, %v1383
  %v2112 = vpack.c.b16 %v1440, %v1384
  %v2113 = vpack.c.b16 %v1441, %v1385
  %v2114 = vpack.c.b16 %v1442, %v1386
  %v2115 = vpack.c.b16 %v1443, %v1387
  %v2116 = vpack.c.b16 %v1444, %v1388
  %v2117 = vpack.c.b16 %v1445, %v1389
  %v2118 = vpack.c.b16 %v1446, %v1390
  %v2119 = vpack.c.b16 %v1447, %v1391
  %v2120 = vpack.c.b16 %v1448, %v1392
  %v2121 = vpack.c.b16 %v1449, %v1393
  %v2122 = vpack.c.b16 %v1450, %v1394
  %v2123 = vpack.c.b16 %v1451, %v1395
  %v2124 = vpack.c.b16 %v1452, %v1396
  %v2125 = vpack.c.b16 %v1453, %v1397
  %v2126 = vpack.c.b16 %v1454, %v1398
  %v2127 = vpack.c.b16 %v1455, %v1399
  %v2128 = vpack.c.b16 %v1456, %v1400
  %v2129 = vpack.c.b16 %v1457, %v1401
  %v2130 = vpack.c.b16 %v1458, %v1402
  %v2131 = vpack.c.b16 %v1459, %v1403
  %v2132 = vpack.c.b16 %v1460, %v1404
  %v2133 = vpack.c.b16 %v1461, %v1405
  %v2134 = vpack.c.b16 %v1462, %v1406
  %v2135 = vpack.c.b16 %v1463, %v1407
  %v2136 = vpack.c.b16 %v1464, %v1408
  %v2137 = vpack.c.b16 %v1465, %v1409
  %v2138 = vpack.c.b16 %v1466, %v1410
  %v2139 = vpack.c.b16 %v1467, %v1411
  %v2140 = vpack.c.b16 %v1468, %v1412
  %v2141 = vpack.c.b16 %v1469, %v1413
  %v2142 = vpack.c.b16 %v1470, %v1414
  %v2143 = vpack.c.b16 %v1471, %v1415
  %v2144 = vpack.c.b16 %v1472, %v1416
  %v2145 = vpack.c.b16 %v1473, %v1417
  %v2146 = vpack.c.b16 %v1474, %v1418
  %v2147 = vpack.c.b16 %v1475, %v1419
  %v2148 = vpack.c.b16 %v1476, %v1420
  %v2149 = vpack.c.b16 %v1533, %v1477
  %v2150 = vpack.c.b16 %v1534, %v1478
  %v2151 = vpack.c.b16 %v1535, %v1479
  %v2152 = vpack.c.b16 %v1536, %v1480
  %v2153 = vpack.c.b16 %v1537, %v1481
  %v2154 = vpack.c.b16 %v1538, %v1482
  %v2155 = vpack.c.b16 %v1539, %v1483
  %v2156 = vpack.c.b16 %v1540, %v1484
  %v2157 = vpack.c.b16 %v1541, %v1485
  %v2158 = vpack.c.b16 %v1542, %v1486
  %v2159 = vpack.c.b16 %v1543, %v1487
  %v2160 = vpack.c.b16 %v1544, %v1488
  %v2161 = vpack.c.b16 %v1545, %v1489
  %v2162 = vpack.c.b16 %v1546, %v1490
  %v2163 = vpack.c.b16 %v1547, %v1491
  %v2164 = vpack.c.b16 %v1548, %v1492
  %v2165 = vpack.c.b16 %v1549, %v1493
  %v2166 = vpack.c.b16 %v1550, %v1494
  %v2167 = vpack.c.b16 %v1551, %v1495
  %v2168 = vpack.c.b16 %v1552, %v1496
  %v2169 = vpack.c.b16 %v1553, %v1497
  %v2170 = vpack.c.b16 %v1554, %v1498
  %v2171 = vpack.c.b16 %v1555, %v1499
  %v2172 = vpack.c.b16 %v1556, %v1500
  %v2173 = vpack.c.b16 %v1557, %v1501
  %v2174 = vpack.c.b16 %v1558, %v1502
  %v2175 = vpack.c.b16 %v1559, %v1503
  %v2176 = vpack.c.b16 %v1560, %v1504
  %v2177 = vpack.c.b16 %v1561, %v1505
  %v2178 = vpack.c.b16 %v1562, %v1506
  %v2179 = vpack.c.b16 %v1563, %v1507
  %v2180 = vpack.c.b16 %v1564, %v1508
  %v2181 = vpack.c.b16 %v1565, %v1509
  %v2182 = vpack.c.b16 %v1566, %v1510
  %v2183 = vpack.c.b16 %v1567, %v1511
  %v2184 = vpack.c.b16 %v1568, %v1512
  %v2185 = vpack.c.b16 %v1569, %v1513
  %v2186 = vpack.c.b16 %v1570, %v1514
  %v2187 = vpack.c.b16 %v1571, %v1515
  %v2188 = vpack.c.b16 %v1572, %v1516
  %v2189 = vpack.c.b16 %v1573, %v1517
  %v2190 = vpack.c.b16 %v1574, %v1518
  %v2191 = vpack.c.b16 %v1575, %v1519
  %v2192 = vpack.c.b16 %v1576, %v1520
  %v2193 = vpack.c.b16 %v1577, %v1521
  %v2194 = vpack.c.b16 %v1578, %v1522
  %v2195 = vpack.c.b16 %v1579, %v1523
  %v2196 = vpack.c.b16 %v1580, %v1524
  %v2197 = vpack.c.b16 %v1581, %v1525
  %v2198 = vpack.c.b16 %v1582, %v1526
  %v2199 = vpack.c.b16 %v1583, %v1527
  %v2200 = vpack.c.b16 %v1584, %v1528
  %v2201 = vpack.c.b16 %v1585, %v1529
  %v2202 = vpack.c.b16 %v1586, %v1530
  %v2203 = vpack.c.b16 %v1587, %v1531
  %v2204 = vpack.c.b16 %v1588, %v1532
  %v2205 = vpack.c.b16 %v1645, %v1589
  %v2206 = vpack.c.b16 %v1646, %v1590
  %v2207 = vpack.c.b16 %v1647, %v1591
  %v2208 = vpack.c.b16 %v1648, %v1592
  %v2209 = vpack.c.b16 %v1649, %v1593
  %v2210 = vpack.c.b16 %v1650, %v1594
  %v2211 = vpack.c.b16 %v1651, %v1595
  %v2212 = vpack.c.b16 %v1652, %v1596
  %v2213 = vpack.c.b16 %v1653, %v1597
  %v2214 = vpack.c.b16 %v1654, %v1598
  %v2215 = vpack.c.b16 %v1655, %v1599
  %v2216 = vpack.c.b16 %v1656, %v1600
  %v2217 = vpack.c.b16 %v1657, %v1601
  %v2218 = vpack.c.b16 %v1658, %v1602
  %v2219 = vpack.c.b16 %v1659, %v1603
  %v2220 = vpack.c.b16 %v1660, %v1604
  %v2221 = vpack.c.b16 %v1661, %v1605
  %v2222 = vpack.c.b16 %v1662, %v1606
  %v2223 = vpack.c.b16 %v1663, %v1607
  %v2224 = vpack.c.b16 %v1664, %v1608
  %v2225 = vpack.c.b16 %v1665, %v1609
  %v2226 = vpack.c.b16 %v1666, %v1610
  %v2227 = vpack.c.b16 %v1667, %v1611
  %v2228 = vpack.c.b16 %v1668, %v1612
  %v2229 = vpack.c.b16 %v1669, %v1613
  %v2230 = vpack.c.b16 %v1670, %v1614
  %v2231 = vpack.c.b16 %v1671, %v1615
  %v2232 = vpack.c.b16 %v1672, %v1616
  %v2233 = vpack.c.b16 %v1673, %v1617
  %v2234 = vpack.c.b16 %v1674, %v1618
  %v2235 = vpack.c.b16 %v1675, %v1619
  %v2236 = vpack.c.b16 %v1676, %v1620
  %v2237 = vpack.c.b16 %v1677, %v1621
  %v2238 = vpack.c.b16 %v1678, %v1622
  %v2239 = vpack.c.b16 %v1679, %v1623
  %v2240 = vpack.c.b16 %v1680, %v1624
  %v2241 = vpack.c.b16 %v1681, %v1625
  %v2242 = vpack.c.b16 %v1682, %v1626
  %v2243 = vpack.c.b16 %v1683, %v1627
  %v2244 = vpack.c.b16 %v1684, %v1628
  %v2245 = vpack.c.b16 %v1685, %v1629
  %v2246 = vpack.c.b16 %v1686, %v1630
  %v2247 = vpack.c.b16 %v1687, %v1631
  %v2248 = vpack.c.b16 %v1688, %v1632
  %v2249 = vpack.c.b16 %v1689, %v1633
  %v2250 = vpack.c.b16 %v1690, %v1634
  %v2251 = vpack.c.b16 %v1691, %v1635
  %v2252 = vpack.c.b16 %v1692, %v1636
  %v2253 = vpack.c.b16 %v1693, %v1637
  %v2254 = vpack.c.b16 %v1694, %v1638
  %v2255 = vpack.c.b16 %v1695, %v1639
  %v2256 = vpack.c.b16 %v1696, %v1640
  %v2257 = vpack.c.b16 %v1697, %v1641
  %v2258 = vpack.c.b16 %v1698, %v1642
  %v2259 = vpack.c.b16 %v1699, %v1643
  %v2260 = vpack.c.b16 %v1700, %v1644
  %v2261 = vpack.c.b16 %v1757, %v1701
  %v2262 = vpack.c.b16 %v1758, %v1702
  %v2263 = vpack.c.b16 %v1759, %v1703
  %v2264 = vpack.c.b16 %v1760, %v1704
  %v2265 = vpack.c.b16 %v1761, %v1705
  %v2266 = vpack.c.b16 %v1762, %v1706
  %v2267 = vpack.c.b16 %v1763, %v1707
  %v2268 = vpack.c.b16 %v1764, %v1708
  %v2269 = vpack.c.b16 %v1765, %v1709
  %v2270 = vpack.c.b16 %v1766, %v1710
  %v2271 = vpack.c.b16 %v1767, %v1711
  %v2272 = vpack.c.b16 %v1768, %v1712
  %v2273 = vpack.c.b16 %v1769, %v1713
  %v2274 = vpack.c.b16 %v1770, %v1714
  %v2275 = vpack.c.b16 %v1771, %v1715
  %v2276 = vpack.c.b16 %v1772, %v1716
  %v2277 = vpack.c.b16 %v1773, %v1717
  %v2278 = vpack.c.b16 %v1774, %v1718
  %v2279 = vpack.c.b16 %v1775, %v1719
  %v2280 = vpack.c.b16 %v1776, %v1720
  %v2281 = vpack.c.b16 %v1777, %v1721
  %v2282 = vpack.c.b16 %v1778, %v1722
  %v2283 = vpack.c.b16 %v1779, %v1723
  %v2284 = vpack.c.b16 %v1780, %v1724
  %v2285 = vpack.c.b16 %v1781, %v1725
  %v2286 = vpack.c.b16 %v1782, %v1726
  %v2287 = vpack.c.b16 %v1783, %v1727
  %v2288 = vpack.c.b16 %v1784, %v1728
  %v2289 = vpack.c.b16 %v1785, %v1729
  %v2290 = vpack.c.b16 %v1786, %v1730
  %v2291 = vpack.c.b16 %v1787, %v1731
  %v2292 = vpack.c.b16 %v1788, %v1732
  %v2293 = vpack.c.b16 %v1789, %v1733
  %v2294 = vpack.c.b16 %v1790, %v1734
  %v2295 = vpack.c.b16 %v1791, %v1735
  %v2296 = vpack.c.b16 %v1792, %v1736
  %v2297 = vpack.c.b16 %v1793, %v1737
  %v2298 = vpack.c.b16 %v1794, %v1738
  %v2299 = vpack.c.b16 %v1795, %v1739
  %v2300 = vpack.c.b16 %v1796, %v1740
  %v2301 = vpack.c.b16 %v1797, %v1741
  %v2302 = vpack.c.b16 %v1798, %v1742
  %v2303 = vpack.c.b16 %v1799, %v1743
  %v2304 = vpack.c.b16 %v1800, %v1744
  %v2305 = vpack.c.b16 %v1801, %v1745
  %v2306 = vpack.c.b16 %v1802, %v1746
  %v2307 = vpack.c.b16 %v1803, %v1747
  %v2308 = vpack.c.b16 %v1804, %v1748
  %v2309 = vpack.c.b16 %v1805, %v1749
  %v2310 = vpack.c.b16 %v1806, %v1750
  %v2311 = vpack.c.b16 %v1807, %v1751
  %v2312 = vpack.c.b16 %v1808, %v1752
  %v2313 = vpack.c.b16 %v1809, %v1753
  %v2314 = vpack.c.b16 %v1810, %v1754
  %v2315 = vpack.c.b16 %v1811, %v1755
  %v2316 = vpack.c.b16 %v1812, %v1756
  %v2317 = vpack.c.b16 %v1869, %v1813
  %v2318 = vpack.c.b16 %v1870, %v1814
  %v2319 = vpack.c.b16 %v1871, %v1815
  %v2320 = vpack.c.b16 %v1872, %v1816
  %v2321 = vpack.c.b16 %v1873, %v1817
  %v2322 = vpack.c.b16 %v1874, %v1818
  %v2323 = vpack.c.b16 %v1875, %v1819
  %v2324 = vpack.c.b16 %v1876, %v1820
  %v2325 = vpack.c.b16 %v1877, %v1821
  %v2326 = vpack.c.b16 %v1878, %v1822
  %v2327 = vpack.c.b16 %v1879, %v1823
  %v2328 = vpack.c.b16 %v1880, %v1824
  %v2329 = vpack.c.b16 %v1881, %v1825
  %v2330 = vpack.c.b16 %v1882, %v1826
  %v2331 = vpack.c.b16 %v1883, %v1827
  %v2332 = vpack.c.b16 %v1884, %v1828
  %v2333 = vpack.c.b16 %v1885, %v1829
  %v2334 = vpack.c.b16 %v1886, %v1830
  %v2335 = vpack.c.b16 %v1887, %v1831
  %v2336 = vpack.c.b16 %v1888, %v1832
  %v2337 = vpack.c.b16 %v1889, %v1833
  %v2338 = vpack.c.b16 %v1890, %v1834
  %v2339 = vpack.c.b16 %v1891, %v1835
  %v2340 = vpack.c.b16 %v1892, %v1836
  %v2341 = vpack.c.b16 %v1893, %v1837
  %v2342 = vpack.c.b16 %v1894, %v1838
  %v2343 = vpack.c.b16 %v1895, %v1839
  %v2344 = vpack.c.b16 %v1896, %v1840
  %v2345 = vpack.c.b16 %v1897, %v1841
  %v2346 = vpack.c.b16 %v1898, %v1842
  %v2347 = vpack.c.b16 %v1899, %v1843
  %v2348 = vpack.c.b16 %v1900, %v1844
  %v2349 = vpack.c.b16 %v1901, %v1845
  %v2350 = vpack.c.b16 %v1902, %v1846
  %v2351 = vpack.c.b16 %v1903, %v1847
  %v2352 = vpack.c.b16 %v1904, %v1848
  %v2353 = vpack.c.b16 %v1905, %v1849
  %v2354 = vpack.c.b16 %v1906, %v1850
  %v2355 = vpack.c.b16 %v1907, %v1851
  %v2356 = vpack.c.b16 %v1908, %v1852
  %v2357 = vpack.c.b16 %v1909, %v1853
  %v2358 = vpack.c.b16 %v1910, %v1854
  %v2359 = vpack.c.b16 %v1911, %v1855
  %v2360 = vpack.c.b16 %v1912, %v1856
  %v2361 = vpack.c.b16 %v1913, %v1857
  %v2362 = vpack.c.b16 %v1914, %v1858
  %v2363 = vpack.c.b16 %v1915, %v1859
  %v2364 = vpack.c.b16 %v1916, %v1860
  %v2365 = vpack.c.b16 %v1917, %v1861
  %v2366 = vpack.c.b16 %v1918, %v1862
  %v2367 = vpack.c.b16 %v1919, %v1863
  %v2368 = vpack.c.b16 %v1920, %v1864
  %v2369 = vpack.c.b16 %v1921, %v1865
  %v2370 = vpack.c.b16 %v1922, %v1866
  %v2371 = vpack.c.b16 %v1923, %v1867
  %v2372 = vpack.c.b16 %v1924, %v1868
  %2821 = vmatprep.subr.bf16.mxu0 %v1926
  %2822 = vmatpush1.bf16.msra.mxu0 %v1925
  %2823 = vmatprep.subr.bf16.mxu0 %v1982
  %2824 = vmatpush1.bf16.msra.mxu0 %v1981
  %2825 = vmatprep.subr.bf16.mxu0 %v2038
  %2826 = vmatpush1.bf16.msra.mxu0 %v2037
  %2827 = vmatprep.subr.bf16.mxu0 %v2094
  %2828 = vmatpush1.bf16.msra.mxu0 %v2093
  %2829 = vmatprep.subr.bf16.mxu0 %v2150
  %2830 = vmatpush1.bf16.msra.mxu0 %v2149
  %2831 = vmatprep.subr.bf16.mxu0 %v2206
  %2832 = vmatpush1.bf16.msra.mxu0 %v2205
  %2833 = vmatprep.subr.bf16.mxu0 %v2262
  %2834 = vmatpush1.bf16.msra.mxu0 %v2261
  %2835 = vmatprep.subr.bf16.mxu0 %v2318
  %2836 = vmatpush1.bf16.msra.mxu0 %v2317
  %2837 = vmatprep.subr.bf16.mxu0 0
  %2838 = vmatpush1.bf16.msra.mxu0 0
  %2839 = vmatprep.subr.bf16.mxu0 0
  %2840 = vmatpush1.bf16.msra.mxu0 0
  %2841 = vmatprep.subr.bf16.mxu0 0
  %2842 = vmatpush1.bf16.msra.mxu0 0
  %2843 = vmatprep.subr.bf16.mxu0 0
  %2844 = vmatpush1.bf16.msra.mxu0 0
  %2845 = vmatprep.subr.bf16.mxu0 0
  %2846 = vmatpush1.bf16.msra.mxu0 0
  %2847 = vmatprep.subr.bf16.mxu0 0
  %2848 = vmatpush1.bf16.msra.mxu0 0
  %2849 = vmatprep.subr.bf16.mxu0 0
  %2850 = vmatpush1.bf16.msra.mxu0 0
  %2851 = vmatprep.subr.bf16.mxu0 0
  %2852 = vmatpush1.bf16.msra.mxu0 0
  %2853 = vmatprep.mubr.bf16.mxu0 0
  %2854 = vmatmul.mubr.bf16.gmra.mrb[0].mxu0 %v553
  %v2855 = vpop.f32.mrb[0].mxu0
  %v2856 = vadd.f32 0.0, %v2855
  %v2857 = vpop.f32.mrb[0].mxu0
  %v2858 = vadd.f32 0.0, %v2857
  %v2859 = vpop.f32.mrb[0].mxu0
  %v2860 = vadd.f32 0.0, %v2859
  %v2861 = vpop.f32.mrb[0].mxu0
  %v2862 = vadd.f32 0.0, %v2861
  %2863 = vmatprep.mubr.bf16.mxu0 0
  %2864 = vmatmul.mubr.bf16.gmra.mrb[0].mxu0 %v554
  %v2865 = vpop.f32.mrb[0].mxu0
  %v2866 = vadd.f32 0.0, %v2865
  %v2867 = vpop.f32.mrb[0].mxu0
  %v2868 = vadd.f32 0.0, %v2867
  %v2869 = vpop.f32.mrb[0].mxu0
  %v2870 = vadd.f32 0.0, %v2869
  %v2871 = vpop.f32.mrb[0].mxu0
  %v2872 = vadd.f32 0.0, %v2871
  %2873 = vmatprep.mubr.bf16.mxu0 0
  %2874 = vmatmul.mubr.bf16.gmra.mrb[0].mxu0 %v555
  %v2875 = vpop.f32.mrb[0].mxu0
  %v2876 = vpop.f32.mrb[0].mxu0
  %v2877 = vadd.f32 0.0, %v2876
  %v2878 = vpop.f32.mrb[0].mxu0
  %v2879 = vpop.f32.mrb[0].mxu0
  %v2880 = vadd.f32 0.0, %v2879
  %2881 = vmatprep.mubr.bf16.mxu0 0
  %2882 = vmatmul.mubr.bf16.gmra.mrb[0].mxu0 %v556
  %v2883 = vpop.f32.mrb[0].mxu0
  %v2884 = vpop.f32.mrb[0].mxu0
  %v2885 = vadd.f32 0.0, %v2884
  %v2886 = vpop.f32.mrb[0].mxu0
  %v2887 = vpop.f32.mrb[0].mxu0
  %v2888 = vadd.f32 0.0, %v2887
  %2889 = vmatprep.mubr.bf16.mxu0 0
  %2890 = vmatmul.mubr.bf16.gmra.mrb[0].mxu0 %v557
  %v2891 = vpop.f32.mrb[0].mxu0
  %v2892 = vpop.f32.mrb[0].mxu0
  %v2893 = vpop.f32.mrb[0].mxu0
  %v2894 = vpop.f32.mrb[0].mxu0
  %2895 = vmatprep.mubr.bf16.mxu0 0
  %2896 = vmatmul.mubr.bf16.gmra.mrb[0].mxu0 %v558
  %v2897 = vpop.f32.mrb[0].mxu0
  %v2898 = vpop.f32.mrb[0].mxu0
  %v2899 = vpop.f32.mrb[0].mxu0
  %v2900 = vpop.f32.mrb[0].mxu0
  %2901 = vmatprep.mubr.bf16.mxu0 0
  %2902 = vmatmul.mubr.bf16.gmra.mrb[0].mxu0 %v559
  %v2903 = vpop.f32.mrb[0].mxu0
  %v2904 = vpop.f32.mrb[0].mxu0
  %v2905 = vpop.f32.mrb[0].mxu0
  %v2906 = vpop.f32.mrb[0].mxu0
  %2907 = vmatprep.mubr.bf16.mxu0 0
  %2908 = vmatmul.mubr.bf16.gmra.mrb[0].mxu0 %v560
  %v2909 = vpop.f32.mrb[0].mxu0
  %v2910 = vpop.f32.mrb[0].mxu0
  %v2911 = vpop.f32.mrb[0].mxu0
  %v2912 = vpop.f32.mrb[0].mxu0
  %2913 = vmatprep.mubr.bf16.mxu0 0
  %2914 = vmatmul.mubr.bf16.gmra.mrb[0].mxu0 %v561
  %v2915 = vpop.f32.mrb[0].mxu0
  %v2916 = vpop.f32.mrb[0].mxu0
  %v2917 = vpop.f32.mrb[0].mxu0
  %v2918 = vpop.f32.mrb[0].mxu0
  %2919 = vmatprep.mubr.bf16.mxu0 0
  %2920 = vmatmul.mubr.bf16.gmra.mrb[0].mxu0 %v562
  %v2921 = vpop.f32.mrb[0].mxu0
  %v2922 = vpop.f32.mrb[0].mxu0
  %v2923 = vpop.f32.mrb[0].mxu0
  %v2924 = vpop.f32.mrb[0].mxu0
  %2925 = vmatprep.mubr.bf16.mxu0 0
  %2926 = vmatmul.mubr.bf16.gmra.mrb[0].mxu0 %v563
  %v2927 = vpop.f32.mrb[0].mxu0
  %v2928 = vpop.f32.mrb[0].mxu0
  %v2929 = vpop.f32.mrb[0].mxu0
  %v2930 = vpop.f32.mrb[0].mxu0
  %2931 = vmatprep.mubr.bf16.mxu0 0
  %2932 = vmatmul.mubr.bf16.gmra.mrb[0].mxu0 %v564
  %v2933 = vpop.f32.mrb[0].mxu0
  %v2934 = vpop.f32.mrb[0].mxu0
  %v2935 = vpop.f32.mrb[0].mxu0
  %v2936 = vpop.f32.mrb[0].mxu0
  %2937 = vmatprep.mubr.bf16.mxu0 0
  %2938 = vmatmul.mubr.bf16.gmra.mrb[0].mxu0 %v565
  %v2939 = vpop.f32.mrb[0].mxu0
  %v2940 = vpop.f32.mrb[0].mxu0
  %v2941 = vpop.f32.mrb[0].mxu0
  %v2942 = vpop.f32.mrb[0].mxu0
  %2943 = vmatprep.mubr.bf16.mxu0 0
  %2944 = vmatmul.mubr.bf16.gmra.mrb[0].mxu0 %v566
  %v2945 = vpop.f32.mrb[0].mxu0
  %v2946 = vpop.f32.mrb[0].mxu0
  %v2947 = vpop.f32.mrb[0].mxu0
  %v2948 = vpop.f32.mrb[0].mxu0
  %2949 = vdwg.mxu0
  %2950 = vmatprep.subr.bf16.mxu0 %v1928
  %2951 = vmatpush1.bf16.msra.mxu0 %v1927
  %2952 = vmatprep.subr.bf16.mxu0 %v1984
  %2953 = vmatpush1.bf16.msra.mxu0 %v1983
  %2954 = vmatprep.subr.bf16.mxu0 %v2040
  %2955 = vmatpush1.bf16.msra.mxu0 %v2039
  %2956 = vmatprep.subr.bf16.mxu0 %v2096
  %2957 = vmatpush1.bf16.msra.mxu0 %v2095
  %2958 = vmatprep.subr.bf16.mxu0 %v2152
  %2959 = vmatpush1.bf16.msra.mxu0 %v2151
  %2960 = vmatprep.subr.bf16.mxu0 %v2208
  %2961 = vmatpush1.bf16.msra.mxu0 %v2207
  %2962 = vmatprep.subr.bf16.mxu0 %v2264
  %2963 = vmatpush1.bf16.msra.mxu0 %v2263
  %2964 = vmatprep.subr.bf16.mxu0 %v2320
  %2965 = vmatpush1.bf16.msra.mxu0 %v2319
  %2966 = vmatprep.subr.bf16.mxu0 0
  %2967 = vmatpush1.bf16.msra.mxu0 0
  %2968 = vmatprep.subr.bf16.mxu0 0
  %2969 = vmatpush1.bf16.msra.mxu0 0
  %2970 = vmatprep.subr.bf16.mxu0 0
  %2971 = vmatpush1.bf16.msra.mxu0 0
  %2972 = vmatprep.subr.bf16.mxu0 0
  %2973 = vmatpush1.bf16.msra.mxu0 0
  %2974 = vmatprep.subr.bf16.mxu0 0
  %2975 = vmatpush1.bf16.msra.mxu0 0
  %2976 = vmatprep.subr.bf16.mxu0 0
  %2977 = vmatpush1.bf16.msra.mxu0 0
  %2978 = vmatprep.subr.bf16.mxu0 0
  %2979 = vmatpush1.bf16.msra.mxu0 0
  %2980 = vmatprep.subr.bf16.mxu0 0
  %2981 = vmatpush1.bf16.msra.mxu0 0
  %2982 = vmatprep.mubr.bf16.mxu0 0
  %2983 = vmatmul.mubr.bf16.gmra.mrb[0].mxu0 %v553
  %v2984 = vpop.f32.mrb[0].mxu0
  %v2985 = vadd.f32 0.0, %v2984
  %v2986 = vpop.f32.mrb[0].mxu0
  %v2987 = vadd.f32 0.0, %v2986
  %v2988 = vpop.f32.mrb[0].mxu0
  %v2989 = vadd.f32 0.0, %v2988
  %v2990 = vpop.f32.mrb[0].mxu0
  %v2991 = vadd.f32 0.0, %v2990
  %2992 = vmatprep.mubr.bf16.mxu0 0
  %2993 = vmatmul.mubr.bf16.gmra.mrb[0].mxu0 %v554
  %v2994 = vpop.f32.mrb[0].mxu0
  %v2995 = vadd.f32 0.0, %v2994
  %v2996 = vpop.f32.mrb[0].mxu0
  %v2997 = vadd.f32 0.0, %v2996
  %v2998 = vpop.f32.mrb[0].mxu0
  %v2999 = vadd.f32 0.0, %v2998
  %v3000 = vpop.f32.mrb[0].mxu0
  %v3001 = vadd.f32 0.0, %v3000
  %3002 = vmatprep.mubr.bf16.mxu0 0
  %3003 = vmatmul.mubr.bf16.gmra.mrb[0].mxu0 %v555
  %v3004 = vpop.f32.mrb[0].mxu0
  %v3005 = vadd.f32 0.0, %v3004
  %v3006 = vpop.f32.mrb[0].mxu0
  %v3007 = vadd.f32 0.0, %v3006
  %v3008 = vpop.f32.mrb[0].mxu0
  %v3009 = vadd.f32 0.0, %v3008
  %v3010 = vpop.f32.mrb[0].mxu0
  %v3011 = vadd.f32 0.0, %v3010
  %3012 = vmatprep.mubr.bf16.mxu0 0
  %3013 = vmatmul.mubr.bf16.gmra.mrb[0].mxu0 %v556
  %v3014 = vpop.f32.mrb[0].mxu0
  %v3015 = vadd.f32 0.0, %v3014
  %v3016 = vpop.f32.mrb[0].mxu0
  %v3017 = vadd.f32 0.0, %v3016
  %v3018 = vpop.f32.mrb[0].mxu0
  %v3019 = vadd.f32 0.0, %v3018
  %v3020 = vpop.f32.mrb[0].mxu0
  %v3021 = vadd.f32 0.0, %v3020
  %3022 = vmatprep.mubr.bf16.mxu0 0
  %3023 = vmatmul.mubr.bf16.gmra.mrb[0].mxu0 %v557
  %v3024 = vpop.f32.mrb[0].mxu0
  %v3025 = vadd.f32 0.0, %v3024
  %v3026 = vpop.f32.mrb[0].mxu0
  %v3027 = vadd.f32 0.0, %v3026
  %v3028 = vpop.f32.mrb[0].mxu0
  %v3029 = vadd.f32 0.0, %v3028
  %v3030 = vpop.f32.mrb[0].mxu0
  %v3031 = vadd.f32 0.0, %v3030
  %3032 = vmatprep.mubr.bf16.mxu0 0
  %3033 = vmatmul.mubr.bf16.gmra.mrb[0].mxu0 %v558
  %v3034 = vpop.f32.mrb[0].mxu0
  %v3035 = vadd.f32 0.0, %v3034
  %v3036 = vpop.f32.mrb[0].mxu0
  %v3037 = vadd.f32 0.0, %v3036
  %v3038 = vpop.f32.mrb[0].mxu0
  %v3039 = vadd.f32 0.0, %v3038
  %v3040 = vpop.f32.mrb[0].mxu0
  %v3041 = vadd.f32 0.0, %v3040
  %3042 = vmatprep.mubr.bf16.mxu0 0
  %3043 = vmatmul.mubr.bf16.gmra.mrb[0].mxu0 %v559
  %v3044 = vpop.f32.mrb[0].mxu0
  %v3045 = vpop.f32.mrb[0].mxu0
  %v3046 = vadd.f32 0.0, %v3045
  %v3047 = vpop.f32.mrb[0].mxu0
  %v3048 = vpop.f32.mrb[0].mxu0
  %v3049 = vadd.f32 0.0, %v3048
  %3050 = vmatprep.mubr.bf16.mxu0 0
  %3051 = vmatmul.mubr.bf16.gmra.mrb[0].mxu0 %v560
  %v3052 = vpop.f32.mrb[0].mxu0
  %v3053 = vpop.f32.mrb[0].mxu0
  %v3054 = vadd.f32 0.0, %v3053
  %v3055 = vpop.f32.mrb[0].mxu0
  %v3056 = vpop.f32.mrb[0].mxu0
  %v3057 = vadd.f32 0.0, %v3056
  %3058 = vmatprep.mubr.bf16.mxu0 0
  %3059 = vmatmul.mubr.bf16.gmra.mrb[0].mxu0 %v561
  %v3060 = vpop.f32.mrb[0].mxu0
  %v3061 = vpop.f32.mrb[0].mxu0
  %v3062 = vpop.f32.mrb[0].mxu0
  %v3063 = vpop.f32.mrb[0].mxu0
  %3064 = vmatprep.mubr.bf16.mxu0 0
  %3065 = vmatmul.mubr.bf16.gmra.mrb[0].mxu0 %v562
  %v3066 = vpop.f32.mrb[0].mxu0
  %v3067 = vpop.f32.mrb[0].mxu0
  %v3068 = vpop.f32.mrb[0].mxu0
  %v3069 = vpop.f32.mrb[0].mxu0
  %3070 = vmatprep.mubr.bf16.mxu0 0
  %3071 = vmatmul.mubr.bf16.gmra.mrb[0].mxu0 %v563
  %v3072 = vpop.f32.mrb[0].mxu0
  %v3073 = vpop.f32.mrb[0].mxu0
  %v3074 = vpop.f32.mrb[0].mxu0
  %v3075 = vpop.f32.mrb[0].mxu0
  %3076 = vmatprep.mubr.bf16.mxu0 0
  %3077 = vmatmul.mubr.bf16.gmra.mrb[0].mxu0 %v564
  %v3078 = vpop.f32.mrb[0].mxu0
  %v3079 = vpop.f32.mrb[0].mxu0
  %v3080 = vpop.f32.mrb[0].mxu0
  %v3081 = vpop.f32.mrb[0].mxu0
  %3082 = vmatprep.mubr.bf16.mxu0 0
  %3083 = vmatmul.mubr.bf16.gmra.mrb[0].mxu0 %v565
  %v3084 = vpop.f32.mrb[0].mxu0
  %v3085 = vpop.f32.mrb[0].mxu0
  %v3086 = vpop.f32.mrb[0].mxu0
  %v3087 = vpop.f32.mrb[0].mxu0
  %3088 = vmatprep.mubr.bf16.mxu0 0
  %3089 = vmatmul.mubr.bf16.gmra.mrb[0].mxu0 %v566
  %v3090 = vpop.f32.mrb[0].mxu0
  %v3091 = vpop.f32.mrb[0].mxu0
  %v3092 = vpop.f32.mrb[0].mxu0
  %v3093 = vpop.f32.mrb[0].mxu0
  %3094 = vdwg.mxu0
  %3095 = vmatprep.subr.bf16.mxu0 %v1930
  %3096 = vmatpush1.bf16.msra.mxu0 %v1929
  %3097 = vmatprep.subr.bf16.mxu0 %v1986
  %3098 = vmatpush1.bf16.msra.mxu0 %v1985
  %3099 = vmatprep.subr.bf16.mxu0 %v2042
  %3100 = vmatpush1.bf16.msra.mxu0 %v2041
  %3101 = vmatprep.subr.bf16.mxu0 %v2098
  %3102 = vmatpush1.bf16.msra.mxu0 %v2097
  %3103 = vmatprep.subr.bf16.mxu0 %v2154
  %3104 = vmatpush1.bf16.msra.mxu0 %v2153
  %3105 = vmatprep.subr.bf16.mxu0 %v2210
  %3106 = vmatpush1.bf16.msra.mxu0 %v2209
  %3107 = vmatprep.subr.bf16.mxu0 %v2266
  %3108 = vmatpush1.bf16.msra.mxu0 %v2265
  %3109 = vmatprep.subr.bf16.mxu0 %v2322
  %3110 = vmatpush1.bf16.msra.mxu0 %v2321
  %3111 = vmatprep.subr.bf16.mxu0 0
  %3112 = vmatpush1.bf16.msra.mxu0 0
  %3113 = vmatprep.subr.bf16.mxu0 0
  %3114 = vmatpush1.bf16.msra.mxu0 0
  %3115 = vmatprep.subr.bf16.mxu0 0
  %3116 = vmatpush1.bf16.msra.mxu0 0
  %3117 = vmatprep.subr.bf16.mxu0 0
  %3118 = vmatpush1.bf16.msra.mxu0 0
  %3119 = vmatprep.subr.bf16.mxu0 0
  %3120 = vmatpush1.bf16.msra.mxu0 0
  %3121 = vmatprep.subr.bf16.mxu0 0
  %3122 = vmatpush1.bf16.msra.mxu0 0
  %3123 = vmatprep.subr.bf16.mxu0 0
  %3124 = vmatpush1.bf16.msra.mxu0 0
  %3125 = vmatprep.subr.bf16.mxu0 0
  %3126 = vmatpush1.bf16.msra.mxu0 0
  %3127 = vmatprep.mubr.bf16.mxu0 0
  %3128 = vmatmul.mubr.bf16.gmra.mrb[0].mxu0 %v553
  %v3129 = vpop.f32.mrb[0].mxu0
  %v3130 = vadd.f32 0.0, %v3129
  %v3131 = vpop.f32.mrb[0].mxu0
  %v3132 = vadd.f32 0.0, %v3131
  %v3133 = vpop.f32.mrb[0].mxu0
  %v3134 = vadd.f32 0.0, %v3133
  %v3135 = vpop.f32.mrb[0].mxu0
  %v3136 = vadd.f32 0.0, %v3135
  %3137 = vmatprep.mubr.bf16.mxu0 0
  %3138 = vmatmul.mubr.bf16.gmra.mrb[0].mxu0 %v554
  %v3139 = vpop.f32.mrb[0].mxu0
  %v3140 = vadd.f32 0.0, %v3139
  %v3141 = vpop.f32.mrb[0].mxu0
  %v3142 = vadd.f32 0.0, %v3141
  %v3143 = vpop.f32.mrb[0].mxu0
  %v3144 = vadd.f32 0.0, %v3143
  %v3145 = vpop.f32.mrb[0].mxu0
  %v3146 = vadd.f32 0.0, %v3145
  %3147 = vmatprep.mubr.bf16.mxu0 0
  %3148 = vmatmul.mubr.bf16.gmra.mrb[0].mxu0 %v555
  %v3149 = vpop.f32.mrb[0].mxu0
  %v3150 = vadd.f32 0.0, %v3149
  %v3151 = vpop.f32.mrb[0].mxu0
  %v3152 = vadd.f32 0.0, %v3151
  %v3153 = vpop.f32.mrb[0].mxu0
  %v3154 = vadd.f32 0.0, %v3153
  %v3155 = vpop.f32.mrb[0].mxu0
  %v3156 = vadd.f32 0.0, %v3155
  %3157 = vmatprep.mubr.bf16.mxu0 0
  %3158 = vmatmul.mubr.bf16.gmra.mrb[0].mxu0 %v556
  %v3159 = vpop.f32.mrb[0].mxu0
  %v3160 = vadd.f32 0.0, %v3159
  %v3161 = vpop.f32.mrb[0].mxu0
  %v3162 = vadd.f32 0.0, %v3161
  %v3163 = vpop.f32.mrb[0].mxu0
  %v3164 = vadd.f32 0.0, %v3163
  %v3165 = vpop.f32.mrb[0].mxu0
  %v3166 = vadd.f32 0.0, %v3165
  %3167 = vmatprep.mubr.bf16.mxu0 0
  %3168 = vmatmul.mubr.bf16.gmra.mrb[0].mxu0 %v557
  %v3169 = vpop.f32.mrb[0].mxu0
  %v3170 = vadd.f32 0.0, %v3169
  %v3171 = vpop.f32.mrb[0].mxu0
  %v3172 = vadd.f32 0.0, %v3171
  %v3173 = vpop.f32.mrb[0].mxu0
  %v3174 = vadd.f32 0.0, %v3173
  %v3175 = vpop.f32.mrb[0].mxu0
  %v3176 = vadd.f32 0.0, %v3175
  %3177 = vmatprep.mubr.bf16.mxu0 0
  %3178 = vmatmul.mubr.bf16.gmra.mrb[0].mxu0 %v558
  %v3179 = vpop.f32.mrb[0].mxu0
  %v3180 = vadd.f32 0.0, %v3179
  %v3181 = vpop.f32.mrb[0].mxu0
  %v3182 = vadd.f32 0.0, %v3181
  %v3183 = vpop.f32.mrb[0].mxu0
  %v3184 = vadd.f32 0.0, %v3183
  %v3185 = vpop.f32.mrb[0].mxu0
  %v3186 = vadd.f32 0.0, %v3185
  %3187 = vmatprep.mubr.bf16.mxu0 0
  %3188 = vmatmul.mubr.bf16.gmra.mrb[0].mxu0 %v559
  %v3189 = vpop.f32.mrb[0].mxu0
  %v3190 = vadd.f32 0.0, %v3189
  %v3191 = vpop.f32.mrb[0].mxu0
  %v3192 = vadd.f32 0.0, %v3191
  %v3193 = vpop.f32.mrb[0].mxu0
  %v3194 = vadd.f32 0.0, %v3193
  %v3195 = vpop.f32.mrb[0].mxu0
  %v3196 = vadd.f32 0.0, %v3195
  %3197 = vmatprep.mubr.bf16.mxu0 0
  %3198 = vmatmul.mubr.bf16.gmra.mrb[0].mxu0 %v560
  %v3199 = vpop.f32.mrb[0].mxu0
  %v3200 = vadd.f32 0.0, %v3199
  %v3201 = vpop.f32.mrb[0].mxu0
  %v3202 = vadd.f32 0.0, %v3201
  %v3203 = vpop.f32.mrb[0].mxu0
  %v3204 = vadd.f32 0.0, %v3203
  %v3205 = vpop.f32.mrb[0].mxu0
  %v3206 = vadd.f32 0.0, %v3205
  %3207 = vmatprep.mubr.bf16.mxu0 0
  %3208 = vmatmul.mubr.bf16.gmra.mrb[0].mxu0 %v561
  %v3209 = vpop.f32.mrb[0].mxu0
  %v3210 = vadd.f32 0.0, %v3209
  %v3211 = vpop.f32.mrb[0].mxu0
  %v3212 = vadd.f32 0.0, %v3211
  %v3213 = vpop.f32.mrb[0].mxu0
  %v3214 = vadd.f32 0.0, %v3213
  %v3215 = vpop.f32.mrb[0].mxu0
  %v3216 = vadd.f32 0.0, %v3215
  %3217 = vmatprep.mubr.bf16.mxu0 0
  %3218 = vmatmul.mubr.bf16.gmra.mrb[0].mxu0 %v562
  %v3219 = vpop.f32.mrb[0].mxu0
  %v3220 = vadd.f32 0.0, %v3219
  %v3221 = vpop.f32.mrb[0].mxu0
  %v3222 = vadd.f32 0.0, %v3221
  %v3223 = vpop.f32.mrb[0].mxu0
  %v3224 = vadd.f32 0.0, %v3223
  %v3225 = vpop.f32.mrb[0].mxu0
  %v3226 = vadd.f32 0.0, %v3225
  %3227 = vmatprep.mubr.bf16.mxu0 0
  %3228 = vmatmul.mubr.bf16.gmra.mrb[0].mxu0 %v563
  %v3229 = vpop.f32.mrb[0].mxu0
  %v3230 = vpop.f32.mrb[0].mxu0
  %v3231 = vadd.f32 0.0, %v3230
  %v3232 = vpop.f32.mrb[0].mxu0
  %v3233 = vpop.f32.mrb[0].mxu0
  %v3234 = vadd.f32 0.0, %v3233
  %3235 = vmatprep.mubr.bf16.mxu0 0
  %3236 = vmatmul.mubr.bf16.gmra.mrb[0].mxu0 %v564
  %v3237 = vpop.f32.mrb[0].mxu0
  %v3238 = vpop.f32.mrb[0].mxu0
  %v3239 = vadd.f32 0.0, %v3238
  %v3240 = vpop.f32.mrb[0].mxu0
  %v3241 = vpop.f32.mrb[0].mxu0
  %v3242 = vadd.f32 0.0, %v3241
  %3243 = vmatprep.mubr.bf16.mxu0 0
  %3244 = vmatmul.mubr.bf16.gmra.mrb[0].mxu0 %v565
  %v3245 = vpop.f32.mrb[0].mxu0
  %v3246 = vpop.f32.mrb[0].mxu0
  %v3247 = vpop.f32.mrb[0].mxu0
  %v3248 = vpop.f32.mrb[0].mxu0
  %3249 = vmatprep.mubr.bf16.mxu0 0
  %3250 = vmatmul.mubr.bf16.gmra.mrb[0].mxu0 %v566
  %v3251 = vpop.f32.mrb[0].mxu0
  %v3252 = vpop.f32.mrb[0].mxu0
  %v3253 = vpop.f32.mrb[0].mxu0
  %v3254 = vpop.f32.mrb[0].mxu0
  %3255 = vdwg.mxu0
  %3256 = vmatprep.subr.bf16.mxu0 %v1932
  %3257 = vmatpush1.bf16.msra.mxu0 %v1931
  %3258 = vmatprep.subr.bf16.mxu0 %v1988
  %3259 = vmatpush1.bf16.msra.mxu0 %v1987
  %3260 = vmatprep.subr.bf16.mxu0 %v2044
  %3261 = vmatpush1.bf16.msra.mxu0 %v2043
  %3262 = vmatprep.subr.bf16.mxu0 %v2100
  %3263 = vmatpush1.bf16.msra.mxu0 %v2099
  %3264 = vmatprep.subr.bf16.mxu0 %v2156
  %3265 = vmatpush1.bf16.msra.mxu0 %v2155
  %3266 = vmatprep.subr.bf16.mxu0 %v2212
  %3267 = vmatpush1.bf16.msra.mxu0 %v2211
  %3268 = vmatprep.subr.bf16.mxu0 %v2268
  %3269 = vmatpush1.bf16.msra.mxu0 %v2267
  %3270 = vmatprep.subr.bf16.mxu0 %v2324
  %3271 = vmatpush1.bf16.msra.mxu0 %v2323
  %3272 = vmatprep.subr.bf16.mxu0 0
  %3273 = vmatpush1.bf16.msra.mxu0 0
  %3274 = vmatprep.subr.bf16.mxu0 0
  %3275 = vmatpush1.bf16.msra.mxu0 0
  %3276 = vmatprep.subr.bf16.mxu0 0
  %3277 = vmatpush1.bf16.msra.mxu0 0
  %3278 = vmatprep.subr.bf16.mxu0 0
  %3279 = vmatpush1.bf16.msra.mxu0 0
  %3280 = vmatprep.subr.bf16.mxu0 0
  %3281 = vmatpush1.bf16.msra.mxu0 0
  %3282 = vmatprep.subr.bf16.mxu0 0
  %3283 = vmatpush1.bf16.msra.mxu0 0
  %3284 = vmatprep.subr.bf16.mxu0 0
  %3285 = vmatpush1.bf16.msra.mxu0 0
  %3286 = vmatprep.subr.bf16.mxu0 0
  %3287 = vmatpush1.bf16.msra.mxu0 0
  %3288 = vmatprep.mubr.bf16.mxu0 0
  %3289 = vmatmul.mubr.bf16.gmra.mrb[0].mxu0 %v553
  %v3290 = vpop.f32.mrb[0].mxu0
  %v3291 = vadd.f32 0.0, %v3290
  %v3292 = vpop.f32.mrb[0].mxu0
  %v3293 = vadd.f32 0.0, %v3292
  %v3294 = vpop.f32.mrb[0].mxu0
  %v3295 = vadd.f32 0.0, %v3294
  %v3296 = vpop.f32.mrb[0].mxu0
  %v3297 = vadd.f32 0.0, %v3296
  %3298 = vmatprep.mubr.bf16.mxu0 0
  %3299 = vmatmul.mubr.bf16.gmra.mrb[0].mxu0 %v554
  %v3300 = vpop.f32.mrb[0].mxu0
  %v3301 = vadd.f32 0.0, %v3300
  %v3302 = vpop.f32.mrb[0].mxu0
  %v3303 = vadd.f32 0.0, %v3302
  %v3304 = vpop.f32.mrb[0].mxu0
  %v3305 = vadd.f32 0.0, %v3304
  %v3306 = vpop.f32.mrb[0].mxu0
  %v3307 = vadd.f32 0.0, %v3306
  %3308 = vmatprep.mubr.bf16.mxu0 0
  %3309 = vmatmul.mubr.bf16.gmra.mrb[0].mxu0 %v555
  %v3310 = vpop.f32.mrb[0].mxu0
  %v3311 = vadd.f32 0.0, %v3310
  %v3312 = vpop.f32.mrb[0].mxu0
  %v3313 = vadd.f32 0.0, %v3312
  %v3314 = vpop.f32.mrb[0].mxu0
  %v3315 = vadd.f32 0.0, %v3314
  %v3316 = vpop.f32.mrb[0].mxu0
  %v3317 = vadd.f32 0.0, %v3316
  %3318 = vmatprep.mubr.bf16.mxu0 0
  %3319 = vmatmul.mubr.bf16.gmra.mrb[0].mxu0 %v556
  %v3320 = vpop.f32.mrb[0].mxu0
  %v3321 = vadd.f32 0.0, %v3320
  %v3322 = vpop.f32.mrb[0].mxu0
  %v3323 = vadd.f32 0.0, %v3322
  %v3324 = vpop.f32.mrb[0].mxu0
  %v3325 = vadd.f32 0.0, %v3324
  %v3326 = vpop.f32.mrb[0].mxu0
  %v3327 = vadd.f32 0.0, %v3326
  %3328 = vmatprep.mubr.bf16.mxu0 0
  %3329 = vmatmul.mubr.bf16.gmra.mrb[0].mxu0 %v557
  %v3330 = vpop.f32.mrb[0].mxu0
  %v3331 = vadd.f32 0.0, %v3330
  %v3332 = vpop.f32.mrb[0].mxu0
  %v3333 = vadd.f32 0.0, %v3332
  %v3334 = vpop.f32.mrb[0].mxu0
  %v3335 = vadd.f32 0.0, %v3334
  %v3336 = vpop.f32.mrb[0].mxu0
  %v3337 = vadd.f32 0.0, %v3336
  %3338 = vmatprep.mubr.bf16.mxu0 0
  %3339 = vmatmul.mubr.bf16.gmra.mrb[0].mxu0 %v558
  %v3340 = vpop.f32.mrb[0].mxu0
  %v3341 = vadd.f32 0.0, %v3340
  %v3342 = vpop.f32.mrb[0].mxu0
  %v3343 = vadd.f32 0.0, %v3342
  %v3344 = vpop.f32.mrb[0].mxu0
  %v3345 = vadd.f32 0.0, %v3344
  %v3346 = vpop.f32.mrb[0].mxu0
  %v3347 = vadd.f32 0.0, %v3346
  %3348 = vmatprep.mubr.bf16.mxu0 0
  %3349 = vmatmul.mubr.bf16.gmra.mrb[0].mxu0 %v559
  %v3350 = vpop.f32.mrb[0].mxu0
  %v3351 = vadd.f32 0.0, %v3350
  %v3352 = vpop.f32.mrb[0].mxu0
  %v3353 = vadd.f32 0.0, %v3352
  %v3354 = vpop.f32.mrb[0].mxu0
  %v3355 = vadd.f32 0.0, %v3354
  %v3356 = vpop.f32.mrb[0].mxu0
  %v3357 = vadd.f32 0.0, %v3356
  %3358 = vmatprep.mubr.bf16.mxu0 0
  %3359 = vmatmul.mubr.bf16.gmra.mrb[0].mxu0 %v560
  %v3360 = vpop.f32.mrb[0].mxu0
  %v3361 = vadd.f32 0.0, %v3360
  %v3362 = vpop.f32.mrb[0].mxu0
  %v3363 = vadd.f32 0.0, %v3362
  %v3364 = vpop.f32.mrb[0].mxu0
  %v3365 = vadd.f32 0.0, %v3364
  %v3366 = vpop.f32.mrb[0].mxu0
  %v3367 = vadd.f32 0.0, %v3366
  %3368 = vmatprep.mubr.bf16.mxu0 0
  %3369 = vmatmul.mubr.bf16.gmra.mrb[0].mxu0 %v561
  %v3370 = vpop.f32.mrb[0].mxu0
  %v3371 = vadd.f32 0.0, %v3370
  %v3372 = vpop.f32.mrb[0].mxu0
  %v3373 = vadd.f32 0.0, %v3372
  %v3374 = vpop.f32.mrb[0].mxu0
  %v3375 = vadd.f32 0.0, %v3374
  %v3376 = vpop.f32.mrb[0].mxu0
  %v3377 = vadd.f32 0.0, %v3376
  %3378 = vmatprep.mubr.bf16.mxu0 0
  %3379 = vmatmul.mubr.bf16.gmra.mrb[0].mxu0 %v562
  %v3380 = vpop.f32.mrb[0].mxu0
  %v3381 = vadd.f32 0.0, %v3380
  %v3382 = vpop.f32.mrb[0].mxu0
  %v3383 = vadd.f32 0.0, %v3382
  %v3384 = vpop.f32.mrb[0].mxu0
  %v3385 = vadd.f32 0.0, %v3384
  %v3386 = vpop.f32.mrb[0].mxu0
  %v3387 = vadd.f32 0.0, %v3386
  %3388 = vmatprep.mubr.bf16.mxu0 0
  %3389 = vmatmul.mubr.bf16.gmra.mrb[0].mxu0 %v563
  %v3390 = vpop.f32.mrb[0].mxu0
  %v3391 = vadd.f32 0.0, %v3390
  %v3392 = vpop.f32.mrb[0].mxu0
  %v3393 = vadd.f32 0.0, %v3392
  %v3394 = vpop.f32.mrb[0].mxu0
  %v3395 = vadd.f32 0.0, %v3394
  %v3396 = vpop.f32.mrb[0].mxu0
  %v3397 = vadd.f32 0.0, %v3396
  %3398 = vmatprep.mubr.bf16.mxu0 0
  %3399 = vmatmul.mubr.bf16.gmra.mrb[0].mxu0 %v564
  %v3400 = vpop.f32.mrb[0].mxu0
  %v3401 = vadd.f32 0.0, %v3400
  %v3402 = vpop.f32.mrb[0].mxu0
  %v3403 = vadd.f32 0.0, %v3402
  %v3404 = vpop.f32.mrb[0].mxu0
  %v3405 = vadd.f32 0.0, %v3404
  %v3406 = vpop.f32.mrb[0].mxu0
  %v3407 = vadd.f32 0.0, %v3406
  %3408 = vmatprep.mubr.bf16.mxu0 0
  %3409 = vmatmul.mubr.bf16.gmra.mrb[0].mxu0 %v565
  %v3410 = vpop.f32.mrb[0].mxu0
  %v3411 = vadd.f32 0.0, %v3410
  %v3412 = vpop.f32.mrb[0].mxu0
  %v3413 = vadd.f32 0.0, %v3412
  %v3414 = vpop.f32.mrb[0].mxu0
  %v3415 = vadd.f32 0.0, %v3414
  %v3416 = vpop.f32.mrb[0].mxu0
  %v3417 = vadd.f32 0.0, %v3416
  %3418 = vmatprep.mubr.bf16.mxu0 0
  %3419 = vmatmul.mubr.bf16.gmra.mrb[0].mxu0 %v566
  %v3420 = vpop.f32.mrb[0].mxu0
  %v3421 = vadd.f32 0.0, %v3420
  %v3422 = vpop.f32.mrb[0].mxu0
  %v3423 = vadd.f32 0.0, %v3422
  %v3424 = vpop.f32.mrb[0].mxu0
  %v3425 = vadd.f32 0.0, %v3424
  %v3426 = vpop.f32.mrb[0].mxu0
  %v3427 = vadd.f32 0.0, %v3426
  %3428 = vdwg.mxu0
  %3429 = vmatprep.subr.bf16.mxu0 %v1934
  %3430 = vmatpush1.bf16.msra.mxu0 %v1933
  %3431 = vmatprep.subr.bf16.mxu0 %v1990
  %3432 = vmatpush1.bf16.msra.mxu0 %v1989
  %3433 = vmatprep.subr.bf16.mxu0 %v2046
  %3434 = vmatpush1.bf16.msra.mxu0 %v2045
  %3435 = vmatprep.subr.bf16.mxu0 %v2102
  %3436 = vmatpush1.bf16.msra.mxu0 %v2101
  %3437 = vmatprep.subr.bf16.mxu0 %v2158
  %3438 = vmatpush1.bf16.msra.mxu0 %v2157
  %3439 = vmatprep.subr.bf16.mxu0 %v2214
  %3440 = vmatpush1.bf16.msra.mxu0 %v2213
  %3441 = vmatprep.subr.bf16.mxu0 %v2270
  %3442 = vmatpush1.bf16.msra.mxu0 %v2269
  %3443 = vmatprep.subr.bf16.mxu0 %v2326
  %3444 = vmatpush1.bf16.msra.mxu0 %v2325
  %3445 = vmatprep.subr.bf16.mxu0 0
  %3446 = vmatpush1.bf16.msra.mxu0 0
  %3447 = vmatprep.subr.bf16.mxu0 0
  %3448 = vmatpush1.bf16.msra.mxu0 0
  %3449 = vmatprep.subr.bf16.mxu0 0
  %3450 = vmatpush1.bf16.msra.mxu0 0
  %3451 = vmatprep.subr.bf16.mxu0 0
  %3452 = vmatpush1.bf16.msra.mxu0 0
  %3453 = vmatprep.subr.bf16.mxu0 0
  %3454 = vmatpush1.bf16.msra.mxu0 0
  %3455 = vmatprep.subr.bf16.mxu0 0
  %3456 = vmatpush1.bf16.msra.mxu0 0
  %3457 = vmatprep.subr.bf16.mxu0 0
  %3458 = vmatpush1.bf16.msra.mxu0 0
  %3459 = vmatprep.subr.bf16.mxu0 0
  %3460 = vmatpush1.bf16.msra.mxu0 0
  %3461 = vmatprep.mubr.bf16.mxu0 0
  %3462 = vmatmul.mubr.bf16.gmra.mrb[0].mxu0 %v553
  %v3463 = vpop.f32.mrb[0].mxu0
  %v3464 = vadd.f32 0.0, %v3463
  %v3465 = vpop.f32.mrb[0].mxu0
  %v3466 = vadd.f32 0.0, %v3465
  %v3467 = vpop.f32.mrb[0].mxu0
  %v3468 = vadd.f32 0.0, %v3467
  %v3469 = vpop.f32.mrb[0].mxu0
  %v3470 = vadd.f32 0.0, %v3469
  %3471 = vmatprep.mubr.bf16.mxu0 0
  %3472 = vmatmul.mubr.bf16.gmra.mrb[0].mxu0 %v554
  %v3473 = vpop.f32.mrb[0].mxu0
  %v3474 = vadd.f32 0.0, %v3473
  %v3475 = vpop.f32.mrb[0].mxu0
  %v3476 = vadd.f32 0.0, %v3475
  %v3477 = vpop.f32.mrb[0].mxu0
  %v3478 = vadd.f32 0.0, %v3477
  %v3479 = vpop.f32.mrb[0].mxu0
  %v3480 = vadd.f32 0.0, %v3479
  %3481 = vmatprep.mubr.bf16.mxu0 0
  %3482 = vmatmul.mubr.bf16.gmra.mrb[0].mxu0 %v555
  %v3483 = vpop.f32.mrb[0].mxu0
  %v3484 = vadd.f32 0.0, %v3483
  %v3485 = vpop.f32.mrb[0].mxu0
  %v3486 = vadd.f32 0.0, %v3485
  %v3487 = vpop.f32.mrb[0].mxu0
  %v3488 = vadd.f32 0.0, %v3487
  %v3489 = vpop.f32.mrb[0].mxu0
  %v3490 = vadd.f32 0.0, %v3489
  %3491 = vmatprep.mubr.bf16.mxu0 0
  %3492 = vmatmul.mubr.bf16.gmra.mrb[0].mxu0 %v556
  %v3493 = vpop.f32.mrb[0].mxu0
  %v3494 = vadd.f32 0.0, %v3493
  %v3495 = vpop.f32.mrb[0].mxu0
  %v3496 = vadd.f32 0.0, %v3495
  %v3497 = vpop.f32.mrb[0].mxu0
  %v3498 = vadd.f32 0.0, %v3497
  %v3499 = vpop.f32.mrb[0].mxu0
  %v3500 = vadd.f32 0.0, %v3499
  %3501 = vmatprep.mubr.bf16.mxu0 0
  %3502 = vmatmul.mubr.bf16.gmra.mrb[0].mxu0 %v557
  %v3503 = vpop.f32.mrb[0].mxu0
  %v3504 = vadd.f32 0.0, %v3503
  %v3505 = vpop.f32.mrb[0].mxu0
  %v3506 = vadd.f32 0.0, %v3505
  %v3507 = vpop.f32.mrb[0].mxu0
  %v3508 = vadd.f32 0.0, %v3507
  %v3509 = vpop.f32.mrb[0].mxu0
  %v3510 = vadd.f32 0.0, %v3509
  %3511 = vmatprep.mubr.bf16.mxu0 0
  %3512 = vmatmul.mubr.bf16.gmra.mrb[0].mxu0 %v558
  %v3513 = vpop.f32.mrb[0].mxu0
  %v3514 = vadd.f32 0.0, %v3513
  %v3515 = vpop.f32.mrb[0].mxu0
  %v3516 = vadd.f32 0.0, %v3515
  %v3517 = vpop.f32.mrb[0].mxu0
  %v3518 = vadd.f32 0.0, %v3517
  %v3519 = vpop.f32.mrb[0].mxu0
  %v3520 = vadd.f32 0.0, %v3519
  %3521 = vmatprep.mubr.bf16.mxu0 0
  %3522 = vmatmul.mubr.bf16.gmra.mrb[0].mxu0 %v559
  %v3523 = vpop.f32.mrb[0].mxu0
  %v3524 = vadd.f32 0.0, %v3523
  %v3525 = vpop.f32.mrb[0].mxu0
  %v3526 = vadd.f32 0.0, %v3525
  %v3527 = vpop.f32.mrb[0].mxu0
  %v3528 = vadd.f32 0.0, %v3527
  %v3529 = vpop.f32.mrb[0].mxu0
  %v3530 = vadd.f32 0.0, %v3529
  %3531 = vmatprep.mubr.bf16.mxu0 0
  %3532 = vmatmul.mubr.bf16.gmra.mrb[0].mxu0 %v560
  %v3533 = vpop.f32.mrb[0].mxu0
  %v3534 = vadd.f32 0.0, %v3533
  %v3535 = vpop.f32.mrb[0].mxu0
  %v3536 = vadd.f32 0.0, %v3535
  %v3537 = vpop.f32.mrb[0].mxu0
  %v3538 = vadd.f32 0.0, %v3537
  %v3539 = vpop.f32.mrb[0].mxu0
  %v3540 = vadd.f32 0.0, %v3539
  %3541 = vmatprep.mubr.bf16.mxu0 0
  %3542 = vmatmul.mubr.bf16.gmra.mrb[0].mxu0 %v561
  %v3543 = vpop.f32.mrb[0].mxu0
  %v3544 = vadd.f32 0.0, %v3543
  %v3545 = vpop.f32.mrb[0].mxu0
  %v3546 = vadd.f32 0.0, %v3545
  %v3547 = vpop.f32.mrb[0].mxu0
  %v3548 = vadd.f32 0.0, %v3547
  %v3549 = vpop.f32.mrb[0].mxu0
  %v3550 = vadd.f32 0.0, %v3549
  %3551 = vmatprep.mubr.bf16.mxu0 0
  %3552 = vmatmul.mubr.bf16.gmra.mrb[0].mxu0 %v562
  %v3553 = vpop.f32.mrb[0].mxu0
  %v3554 = vadd.f32 0.0, %v3553
  %v3555 = vpop.f32.mrb[0].mxu0
  %v3556 = vadd.f32 0.0, %v3555
  %v3557 = vpop.f32.mrb[0].mxu0
  %v3558 = vadd.f32 0.0, %v3557
  %v3559 = vpop.f32.mrb[0].mxu0
  %v3560 = vadd.f32 0.0, %v3559
  %3561 = vmatprep.mubr.bf16.mxu0 0
  %3562 = vmatmul.mubr.bf16.gmra.mrb[0].mxu0 %v563
  %v3563 = vpop.f32.mrb[0].mxu0
  %v3564 = vadd.f32 0.0, %v3563
  %v3565 = vpop.f32.mrb[0].mxu0
  %v3566 = vadd.f32 0.0, %v3565
  %v3567 = vpop.f32.mrb[0].mxu0
  %v3568 = vadd.f32 0.0, %v3567
  %v3569 = vpop.f32.mrb[0].mxu0
  %v3570 = vadd.f32 0.0, %v3569
  %3571 = vmatprep.mubr.bf16.mxu0 0
  %3572 = vmatmul.mubr.bf16.gmra.mrb[0].mxu0 %v564
  %v3573 = vpop.f32.mrb[0].mxu0
  %v3574 = vadd.f32 0.0, %v3573
  %v3575 = vpop.f32.mrb[0].mxu0
  %v3576 = vadd.f32 0.0, %v3575
  %v3577 = vpop.f32.mrb[0].mxu0
  %v3578 = vadd.f32 0.0, %v3577
  %v3579 = vpop.f32.mrb[0].mxu0
  %v3580 = vadd.f32 0.0, %v3579
  %3581 = vmatprep.mubr.bf16.mxu0 0
  %3582 = vmatmul.mubr.bf16.gmra.mrb[0].mxu0 %v565
  %v3583 = vpop.f32.mrb[0].mxu0
  %v3584 = vadd.f32 0.0, %v3583
  %v3585 = vpop.f32.mrb[0].mxu0
  %v3586 = vadd.f32 0.0, %v3585
  %v3587 = vpop.f32.mrb[0].mxu0
  %v3588 = vadd.f32 0.0, %v3587
  %v3589 = vpop.f32.mrb[0].mxu0
  %v3590 = vadd.f32 0.0, %v3589
  %3591 = vmatprep.mubr.bf16.mxu0 0
  %3592 = vmatmul.mubr.bf16.gmra.mrb[0].mxu0 %v566
  %v3593 = vpop.f32.mrb[0].mxu0
  %v3594 = vadd.f32 0.0, %v3593
  %v3595 = vpop.f32.mrb[0].mxu0
  %v3596 = vadd.f32 0.0, %v3595
  %v3597 = vpop.f32.mrb[0].mxu0
  %v3598 = vadd.f32 0.0, %v3597
  %v3599 = vpop.f32.mrb[0].mxu0
  %v3600 = vadd.f32 0.0, %v3599
  %3601 = vdwg.mxu0
  %3602 = vmatprep.subr.bf16.mxu0 %v1936
  %3603 = vmatpush1.bf16.msra.mxu0 %v1935
  %3604 = vmatprep.subr.bf16.mxu0 %v1992
  %3605 = vmatpush1.bf16.msra.mxu0 %v1991
  %3606 = vmatprep.subr.bf16.mxu0 %v2048
  %3607 = vmatpush1.bf16.msra.mxu0 %v2047
  %3608 = vmatprep.subr.bf16.mxu0 %v2104
  %3609 = vmatpush1.bf16.msra.mxu0 %v2103
  %3610 = vmatprep.subr.bf16.mxu0 %v2160
  %3611 = vmatpush1.bf16.msra.mxu0 %v2159
  %3612 = vmatprep.subr.bf16.mxu0 %v2216
  %3613 = vmatpush1.bf16.msra.mxu0 %v2215
  %3614 = vmatprep.subr.bf16.mxu0 %v2272
  %3615 = vmatpush1.bf16.msra.mxu0 %v2271
  %3616 = vmatprep.subr.bf16.mxu0 %v2328
  %3617 = vmatpush1.bf16.msra.mxu0 %v2327
  %3618 = vmatprep.subr.bf16.mxu0 0
  %3619 = vmatpush1.bf16.msra.mxu0 0
  %3620 = vmatprep.subr.bf16.mxu0 0
  %3621 = vmatpush1.bf16.msra.mxu0 0
  %3622 = vmatprep.subr.bf16.mxu0 0
  %3623 = vmatpush1.bf16.msra.mxu0 0
  %3624 = vmatprep.subr.bf16.mxu0 0
  %3625 = vmatpush1.bf16.msra.mxu0 0
  %3626 = vmatprep.subr.bf16.mxu0 0
  %3627 = vmatpush1.bf16.msra.mxu0 0
  %3628 = vmatprep.subr.bf16.mxu0 0
  %3629 = vmatpush1.bf16.msra.mxu0 0
  %3630 = vmatprep.subr.bf16.mxu0 0
  %3631 = vmatpush1.bf16.msra.mxu0 0
  %3632 = vmatprep.subr.bf16.mxu0 0
  %3633 = vmatpush1.bf16.msra.mxu0 0
  %3634 = vmatprep.mubr.bf16.mxu0 0
  %3635 = vmatmul.mubr.bf16.gmra.mrb[0].mxu0 %v553
  %v3636 = vpop.f32.mrb[0].mxu0
  %v3637 = vadd.f32 0.0, %v3636
  %v3638 = vpop.f32.mrb[0].mxu0
  %v3639 = vadd.f32 0.0, %v3638
  %v3640 = vpop.f32.mrb[0].mxu0
  %v3641 = vadd.f32 0.0, %v3640
  %v3642 = vpop.f32.mrb[0].mxu0
  %v3643 = vadd.f32 0.0, %v3642
  %3644 = vmatprep.mubr.bf16.mxu0 0
  %3645 = vmatmul.mubr.bf16.gmra.mrb[0].mxu0 %v554
  %v3646 = vpop.f32.mrb[0].mxu0
  %v3647 = vadd.f32 0.0, %v3646
  %v3648 = vpop.f32.mrb[0].mxu0
  %v3649 = vadd.f32 0.0, %v3648
  %v3650 = vpop.f32.mrb[0].mxu0
  %v3651 = vadd.f32 0.0, %v3650
  %v3652 = vpop.f32.mrb[0].mxu0
  %v3653 = vadd.f32 0.0, %v3652
  %3654 = vmatprep.mubr.bf16.mxu0 0
  %3655 = vmatmul.mubr.bf16.gmra.mrb[0].mxu0 %v555
  %v3656 = vpop.f32.mrb[0].mxu0
  %v3657 = vadd.f32 0.0, %v3656
  %v3658 = vpop.f32.mrb[0].mxu0
  %v3659 = vadd.f32 0.0, %v3658
  %v3660 = vpop.f32.mrb[0].mxu0
  %v3661 = vadd.f32 0.0, %v3660
  %v3662 = vpop.f32.mrb[0].mxu0
  %v3663 = vadd.f32 0.0, %v3662
  %3664 = vmatprep.mubr.bf16.mxu0 0
  %3665 = vmatmul.mubr.bf16.gmra.mrb[0].mxu0 %v556
  %v3666 = vpop.f32.mrb[0].mxu0
  %v3667 = vadd.f32 0.0, %v3666
  %v3668 = vpop.f32.mrb[0].mxu0
  %v3669 = vadd.f32 0.0, %v3668
  %v3670 = vpop.f32.mrb[0].mxu0
  %v3671 = vadd.f32 0.0, %v3670
  %v3672 = vpop.f32.mrb[0].mxu0
  %v3673 = vadd.f32 0.0, %v3672
  %3674 = vmatprep.mubr.bf16.mxu0 0
  %3675 = vmatmul.mubr.bf16.gmra.mrb[0].mxu0 %v557
  %v3676 = vpop.f32.mrb[0].mxu0
  %v3677 = vadd.f32 0.0, %v3676
  %v3678 = vpop.f32.mrb[0].mxu0
  %v3679 = vadd.f32 0.0, %v3678
  %v3680 = vpop.f32.mrb[0].mxu0
  %v3681 = vadd.f32 0.0, %v3680
  %v3682 = vpop.f32.mrb[0].mxu0
  %v3683 = vadd.f32 0.0, %v3682
  %3684 = vmatprep.mubr.bf16.mxu0 0
  %3685 = vmatmul.mubr.bf16.gmra.mrb[0].mxu0 %v558
  %v3686 = vpop.f32.mrb[0].mxu0
  %v3687 = vadd.f32 0.0, %v3686
  %v3688 = vpop.f32.mrb[0].mxu0
  %v3689 = vadd.f32 0.0, %v3688
  %v3690 = vpop.f32.mrb[0].mxu0
  %v3691 = vadd.f32 0.0, %v3690
  %v3692 = vpop.f32.mrb[0].mxu0
  %v3693 = vadd.f32 0.0, %v3692
  %3694 = vmatprep.mubr.bf16.mxu0 0
  %3695 = vmatmul.mubr.bf16.gmra.mrb[0].mxu0 %v559
  %v3696 = vpop.f32.mrb[0].mxu0
  %v3697 = vadd.f32 0.0, %v3696
  %v3698 = vpop.f32.mrb[0].mxu0
  %v3699 = vadd.f32 0.0, %v3698
  %v3700 = vpop.f32.mrb[0].mxu0
  %v3701 = vadd.f32 0.0, %v3700
  %v3702 = vpop.f32.mrb[0].mxu0
  %v3703 = vadd.f32 0.0, %v3702
  %3704 = vmatprep.mubr.bf16.mxu0 0
  %3705 = vmatmul.mubr.bf16.gmra.mrb[0].mxu0 %v560
  %v3706 = vpop.f32.mrb[0].mxu0
  %v3707 = vadd.f32 0.0, %v3706
  %v3708 = vpop.f32.mrb[0].mxu0
  %v3709 = vadd.f32 0.0, %v3708
  %v3710 = vpop.f32.mrb[0].mxu0
  %v3711 = vadd.f32 0.0, %v3710
  %v3712 = vpop.f32.mrb[0].mxu0
  %v3713 = vadd.f32 0.0, %v3712
  %3714 = vmatprep.mubr.bf16.mxu0 0
  %3715 = vmatmul.mubr.bf16.gmra.mrb[0].mxu0 %v561
  %v3716 = vpop.f32.mrb[0].mxu0
  %v3717 = vadd.f32 0.0, %v3716
  %v3718 = vpop.f32.mrb[0].mxu0
  %v3719 = vadd.f32 0.0, %v3718
  %v3720 = vpop.f32.mrb[0].mxu0
  %v3721 = vadd.f32 0.0, %v3720
  %v3722 = vpop.f32.mrb[0].mxu0
  %v3723 = vadd.f32 0.0, %v3722
  %3724 = vmatprep.mubr.bf16.mxu0 0
  %3725 = vmatmul.mubr.bf16.gmra.mrb[0].mxu0 %v562
  %v3726 = vpop.f32.mrb[0].mxu0
  %v3727 = vadd.f32 0.0, %v3726
  %v3728 = vpop.f32.mrb[0].mxu0
  %v3729 = vadd.f32 0.0, %v3728
  %v3730 = vpop.f32.mrb[0].mxu0
  %v3731 = vadd.f32 0.0, %v3730
  %v3732 = vpop.f32.mrb[0].mxu0
  %v3733 = vadd.f32 0.0, %v3732
  %3734 = vmatprep.mubr.bf16.mxu0 0
  %3735 = vmatmul.mubr.bf16.gmra.mrb[0].mxu0 %v563
  %v3736 = vpop.f32.mrb[0].mxu0
  %v3737 = vadd.f32 0.0, %v3736
  %v3738 = vpop.f32.mrb[0].mxu0
  %v3739 = vadd.f32 0.0, %v3738
  %v3740 = vpop.f32.mrb[0].mxu0
  %v3741 = vadd.f32 0.0, %v3740
  %v3742 = vpop.f32.mrb[0].mxu0
  %v3743 = vadd.f32 0.0, %v3742
  %3744 = vmatprep.mubr.bf16.mxu0 0
  %3745 = vmatmul.mubr.bf16.gmra.mrb[0].mxu0 %v564
  %v3746 = vpop.f32.mrb[0].mxu0
  %v3747 = vadd.f32 0.0, %v3746
  %v3748 = vpop.f32.mrb[0].mxu0
  %v3749 = vadd.f32 0.0, %v3748
  %v3750 = vpop.f32.mrb[0].mxu0
  %v3751 = vadd.f32 0.0, %v3750
  %v3752 = vpop.f32.mrb[0].mxu0
  %v3753 = vadd.f32 0.0, %v3752
  %3754 = vmatprep.mubr.bf16.mxu0 0
  %3755 = vmatmul.mubr.bf16.gmra.mrb[0].mxu0 %v565
  %v3756 = vpop.f32.mrb[0].mxu0
  %v3757 = vadd.f32 0.0, %v3756
  %v3758 = vpop.f32.mrb[0].mxu0
  %v3759 = vadd.f32 0.0, %v3758
  %v3760 = vpop.f32.mrb[0].mxu0
  %v3761 = vadd.f32 0.0, %v3760
  %v3762 = vpop.f32.mrb[0].mxu0
  %v3763 = vadd.f32 0.0, %v3762
  %3764 = vmatprep.mubr.bf16.mxu0 0
  %3765 = vmatmul.mubr.bf16.gmra.mrb[0].mxu0 %v566
  %v3766 = vpop.f32.mrb[0].mxu0
  %v3767 = vadd.f32 0.0, %v3766
  %v3768 = vpop.f32.mrb[0].mxu0
  %v3769 = vadd.f32 0.0, %v3768
  %v3770 = vpop.f32.mrb[0].mxu0
  %v3771 = vadd.f32 0.0, %v3770
  %v3772 = vpop.f32.mrb[0].mxu0
  %v3773 = vadd.f32 0.0, %v3772
  %3774 = vdwg.mxu0
  %3775 = vmatprep.subr.bf16.mxu0 %v1938
  %3776 = vmatpush1.bf16.msra.mxu0 %v1937
  %3777 = vmatprep.subr.bf16.mxu0 %v1994
  %3778 = vmatpush1.bf16.msra.mxu0 %v1993
  %3779 = vmatprep.subr.bf16.mxu0 %v2050
  %3780 = vmatpush1.bf16.msra.mxu0 %v2049
  %3781 = vmatprep.subr.bf16.mxu0 %v2106
  %3782 = vmatpush1.bf16.msra.mxu0 %v2105
  %3783 = vmatprep.subr.bf16.mxu0 %v2162
  %3784 = vmatpush1.bf16.msra.mxu0 %v2161
  %3785 = vmatprep.subr.bf16.mxu0 %v2218
  %3786 = vmatpush1.bf16.msra.mxu0 %v2217
  %3787 = vmatprep.subr.bf16.mxu0 %v2274
  %3788 = vmatpush1.bf16.msra.mxu0 %v2273
  %3789 = vmatprep.subr.bf16.mxu0 %v2330
  %3790 = vmatpush1.bf16.msra.mxu0 %v2329
  %3791 = vmatprep.subr.bf16.mxu0 0
  %3792 = vmatpush1.bf16.msra.mxu0 0
  %3793 = vmatprep.subr.bf16.mxu0 0
  %3794 = vmatpush1.bf16.msra.mxu0 0
  %3795 = vmatprep.subr.bf16.mxu0 0
  %3796 = vmatpush1.bf16.msra.mxu0 0
  %3797 = vmatprep.subr.bf16.mxu0 0
  %3798 = vmatpush1.bf16.msra.mxu0 0
  %3799 = vmatprep.subr.bf16.mxu0 0
  %3800 = vmatpush1.bf16.msra.mxu0 0
  %3801 = vmatprep.subr.bf16.mxu0 0
  %3802 = vmatpush1.bf16.msra.mxu0 0
  %3803 = vmatprep.subr.bf16.mxu0 0
  %3804 = vmatpush1.bf16.msra.mxu0 0
  %3805 = vmatprep.subr.bf16.mxu0 0
  %3806 = vmatpush1.bf16.msra.mxu0 0
  %3807 = vmatprep.mubr.bf16.mxu0 0
  %3808 = vmatmul.mubr.bf16.gmra.mrb[0].mxu0 %v553
  %v3809 = vpop.f32.mrb[0].mxu0
  %v3810 = vadd.f32 0.0, %v3809
  %v3811 = vpop.f32.mrb[0].mxu0
  %v3812 = vadd.f32 0.0, %v3811
  %v3813 = vpop.f32.mrb[0].mxu0
  %v3814 = vadd.f32 0.0, %v3813
  %v3815 = vpop.f32.mrb[0].mxu0
  %v3816 = vadd.f32 0.0, %v3815
  %3817 = vmatprep.mubr.bf16.mxu0 0
  %3818 = vmatmul.mubr.bf16.gmra.mrb[0].mxu0 %v554
  %v3819 = vpop.f32.mrb[0].mxu0
  %v3820 = vadd.f32 0.0, %v3819
  %v3821 = vpop.f32.mrb[0].mxu0
  %v3822 = vadd.f32 0.0, %v3821
  %v3823 = vpop.f32.mrb[0].mxu0
  %v3824 = vadd.f32 0.0, %v3823
  %v3825 = vpop.f32.mrb[0].mxu0
  %v3826 = vadd.f32 0.0, %v3825
  %3827 = vmatprep.mubr.bf16.mxu0 0
  %3828 = vmatmul.mubr.bf16.gmra.mrb[0].mxu0 %v555
  %v3829 = vpop.f32.mrb[0].mxu0
  %v3830 = vadd.f32 0.0, %v3829
  %v3831 = vpop.f32.mrb[0].mxu0
  %v3832 = vadd.f32 0.0, %v3831
  %v3833 = vpop.f32.mrb[0].mxu0
  %v3834 = vadd.f32 0.0, %v3833
  %v3835 = vpop.f32.mrb[0].mxu0
  %v3836 = vadd.f32 0.0, %v3835
  %3837 = vmatprep.mubr.bf16.mxu0 0
  %3838 = vmatmul.mubr.bf16.gmra.mrb[0].mxu0 %v556
  %v3839 = vpop.f32.mrb[0].mxu0
  %v3840 = vadd.f32 0.0, %v3839
  %v3841 = vpop.f32.mrb[0].mxu0
  %v3842 = vadd.f32 0.0, %v3841
  %v3843 = vpop.f32.mrb[0].mxu0
  %v3844 = vadd.f32 0.0, %v3843
  %v3845 = vpop.f32.mrb[0].mxu0
  %v3846 = vadd.f32 0.0, %v3845
  %3847 = vmatprep.mubr.bf16.mxu0 0
  %3848 = vmatmul.mubr.bf16.gmra.mrb[0].mxu0 %v557
  %v3849 = vpop.f32.mrb[0].mxu0
  %v3850 = vadd.f32 0.0, %v3849
  %v3851 = vpop.f32.mrb[0].mxu0
  %v3852 = vadd.f32 0.0, %v3851
  %v3853 = vpop.f32.mrb[0].mxu0
  %v3854 = vadd.f32 0.0, %v3853
  %v3855 = vpop.f32.mrb[0].mxu0
  %v3856 = vadd.f32 0.0, %v3855
  %3857 = vmatprep.mubr.bf16.mxu0 0
  %3858 = vmatmul.mubr.bf16.gmra.mrb[0].mxu0 %v558
  %v3859 = vpop.f32.mrb[0].mxu0
  %v3860 = vadd.f32 0.0, %v3859
  %v3861 = vpop.f32.mrb[0].mxu0
  %v3862 = vadd.f32 0.0, %v3861
  %v3863 = vpop.f32.mrb[0].mxu0
  %v3864 = vadd.f32 0.0, %v3863
  %v3865 = vpop.f32.mrb[0].mxu0
  %v3866 = vadd.f32 0.0, %v3865
  %3867 = vmatprep.mubr.bf16.mxu0 0
  %3868 = vmatmul.mubr.bf16.gmra.mrb[0].mxu0 %v559
  %v3869 = vpop.f32.mrb[0].mxu0
  %v3870 = vadd.f32 0.0, %v3869
  %v3871 = vpop.f32.mrb[0].mxu0
  %v3872 = vadd.f32 0.0, %v3871
  %v3873 = vpop.f32.mrb[0].mxu0
  %v3874 = vadd.f32 0.0, %v3873
  %v3875 = vpop.f32.mrb[0].mxu0
  %v3876 = vadd.f32 0.0, %v3875
  %3877 = vmatprep.mubr.bf16.mxu0 0
  %3878 = vmatmul.mubr.bf16.gmra.mrb[0].mxu0 %v560
  %v3879 = vpop.f32.mrb[0].mxu0
  %v3880 = vadd.f32 0.0, %v3879
  %v3881 = vpop.f32.mrb[0].mxu0
  %v3882 = vadd.f32 0.0, %v3881
  %v3883 = vpop.f32.mrb[0].mxu0
  %v3884 = vadd.f32 0.0, %v3883
  %v3885 = vpop.f32.mrb[0].mxu0
  %v3886 = vadd.f32 0.0, %v3885
  %3887 = vmatprep.mubr.bf16.mxu0 0
  %3888 = vmatmul.mubr.bf16.gmra.mrb[0].mxu0 %v561
  %v3889 = vpop.f32.mrb[0].mxu0
  %v3890 = vadd.f32 0.0, %v3889
  %v3891 = vpop.f32.mrb[0].mxu0
  %v3892 = vadd.f32 0.0, %v3891
  %v3893 = vpop.f32.mrb[0].mxu0
  %v3894 = vadd.f32 0.0, %v3893
  %v3895 = vpop.f32.mrb[0].mxu0
  %v3896 = vadd.f32 0.0, %v3895
  %3897 = vmatprep.mubr.bf16.mxu0 0
  %3898 = vmatmul.mubr.bf16.gmra.mrb[0].mxu0 %v562
  %v3899 = vpop.f32.mrb[0].mxu0
  %v3900 = vadd.f32 0.0, %v3899
  %v3901 = vpop.f32.mrb[0].mxu0
  %v3902 = vadd.f32 0.0, %v3901
  %v3903 = vpop.f32.mrb[0].mxu0
  %v3904 = vadd.f32 0.0, %v3903
  %v3905 = vpop.f32.mrb[0].mxu0
  %v3906 = vadd.f32 0.0, %v3905
  %3907 = vmatprep.mubr.bf16.mxu0 0
  %3908 = vmatmul.mubr.bf16.gmra.mrb[0].mxu0 %v563
  %v3909 = vpop.f32.mrb[0].mxu0
  %v3910 = vadd.f32 0.0, %v3909
  %v3911 = vpop.f32.mrb[0].mxu0
  %v3912 = vadd.f32 0.0, %v3911
  %v3913 = vpop.f32.mrb[0].mxu0
  %v3914 = vadd.f32 0.0, %v3913
  %v3915 = vpop.f32.mrb[0].mxu0
  %v3916 = vadd.f32 0.0, %v3915
  %3917 = vmatprep.mubr.bf16.mxu0 0
  %3918 = vmatmul.mubr.bf16.gmra.mrb[0].mxu0 %v564
  %v3919 = vpop.f32.mrb[0].mxu0
  %v3920 = vadd.f32 0.0, %v3919
  %v3921 = vpop.f32.mrb[0].mxu0
  %v3922 = vadd.f32 0.0, %v3921
  %v3923 = vpop.f32.mrb[0].mxu0
  %v3924 = vadd.f32 0.0, %v3923
  %v3925 = vpop.f32.mrb[0].mxu0
  %v3926 = vadd.f32 0.0, %v3925
  %3927 = vmatprep.mubr.bf16.mxu0 0
  %3928 = vmatmul.mubr.bf16.gmra.mrb[0].mxu0 %v565
  %v3929 = vpop.f32.mrb[0].mxu0
  %v3930 = vadd.f32 0.0, %v3929
  %v3931 = vpop.f32.mrb[0].mxu0
  %v3932 = vadd.f32 0.0, %v3931
  %v3933 = vpop.f32.mrb[0].mxu0
  %v3934 = vadd.f32 0.0, %v3933
  %v3935 = vpop.f32.mrb[0].mxu0
  %v3936 = vadd.f32 0.0, %v3935
  %3937 = vmatprep.mubr.bf16.mxu0 0
  %3938 = vmatmul.mubr.bf16.gmra.mrb[0].mxu0 %v566
  %v3939 = vpop.f32.mrb[0].mxu0
  %v3940 = vadd.f32 0.0, %v3939
  %v3941 = vpop.f32.mrb[0].mxu0
  %v3942 = vadd.f32 0.0, %v3941
  %v3943 = vpop.f32.mrb[0].mxu0
  %v3944 = vadd.f32 0.0, %v3943
  %v3945 = vpop.f32.mrb[0].mxu0
  %v3946 = vadd.f32 0.0, %v3945
  %3947 = vdwg.mxu0
  %3948 = vmatprep.subr.bf16.mxu0 %v1940
  %3949 = vmatpush1.bf16.msra.mxu0 %v1939
  %3950 = vmatprep.subr.bf16.mxu0 %v1996
  %3951 = vmatpush1.bf16.msra.mxu0 %v1995
  %3952 = vmatprep.subr.bf16.mxu0 %v2052
  %3953 = vmatpush1.bf16.msra.mxu0 %v2051
  %3954 = vmatprep.subr.bf16.mxu0 %v2108
  %3955 = vmatpush1.bf16.msra.mxu0 %v2107
  %3956 = vmatprep.subr.bf16.mxu0 %v2164
  %3957 = vmatpush1.bf16.msra.mxu0 %v2163
  %3958 = vmatprep.subr.bf16.mxu0 %v2220
  %3959 = vmatpush1.bf16.msra.mxu0 %v2219
  %3960 = vmatprep.subr.bf16.mxu0 %v2276
  %3961 = vmatpush1.bf16.msra.mxu0 %v2275
  %3962 = vmatprep.subr.bf16.mxu0 %v2332
  %3963 = vmatpush1.bf16.msra.mxu0 %v2331
  %3964 = vmatprep.subr.bf16.mxu0 0
  %3965 = vmatpush1.bf16.msra.mxu0 0
  %3966 = vmatprep.subr.bf16.mxu0 0
  %3967 = vmatpush1.bf16.msra.mxu0 0
  %3968 = vmatprep.subr.bf16.mxu0 0
  %3969 = vmatpush1.bf16.msra.mxu0 0
  %3970 = vmatprep.subr.bf16.mxu0 0
  %3971 = vmatpush1.bf16.msra.mxu0 0
  %3972 = vmatprep.subr.bf16.mxu0 0
  %3973 = vmatpush1.bf16.msra.mxu0 0
  %3974 = vmatprep.subr.bf16.mxu0 0
  %3975 = vmatpush1.bf16.msra.mxu0 0
  %3976 = vmatprep.subr.bf16.mxu0 0
  %3977 = vmatpush1.bf16.msra.mxu0 0
  %3978 = vmatprep.subr.bf16.mxu0 0
  %3979 = vmatpush1.bf16.msra.mxu0 0
  %3980 = vmatprep.mubr.bf16.mxu0 0
  %3981 = vmatmul.mubr.bf16.gmra.mrb[0].mxu0 %v553
  %v3982 = vpop.f32.mrb[0].mxu0
  %v3983 = vadd.f32 0.0, %v3982
  %v3984 = vpop.f32.mrb[0].mxu0
  %v3985 = vadd.f32 0.0, %v3984
  %v3986 = vpop.f32.mrb[0].mxu0
  %v3987 = vadd.f32 0.0, %v3986
  %v3988 = vpop.f32.mrb[0].mxu0
  %v3989 = vadd.f32 0.0, %v3988
  %3990 = vmatprep.mubr.bf16.mxu0 0
  %3991 = vmatmul.mubr.bf16.gmra.mrb[0].mxu0 %v554
  %v3992 = vpop.f32.mrb[0].mxu0
  %v3993 = vadd.f32 0.0, %v3992
  %v3994 = vpop.f32.mrb[0].mxu0
  %v3995 = vadd.f32 0.0, %v3994
  %v3996 = vpop.f32.mrb[0].mxu0
  %v3997 = vadd.f32 0.0, %v3996
  %v3998 = vpop.f32.mrb[0].mxu0
  %v3999 = vadd.f32 0.0, %v3998
  %4000 = vmatprep.mubr.bf16.mxu0 0
  %4001 = vmatmul.mubr.bf16.gmra.mrb[0].mxu0 %v555
  %v4002 = vpop.f32.mrb[0].mxu0
  %v4003 = vadd.f32 0.0, %v4002
  %v4004 = vpop.f32.mrb[0].mxu0
  %v4005 = vadd.f32 0.0, %v4004
  %v4006 = vpop.f32.mrb[0].mxu0
  %v4007 = vadd.f32 0.0, %v4006
  %v4008 = vpop.f32.mrb[0].mxu0
  %v4009 = vadd.f32 0.0, %v4008
  %4010 = vmatprep.mubr.bf16.mxu0 0
  %4011 = vmatmul.mubr.bf16.gmra.mrb[0].mxu0 %v556
  %v4012 = vpop.f32.mrb[0].mxu0
  %v4013 = vadd.f32 0.0, %v4012
  %v4014 = vpop.f32.mrb[0].mxu0
  %v4015 = vadd.f32 0.0, %v4014
  %v4016 = vpop.f32.mrb[0].mxu0
  %v4017 = vadd.f32 0.0, %v4016
  %v4018 = vpop.f32.mrb[0].mxu0
  %v4019 = vadd.f32 0.0, %v4018
  %4020 = vmatprep.mubr.bf16.mxu0 0
  %4021 = vmatmul.mubr.bf16.gmra.mrb[0].mxu0 %v557
  %v4022 = vpop.f32.mrb[0].mxu0
  %v4023 = vadd.f32 0.0, %v4022
  %v4024 = vpop.f32.mrb[0].mxu0
  %v4025 = vadd.f32 0.0, %v4024
  %v4026 = vpop.f32.mrb[0].mxu0
  %v4027 = vadd.f32 0.0, %v4026
  %v4028 = vpop.f32.mrb[0].mxu0
  %v4029 = vadd.f32 0.0, %v4028
  %4030 = vmatprep.mubr.bf16.mxu0 0
  %4031 = vmatmul.mubr.bf16.gmra.mrb[0].mxu0 %v558
  %v4032 = vpop.f32.mrb[0].mxu0
  %v4033 = vadd.f32 0.0, %v4032
  %v4034 = vpop.f32.mrb[0].mxu0
  %v4035 = vadd.f32 0.0, %v4034
  %v4036 = vpop.f32.mrb[0].mxu0
  %v4037 = vadd.f32 0.0, %v4036
  %v4038 = vpop.f32.mrb[0].mxu0
  %v4039 = vadd.f32 0.0, %v4038
  %4040 = vmatprep.mubr.bf16.mxu0 0
  %4041 = vmatmul.mubr.bf16.gmra.mrb[0].mxu0 %v559
  %v4042 = vpop.f32.mrb[0].mxu0
  %v4043 = vadd.f32 0.0, %v4042
  %v4044 = vpop.f32.mrb[0].mxu0
  %v4045 = vadd.f32 0.0, %v4044
  %v4046 = vpop.f32.mrb[0].mxu0
  %v4047 = vadd.f32 0.0, %v4046
  %v4048 = vpop.f32.mrb[0].mxu0
  %v4049 = vadd.f32 0.0, %v4048
  %4050 = vmatprep.mubr.bf16.mxu0 0
  %4051 = vmatmul.mubr.bf16.gmra.mrb[0].mxu0 %v560
  %v4052 = vpop.f32.mrb[0].mxu0
  %v4053 = vadd.f32 0.0, %v4052
  %v4054 = vpop.f32.mrb[0].mxu0
  %v4055 = vadd.f32 0.0, %v4054
  %v4056 = vpop.f32.mrb[0].mxu0
  %v4057 = vadd.f32 0.0, %v4056
  %v4058 = vpop.f32.mrb[0].mxu0
  %v4059 = vadd.f32 0.0, %v4058
  %4060 = vmatprep.mubr.bf16.mxu0 0
  %4061 = vmatmul.mubr.bf16.gmra.mrb[0].mxu0 %v561
  %v4062 = vpop.f32.mrb[0].mxu0
  %v4063 = vadd.f32 0.0, %v4062
  %v4064 = vpop.f32.mrb[0].mxu0
  %v4065 = vadd.f32 0.0, %v4064
  %v4066 = vpop.f32.mrb[0].mxu0
  %v4067 = vadd.f32 0.0, %v4066
  %v4068 = vpop.f32.mrb[0].mxu0
  %v4069 = vadd.f32 0.0, %v4068
  %4070 = vmatprep.mubr.bf16.mxu0 0
  %4071 = vmatmul.mubr.bf16.gmra.mrb[0].mxu0 %v562
  %v4072 = vpop.f32.mrb[0].mxu0
  %v4073 = vadd.f32 0.0, %v4072
  %v4074 = vpop.f32.mrb[0].mxu0
  %v4075 = vadd.f32 0.0, %v4074
  %v4076 = vpop.f32.mrb[0].mxu0
  %v4077 = vadd.f32 0.0, %v4076
  %v4078 = vpop.f32.mrb[0].mxu0
  %v4079 = vadd.f32 0.0, %v4078
  %4080 = vmatprep.mubr.bf16.mxu0 0
  %4081 = vmatmul.mubr.bf16.gmra.mrb[0].mxu0 %v563
  %v4082 = vpop.f32.mrb[0].mxu0
  %v4083 = vadd.f32 0.0, %v4082
  %v4084 = vpop.f32.mrb[0].mxu0
  %v4085 = vadd.f32 0.0, %v4084
  %v4086 = vpop.f32.mrb[0].mxu0
  %v4087 = vadd.f32 0.0, %v4086
  %v4088 = vpop.f32.mrb[0].mxu0
  %v4089 = vadd.f32 0.0, %v4088
  %4090 = vmatprep.mubr.bf16.mxu0 0
  %4091 = vmatmul.mubr.bf16.gmra.mrb[0].mxu0 %v564
  %v4092 = vpop.f32.mrb[0].mxu0
  %v4093 = vadd.f32 0.0, %v4092
  %v4094 = vpop.f32.mrb[0].mxu0
  %v4095 = vadd.f32 0.0, %v4094
  %v4096 = vpop.f32.mrb[0].mxu0
  %v4097 = vadd.f32 0.0, %v4096
  %v4098 = vpop.f32.mrb[0].mxu0
  %v4099 = vadd.f32 0.0, %v4098
  %4100 = vmatprep.mubr.bf16.mxu0 0
  %4101 = vmatmul.mubr.bf16.gmra.mrb[0].mxu0 %v565
  %v4102 = vpop.f32.mrb[0].mxu0
  %v4103 = vadd.f32 0.0, %v4102
  %v4104 = vpop.f32.mrb[0].mxu0
  %v4105 = vadd.f32 0.0, %v4104
  %v4106 = vpop.f32.mrb[0].mxu0
  %v4107 = vadd.f32 0.0, %v4106
  %v4108 = vpop.f32.mrb[0].mxu0
  %v4109 = vadd.f32 0.0, %v4108
  %4110 = vmatprep.mubr.bf16.mxu0 0
  %4111 = vmatmul.mubr.bf16.gmra.mrb[0].mxu0 %v566
  %v4112 = vpop.f32.mrb[0].mxu0
  %v4113 = vadd.f32 0.0, %v4112
  %v4114 = vpop.f32.mrb[0].mxu0
  %v4115 = vadd.f32 0.0, %v4114
  %v4116 = vpop.f32.mrb[0].mxu0
  %v4117 = vadd.f32 0.0, %v4116
  %v4118 = vpop.f32.mrb[0].mxu0
  %v4119 = vadd.f32 0.0, %v4118
  %4120 = vdwg.mxu0
  %4121 = vmatprep.subr.bf16.mxu0 %v1942
  %4122 = vmatpush1.bf16.msra.mxu0 %v1941
  %4123 = vmatprep.subr.bf16.mxu0 %v1998
  %4124 = vmatpush1.bf16.msra.mxu0 %v1997
  %4125 = vmatprep.subr.bf16.mxu0 %v2054
  %4126 = vmatpush1.bf16.msra.mxu0 %v2053
  %4127 = vmatprep.subr.bf16.mxu0 %v2110
  %4128 = vmatpush1.bf16.msra.mxu0 %v2109
  %4129 = vmatprep.subr.bf16.mxu0 %v2166
  %4130 = vmatpush1.bf16.msra.mxu0 %v2165
  %4131 = vmatprep.subr.bf16.mxu0 %v2222
  %4132 = vmatpush1.bf16.msra.mxu0 %v2221
  %4133 = vmatprep.subr.bf16.mxu0 %v2278
  %4134 = vmatpush1.bf16.msra.mxu0 %v2277
  %4135 = vmatprep.subr.bf16.mxu0 %v2334
  %4136 = vmatpush1.bf16.msra.mxu0 %v2333
  %4137 = vmatprep.subr.bf16.mxu0 0
  %4138 = vmatpush1.bf16.msra.mxu0 0
  %4139 = vmatprep.subr.bf16.mxu0 0
  %4140 = vmatpush1.bf16.msra.mxu0 0
  %4141 = vmatprep.subr.bf16.mxu0 0
  %4142 = vmatpush1.bf16.msra.mxu0 0
  %4143 = vmatprep.subr.bf16.mxu0 0
  %4144 = vmatpush1.bf16.msra.mxu0 0
  %4145 = vmatprep.subr.bf16.mxu0 0
  %4146 = vmatpush1.bf16.msra.mxu0 0
  %4147 = vmatprep.subr.bf16.mxu0 0
  %4148 = vmatpush1.bf16.msra.mxu0 0
  %4149 = vmatprep.subr.bf16.mxu0 0
  %4150 = vmatpush1.bf16.msra.mxu0 0
  %4151 = vmatprep.subr.bf16.mxu0 0
  %4152 = vmatpush1.bf16.msra.mxu0 0
  %4153 = vmatprep.mubr.bf16.mxu0 0
  %4154 = vmatmul.mubr.bf16.gmra.mrb[0].mxu0 %v553
  %v4155 = vpop.f32.mrb[0].mxu0
  %v4156 = vadd.f32 0.0, %v4155
  %v4157 = vpop.f32.mrb[0].mxu0
  %v4158 = vadd.f32 0.0, %v4157
  %v4159 = vpop.f32.mrb[0].mxu0
  %v4160 = vadd.f32 0.0, %v4159
  %v4161 = vpop.f32.mrb[0].mxu0
  %v4162 = vadd.f32 0.0, %v4161
  %4163 = vmatprep.mubr.bf16.mxu0 0
  %4164 = vmatmul.mubr.bf16.gmra.mrb[0].mxu0 %v554
  %v4165 = vpop.f32.mrb[0].mxu0
  %v4166 = vadd.f32 0.0, %v4165
  %v4167 = vpop.f32.mrb[0].mxu0
  %v4168 = vadd.f32 0.0, %v4167
  %v4169 = vpop.f32.mrb[0].mxu0
  %v4170 = vadd.f32 0.0, %v4169
  %v4171 = vpop.f32.mrb[0].mxu0
  %v4172 = vadd.f32 0.0, %v4171
  %4173 = vmatprep.mubr.bf16.mxu0 0
  %4174 = vmatmul.mubr.bf16.gmra.mrb[0].mxu0 %v555
  %v4175 = vpop.f32.mrb[0].mxu0
  %v4176 = vadd.f32 0.0, %v4175
  %v4177 = vpop.f32.mrb[0].mxu0
  %v4178 = vadd.f32 0.0, %v4177
  %v4179 = vpop.f32.mrb[0].mxu0
  %v4180 = vadd.f32 0.0, %v4179
  %v4181 = vpop.f32.mrb[0].mxu0
  %v4182 = vadd.f32 0.0, %v4181
  %4183 = vmatprep.mubr.bf16.mxu0 0
  %4184 = vmatmul.mubr.bf16.gmra.mrb[0].mxu0 %v556
  %v4185 = vpop.f32.mrb[0].mxu0
  %v4186 = vadd.f32 0.0, %v4185
  %v4187 = vpop.f32.mrb[0].mxu0
  %v4188 = vadd.f32 0.0, %v4187
  %v4189 = vpop.f32.mrb[0].mxu0
  %v4190 = vadd.f32 0.0, %v4189
  %v4191 = vpop.f32.mrb[0].mxu0
  %v4192 = vadd.f32 0.0, %v4191
  %4193 = vmatprep.mubr.bf16.mxu0 0
  %4194 = vmatmul.mubr.bf16.gmra.mrb[0].mxu0 %v557
  %v4195 = vpop.f32.mrb[0].mxu0
  %v4196 = vadd.f32 0.0, %v4195
  %v4197 = vpop.f32.mrb[0].mxu0
  %v4198 = vadd.f32 0.0, %v4197
  %v4199 = vpop.f32.mrb[0].mxu0
  %v4200 = vadd.f32 0.0, %v4199
  %v4201 = vpop.f32.mrb[0].mxu0
  %v4202 = vadd.f32 0.0, %v4201
  %4203 = vmatprep.mubr.bf16.mxu0 0
  %4204 = vmatmul.mubr.bf16.gmra.mrb[0].mxu0 %v558
  %v4205 = vpop.f32.mrb[0].mxu0
  %v4206 = vadd.f32 0.0, %v4205
  %v4207 = vpop.f32.mrb[0].mxu0
  %v4208 = vadd.f32 0.0, %v4207
  %v4209 = vpop.f32.mrb[0].mxu0
  %v4210 = vadd.f32 0.0, %v4209
  %v4211 = vpop.f32.mrb[0].mxu0
  %v4212 = vadd.f32 0.0, %v4211
  %4213 = vmatprep.mubr.bf16.mxu0 0
  %4214 = vmatmul.mubr.bf16.gmra.mrb[0].mxu0 %v559
  %v4215 = vpop.f32.mrb[0].mxu0
  %v4216 = vadd.f32 0.0, %v4215
  %v4217 = vpop.f32.mrb[0].mxu0
  %v4218 = vadd.f32 0.0, %v4217
  %v4219 = vpop.f32.mrb[0].mxu0
  %v4220 = vadd.f32 0.0, %v4219
  %v4221 = vpop.f32.mrb[0].mxu0
  %v4222 = vadd.f32 0.0, %v4221
  %4223 = vmatprep.mubr.bf16.mxu0 0
  %4224 = vmatmul.mubr.bf16.gmra.mrb[0].mxu0 %v560
  %v4225 = vpop.f32.mrb[0].mxu0
  %v4226 = vadd.f32 0.0, %v4225
  %v4227 = vpop.f32.mrb[0].mxu0
  %v4228 = vadd.f32 0.0, %v4227
  %v4229 = vpop.f32.mrb[0].mxu0
  %v4230 = vadd.f32 0.0, %v4229
  %v4231 = vpop.f32.mrb[0].mxu0
  %v4232 = vadd.f32 0.0, %v4231
  %4233 = vmatprep.mubr.bf16.mxu0 0
  %4234 = vmatmul.mubr.bf16.gmra.mrb[0].mxu0 %v561
  %v4235 = vpop.f32.mrb[0].mxu0
  %v4236 = vadd.f32 0.0, %v4235
  %v4237 = vpop.f32.mrb[0].mxu0
  %v4238 = vadd.f32 0.0, %v4237
  %v4239 = vpop.f32.mrb[0].mxu0
  %v4240 = vadd.f32 0.0, %v4239
  %v4241 = vpop.f32.mrb[0].mxu0
  %v4242 = vadd.f32 0.0, %v4241
  %4243 = vmatprep.mubr.bf16.mxu0 0
  %4244 = vmatmul.mubr.bf16.gmra.mrb[0].mxu0 %v562
  %v4245 = vpop.f32.mrb[0].mxu0
  %v4246 = vadd.f32 0.0, %v4245
  %v4247 = vpop.f32.mrb[0].mxu0
  %v4248 = vadd.f32 0.0, %v4247
  %v4249 = vpop.f32.mrb[0].mxu0
  %v4250 = vadd.f32 0.0, %v4249
  %v4251 = vpop.f32.mrb[0].mxu0
  %v4252 = vadd.f32 0.0, %v4251
  %4253 = vmatprep.mubr.bf16.mxu0 0
  %4254 = vmatmul.mubr.bf16.gmra.mrb[0].mxu0 %v563
  %v4255 = vpop.f32.mrb[0].mxu0
  %v4256 = vadd.f32 0.0, %v4255
  %v4257 = vpop.f32.mrb[0].mxu0
  %v4258 = vadd.f32 0.0, %v4257
  %v4259 = vpop.f32.mrb[0].mxu0
  %v4260 = vadd.f32 0.0, %v4259
  %v4261 = vpop.f32.mrb[0].mxu0
  %v4262 = vadd.f32 0.0, %v4261
  %4263 = vmatprep.mubr.bf16.mxu0 0
  %4264 = vmatmul.mubr.bf16.gmra.mrb[0].mxu0 %v564
  %v4265 = vpop.f32.mrb[0].mxu0
  %v4266 = vadd.f32 0.0, %v4265
  %v4267 = vpop.f32.mrb[0].mxu0
  %v4268 = vadd.f32 0.0, %v4267
  %v4269 = vpop.f32.mrb[0].mxu0
  %v4270 = vadd.f32 0.0, %v4269
  %v4271 = vpop.f32.mrb[0].mxu0
  %v4272 = vadd.f32 0.0, %v4271
  %4273 = vmatprep.mubr.bf16.mxu0 0
  %4274 = vmatmul.mubr.bf16.gmra.mrb[0].mxu0 %v565
  %v4275 = vpop.f32.mrb[0].mxu0
  %v4276 = vadd.f32 0.0, %v4275
  %v4277 = vpop.f32.mrb[0].mxu0
  %v4278 = vadd.f32 0.0, %v4277
  %v4279 = vpop.f32.mrb[0].mxu0
  %v4280 = vadd.f32 0.0, %v4279
  %v4281 = vpop.f32.mrb[0].mxu0
  %v4282 = vadd.f32 0.0, %v4281
  %4283 = vmatprep.mubr.bf16.mxu0 0
  %4284 = vmatmul.mubr.bf16.gmra.mrb[0].mxu0 %v566
  %v4285 = vpop.f32.mrb[0].mxu0
  %v4286 = vadd.f32 0.0, %v4285
  %v4287 = vpop.f32.mrb[0].mxu0
  %v4288 = vadd.f32 0.0, %v4287
  %v4289 = vpop.f32.mrb[0].mxu0
  %v4290 = vadd.f32 0.0, %v4289
  %v4291 = vpop.f32.mrb[0].mxu0
  %v4292 = vadd.f32 0.0, %v4291
  %4293 = vdwg.mxu0
  %4294 = vmatprep.subr.bf16.mxu0 %v1944
  %4295 = vmatpush1.bf16.msra.mxu0 %v1943
  %4296 = vmatprep.subr.bf16.mxu0 %v2000
  %4297 = vmatpush1.bf16.msra.mxu0 %v1999
  %4298 = vmatprep.subr.bf16.mxu0 %v2056
  %4299 = vmatpush1.bf16.msra.mxu0 %v2055
  %4300 = vmatprep.subr.bf16.mxu0 %v2112
  %4301 = vmatpush1.bf16.msra.mxu0 %v2111
  %4302 = vmatprep.subr.bf16.mxu0 %v2168
  %4303 = vmatpush1.bf16.msra.mxu0 %v2167
  %4304 = vmatprep.subr.bf16.mxu0 %v2224
  %4305 = vmatpush1.bf16.msra.mxu0 %v2223
  %4306 = vmatprep.subr.bf16.mxu0 %v2280
  %4307 = vmatpush1.bf16.msra.mxu0 %v2279
  %4308 = vmatprep.subr.bf16.mxu0 %v2336
  %4309 = vmatpush1.bf16.msra.mxu0 %v2335
  %4310 = vmatprep.subr.bf16.mxu0 0
  %4311 = vmatpush1.bf16.msra.mxu0 0
  %4312 = vmatprep.subr.bf16.mxu0 0
  %4313 = vmatpush1.bf16.msra.mxu0 0
  %4314 = vmatprep.subr.bf16.mxu0 0
  %4315 = vmatpush1.bf16.msra.mxu0 0
  %4316 = vmatprep.subr.bf16.mxu0 0
  %4317 = vmatpush1.bf16.msra.mxu0 0
  %4318 = vmatprep.subr.bf16.mxu0 0
  %4319 = vmatpush1.bf16.msra.mxu0 0
  %4320 = vmatprep.subr.bf16.mxu0 0
  %4321 = vmatpush1.bf16.msra.mxu0 0
  %4322 = vmatprep.subr.bf16.mxu0 0
  %4323 = vmatpush1.bf16.msra.mxu0 0
  %4324 = vmatprep.subr.bf16.mxu0 0
  %4325 = vmatpush1.bf16.msra.mxu0 0
  %4326 = vmatprep.mubr.bf16.mxu0 0
  %4327 = vmatmul.mubr.bf16.gmra.mrb[0].mxu0 %v553
  %v4328 = vpop.f32.mrb[0].mxu0
  %v4329 = vadd.f32 0.0, %v4328
  %v4330 = vpop.f32.mrb[0].mxu0
  %v4331 = vadd.f32 0.0, %v4330
  %v4332 = vpop.f32.mrb[0].mxu0
  %v4333 = vadd.f32 0.0, %v4332
  %v4334 = vpop.f32.mrb[0].mxu0
  %v4335 = vadd.f32 0.0, %v4334
  %4336 = vmatprep.mubr.bf16.mxu0 0
  %4337 = vmatmul.mubr.bf16.gmra.mrb[0].mxu0 %v554
  %v4338 = vpop.f32.mrb[0].mxu0
  %v4339 = vadd.f32 0.0, %v4338
  %v4340 = vpop.f32.mrb[0].mxu0
  %v4341 = vadd.f32 0.0, %v4340
  %v4342 = vpop.f32.mrb[0].mxu0
  %v4343 = vadd.f32 0.0, %v4342
  %v4344 = vpop.f32.mrb[0].mxu0
  %v4345 = vadd.f32 0.0, %v4344
  %4346 = vmatprep.mubr.bf16.mxu0 0
  %4347 = vmatmul.mubr.bf16.gmra.mrb[0].mxu0 %v555
  %v4348 = vpop.f32.mrb[0].mxu0
  %v4349 = vadd.f32 0.0, %v4348
  %v4350 = vpop.f32.mrb[0].mxu0
  %v4351 = vadd.f32 0.0, %v4350
  %v4352 = vpop.f32.mrb[0].mxu0
  %v4353 = vadd.f32 0.0, %v4352
  %v4354 = vpop.f32.mrb[0].mxu0
  %v4355 = vadd.f32 0.0, %v4354
  %4356 = vmatprep.mubr.bf16.mxu0 0
  %4357 = vmatmul.mubr.bf16.gmra.mrb[0].mxu0 %v556
  %v4358 = vpop.f32.mrb[0].mxu0
  %v4359 = vadd.f32 0.0, %v4358
  %v4360 = vpop.f32.mrb[0].mxu0
  %v4361 = vadd.f32 0.0, %v4360
  %v4362 = vpop.f32.mrb[0].mxu0
  %v4363 = vadd.f32 0.0, %v4362
  %v4364 = vpop.f32.mrb[0].mxu0
  %v4365 = vadd.f32 0.0, %v4364
  %4366 = vmatprep.mubr.bf16.mxu0 0
  %4367 = vmatmul.mubr.bf16.gmra.mrb[0].mxu0 %v557
  %v4368 = vpop.f32.mrb[0].mxu0
  %v4369 = vadd.f32 0.0, %v4368
  %v4370 = vpop.f32.mrb[0].mxu0
  %v4371 = vadd.f32 0.0, %v4370
  %v4372 = vpop.f32.mrb[0].mxu0
  %v4373 = vadd.f32 0.0, %v4372
  %v4374 = vpop.f32.mrb[0].mxu0
  %v4375 = vadd.f32 0.0, %v4374
  %4376 = vmatprep.mubr.bf16.mxu0 0
  %4377 = vmatmul.mubr.bf16.gmra.mrb[0].mxu0 %v558
  %v4378 = vpop.f32.mrb[0].mxu0
  %v4379 = vadd.f32 0.0, %v4378
  %v4380 = vpop.f32.mrb[0].mxu0
  %v4381 = vadd.f32 0.0, %v4380
  %v4382 = vpop.f32.mrb[0].mxu0
  %v4383 = vadd.f32 0.0, %v4382
  %v4384 = vpop.f32.mrb[0].mxu0
  %v4385 = vadd.f32 0.0, %v4384
  %4386 = vmatprep.mubr.bf16.mxu0 0
  %4387 = vmatmul.mubr.bf16.gmra.mrb[0].mxu0 %v559
  %v4388 = vpop.f32.mrb[0].mxu0
  %v4389 = vadd.f32 0.0, %v4388
  %v4390 = vpop.f32.mrb[0].mxu0
  %v4391 = vadd.f32 0.0, %v4390
  %v4392 = vpop.f32.mrb[0].mxu0
  %v4393 = vadd.f32 0.0, %v4392
  %v4394 = vpop.f32.mrb[0].mxu0
  %v4395 = vadd.f32 0.0, %v4394
  %4396 = vmatprep.mubr.bf16.mxu0 0
  %4397 = vmatmul.mubr.bf16.gmra.mrb[0].mxu0 %v560
  %v4398 = vpop.f32.mrb[0].mxu0
  %v4399 = vadd.f32 0.0, %v4398
  %v4400 = vpop.f32.mrb[0].mxu0
  %v4401 = vadd.f32 0.0, %v4400
  %v4402 = vpop.f32.mrb[0].mxu0
  %v4403 = vadd.f32 0.0, %v4402
  %v4404 = vpop.f32.mrb[0].mxu0
  %v4405 = vadd.f32 0.0, %v4404
  %4406 = vmatprep.mubr.bf16.mxu0 0
  %4407 = vmatmul.mubr.bf16.gmra.mrb[0].mxu0 %v561
  %v4408 = vpop.f32.mrb[0].mxu0
  %v4409 = vadd.f32 0.0, %v4408
  %v4410 = vpop.f32.mrb[0].mxu0
  %v4411 = vadd.f32 0.0, %v4410
  %v4412 = vpop.f32.mrb[0].mxu0
  %v4413 = vadd.f32 0.0, %v4412
  %v4414 = vpop.f32.mrb[0].mxu0
  %v4415 = vadd.f32 0.0, %v4414
  %4416 = vmatprep.mubr.bf16.mxu0 0
  %4417 = vmatmul.mubr.bf16.gmra.mrb[0].mxu0 %v562
  %v4418 = vpop.f32.mrb[0].mxu0
  %v4419 = vadd.f32 0.0, %v4418
  %v4420 = vpop.f32.mrb[0].mxu0
  %v4421 = vadd.f32 0.0, %v4420
  %v4422 = vpop.f32.mrb[0].mxu0
  %v4423 = vadd.f32 0.0, %v4422
  %v4424 = vpop.f32.mrb[0].mxu0
  %v4425 = vadd.f32 0.0, %v4424
  %4426 = vmatprep.mubr.bf16.mxu0 0
  %4427 = vmatmul.mubr.bf16.gmra.mrb[0].mxu0 %v563
  %v4428 = vpop.f32.mrb[0].mxu0
  %v4429 = vadd.f32 0.0, %v4428
  %v4430 = vpop.f32.mrb[0].mxu0
  %v4431 = vadd.f32 0.0, %v4430
  %v4432 = vpop.f32.mrb[0].mxu0
  %v4433 = vadd.f32 0.0, %v4432
  %v4434 = vpop.f32.mrb[0].mxu0
  %v4435 = vadd.f32 0.0, %v4434
  %4436 = vmatprep.mubr.bf16.mxu0 0
  %4437 = vmatmul.mubr.bf16.gmra.mrb[0].mxu0 %v564
  %v4438 = vpop.f32.mrb[0].mxu0
  %v4439 = vadd.f32 0.0, %v4438
  %v4440 = vpop.f32.mrb[0].mxu0
  %v4441 = vadd.f32 0.0, %v4440
  %v4442 = vpop.f32.mrb[0].mxu0
  %v4443 = vadd.f32 0.0, %v4442
  %v4444 = vpop.f32.mrb[0].mxu0
  %v4445 = vadd.f32 0.0, %v4444
  %4446 = vmatprep.mubr.bf16.mxu0 0
  %4447 = vmatmul.mubr.bf16.gmra.mrb[0].mxu0 %v565
  %v4448 = vpop.f32.mrb[0].mxu0
  %v4449 = vadd.f32 0.0, %v4448
  %v4450 = vpop.f32.mrb[0].mxu0
  %v4451 = vadd.f32 0.0, %v4450
  %v4452 = vpop.f32.mrb[0].mxu0
  %v4453 = vadd.f32 0.0, %v4452
  %v4454 = vpop.f32.mrb[0].mxu0
  %v4455 = vadd.f32 0.0, %v4454
  %4456 = vmatprep.mubr.bf16.mxu0 0
  %4457 = vmatmul.mubr.bf16.gmra.mrb[0].mxu0 %v566
  %v4458 = vpop.f32.mrb[0].mxu0
  %v4459 = vadd.f32 0.0, %v4458
  %v4460 = vpop.f32.mrb[0].mxu0
  %v4461 = vadd.f32 0.0, %v4460
  %v4462 = vpop.f32.mrb[0].mxu0
  %v4463 = vadd.f32 0.0, %v4462
  %v4464 = vpop.f32.mrb[0].mxu0
  %v4465 = vadd.f32 0.0, %v4464
  %4466 = vdwg.mxu0
  %4467 = vmatprep.subr.bf16.mxu0 %v1946
  %4468 = vmatpush1.bf16.msra.mxu0 %v1945
  %4469 = vmatprep.subr.bf16.mxu0 %v2002
  %4470 = vmatpush1.bf16.msra.mxu0 %v2001
  %4471 = vmatprep.subr.bf16.mxu0 %v2058
  %4472 = vmatpush1.bf16.msra.mxu0 %v2057
  %4473 = vmatprep.subr.bf16.mxu0 %v2114
  %4474 = vmatpush1.bf16.msra.mxu0 %v2113
  %4475 = vmatprep.subr.bf16.mxu0 %v2170
  %4476 = vmatpush1.bf16.msra.mxu0 %v2169
  %4477 = vmatprep.subr.bf16.mxu0 %v2226
  %4478 = vmatpush1.bf16.msra.mxu0 %v2225
  %4479 = vmatprep.subr.bf16.mxu0 %v2282
  %4480 = vmatpush1.bf16.msra.mxu0 %v2281
  %4481 = vmatprep.subr.bf16.mxu0 %v2338
  %4482 = vmatpush1.bf16.msra.mxu0 %v2337
  %4483 = vmatprep.subr.bf16.mxu0 0
  %4484 = vmatpush1.bf16.msra.mxu0 0
  %4485 = vmatprep.subr.bf16.mxu0 0
  %4486 = vmatpush1.bf16.msra.mxu0 0
  %4487 = vmatprep.subr.bf16.mxu0 0
  %4488 = vmatpush1.bf16.msra.mxu0 0
  %4489 = vmatprep.subr.bf16.mxu0 0
  %4490 = vmatpush1.bf16.msra.mxu0 0
  %4491 = vmatprep.subr.bf16.mxu0 0
  %4492 = vmatpush1.bf16.msra.mxu0 0
  %4493 = vmatprep.subr.bf16.mxu0 0
  %4494 = vmatpush1.bf16.msra.mxu0 0
  %4495 = vmatprep.subr.bf16.mxu0 0
  %4496 = vmatpush1.bf16.msra.mxu0 0
  %4497 = vmatprep.subr.bf16.mxu0 0
  %4498 = vmatpush1.bf16.msra.mxu0 0
  %4499 = vmatprep.mubr.bf16.mxu0 0
  %4500 = vmatmul.mubr.bf16.gmra.mrb[0].mxu0 %v553
  %v4501 = vpop.f32.mrb[0].mxu0
  %v4502 = vadd.f32 0.0, %v4501
  %v4503 = vpop.f32.mrb[0].mxu0
  %v4504 = vadd.f32 0.0, %v4503
  %v4505 = vpop.f32.mrb[0].mxu0
  %v4506 = vadd.f32 0.0, %v4505
  %v4507 = vpop.f32.mrb[0].mxu0
  %v4508 = vadd.f32 0.0, %v4507
  %4509 = vmatprep.mubr.bf16.mxu0 0
  %4510 = vmatmul.mubr.bf16.gmra.mrb[0].mxu0 %v554
  %v4511 = vpop.f32.mrb[0].mxu0
  %v4512 = vadd.f32 0.0, %v4511
  %v4513 = vpop.f32.mrb[0].mxu0
  %v4514 = vadd.f32 0.0, %v4513
  %v4515 = vpop.f32.mrb[0].mxu0
  %v4516 = vadd.f32 0.0, %v4515
  %v4517 = vpop.f32.mrb[0].mxu0
  %v4518 = vadd.f32 0.0, %v4517
  %4519 = vmatprep.mubr.bf16.mxu0 0
  %4520 = vmatmul.mubr.bf16.gmra.mrb[0].mxu0 %v555
  %v4521 = vpop.f32.mrb[0].mxu0
  %v4522 = vadd.f32 0.0, %v4521
  %v4523 = vpop.f32.mrb[0].mxu0
  %v4524 = vadd.f32 0.0, %v4523
  %v4525 = vpop.f32.mrb[0].mxu0
  %v4526 = vadd.f32 0.0, %v4525
  %v4527 = vpop.f32.mrb[0].mxu0
  %v4528 = vadd.f32 0.0, %v4527
  %4529 = vmatprep.mubr.bf16.mxu0 0
  %4530 = vmatmul.mubr.bf16.gmra.mrb[0].mxu0 %v556
  %v4531 = vpop.f32.mrb[0].mxu0
  %v4532 = vadd.f32 0.0, %v4531
  %v4533 = vpop.f32.mrb[0].mxu0
  %v4534 = vadd.f32 0.0, %v4533
  %v4535 = vpop.f32.mrb[0].mxu0
  %v4536 = vadd.f32 0.0, %v4535
  %v4537 = vpop.f32.mrb[0].mxu0
  %v4538 = vadd.f32 0.0, %v4537
  %4539 = vmatprep.mubr.bf16.mxu0 0
  %4540 = vmatmul.mubr.bf16.gmra.mrb[0].mxu0 %v557
  %v4541 = vpop.f32.mrb[0].mxu0
  %v4542 = vadd.f32 0.0, %v4541
  %v4543 = vpop.f32.mrb[0].mxu0
  %v4544 = vadd.f32 0.0, %v4543
  %v4545 = vpop.f32.mrb[0].mxu0
  %v4546 = vadd.f32 0.0, %v4545
  %v4547 = vpop.f32.mrb[0].mxu0
  %v4548 = vadd.f32 0.0, %v4547
  %4549 = vmatprep.mubr.bf16.mxu0 0
  %4550 = vmatmul.mubr.bf16.gmra.mrb[0].mxu0 %v558
  %v4551 = vpop.f32.mrb[0].mxu0
  %v4552 = vadd.f32 0.0, %v4551
  %v4553 = vpop.f32.mrb[0].mxu0
  %v4554 = vadd.f32 0.0, %v4553
  %v4555 = vpop.f32.mrb[0].mxu0
  %v4556 = vadd.f32 0.0, %v4555
  %v4557 = vpop.f32.mrb[0].mxu0
  %v4558 = vadd.f32 0.0, %v4557
  %4559 = vmatprep.mubr.bf16.mxu0 0
  %4560 = vmatmul.mubr.bf16.gmra.mrb[0].mxu0 %v559
  %v4561 = vpop.f32.mrb[0].mxu0
  %v4562 = vadd.f32 0.0, %v4561
  %v4563 = vpop.f32.mrb[0].mxu0
  %v4564 = vadd.f32 0.0, %v4563
  %v4565 = vpop.f32.mrb[0].mxu0
  %v4566 = vadd.f32 0.0, %v4565
  %v4567 = vpop.f32.mrb[0].mxu0
  %v4568 = vadd.f32 0.0, %v4567
  %4569 = vmatprep.mubr.bf16.mxu0 0
  %4570 = vmatmul.mubr.bf16.gmra.mrb[0].mxu0 %v560
  %v4571 = vpop.f32.mrb[0].mxu0
  %v4572 = vadd.f32 0.0, %v4571
  %v4573 = vpop.f32.mrb[0].mxu0
  %v4574 = vadd.f32 0.0, %v4573
  %v4575 = vpop.f32.mrb[0].mxu0
  %v4576 = vadd.f32 0.0, %v4575
  %v4577 = vpop.f32.mrb[0].mxu0
  %v4578 = vadd.f32 0.0, %v4577
  %4579 = vmatprep.mubr.bf16.mxu0 0
  %4580 = vmatmul.mubr.bf16.gmra.mrb[0].mxu0 %v561
  %v4581 = vpop.f32.mrb[0].mxu0
  %v4582 = vadd.f32 0.0, %v4581
  %v4583 = vpop.f32.mrb[0].mxu0
  %v4584 = vadd.f32 0.0, %v4583
  %v4585 = vpop.f32.mrb[0].mxu0
  %v4586 = vadd.f32 0.0, %v4585
  %v4587 = vpop.f32.mrb[0].mxu0
  %v4588 = vadd.f32 0.0, %v4587
  %4589 = vmatprep.mubr.bf16.mxu0 0
  %4590 = vmatmul.mubr.bf16.gmra.mrb[0].mxu0 %v562
  %v4591 = vpop.f32.mrb[0].mxu0
  %v4592 = vadd.f32 0.0, %v4591
  %v4593 = vpop.f32.mrb[0].mxu0
  %v4594 = vadd.f32 0.0, %v4593
  %v4595 = vpop.f32.mrb[0].mxu0
  %v4596 = vadd.f32 0.0, %v4595
  %v4597 = vpop.f32.mrb[0].mxu0
  %v4598 = vadd.f32 0.0, %v4597
  %4599 = vmatprep.mubr.bf16.mxu0 0
  %4600 = vmatmul.mubr.bf16.gmra.mrb[0].mxu0 %v563
  %v4601 = vpop.f32.mrb[0].mxu0
  %v4602 = vadd.f32 0.0, %v4601
  %v4603 = vpop.f32.mrb[0].mxu0
  %v4604 = vadd.f32 0.0, %v4603
  %v4605 = vpop.f32.mrb[0].mxu0
  %v4606 = vadd.f32 0.0, %v4605
  %v4607 = vpop.f32.mrb[0].mxu0
  %v4608 = vadd.f32 0.0, %v4607
  %4609 = vmatprep.mubr.bf16.mxu0 0
  %4610 = vmatmul.mubr.bf16.gmra.mrb[0].mxu0 %v564
  %v4611 = vpop.f32.mrb[0].mxu0
  %v4612 = vadd.f32 0.0, %v4611
  %v4613 = vpop.f32.mrb[0].mxu0
  %v4614 = vadd.f32 0.0, %v4613
  %v4615 = vpop.f32.mrb[0].mxu0
  %v4616 = vadd.f32 0.0, %v4615
  %v4617 = vpop.f32.mrb[0].mxu0
  %v4618 = vadd.f32 0.0, %v4617
  %4619 = vmatprep.mubr.bf16.mxu0 0
  %4620 = vmatmul.mubr.bf16.gmra.mrb[0].mxu0 %v565
  %v4621 = vpop.f32.mrb[0].mxu0
  %v4622 = vadd.f32 0.0, %v4621
  %v4623 = vpop.f32.mrb[0].mxu0
  %v4624 = vadd.f32 0.0, %v4623
  %v4625 = vpop.f32.mrb[0].mxu0
  %v4626 = vadd.f32 0.0, %v4625
  %v4627 = vpop.f32.mrb[0].mxu0
  %v4628 = vadd.f32 0.0, %v4627
  %4629 = vmatprep.mubr.bf16.mxu0 0
  %4630 = vmatmul.mubr.bf16.gmra.mrb[0].mxu0 %v566
  %v4631 = vpop.f32.mrb[0].mxu0
  %v4632 = vadd.f32 0.0, %v4631
  %v4633 = vpop.f32.mrb[0].mxu0
  %v4634 = vadd.f32 0.0, %v4633
  %v4635 = vpop.f32.mrb[0].mxu0
  %v4636 = vadd.f32 0.0, %v4635
  %v4637 = vpop.f32.mrb[0].mxu0
  %v4638 = vadd.f32 0.0, %v4637
  %4639 = vdwg.mxu0
  %4640 = vmatprep.subr.bf16.mxu0 %v1948
  %4641 = vmatpush1.bf16.msra.mxu0 %v1947
  %4642 = vmatprep.subr.bf16.mxu0 %v2004
  %4643 = vmatpush1.bf16.msra.mxu0 %v2003
  %4644 = vmatprep.subr.bf16.mxu0 %v2060
  %4645 = vmatpush1.bf16.msra.mxu0 %v2059
  %4646 = vmatprep.subr.bf16.mxu0 %v2116
  %4647 = vmatpush1.bf16.msra.mxu0 %v2115
  %4648 = vmatprep.subr.bf16.mxu0 %v2172
  %4649 = vmatpush1.bf16.msra.mxu0 %v2171
  %4650 = vmatprep.subr.bf16.mxu0 %v2228
  %4651 = vmatpush1.bf16.msra.mxu0 %v2227
  %4652 = vmatprep.subr.bf16.mxu0 %v2284
  %4653 = vmatpush1.bf16.msra.mxu0 %v2283
  %4654 = vmatprep.subr.bf16.mxu0 %v2340
  %4655 = vmatpush1.bf16.msra.mxu0 %v2339
  %4656 = vmatprep.subr.bf16.mxu0 0
  %4657 = vmatpush1.bf16.msra.mxu0 0
  %4658 = vmatprep.subr.bf16.mxu0 0
  %4659 = vmatpush1.bf16.msra.mxu0 0
  %4660 = vmatprep.subr.bf16.mxu0 0
  %4661 = vmatpush1.bf16.msra.mxu0 0
  %4662 = vmatprep.subr.bf16.mxu0 0
  %4663 = vmatpush1.bf16.msra.mxu0 0
  %4664 = vmatprep.subr.bf16.mxu0 0
  %4665 = vmatpush1.bf16.msra.mxu0 0
  %4666 = vmatprep.subr.bf16.mxu0 0
  %4667 = vmatpush1.bf16.msra.mxu0 0
  %4668 = vmatprep.subr.bf16.mxu0 0
  %4669 = vmatpush1.bf16.msra.mxu0 0
  %4670 = vmatprep.subr.bf16.mxu0 0
  %4671 = vmatpush1.bf16.msra.mxu0 0
  %4672 = vmatprep.mubr.bf16.mxu0 0
  %4673 = vmatmul.mubr.bf16.gmra.mrb[0].mxu0 %v553
  %v4674 = vpop.f32.mrb[0].mxu0
  %v4675 = vadd.f32 0.0, %v4674
  %v4676 = vpop.f32.mrb[0].mxu0
  %v4677 = vadd.f32 0.0, %v4676
  %v4678 = vpop.f32.mrb[0].mxu0
  %v4679 = vadd.f32 0.0, %v4678
  %v4680 = vpop.f32.mrb[0].mxu0
  %v4681 = vadd.f32 0.0, %v4680
  %4682 = vmatprep.mubr.bf16.mxu0 0
  %4683 = vmatmul.mubr.bf16.gmra.mrb[0].mxu0 %v554
  %v4684 = vpop.f32.mrb[0].mxu0
  %v4685 = vadd.f32 0.0, %v4684
  %v4686 = vpop.f32.mrb[0].mxu0
  %v4687 = vadd.f32 0.0, %v4686
  %v4688 = vpop.f32.mrb[0].mxu0
  %v4689 = vadd.f32 0.0, %v4688
  %v4690 = vpop.f32.mrb[0].mxu0
  %v4691 = vadd.f32 0.0, %v4690
  %4692 = vmatprep.mubr.bf16.mxu0 0
  %4693 = vmatmul.mubr.bf16.gmra.mrb[0].mxu0 %v555
  %v4694 = vpop.f32.mrb[0].mxu0
  %v4695 = vadd.f32 0.0, %v4694
  %v4696 = vpop.f32.mrb[0].mxu0
  %v4697 = vadd.f32 0.0, %v4696
  %v4698 = vpop.f32.mrb[0].mxu0
  %v4699 = vadd.f32 0.0, %v4698
  %v4700 = vpop.f32.mrb[0].mxu0
  %v4701 = vadd.f32 0.0, %v4700
  %4702 = vmatprep.mubr.bf16.mxu0 0
  %4703 = vmatmul.mubr.bf16.gmra.mrb[0].mxu0 %v556
  %v4704 = vpop.f32.mrb[0].mxu0
  %v4705 = vadd.f32 0.0, %v4704
  %v4706 = vpop.f32.mrb[0].mxu0
  %v4707 = vadd.f32 0.0, %v4706
  %v4708 = vpop.f32.mrb[0].mxu0
  %v4709 = vadd.f32 0.0, %v4708
  %v4710 = vpop.f32.mrb[0].mxu0
  %v4711 = vadd.f32 0.0, %v4710
  %4712 = vmatprep.mubr.bf16.mxu0 0
  %4713 = vmatmul.mubr.bf16.gmra.mrb[0].mxu0 %v557
  %v4714 = vpop.f32.mrb[0].mxu0
  %v4715 = vadd.f32 0.0, %v4714
  %v4716 = vpop.f32.mrb[0].mxu0
  %v4717 = vadd.f32 0.0, %v4716
  %v4718 = vpop.f32.mrb[0].mxu0
  %v4719 = vadd.f32 0.0, %v4718
  %v4720 = vpop.f32.mrb[0].mxu0
  %v4721 = vadd.f32 0.0, %v4720
  %4722 = vmatprep.mubr.bf16.mxu0 0
  %4723 = vmatmul.mubr.bf16.gmra.mrb[0].mxu0 %v558
  %v4724 = vpop.f32.mrb[0].mxu0
  %v4725 = vadd.f32 0.0, %v4724
  %v4726 = vpop.f32.mrb[0].mxu0
  %v4727 = vadd.f32 0.0, %v4726
  %v4728 = vpop.f32.mrb[0].mxu0
  %v4729 = vadd.f32 0.0, %v4728
  %v4730 = vpop.f32.mrb[0].mxu0
  %v4731 = vadd.f32 0.0, %v4730
  %4732 = vmatprep.mubr.bf16.mxu0 0
  %4733 = vmatmul.mubr.bf16.gmra.mrb[0].mxu0 %v559
  %v4734 = vpop.f32.mrb[0].mxu0
  %v4735 = vadd.f32 0.0, %v4734
  %v4736 = vpop.f32.mrb[0].mxu0
  %v4737 = vadd.f32 0.0, %v4736
  %v4738 = vpop.f32.mrb[0].mxu0
  %v4739 = vadd.f32 0.0, %v4738
  %v4740 = vpop.f32.mrb[0].mxu0
  %v4741 = vadd.f32 0.0, %v4740
  %4742 = vmatprep.mubr.bf16.mxu0 0
  %4743 = vmatmul.mubr.bf16.gmra.mrb[0].mxu0 %v560
  %v4744 = vpop.f32.mrb[0].mxu0
  %v4745 = vadd.f32 0.0, %v4744
  %v4746 = vpop.f32.mrb[0].mxu0
  %v4747 = vadd.f32 0.0, %v4746
  %v4748 = vpop.f32.mrb[0].mxu0
  %v4749 = vadd.f32 0.0, %v4748
  %v4750 = vpop.f32.mrb[0].mxu0
  %v4751 = vadd.f32 0.0, %v4750
  %4752 = vmatprep.mubr.bf16.mxu0 0
  %4753 = vmatmul.mubr.bf16.gmra.mrb[0].mxu0 %v561
  %v4754 = vpop.f32.mrb[0].mxu0
  %v4755 = vadd.f32 0.0, %v4754
  %v4756 = vpop.f32.mrb[0].mxu0
  %v4757 = vadd.f32 0.0, %v4756
  %v4758 = vpop.f32.mrb[0].mxu0
  %v4759 = vadd.f32 0.0, %v4758
  %v4760 = vpop.f32.mrb[0].mxu0
  %v4761 = vadd.f32 0.0, %v4760
  %4762 = vmatprep.mubr.bf16.mxu0 0
  %4763 = vmatmul.mubr.bf16.gmra.mrb[0].mxu0 %v562
  %v4764 = vpop.f32.mrb[0].mxu0
  %v4765 = vadd.f32 0.0, %v4764
  %v4766 = vpop.f32.mrb[0].mxu0
  %v4767 = vadd.f32 0.0, %v4766
  %v4768 = vpop.f32.mrb[0].mxu0
  %v4769 = vadd.f32 0.0, %v4768
  %v4770 = vpop.f32.mrb[0].mxu0
  %v4771 = vadd.f32 0.0, %v4770
  %4772 = vmatprep.mubr.bf16.mxu0 0
  %4773 = vmatmul.mubr.bf16.gmra.mrb[0].mxu0 %v563
  %v4774 = vpop.f32.mrb[0].mxu0
  %v4775 = vadd.f32 0.0, %v4774
  %v4776 = vpop.f32.mrb[0].mxu0
  %v4777 = vadd.f32 0.0, %v4776
  %v4778 = vpop.f32.mrb[0].mxu0
  %v4779 = vadd.f32 0.0, %v4778
  %v4780 = vpop.f32.mrb[0].mxu0
  %v4781 = vadd.f32 0.0, %v4780
  %4782 = vmatprep.mubr.bf16.mxu0 0
  %4783 = vmatmul.mubr.bf16.gmra.mrb[0].mxu0 %v564
  %v4784 = vpop.f32.mrb[0].mxu0
  %v4785 = vadd.f32 0.0, %v4784
  %v4786 = vpop.f32.mrb[0].mxu0
  %v4787 = vadd.f32 0.0, %v4786
  %v4788 = vpop.f32.mrb[0].mxu0
  %v4789 = vadd.f32 0.0, %v4788
  %v4790 = vpop.f32.mrb[0].mxu0
  %v4791 = vadd.f32 0.0, %v4790
  %4792 = vmatprep.mubr.bf16.mxu0 0
  %4793 = vmatmul.mubr.bf16.gmra.mrb[0].mxu0 %v565
  %v4794 = vpop.f32.mrb[0].mxu0
  %v4795 = vadd.f32 0.0, %v4794
  %v4796 = vpop.f32.mrb[0].mxu0
  %v4797 = vadd.f32 0.0, %v4796
  %v4798 = vpop.f32.mrb[0].mxu0
  %v4799 = vadd.f32 0.0, %v4798
  %v4800 = vpop.f32.mrb[0].mxu0
  %v4801 = vadd.f32 0.0, %v4800
  %4802 = vmatprep.mubr.bf16.mxu0 0
  %4803 = vmatmul.mubr.bf16.gmra.mrb[0].mxu0 %v566
  %v4804 = vpop.f32.mrb[0].mxu0
  %v4805 = vadd.f32 0.0, %v4804
  %v4806 = vpop.f32.mrb[0].mxu0
  %v4807 = vadd.f32 0.0, %v4806
  %v4808 = vpop.f32.mrb[0].mxu0
  %v4809 = vadd.f32 0.0, %v4808
  %v4810 = vpop.f32.mrb[0].mxu0
  %v4811 = vadd.f32 0.0, %v4810
  %4812 = vdwg.mxu0
  %4813 = vmatprep.subr.bf16.mxu0 %v1950
  %4814 = vmatpush1.bf16.msra.mxu0 %v1949
  %4815 = vmatprep.subr.bf16.mxu0 %v2006
  %4816 = vmatpush1.bf16.msra.mxu0 %v2005
  %4817 = vmatprep.subr.bf16.mxu0 %v2062
  %4818 = vmatpush1.bf16.msra.mxu0 %v2061
  %4819 = vmatprep.subr.bf16.mxu0 %v2118
  %4820 = vmatpush1.bf16.msra.mxu0 %v2117
  %4821 = vmatprep.subr.bf16.mxu0 %v2174
  %4822 = vmatpush1.bf16.msra.mxu0 %v2173
  %4823 = vmatprep.subr.bf16.mxu0 %v2230
  %4824 = vmatpush1.bf16.msra.mxu0 %v2229
  %4825 = vmatprep.subr.bf16.mxu0 %v2286
  %4826 = vmatpush1.bf16.msra.mxu0 %v2285
  %4827 = vmatprep.subr.bf16.mxu0 %v2342
  %4828 = vmatpush1.bf16.msra.mxu0 %v2341
  %4829 = vmatprep.subr.bf16.mxu0 0
  %4830 = vmatpush1.bf16.msra.mxu0 0
  %4831 = vmatprep.subr.bf16.mxu0 0
  %4832 = vmatpush1.bf16.msra.mxu0 0
  %4833 = vmatprep.subr.bf16.mxu0 0
  %4834 = vmatpush1.bf16.msra.mxu0 0
  %4835 = vmatprep.subr.bf16.mxu0 0
  %4836 = vmatpush1.bf16.msra.mxu0 0
  %4837 = vmatprep.subr.bf16.mxu0 0
  %4838 = vmatpush1.bf16.msra.mxu0 0
  %4839 = vmatprep.subr.bf16.mxu0 0
  %4840 = vmatpush1.bf16.msra.mxu0 0
  %4841 = vmatprep.subr.bf16.mxu0 0
  %4842 = vmatpush1.bf16.msra.mxu0 0
  %4843 = vmatprep.subr.bf16.mxu0 0
  %4844 = vmatpush1.bf16.msra.mxu0 0
  %4845 = vmatprep.mubr.bf16.mxu0 0
  %4846 = vmatmul.mubr.bf16.gmra.mrb[0].mxu0 %v553
  %v4847 = vpop.f32.mrb[0].mxu0
  %v4848 = vadd.f32 0.0, %v4847
  %v4849 = vpop.f32.mrb[0].mxu0
  %v4850 = vadd.f32 0.0, %v4849
  %v4851 = vpop.f32.mrb[0].mxu0
  %v4852 = vadd.f32 0.0, %v4851
  %v4853 = vpop.f32.mrb[0].mxu0
  %v4854 = vadd.f32 0.0, %v4853
  %4855 = vmatprep.mubr.bf16.mxu0 0
  %4856 = vmatmul.mubr.bf16.gmra.mrb[0].mxu0 %v554
  %v4857 = vpop.f32.mrb[0].mxu0
  %v4858 = vadd.f32 0.0, %v4857
  %v4859 = vpop.f32.mrb[0].mxu0
  %v4860 = vadd.f32 0.0, %v4859
  %v4861 = vpop.f32.mrb[0].mxu0
  %v4862 = vadd.f32 0.0, %v4861
  %v4863 = vpop.f32.mrb[0].mxu0
  %v4864 = vadd.f32 0.0, %v4863
  %4865 = vmatprep.mubr.bf16.mxu0 0
  %4866 = vmatmul.mubr.bf16.gmra.mrb[0].mxu0 %v555
  %v4867 = vpop.f32.mrb[0].mxu0
  %v4868 = vadd.f32 0.0, %v4867
  %v4869 = vpop.f32.mrb[0].mxu0
  %v4870 = vadd.f32 0.0, %v4869
  %v4871 = vpop.f32.mrb[0].mxu0
  %v4872 = vadd.f32 0.0, %v4871
  %v4873 = vpop.f32.mrb[0].mxu0
  %v4874 = vadd.f32 0.0, %v4873
  %4875 = vmatprep.mubr.bf16.mxu0 0
  %4876 = vmatmul.mubr.bf16.gmra.mrb[0].mxu0 %v556
  %v4877 = vpop.f32.mrb[0].mxu0
  %v4878 = vadd.f32 0.0, %v4877
  %v4879 = vpop.f32.mrb[0].mxu0
  %v4880 = vadd.f32 0.0, %v4879
  %v4881 = vpop.f32.mrb[0].mxu0
  %v4882 = vadd.f32 0.0, %v4881
  %v4883 = vpop.f32.mrb[0].mxu0
  %v4884 = vadd.f32 0.0, %v4883
  %4885 = vmatprep.mubr.bf16.mxu0 0
  %4886 = vmatmul.mubr.bf16.gmra.mrb[0].mxu0 %v557
  %v4887 = vpop.f32.mrb[0].mxu0
  %v4888 = vadd.f32 0.0, %v4887
  %v4889 = vpop.f32.mrb[0].mxu0
  %v4890 = vadd.f32 0.0, %v4889
  %v4891 = vpop.f32.mrb[0].mxu0
  %v4892 = vadd.f32 0.0, %v4891
  %v4893 = vpop.f32.mrb[0].mxu0
  %v4894 = vadd.f32 0.0, %v4893
  %4895 = vmatprep.mubr.bf16.mxu0 0
  %4896 = vmatmul.mubr.bf16.gmra.mrb[0].mxu0 %v558
  %v4897 = vpop.f32.mrb[0].mxu0
  %v4898 = vadd.f32 0.0, %v4897
  %v4899 = vpop.f32.mrb[0].mxu0
  %v4900 = vadd.f32 0.0, %v4899
  %v4901 = vpop.f32.mrb[0].mxu0
  %v4902 = vadd.f32 0.0, %v4901
  %v4903 = vpop.f32.mrb[0].mxu0
  %v4904 = vadd.f32 0.0, %v4903
  %4905 = vmatprep.mubr.bf16.mxu0 0
  %4906 = vmatmul.mubr.bf16.gmra.mrb[0].mxu0 %v559
  %v4907 = vpop.f32.mrb[0].mxu0
  %v4908 = vadd.f32 0.0, %v4907
  %v4909 = vpop.f32.mrb[0].mxu0
  %v4910 = vadd.f32 0.0, %v4909
  %v4911 = vpop.f32.mrb[0].mxu0
  %v4912 = vadd.f32 0.0, %v4911
  %v4913 = vpop.f32.mrb[0].mxu0
  %v4914 = vadd.f32 0.0, %v4913
  %4915 = vmatprep.mubr.bf16.mxu0 0
  %4916 = vmatmul.mubr.bf16.gmra.mrb[0].mxu0 %v560
  %v4917 = vpop.f32.mrb[0].mxu0
  %v4918 = vadd.f32 0.0, %v4917
  %v4919 = vpop.f32.mrb[0].mxu0
  %v4920 = vadd.f32 0.0, %v4919
  %v4921 = vpop.f32.mrb[0].mxu0
  %v4922 = vadd.f32 0.0, %v4921
  %v4923 = vpop.f32.mrb[0].mxu0
  %v4924 = vadd.f32 0.0, %v4923
  %4925 = vmatprep.mubr.bf16.mxu0 0
  %4926 = vmatmul.mubr.bf16.gmra.mrb[0].mxu0 %v561
  %v4927 = vpop.f32.mrb[0].mxu0
  %v4928 = vadd.f32 0.0, %v4927
  %v4929 = vpop.f32.mrb[0].mxu0
  %v4930 = vadd.f32 0.0, %v4929
  %v4931 = vpop.f32.mrb[0].mxu0
  %v4932 = vadd.f32 0.0, %v4931
  %v4933 = vpop.f32.mrb[0].mxu0
  %v4934 = vadd.f32 0.0, %v4933
  %4935 = vmatprep.mubr.bf16.mxu0 0
  %4936 = vmatmul.mubr.bf16.gmra.mrb[0].mxu0 %v562
  %v4937 = vpop.f32.mrb[0].mxu0
  %v4938 = vadd.f32 0.0, %v4937
  %v4939 = vpop.f32.mrb[0].mxu0
  %v4940 = vadd.f32 0.0, %v4939
  %v4941 = vpop.f32.mrb[0].mxu0
  %v4942 = vadd.f32 0.0, %v4941
  %v4943 = vpop.f32.mrb[0].mxu0
  %v4944 = vadd.f32 0.0, %v4943
  %4945 = vmatprep.mubr.bf16.mxu0 0
  %4946 = vmatmul.mubr.bf16.gmra.mrb[0].mxu0 %v563
  %v4947 = vpop.f32.mrb[0].mxu0
  %v4948 = vadd.f32 0.0, %v4947
  %v4949 = vpop.f32.mrb[0].mxu0
  %v4950 = vadd.f32 0.0, %v4949
  %v4951 = vpop.f32.mrb[0].mxu0
  %v4952 = vadd.f32 0.0, %v4951
  %v4953 = vpop.f32.mrb[0].mxu0
  %v4954 = vadd.f32 0.0, %v4953
  %4955 = vmatprep.mubr.bf16.mxu0 0
  %4956 = vmatmul.mubr.bf16.gmra.mrb[0].mxu0 %v564
  %v4957 = vpop.f32.mrb[0].mxu0
  %v4958 = vadd.f32 0.0, %v4957
  %v4959 = vpop.f32.mrb[0].mxu0
  %v4960 = vadd.f32 0.0, %v4959
  %v4961 = vpop.f32.mrb[0].mxu0
  %v4962 = vadd.f32 0.0, %v4961
  %v4963 = vpop.f32.mrb[0].mxu0
  %v4964 = vadd.f32 0.0, %v4963
  %4965 = vmatprep.mubr.bf16.mxu0 0
  %4966 = vmatmul.mubr.bf16.gmra.mrb[0].mxu0 %v565
  %v4967 = vpop.f32.mrb[0].mxu0
  %v4968 = vadd.f32 0.0, %v4967
  %v4969 = vpop.f32.mrb[0].mxu0
  %v4970 = vadd.f32 0.0, %v4969
  %v4971 = vpop.f32.mrb[0].mxu0
  %v4972 = vadd.f32 0.0, %v4971
  %v4973 = vpop.f32.mrb[0].mxu0
  %v4974 = vadd.f32 0.0, %v4973
  %4975 = vmatprep.mubr.bf16.mxu0 0
  %4976 = vmatmul.mubr.bf16.gmra.mrb[0].mxu0 %v566
  %v4977 = vpop.f32.mrb[0].mxu0
  %v4978 = vadd.f32 0.0, %v4977
  %v4979 = vpop.f32.mrb[0].mxu0
  %v4980 = vadd.f32 0.0, %v4979
  %v4981 = vpop.f32.mrb[0].mxu0
  %v4982 = vadd.f32 0.0, %v4981
  %v4983 = vpop.f32.mrb[0].mxu0
  %v4984 = vadd.f32 0.0, %v4983
  %4985 = vdwg.mxu0
  %4986 = vmatprep.subr.bf16.mxu0 %v1952
  %4987 = vmatpush1.bf16.msra.mxu0 %v1951
  %4988 = vmatprep.subr.bf16.mxu0 %v2008
  %4989 = vmatpush1.bf16.msra.mxu0 %v2007
  %4990 = vmatprep.subr.bf16.mxu0 %v2064
  %4991 = vmatpush1.bf16.msra.mxu0 %v2063
  %4992 = vmatprep.subr.bf16.mxu0 %v2120
  %4993 = vmatpush1.bf16.msra.mxu0 %v2119
  %4994 = vmatprep.subr.bf16.mxu0 %v2176
  %4995 = vmatpush1.bf16.msra.mxu0 %v2175
  %4996 = vmatprep.subr.bf16.mxu0 %v2232
  %4997 = vmatpush1.bf16.msra.mxu0 %v2231
  %4998 = vmatprep.subr.bf16.mxu0 %v2288
  %4999 = vmatpush1.bf16.msra.mxu0 %v2287
  %5000 = vmatprep.subr.bf16.mxu0 %v2344
  %5001 = vmatpush1.bf16.msra.mxu0 %v2343
  %5002 = vmatprep.subr.bf16.mxu0 0
  %5003 = vmatpush1.bf16.msra.mxu0 0
  %5004 = vmatprep.subr.bf16.mxu0 0
  %5005 = vmatpush1.bf16.msra.mxu0 0
  %5006 = vmatprep.subr.bf16.mxu0 0
  %5007 = vmatpush1.bf16.msra.mxu0 0
  %5008 = vmatprep.subr.bf16.mxu0 0
  %5009 = vmatpush1.bf16.msra.mxu0 0
  %5010 = vmatprep.subr.bf16.mxu0 0
  %5011 = vmatpush1.bf16.msra.mxu0 0
  %5012 = vmatprep.subr.bf16.mxu0 0
  %5013 = vmatpush1.bf16.msra.mxu0 0
  %5014 = vmatprep.subr.bf16.mxu0 0
  %5015 = vmatpush1.bf16.msra.mxu0 0
  %5016 = vmatprep.subr.bf16.mxu0 0
  %5017 = vmatpush1.bf16.msra.mxu0 0
  %5018 = vmatprep.mubr.bf16.mxu0 0
  %5019 = vmatmul.mubr.bf16.gmra.mrb[0].mxu0 %v553
  %v5020 = vpop.f32.mrb[0].mxu0
  %v5021 = vadd.f32 0.0, %v5020
  %v5022 = vpop.f32.mrb[0].mxu0
  %v5023 = vadd.f32 0.0, %v5022
  %v5024 = vpop.f32.mrb[0].mxu0
  %v5025 = vadd.f32 0.0, %v5024
  %v5026 = vpop.f32.mrb[0].mxu0
  %v5027 = vadd.f32 0.0, %v5026
  %5028 = vmatprep.mubr.bf16.mxu0 0
  %5029 = vmatmul.mubr.bf16.gmra.mrb[0].mxu0 %v554
  %v5030 = vpop.f32.mrb[0].mxu0
  %v5031 = vadd.f32 0.0, %v5030
  %v5032 = vpop.f32.mrb[0].mxu0
  %v5033 = vadd.f32 0.0, %v5032
  %v5034 = vpop.f32.mrb[0].mxu0
  %v5035 = vadd.f32 0.0, %v5034
  %v5036 = vpop.f32.mrb[0].mxu0
  %v5037 = vadd.f32 0.0, %v5036
  %5038 = vmatprep.mubr.bf16.mxu0 0
  %5039 = vmatmul.mubr.bf16.gmra.mrb[0].mxu0 %v555
  %v5040 = vpop.f32.mrb[0].mxu0
  %v5041 = vadd.f32 0.0, %v5040
  %v5042 = vpop.f32.mrb[0].mxu0
  %v5043 = vadd.f32 0.0, %v5042
  %v5044 = vpop.f32.mrb[0].mxu0
  %v5045 = vadd.f32 0.0, %v5044
  %v5046 = vpop.f32.mrb[0].mxu0
  %v5047 = vadd.f32 0.0, %v5046
  %5048 = vmatprep.mubr.bf16.mxu0 0
  %5049 = vmatmul.mubr.bf16.gmra.mrb[0].mxu0 %v556
  %v5050 = vpop.f32.mrb[0].mxu0
  %v5051 = vadd.f32 0.0, %v5050
  %v5052 = vpop.f32.mrb[0].mxu0
  %v5053 = vadd.f32 0.0, %v5052
  %v5054 = vpop.f32.mrb[0].mxu0
  %v5055 = vadd.f32 0.0, %v5054
  %v5056 = vpop.f32.mrb[0].mxu0
  %v5057 = vadd.f32 0.0, %v5056
  %5058 = vmatprep.mubr.bf16.mxu0 0
  %5059 = vmatmul.mubr.bf16.gmra.mrb[0].mxu0 %v557
  %v5060 = vpop.f32.mrb[0].mxu0
  %v5061 = vadd.f32 0.0, %v5060
  %v5062 = vpop.f32.mrb[0].mxu0
  %v5063 = vadd.f32 0.0, %v5062
  %v5064 = vpop.f32.mrb[0].mxu0
  %v5065 = vadd.f32 0.0, %v5064
  %v5066 = vpop.f32.mrb[0].mxu0
  %v5067 = vadd.f32 0.0, %v5066
  %5068 = vmatprep.mubr.bf16.mxu0 0
  %5069 = vmatmul.mubr.bf16.gmra.mrb[0].mxu0 %v558
  %v5070 = vpop.f32.mrb[0].mxu0
  %v5071 = vadd.f32 0.0, %v5070
  %v5072 = vpop.f32.mrb[0].mxu0
  %v5073 = vadd.f32 0.0, %v5072
  %v5074 = vpop.f32.mrb[0].mxu0
  %v5075 = vadd.f32 0.0, %v5074
  %v5076 = vpop.f32.mrb[0].mxu0
  %v5077 = vadd.f32 0.0, %v5076
  %5078 = vmatprep.mubr.bf16.mxu0 0
  %5079 = vmatmul.mubr.bf16.gmra.mrb[0].mxu0 %v559
  %v5080 = vpop.f32.mrb[0].mxu0
  %v5081 = vadd.f32 0.0, %v5080
  %v5082 = vpop.f32.mrb[0].mxu0
  %v5083 = vadd.f32 0.0, %v5082
  %v5084 = vpop.f32.mrb[0].mxu0
  %v5085 = vadd.f32 0.0, %v5084
  %v5086 = vpop.f32.mrb[0].mxu0
  %v5087 = vadd.f32 0.0, %v5086
  %5088 = vmatprep.mubr.bf16.mxu0 0
  %5089 = vmatmul.mubr.bf16.gmra.mrb[0].mxu0 %v560
  %v5090 = vpop.f32.mrb[0].mxu0
  %v5091 = vadd.f32 0.0, %v5090
  %v5092 = vpop.f32.mrb[0].mxu0
  %v5093 = vadd.f32 0.0, %v5092
  %v5094 = vpop.f32.mrb[0].mxu0
  %v5095 = vadd.f32 0.0, %v5094
  %v5096 = vpop.f32.mrb[0].mxu0
  %v5097 = vadd.f32 0.0, %v5096
  %5098 = vmatprep.mubr.bf16.mxu0 0
  %5099 = vmatmul.mubr.bf16.gmra.mrb[0].mxu0 %v561
  %v5100 = vpop.f32.mrb[0].mxu0
  %v5101 = vadd.f32 0.0, %v5100
  %v5102 = vpop.f32.mrb[0].mxu0
  %v5103 = vadd.f32 0.0, %v5102
  %v5104 = vpop.f32.mrb[0].mxu0
  %v5105 = vadd.f32 0.0, %v5104
  %v5106 = vpop.f32.mrb[0].mxu0
  %v5107 = vadd.f32 0.0, %v5106
  %5108 = vmatprep.mubr.bf16.mxu0 0
  %5109 = vmatmul.mubr.bf16.gmra.mrb[0].mxu0 %v562
  %v5110 = vpop.f32.mrb[0].mxu0
  %v5111 = vadd.f32 0.0, %v5110
  %v5112 = vpop.f32.mrb[0].mxu0
  %v5113 = vadd.f32 0.0, %v5112
  %v5114 = vpop.f32.mrb[0].mxu0
  %v5115 = vadd.f32 0.0, %v5114
  %v5116 = vpop.f32.mrb[0].mxu0
  %v5117 = vadd.f32 0.0, %v5116
  %5118 = vmatprep.mubr.bf16.mxu0 0
  %5119 = vmatmul.mubr.bf16.gmra.mrb[0].mxu0 %v563
  %v5120 = vpop.f32.mrb[0].mxu0
  %v5121 = vadd.f32 0.0, %v5120
  %v5122 = vpop.f32.mrb[0].mxu0
  %v5123 = vadd.f32 0.0, %v5122
  %v5124 = vpop.f32.mrb[0].mxu0
  %v5125 = vadd.f32 0.0, %v5124
  %v5126 = vpop.f32.mrb[0].mxu0
  %v5127 = vadd.f32 0.0, %v5126
  %5128 = vmatprep.mubr.bf16.mxu0 0
  %5129 = vmatmul.mubr.bf16.gmra.mrb[0].mxu0 %v564
  %v5130 = vpop.f32.mrb[0].mxu0
  %v5131 = vadd.f32 0.0, %v5130
  %v5132 = vpop.f32.mrb[0].mxu0
  %v5133 = vadd.f32 0.0, %v5132
  %v5134 = vpop.f32.mrb[0].mxu0
  %v5135 = vadd.f32 0.0, %v5134
  %v5136 = vpop.f32.mrb[0].mxu0
  %v5137 = vadd.f32 0.0, %v5136
  %5138 = vmatprep.mubr.bf16.mxu0 0
  %5139 = vmatmul.mubr.bf16.gmra.mrb[0].mxu0 %v565
  %v5140 = vpop.f32.mrb[0].mxu0
  %v5141 = vadd.f32 0.0, %v5140
  %v5142 = vpop.f32.mrb[0].mxu0
  %v5143 = vadd.f32 0.0, %v5142
  %v5144 = vpop.f32.mrb[0].mxu0
  %v5145 = vadd.f32 0.0, %v5144
  %v5146 = vpop.f32.mrb[0].mxu0
  %v5147 = vadd.f32 0.0, %v5146
  %5148 = vmatprep.mubr.bf16.mxu0 0
  %5149 = vmatmul.mubr.bf16.gmra.mrb[0].mxu0 %v566
  %v5150 = vpop.f32.mrb[0].mxu0
  %v5151 = vadd.f32 0.0, %v5150
  %v5152 = vpop.f32.mrb[0].mxu0
  %v5153 = vadd.f32 0.0, %v5152
  %v5154 = vpop.f32.mrb[0].mxu0
  %v5155 = vadd.f32 0.0, %v5154
  %v5156 = vpop.f32.mrb[0].mxu0
  %v5157 = vadd.f32 0.0, %v5156
  %5158 = vdwg.mxu0
  %5159 = vmatprep.subr.bf16.mxu0 %v1954
  %5160 = vmatpush1.bf16.msra.mxu0 %v1953
  %5161 = vmatprep.subr.bf16.mxu0 %v2010
  %5162 = vmatpush1.bf16.msra.mxu0 %v2009
  %5163 = vmatprep.subr.bf16.mxu0 %v2066
  %5164 = vmatpush1.bf16.msra.mxu0 %v2065
  %5165 = vmatprep.subr.bf16.mxu0 %v2122
  %5166 = vmatpush1.bf16.msra.mxu0 %v2121
  %5167 = vmatprep.subr.bf16.mxu0 %v2178
  %5168 = vmatpush1.bf16.msra.mxu0 %v2177
  %5169 = vmatprep.subr.bf16.mxu0 %v2234
  %5170 = vmatpush1.bf16.msra.mxu0 %v2233
  %5171 = vmatprep.subr.bf16.mxu0 %v2290
  %5172 = vmatpush1.bf16.msra.mxu0 %v2289
  %5173 = vmatprep.subr.bf16.mxu0 %v2346
  %5174 = vmatpush1.bf16.msra.mxu0 %v2345
  %5175 = vmatprep.subr.bf16.mxu0 0
  %5176 = vmatpush1.bf16.msra.mxu0 0
  %5177 = vmatprep.subr.bf16.mxu0 0
  %5178 = vmatpush1.bf16.msra.mxu0 0
  %5179 = vmatprep.subr.bf16.mxu0 0
  %5180 = vmatpush1.bf16.msra.mxu0 0
  %5181 = vmatprep.subr.bf16.mxu0 0
  %5182 = vmatpush1.bf16.msra.mxu0 0
  %5183 = vmatprep.subr.bf16.mxu0 0
  %5184 = vmatpush1.bf16.msra.mxu0 0
  %5185 = vmatprep.subr.bf16.mxu0 0
  %5186 = vmatpush1.bf16.msra.mxu0 0
  %5187 = vmatprep.subr.bf16.mxu0 0
  %5188 = vmatpush1.bf16.msra.mxu0 0
  %5189 = vmatprep.subr.bf16.mxu0 0
  %5190 = vmatpush1.bf16.msra.mxu0 0
  %5191 = vmatprep.mubr.bf16.mxu0 0
  %5192 = vmatmul.mubr.bf16.gmra.mrb[0].mxu0 %v553
  %v5193 = vpop.f32.mrb[0].mxu0
  %v5194 = vadd.f32 0.0, %v5193
  %v5195 = vpop.f32.mrb[0].mxu0
  %v5196 = vadd.f32 0.0, %v5195
  %v5197 = vpop.f32.mrb[0].mxu0
  %v5198 = vadd.f32 0.0, %v5197
  %v5199 = vpop.f32.mrb[0].mxu0
  %v5200 = vadd.f32 0.0, %v5199
  %5201 = vmatprep.mubr.bf16.mxu0 0
  %5202 = vmatmul.mubr.bf16.gmra.mrb[0].mxu0 %v554
  %v5203 = vpop.f32.mrb[0].mxu0
  %v5204 = vadd.f32 0.0, %v5203
  %v5205 = vpop.f32.mrb[0].mxu0
  %v5206 = vadd.f32 0.0, %v5205
  %v5207 = vpop.f32.mrb[0].mxu0
  %v5208 = vadd.f32 0.0, %v5207
  %v5209 = vpop.f32.mrb[0].mxu0
  %v5210 = vadd.f32 0.0, %v5209
  %5211 = vmatprep.mubr.bf16.mxu0 0
  %5212 = vmatmul.mubr.bf16.gmra.mrb[0].mxu0 %v555
  %v5213 = vpop.f32.mrb[0].mxu0
  %v5214 = vadd.f32 0.0, %v5213
  %v5215 = vpop.f32.mrb[0].mxu0
  %v5216 = vadd.f32 0.0, %v5215
  %v5217 = vpop.f32.mrb[0].mxu0
  %v5218 = vadd.f32 0.0, %v5217
  %v5219 = vpop.f32.mrb[0].mxu0
  %v5220 = vadd.f32 0.0, %v5219
  %5221 = vmatprep.mubr.bf16.mxu0 0
  %5222 = vmatmul.mubr.bf16.gmra.mrb[0].mxu0 %v556
  %v5223 = vpop.f32.mrb[0].mxu0
  %v5224 = vadd.f32 0.0, %v5223
  %v5225 = vpop.f32.mrb[0].mxu0
  %v5226 = vadd.f32 0.0, %v5225
  %v5227 = vpop.f32.mrb[0].mxu0
  %v5228 = vadd.f32 0.0, %v5227
  %v5229 = vpop.f32.mrb[0].mxu0
  %v5230 = vadd.f32 0.0, %v5229
  %5231 = vmatprep.mubr.bf16.mxu0 0
  %5232 = vmatmul.mubr.bf16.gmra.mrb[0].mxu0 %v557
  %v5233 = vpop.f32.mrb[0].mxu0
  %v5234 = vadd.f32 0.0, %v5233
  %v5235 = vpop.f32.mrb[0].mxu0
  %v5236 = vadd.f32 0.0, %v5235
  %v5237 = vpop.f32.mrb[0].mxu0
  %v5238 = vadd.f32 0.0, %v5237
  %v5239 = vpop.f32.mrb[0].mxu0
  %v5240 = vadd.f32 0.0, %v5239
  %5241 = vmatprep.mubr.bf16.mxu0 0
  %5242 = vmatmul.mubr.bf16.gmra.mrb[0].mxu0 %v558
  %v5243 = vpop.f32.mrb[0].mxu0
  %v5244 = vadd.f32 0.0, %v5243
  %v5245 = vpop.f32.mrb[0].mxu0
  %v5246 = vadd.f32 0.0, %v5245
  %v5247 = vpop.f32.mrb[0].mxu0
  %v5248 = vadd.f32 0.0, %v5247
  %v5249 = vpop.f32.mrb[0].mxu0
  %v5250 = vadd.f32 0.0, %v5249
  %5251 = vmatprep.mubr.bf16.mxu0 0
  %5252 = vmatmul.mubr.bf16.gmra.mrb[0].mxu0 %v559
  %v5253 = vpop.f32.mrb[0].mxu0
  %v5254 = vadd.f32 0.0, %v5253
  %v5255 = vpop.f32.mrb[0].mxu0
  %v5256 = vadd.f32 0.0, %v5255
  %v5257 = vpop.f32.mrb[0].mxu0
  %v5258 = vadd.f32 0.0, %v5257
  %v5259 = vpop.f32.mrb[0].mxu0
  %v5260 = vadd.f32 0.0, %v5259
  %5261 = vmatprep.mubr.bf16.mxu0 0
  %5262 = vmatmul.mubr.bf16.gmra.mrb[0].mxu0 %v560
  %v5263 = vpop.f32.mrb[0].mxu0
  %v5264 = vadd.f32 0.0, %v5263
  %v5265 = vpop.f32.mrb[0].mxu0
  %v5266 = vadd.f32 0.0, %v5265
  %v5267 = vpop.f32.mrb[0].mxu0
  %v5268 = vadd.f32 0.0, %v5267
  %v5269 = vpop.f32.mrb[0].mxu0
  %v5270 = vadd.f32 0.0, %v5269
  %5271 = vmatprep.mubr.bf16.mxu0 0
  %5272 = vmatmul.mubr.bf16.gmra.mrb[0].mxu0 %v561
  %v5273 = vpop.f32.mrb[0].mxu0
  %v5274 = vadd.f32 0.0, %v5273
  %v5275 = vpop.f32.mrb[0].mxu0
  %v5276 = vadd.f32 0.0, %v5275
  %v5277 = vpop.f32.mrb[0].mxu0
  %v5278 = vadd.f32 0.0, %v5277
  %v5279 = vpop.f32.mrb[0].mxu0
  %v5280 = vadd.f32 0.0, %v5279
  %5281 = vmatprep.mubr.bf16.mxu0 0
  %5282 = vmatmul.mubr.bf16.gmra.mrb[0].mxu0 %v562
  %v5283 = vpop.f32.mrb[0].mxu0
  %v5284 = vadd.f32 0.0, %v5283
  %v5285 = vpop.f32.mrb[0].mxu0
  %v5286 = vadd.f32 0.0, %v5285
  %v5287 = vpop.f32.mrb[0].mxu0
  %v5288 = vadd.f32 0.0, %v5287
  %v5289 = vpop.f32.mrb[0].mxu0
  %v5290 = vadd.f32 0.0, %v5289
  %5291 = vmatprep.mubr.bf16.mxu0 0
  %5292 = vmatmul.mubr.bf16.gmra.mrb[0].mxu0 %v563
  %v5293 = vpop.f32.mrb[0].mxu0
  %v5294 = vadd.f32 0.0, %v5293
  %v5295 = vpop.f32.mrb[0].mxu0
  %v5296 = vadd.f32 0.0, %v5295
  %v5297 = vpop.f32.mrb[0].mxu0
  %v5298 = vadd.f32 0.0, %v5297
  %v5299 = vpop.f32.mrb[0].mxu0
  %v5300 = vadd.f32 0.0, %v5299
  %5301 = vmatprep.mubr.bf16.mxu0 0
  %5302 = vmatmul.mubr.bf16.gmra.mrb[0].mxu0 %v564
  %v5303 = vpop.f32.mrb[0].mxu0
  %v5304 = vadd.f32 0.0, %v5303
  %v5305 = vpop.f32.mrb[0].mxu0
  %v5306 = vadd.f32 0.0, %v5305
  %v5307 = vpop.f32.mrb[0].mxu0
  %v5308 = vadd.f32 0.0, %v5307
  %v5309 = vpop.f32.mrb[0].mxu0
  %v5310 = vadd.f32 0.0, %v5309
  %5311 = vmatprep.mubr.bf16.mxu0 0
  %5312 = vmatmul.mubr.bf16.gmra.mrb[0].mxu0 %v565
  %v5313 = vpop.f32.mrb[0].mxu0
  %v5314 = vadd.f32 0.0, %v5313
  %v5315 = vpop.f32.mrb[0].mxu0
  %v5316 = vadd.f32 0.0, %v5315
  %v5317 = vpop.f32.mrb[0].mxu0
  %v5318 = vadd.f32 0.0, %v5317
  %v5319 = vpop.f32.mrb[0].mxu0
  %v5320 = vadd.f32 0.0, %v5319
  %5321 = vmatprep.mubr.bf16.mxu0 0
  %5322 = vmatmul.mubr.bf16.gmra.mrb[0].mxu0 %v566
  %v5323 = vpop.f32.mrb[0].mxu0
  %v5324 = vadd.f32 0.0, %v5323
  %v5325 = vpop.f32.mrb[0].mxu0
  %v5326 = vadd.f32 0.0, %v5325
  %v5327 = vpop.f32.mrb[0].mxu0
  %v5328 = vadd.f32 0.0, %v5327
  %v5329 = vpop.f32.mrb[0].mxu0
  %v5330 = vadd.f32 0.0, %v5329
  %5331 = vdwg.mxu0
  %5332 = vmatprep.subr.bf16.mxu0 %v1956
  %5333 = vmatpush1.bf16.msra.mxu0 %v1955
  %5334 = vmatprep.subr.bf16.mxu0 %v2012
  %5335 = vmatpush1.bf16.msra.mxu0 %v2011
  %5336 = vmatprep.subr.bf16.mxu0 %v2068
  %5337 = vmatpush1.bf16.msra.mxu0 %v2067
  %5338 = vmatprep.subr.bf16.mxu0 %v2124
  %5339 = vmatpush1.bf16.msra.mxu0 %v2123
  %5340 = vmatprep.subr.bf16.mxu0 %v2180
  %5341 = vmatpush1.bf16.msra.mxu0 %v2179
  %5342 = vmatprep.subr.bf16.mxu0 %v2236
  %5343 = vmatpush1.bf16.msra.mxu0 %v2235
  %5344 = vmatprep.subr.bf16.mxu0 %v2292
  %5345 = vmatpush1.bf16.msra.mxu0 %v2291
  %5346 = vmatprep.subr.bf16.mxu0 %v2348
  %5347 = vmatpush1.bf16.msra.mxu0 %v2347
  %5348 = vmatprep.subr.bf16.mxu0 0
  %5349 = vmatpush1.bf16.msra.mxu0 0
  %5350 = vmatprep.subr.bf16.mxu0 0
  %5351 = vmatpush1.bf16.msra.mxu0 0
  %5352 = vmatprep.subr.bf16.mxu0 0
  %5353 = vmatpush1.bf16.msra.mxu0 0
  %5354 = vmatprep.subr.bf16.mxu0 0
  %5355 = vmatpush1.bf16.msra.mxu0 0
  %5356 = vmatprep.subr.bf16.mxu0 0
  %5357 = vmatpush1.bf16.msra.mxu0 0
  %5358 = vmatprep.subr.bf16.mxu0 0
  %5359 = vmatpush1.bf16.msra.mxu0 0
  %5360 = vmatprep.subr.bf16.mxu0 0
  %5361 = vmatpush1.bf16.msra.mxu0 0
  %5362 = vmatprep.subr.bf16.mxu0 0
  %5363 = vmatpush1.bf16.msra.mxu0 0
  %5364 = vmatprep.mubr.bf16.mxu0 0
  %5365 = vmatmul.mubr.bf16.gmra.mrb[0].mxu0 %v553
  %v5366 = vpop.f32.mrb[0].mxu0
  %v5367 = vadd.f32 0.0, %v5366
  %v5368 = vpop.f32.mrb[0].mxu0
  %v5369 = vadd.f32 0.0, %v5368
  %v5370 = vpop.f32.mrb[0].mxu0
  %v5371 = vadd.f32 0.0, %v5370
  %v5372 = vpop.f32.mrb[0].mxu0
  %v5373 = vadd.f32 0.0, %v5372
  %5374 = vmatprep.mubr.bf16.mxu0 0
  %5375 = vmatmul.mubr.bf16.gmra.mrb[0].mxu0 %v554
  %v5376 = vpop.f32.mrb[0].mxu0
  %v5377 = vadd.f32 0.0, %v5376
  %v5378 = vpop.f32.mrb[0].mxu0
  %v5379 = vadd.f32 0.0, %v5378
  %v5380 = vpop.f32.mrb[0].mxu0
  %v5381 = vadd.f32 0.0, %v5380
  %v5382 = vpop.f32.mrb[0].mxu0
  %v5383 = vadd.f32 0.0, %v5382
  %5384 = vmatprep.mubr.bf16.mxu0 0
  %5385 = vmatmul.mubr.bf16.gmra.mrb[0].mxu0 %v555
  %v5386 = vpop.f32.mrb[0].mxu0
  %v5387 = vadd.f32 0.0, %v5386
  %v5388 = vpop.f32.mrb[0].mxu0
  %v5389 = vadd.f32 0.0, %v5388
  %v5390 = vpop.f32.mrb[0].mxu0
  %v5391 = vadd.f32 0.0, %v5390
  %v5392 = vpop.f32.mrb[0].mxu0
  %v5393 = vadd.f32 0.0, %v5392
  %5394 = vmatprep.mubr.bf16.mxu0 0
  %5395 = vmatmul.mubr.bf16.gmra.mrb[0].mxu0 %v556
  %v5396 = vpop.f32.mrb[0].mxu0
  %v5397 = vadd.f32 0.0, %v5396
  %v5398 = vpop.f32.mrb[0].mxu0
  %v5399 = vadd.f32 0.0, %v5398
  %v5400 = vpop.f32.mrb[0].mxu0
  %v5401 = vadd.f32 0.0, %v5400
  %v5402 = vpop.f32.mrb[0].mxu0
  %v5403 = vadd.f32 0.0, %v5402
  %5404 = vmatprep.mubr.bf16.mxu0 0
  %5405 = vmatmul.mubr.bf16.gmra.mrb[0].mxu0 %v557
  %v5406 = vpop.f32.mrb[0].mxu0
  %v5407 = vadd.f32 0.0, %v5406
  %v5408 = vpop.f32.mrb[0].mxu0
  %v5409 = vadd.f32 0.0, %v5408
  %v5410 = vpop.f32.mrb[0].mxu0
  %v5411 = vadd.f32 0.0, %v5410
  %v5412 = vpop.f32.mrb[0].mxu0
  %v5413 = vadd.f32 0.0, %v5412
  %5414 = vmatprep.mubr.bf16.mxu0 0
  %5415 = vmatmul.mubr.bf16.gmra.mrb[0].mxu0 %v558
  %v5416 = vpop.f32.mrb[0].mxu0
  %v5417 = vadd.f32 0.0, %v5416
  %v5418 = vpop.f32.mrb[0].mxu0
  %v5419 = vadd.f32 0.0, %v5418
  %v5420 = vpop.f32.mrb[0].mxu0
  %v5421 = vadd.f32 0.0, %v5420
  %v5422 = vpop.f32.mrb[0].mxu0
  %v5423 = vadd.f32 0.0, %v5422
  %5424 = vmatprep.mubr.bf16.mxu0 0
  %5425 = vmatmul.mubr.bf16.gmra.mrb[0].mxu0 %v559
  %v5426 = vpop.f32.mrb[0].mxu0
  %v5427 = vadd.f32 0.0, %v5426
  %v5428 = vpop.f32.mrb[0].mxu0
  %v5429 = vadd.f32 0.0, %v5428
  %v5430 = vpop.f32.mrb[0].mxu0
  %v5431 = vadd.f32 0.0, %v5430
  %v5432 = vpop.f32.mrb[0].mxu0
  %v5433 = vadd.f32 0.0, %v5432
  %5434 = vmatprep.mubr.bf16.mxu0 0
  %5435 = vmatmul.mubr.bf16.gmra.mrb[0].mxu0 %v560
  %v5436 = vpop.f32.mrb[0].mxu0
  %v5437 = vadd.f32 0.0, %v5436
  %v5438 = vpop.f32.mrb[0].mxu0
  %v5439 = vadd.f32 0.0, %v5438
  %v5440 = vpop.f32.mrb[0].mxu0
  %v5441 = vadd.f32 0.0, %v5440
  %v5442 = vpop.f32.mrb[0].mxu0
  %v5443 = vadd.f32 0.0, %v5442
  %5444 = vmatprep.mubr.bf16.mxu0 0
  %5445 = vmatmul.mubr.bf16.gmra.mrb[0].mxu0 %v561
  %v5446 = vpop.f32.mrb[0].mxu0
  %v5447 = vadd.f32 0.0, %v5446
  %v5448 = vpop.f32.mrb[0].mxu0
  %v5449 = vadd.f32 0.0, %v5448
  %v5450 = vpop.f32.mrb[0].mxu0
  %v5451 = vadd.f32 0.0, %v5450
  %v5452 = vpop.f32.mrb[0].mxu0
  %v5453 = vadd.f32 0.0, %v5452
  %5454 = vmatprep.mubr.bf16.mxu0 0
  %5455 = vmatmul.mubr.bf16.gmra.mrb[0].mxu0 %v562
  %v5456 = vpop.f32.mrb[0].mxu0
  %v5457 = vadd.f32 0.0, %v5456
  %v5458 = vpop.f32.mrb[0].mxu0
  %v5459 = vadd.f32 0.0, %v5458
  %v5460 = vpop.f32.mrb[0].mxu0
  %v5461 = vadd.f32 0.0, %v5460
  %v5462 = vpop.f32.mrb[0].mxu0
  %v5463 = vadd.f32 0.0, %v5462
  %5464 = vmatprep.mubr.bf16.mxu0 0
  %5465 = vmatmul.mubr.bf16.gmra.mrb[0].mxu0 %v563
  %v5466 = vpop.f32.mrb[0].mxu0
  %v5467 = vadd.f32 0.0, %v5466
  %v5468 = vpop.f32.mrb[0].mxu0
  %v5469 = vadd.f32 0.0, %v5468
  %v5470 = vpop.f32.mrb[0].mxu0
  %v5471 = vadd.f32 0.0, %v5470
  %v5472 = vpop.f32.mrb[0].mxu0
  %v5473 = vadd.f32 0.0, %v5472
  %5474 = vmatprep.mubr.bf16.mxu0 0
  %5475 = vmatmul.mubr.bf16.gmra.mrb[0].mxu0 %v564
  %v5476 = vpop.f32.mrb[0].mxu0
  %v5477 = vadd.f32 0.0, %v5476
  %v5478 = vpop.f32.mrb[0].mxu0
  %v5479 = vadd.f32 0.0, %v5478
  %v5480 = vpop.f32.mrb[0].mxu0
  %v5481 = vadd.f32 0.0, %v5480
  %v5482 = vpop.f32.mrb[0].mxu0
  %v5483 = vadd.f32 0.0, %v5482
  %5484 = vmatprep.mubr.bf16.mxu0 0
  %5485 = vmatmul.mubr.bf16.gmra.mrb[0].mxu0 %v565
  %v5486 = vpop.f32.mrb[0].mxu0
  %v5487 = vadd.f32 0.0, %v5486
  %v5488 = vpop.f32.mrb[0].mxu0
  %v5489 = vadd.f32 0.0, %v5488
  %v5490 = vpop.f32.mrb[0].mxu0
  %v5491 = vadd.f32 0.0, %v5490
  %v5492 = vpop.f32.mrb[0].mxu0
  %v5493 = vadd.f32 0.0, %v5492
  %5494 = vmatprep.mubr.bf16.mxu0 0
  %5495 = vmatmul.mubr.bf16.gmra.mrb[0].mxu0 %v566
  %v5496 = vpop.f32.mrb[0].mxu0
  %v5497 = vadd.f32 0.0, %v5496
  %v5498 = vpop.f32.mrb[0].mxu0
  %v5499 = vadd.f32 0.0, %v5498
  %v5500 = vpop.f32.mrb[0].mxu0
  %v5501 = vadd.f32 0.0, %v5500
  %v5502 = vpop.f32.mrb[0].mxu0
  %v5503 = vadd.f32 0.0, %v5502
  %5504 = vdwg.mxu0
  %5505 = vmatprep.subr.bf16.mxu0 %v1958
  %5506 = vmatpush1.bf16.msra.mxu0 %v1957
  %5507 = vmatprep.subr.bf16.mxu0 %v2014
  %5508 = vmatpush1.bf16.msra.mxu0 %v2013
  %5509 = vmatprep.subr.bf16.mxu0 %v2070
  %5510 = vmatpush1.bf16.msra.mxu0 %v2069
  %5511 = vmatprep.subr.bf16.mxu0 %v2126
  %5512 = vmatpush1.bf16.msra.mxu0 %v2125
  %5513 = vmatprep.subr.bf16.mxu0 %v2182
  %5514 = vmatpush1.bf16.msra.mxu0 %v2181
  %5515 = vmatprep.subr.bf16.mxu0 %v2238
  %5516 = vmatpush1.bf16.msra.mxu0 %v2237
  %5517 = vmatprep.subr.bf16.mxu0 %v2294
  %5518 = vmatpush1.bf16.msra.mxu0 %v2293
  %5519 = vmatprep.subr.bf16.mxu0 %v2350
  %5520 = vmatpush1.bf16.msra.mxu0 %v2349
  %5521 = vmatprep.subr.bf16.mxu0 0
  %5522 = vmatpush1.bf16.msra.mxu0 0
  %5523 = vmatprep.subr.bf16.mxu0 0
  %5524 = vmatpush1.bf16.msra.mxu0 0
  %5525 = vmatprep.subr.bf16.mxu0 0
  %5526 = vmatpush1.bf16.msra.mxu0 0
  %5527 = vmatprep.subr.bf16.mxu0 0
  %5528 = vmatpush1.bf16.msra.mxu0 0
  %5529 = vmatprep.subr.bf16.mxu0 0
  %5530 = vmatpush1.bf16.msra.mxu0 0
  %5531 = vmatprep.subr.bf16.mxu0 0
  %5532 = vmatpush1.bf16.msra.mxu0 0
  %5533 = vmatprep.subr.bf16.mxu0 0
  %5534 = vmatpush1.bf16.msra.mxu0 0
  %5535 = vmatprep.subr.bf16.mxu0 0
  %5536 = vmatpush1.bf16.msra.mxu0 0
  %5537 = vmatprep.mubr.bf16.mxu0 0
  %5538 = vmatmul.mubr.bf16.gmra.mrb[0].mxu0 %v553
  %v5539 = vpop.f32.mrb[0].mxu0
  %v5540 = vadd.f32 0.0, %v5539
  %v5541 = vpop.f32.mrb[0].mxu0
  %v5542 = vadd.f32 0.0, %v5541
  %v5543 = vpop.f32.mrb[0].mxu0
  %v5544 = vadd.f32 0.0, %v5543
  %v5545 = vpop.f32.mrb[0].mxu0
  %v5546 = vadd.f32 0.0, %v5545
  %5547 = vmatprep.mubr.bf16.mxu0 0
  %5548 = vmatmul.mubr.bf16.gmra.mrb[0].mxu0 %v554
  %v5549 = vpop.f32.mrb[0].mxu0
  %v5550 = vadd.f32 0.0, %v5549
  %v5551 = vpop.f32.mrb[0].mxu0
  %v5552 = vadd.f32 0.0, %v5551
  %v5553 = vpop.f32.mrb[0].mxu0
  %v5554 = vadd.f32 0.0, %v5553
  %v5555 = vpop.f32.mrb[0].mxu0
  %v5556 = vadd.f32 0.0, %v5555
  %5557 = vmatprep.mubr.bf16.mxu0 0
  %5558 = vmatmul.mubr.bf16.gmra.mrb[0].mxu0 %v555
  %v5559 = vpop.f32.mrb[0].mxu0
  %v5560 = vadd.f32 0.0, %v5559
  %v5561 = vpop.f32.mrb[0].mxu0
  %v5562 = vadd.f32 0.0, %v5561
  %v5563 = vpop.f32.mrb[0].mxu0
  %v5564 = vadd.f32 0.0, %v5563
  %v5565 = vpop.f32.mrb[0].mxu0
  %v5566 = vadd.f32 0.0, %v5565
  %5567 = vmatprep.mubr.bf16.mxu0 0
  %5568 = vmatmul.mubr.bf16.gmra.mrb[0].mxu0 %v556
  %v5569 = vpop.f32.mrb[0].mxu0
  %v5570 = vadd.f32 0.0, %v5569
  %v5571 = vpop.f32.mrb[0].mxu0
  %v5572 = vadd.f32 0.0, %v5571
  %v5573 = vpop.f32.mrb[0].mxu0
  %v5574 = vadd.f32 0.0, %v5573
  %v5575 = vpop.f32.mrb[0].mxu0
  %v5576 = vadd.f32 0.0, %v5575
  %5577 = vmatprep.mubr.bf16.mxu0 0
  %5578 = vmatmul.mubr.bf16.gmra.mrb[0].mxu0 %v557
  %v5579 = vpop.f32.mrb[0].mxu0
  %v5580 = vadd.f32 0.0, %v5579
  %v5581 = vpop.f32.mrb[0].mxu0
  %v5582 = vadd.f32 0.0, %v5581
  %v5583 = vpop.f32.mrb[0].mxu0
  %v5584 = vadd.f32 0.0, %v5583
  %v5585 = vpop.f32.mrb[0].mxu0
  %v5586 = vadd.f32 0.0, %v5585
  %5587 = vmatprep.mubr.bf16.mxu0 0
  %5588 = vmatmul.mubr.bf16.gmra.mrb[0].mxu0 %v558
  %v5589 = vpop.f32.mrb[0].mxu0
  %v5590 = vadd.f32 0.0, %v5589
  %v5591 = vpop.f32.mrb[0].mxu0
  %v5592 = vadd.f32 0.0, %v5591
  %v5593 = vpop.f32.mrb[0].mxu0
  %v5594 = vadd.f32 0.0, %v5593
  %v5595 = vpop.f32.mrb[0].mxu0
  %v5596 = vadd.f32 0.0, %v5595
  %5597 = vmatprep.mubr.bf16.mxu0 0
  %5598 = vmatmul.mubr.bf16.gmra.mrb[0].mxu0 %v559
  %v5599 = vpop.f32.mrb[0].mxu0
  %v5600 = vadd.f32 0.0, %v5599
  %v5601 = vpop.f32.mrb[0].mxu0
  %v5602 = vadd.f32 0.0, %v5601
  %v5603 = vpop.f32.mrb[0].mxu0
  %v5604 = vadd.f32 0.0, %v5603
  %v5605 = vpop.f32.mrb[0].mxu0
  %v5606 = vadd.f32 0.0, %v5605
  %5607 = vmatprep.mubr.bf16.mxu0 0
  %5608 = vmatmul.mubr.bf16.gmra.mrb[0].mxu0 %v560
  %v5609 = vpop.f32.mrb[0].mxu0
  %v5610 = vadd.f32 0.0, %v5609
  %v5611 = vpop.f32.mrb[0].mxu0
  %v5612 = vadd.f32 0.0, %v5611
  %v5613 = vpop.f32.mrb[0].mxu0
  %v5614 = vadd.f32 0.0, %v5613
  %v5615 = vpop.f32.mrb[0].mxu0
  %v5616 = vadd.f32 0.0, %v5615
  %5617 = vmatprep.mubr.bf16.mxu0 0
  %5618 = vmatmul.mubr.bf16.gmra.mrb[0].mxu0 %v561
  %v5619 = vpop.f32.mrb[0].mxu0
  %v5620 = vadd.f32 0.0, %v5619
  %v5621 = vpop.f32.mrb[0].mxu0
  %v5622 = vadd.f32 0.0, %v5621
  %v5623 = vpop.f32.mrb[0].mxu0
  %v5624 = vadd.f32 0.0, %v5623
  %v5625 = vpop.f32.mrb[0].mxu0
  %v5626 = vadd.f32 0.0, %v5625
  %5627 = vmatprep.mubr.bf16.mxu0 0
  %5628 = vmatmul.mubr.bf16.gmra.mrb[0].mxu0 %v562
  %v5629 = vpop.f32.mrb[0].mxu0
  %v5630 = vadd.f32 0.0, %v5629
  %v5631 = vpop.f32.mrb[0].mxu0
  %v5632 = vadd.f32 0.0, %v5631
  %v5633 = vpop.f32.mrb[0].mxu0
  %v5634 = vadd.f32 0.0, %v5633
  %v5635 = vpop.f32.mrb[0].mxu0
  %v5636 = vadd.f32 0.0, %v5635
  %5637 = vmatprep.mubr.bf16.mxu0 0
  %5638 = vmatmul.mubr.bf16.gmra.mrb[0].mxu0 %v563
  %v5639 = vpop.f32.mrb[0].mxu0
  %v5640 = vadd.f32 0.0, %v5639
  %v5641 = vpop.f32.mrb[0].mxu0
  %v5642 = vadd.f32 0.0, %v5641
  %v5643 = vpop.f32.mrb[0].mxu0
  %v5644 = vadd.f32 0.0, %v5643
  %v5645 = vpop.f32.mrb[0].mxu0
  %v5646 = vadd.f32 0.0, %v5645
  %5647 = vmatprep.mubr.bf16.mxu0 0
  %5648 = vmatmul.mubr.bf16.gmra.mrb[0].mxu0 %v564
  %v5649 = vpop.f32.mrb[0].mxu0
  %v5650 = vadd.f32 0.0, %v5649
  %v5651 = vpop.f32.mrb[0].mxu0
  %v5652 = vadd.f32 0.0, %v5651
  %v5653 = vpop.f32.mrb[0].mxu0
  %v5654 = vadd.f32 0.0, %v5653
  %v5655 = vpop.f32.mrb[0].mxu0
  %v5656 = vadd.f32 0.0, %v5655
  %5657 = vmatprep.mubr.bf16.mxu0 0
  %5658 = vmatmul.mubr.bf16.gmra.mrb[0].mxu0 %v565
  %v5659 = vpop.f32.mrb[0].mxu0
  %v5660 = vadd.f32 0.0, %v5659
  %v5661 = vpop.f32.mrb[0].mxu0
  %v5662 = vadd.f32 0.0, %v5661
  %v5663 = vpop.f32.mrb[0].mxu0
  %v5664 = vadd.f32 0.0, %v5663
  %v5665 = vpop.f32.mrb[0].mxu0
  %v5666 = vadd.f32 0.0, %v5665
  %5667 = vmatprep.mubr.bf16.mxu0 0
  %5668 = vmatmul.mubr.bf16.gmra.mrb[0].mxu0 %v566
  %v5669 = vpop.f32.mrb[0].mxu0
  %v5670 = vadd.f32 0.0, %v5669
  %v5671 = vpop.f32.mrb[0].mxu0
  %v5672 = vadd.f32 0.0, %v5671
  %v5673 = vpop.f32.mrb[0].mxu0
  %v5674 = vadd.f32 0.0, %v5673
  %v5675 = vpop.f32.mrb[0].mxu0
  %v5676 = vadd.f32 0.0, %v5675
  %5677 = vdwg.mxu0
  %5678 = vmatprep.subr.bf16.mxu0 %v1960
  %5679 = vmatpush1.bf16.msra.mxu0 %v1959
  %5680 = vmatprep.subr.bf16.mxu0 %v2016
  %5681 = vmatpush1.bf16.msra.mxu0 %v2015
  %5682 = vmatprep.subr.bf16.mxu0 %v2072
  %5683 = vmatpush1.bf16.msra.mxu0 %v2071
  %5684 = vmatprep.subr.bf16.mxu0 %v2128
  %5685 = vmatpush1.bf16.msra.mxu0 %v2127
  %5686 = vmatprep.subr.bf16.mxu0 %v2184
  %5687 = vmatpush1.bf16.msra.mxu0 %v2183
  %5688 = vmatprep.subr.bf16.mxu0 %v2240
  %5689 = vmatpush1.bf16.msra.mxu0 %v2239
  %5690 = vmatprep.subr.bf16.mxu0 %v2296
  %5691 = vmatpush1.bf16.msra.mxu0 %v2295
  %5692 = vmatprep.subr.bf16.mxu0 %v2352
  %5693 = vmatpush1.bf16.msra.mxu0 %v2351
  %5694 = vmatprep.subr.bf16.mxu0 0
  %5695 = vmatpush1.bf16.msra.mxu0 0
  %5696 = vmatprep.subr.bf16.mxu0 0
  %5697 = vmatpush1.bf16.msra.mxu0 0
  %5698 = vmatprep.subr.bf16.mxu0 0
  %5699 = vmatpush1.bf16.msra.mxu0 0
  %5700 = vmatprep.subr.bf16.mxu0 0
  %5701 = vmatpush1.bf16.msra.mxu0 0
  %5702 = vmatprep.subr.bf16.mxu0 0
  %5703 = vmatpush1.bf16.msra.mxu0 0
  %5704 = vmatprep.subr.bf16.mxu0 0
  %5705 = vmatpush1.bf16.msra.mxu0 0
  %5706 = vmatprep.subr.bf16.mxu0 0
  %5707 = vmatpush1.bf16.msra.mxu0 0
  %5708 = vmatprep.subr.bf16.mxu0 0
  %5709 = vmatpush1.bf16.msra.mxu0 0
  %5710 = vmatprep.mubr.bf16.mxu0 0
  %5711 = vmatmul.mubr.bf16.gmra.mrb[0].mxu0 %v553
  %v5712 = vpop.f32.mrb[0].mxu0
  %v5713 = vadd.f32 0.0, %v5712
  %v5714 = vpop.f32.mrb[0].mxu0
  %v5715 = vadd.f32 0.0, %v5714
  %v5716 = vpop.f32.mrb[0].mxu0
  %v5717 = vadd.f32 0.0, %v5716
  %v5718 = vpop.f32.mrb[0].mxu0
  %v5719 = vadd.f32 0.0, %v5718
  %5720 = vmatprep.mubr.bf16.mxu0 0
  %5721 = vmatmul.mubr.bf16.gmra.mrb[0].mxu0 %v554
  %v5722 = vpop.f32.mrb[0].mxu0
  %v5723 = vadd.f32 0.0, %v5722
  %v5724 = vpop.f32.mrb[0].mxu0
  %v5725 = vadd.f32 0.0, %v5724
  %v5726 = vpop.f32.mrb[0].mxu0
  %v5727 = vadd.f32 0.0, %v5726
  %v5728 = vpop.f32.mrb[0].mxu0
  %v5729 = vadd.f32 0.0, %v5728
  %5730 = vmatprep.mubr.bf16.mxu0 0
  %5731 = vmatmul.mubr.bf16.gmra.mrb[0].mxu0 %v555
  %v5732 = vpop.f32.mrb[0].mxu0
  %v5733 = vadd.f32 0.0, %v5732
  %v5734 = vpop.f32.mrb[0].mxu0
  %v5735 = vadd.f32 0.0, %v5734
  %v5736 = vpop.f32.mrb[0].mxu0
  %v5737 = vadd.f32 0.0, %v5736
  %v5738 = vpop.f32.mrb[0].mxu0
  %v5739 = vadd.f32 0.0, %v5738
  %5740 = vmatprep.mubr.bf16.mxu0 0
  %5741 = vmatmul.mubr.bf16.gmra.mrb[0].mxu0 %v556
  %v5742 = vpop.f32.mrb[0].mxu0
  %v5743 = vadd.f32 0.0, %v5742
  %v5744 = vpop.f32.mrb[0].mxu0
  %v5745 = vadd.f32 0.0, %v5744
  %v5746 = vpop.f32.mrb[0].mxu0
  %v5747 = vadd.f32 0.0, %v5746
  %v5748 = vpop.f32.mrb[0].mxu0
  %v5749 = vadd.f32 0.0, %v5748
  %5750 = vmatprep.mubr.bf16.mxu0 0
  %5751 = vmatmul.mubr.bf16.gmra.mrb[0].mxu0 %v557
  %v5752 = vpop.f32.mrb[0].mxu0
  %v5753 = vadd.f32 0.0, %v5752
  %v5754 = vpop.f32.mrb[0].mxu0
  %v5755 = vadd.f32 0.0, %v5754
  %v5756 = vpop.f32.mrb[0].mxu0
  %v5757 = vadd.f32 0.0, %v5756
  %v5758 = vpop.f32.mrb[0].mxu0
  %v5759 = vadd.f32 0.0, %v5758
  %5760 = vmatprep.mubr.bf16.mxu0 0
  %5761 = vmatmul.mubr.bf16.gmra.mrb[0].mxu0 %v558
  %v5762 = vpop.f32.mrb[0].mxu0
  %v5763 = vadd.f32 0.0, %v5762
  %v5764 = vpop.f32.mrb[0].mxu0
  %v5765 = vadd.f32 0.0, %v5764
  %v5766 = vpop.f32.mrb[0].mxu0
  %v5767 = vadd.f32 0.0, %v5766
  %v5768 = vpop.f32.mrb[0].mxu0
  %v5769 = vadd.f32 0.0, %v5768
  %5770 = vmatprep.mubr.bf16.mxu0 0
  %5771 = vmatmul.mubr.bf16.gmra.mrb[0].mxu0 %v559
  %v5772 = vpop.f32.mrb[0].mxu0
  %v5773 = vadd.f32 0.0, %v5772
  %v5774 = vpop.f32.mrb[0].mxu0
  %v5775 = vadd.f32 0.0, %v5774
  %v5776 = vpop.f32.mrb[0].mxu0
  %v5777 = vadd.f32 0.0, %v5776
  %v5778 = vpop.f32.mrb[0].mxu0
  %v5779 = vadd.f32 0.0, %v5778
  %5780 = vmatprep.mubr.bf16.mxu0 0
  %5781 = vmatmul.mubr.bf16.gmra.mrb[0].mxu0 %v560
  %v5782 = vpop.f32.mrb[0].mxu0
  %v5783 = vadd.f32 0.0, %v5782
  %v5784 = vpop.f32.mrb[0].mxu0
  %v5785 = vadd.f32 0.0, %v5784
  %v5786 = vpop.f32.mrb[0].mxu0
  %v5787 = vadd.f32 0.0, %v5786
  %v5788 = vpop.f32.mrb[0].mxu0
  %v5789 = vadd.f32 0.0, %v5788
  %5790 = vmatprep.mubr.bf16.mxu0 0
  %5791 = vmatmul.mubr.bf16.gmra.mrb[0].mxu0 %v561
  %v5792 = vpop.f32.mrb[0].mxu0
  %v5793 = vadd.f32 0.0, %v5792
  %v5794 = vpop.f32.mrb[0].mxu0
  %v5795 = vadd.f32 0.0, %v5794
  %v5796 = vpop.f32.mrb[0].mxu0
  %v5797 = vadd.f32 0.0, %v5796
  %v5798 = vpop.f32.mrb[0].mxu0
  %v5799 = vadd.f32 0.0, %v5798
  %5800 = vmatprep.mubr.bf16.mxu0 0
  %5801 = vmatmul.mubr.bf16.gmra.mrb[0].mxu0 %v562
  %v5802 = vpop.f32.mrb[0].mxu0
  %v5803 = vadd.f32 0.0, %v5802
  %v5804 = vpop.f32.mrb[0].mxu0
  %v5805 = vadd.f32 0.0, %v5804
  %v5806 = vpop.f32.mrb[0].mxu0
  %v5807 = vadd.f32 0.0, %v5806
  %v5808 = vpop.f32.mrb[0].mxu0
  %v5809 = vadd.f32 0.0, %v5808
  %5810 = vmatprep.mubr.bf16.mxu0 0
  %5811 = vmatmul.mubr.bf16.gmra.mrb[0].mxu0 %v563
  %v5812 = vpop.f32.mrb[0].mxu0
  %v5813 = vadd.f32 0.0, %v5812
  %v5814 = vpop.f32.mrb[0].mxu0
  %v5815 = vadd.f32 0.0, %v5814
  %v5816 = vpop.f32.mrb[0].mxu0
  %v5817 = vadd.f32 0.0, %v5816
  %v5818 = vpop.f32.mrb[0].mxu0
  %v5819 = vadd.f32 0.0, %v5818
  %5820 = vmatprep.mubr.bf16.mxu0 0
  %5821 = vmatmul.mubr.bf16.gmra.mrb[0].mxu0 %v564
  %v5822 = vpop.f32.mrb[0].mxu0
  %v5823 = vadd.f32 0.0, %v5822
  %v5824 = vpop.f32.mrb[0].mxu0
  %v5825 = vadd.f32 0.0, %v5824
  %v5826 = vpop.f32.mrb[0].mxu0
  %v5827 = vadd.f32 0.0, %v5826
  %v5828 = vpop.f32.mrb[0].mxu0
  %v5829 = vadd.f32 0.0, %v5828
  %5830 = vmatprep.mubr.bf16.mxu0 0
  %5831 = vmatmul.mubr.bf16.gmra.mrb[0].mxu0 %v565
  %v5832 = vpop.f32.mrb[0].mxu0
  %v5833 = vadd.f32 0.0, %v5832
  %v5834 = vpop.f32.mrb[0].mxu0
  %v5835 = vadd.f32 0.0, %v5834
  %v5836 = vpop.f32.mrb[0].mxu0
  %v5837 = vadd.f32 0.0, %v5836
  %v5838 = vpop.f32.mrb[0].mxu0
  %v5839 = vadd.f32 0.0, %v5838
  %5840 = vmatprep.mubr.bf16.mxu0 0
  %5841 = vmatmul.mubr.bf16.gmra.mrb[0].mxu0 %v566
  %v5842 = vpop.f32.mrb[0].mxu0
  %v5843 = vadd.f32 0.0, %v5842
  %v5844 = vpop.f32.mrb[0].mxu0
  %v5845 = vadd.f32 0.0, %v5844
  %v5846 = vpop.f32.mrb[0].mxu0
  %v5847 = vadd.f32 0.0, %v5846
  %v5848 = vpop.f32.mrb[0].mxu0
  %v5849 = vadd.f32 0.0, %v5848
  %5850 = vdwg.mxu0
  %5851 = vmatprep.subr.bf16.mxu0 %v1962
  %5852 = vmatpush1.bf16.msra.mxu0 %v1961
  %5853 = vmatprep.subr.bf16.mxu0 %v2018
  %5854 = vmatpush1.bf16.msra.mxu0 %v2017
  %5855 = vmatprep.subr.bf16.mxu0 %v2074
  %5856 = vmatpush1.bf16.msra.mxu0 %v2073
  %5857 = vmatprep.subr.bf16.mxu0 %v2130
  %5858 = vmatpush1.bf16.msra.mxu0 %v2129
  %5859 = vmatprep.subr.bf16.mxu0 %v2186
  %5860 = vmatpush1.bf16.msra.mxu0 %v2185
  %5861 = vmatprep.subr.bf16.mxu0 %v2242
  %5862 = vmatpush1.bf16.msra.mxu0 %v2241
  %5863 = vmatprep.subr.bf16.mxu0 %v2298
  %5864 = vmatpush1.bf16.msra.mxu0 %v2297
  %5865 = vmatprep.subr.bf16.mxu0 %v2354
  %5866 = vmatpush1.bf16.msra.mxu0 %v2353
  %5867 = vmatprep.subr.bf16.mxu0 0
  %5868 = vmatpush1.bf16.msra.mxu0 0
  %5869 = vmatprep.subr.bf16.mxu0 0
  %5870 = vmatpush1.bf16.msra.mxu0 0
  %5871 = vmatprep.subr.bf16.mxu0 0
  %5872 = vmatpush1.bf16.msra.mxu0 0
  %5873 = vmatprep.subr.bf16.mxu0 0
  %5874 = vmatpush1.bf16.msra.mxu0 0
  %5875 = vmatprep.subr.bf16.mxu0 0
  %5876 = vmatpush1.bf16.msra.mxu0 0
  %5877 = vmatprep.subr.bf16.mxu0 0
  %5878 = vmatpush1.bf16.msra.mxu0 0
  %5879 = vmatprep.subr.bf16.mxu0 0
  %5880 = vmatpush1.bf16.msra.mxu0 0
  %5881 = vmatprep.subr.bf16.mxu0 0
  %5882 = vmatpush1.bf16.msra.mxu0 0
  %5883 = vmatprep.mubr.bf16.mxu0 0
  %5884 = vmatmul.mubr.bf16.gmra.mrb[0].mxu0 %v553
  %v5885 = vpop.f32.mrb[0].mxu0
  %v5886 = vadd.f32 0.0, %v5885
  %v5887 = vpop.f32.mrb[0].mxu0
  %v5888 = vadd.f32 0.0, %v5887
  %v5889 = vpop.f32.mrb[0].mxu0
  %v5890 = vadd.f32 0.0, %v5889
  %v5891 = vpop.f32.mrb[0].mxu0
  %v5892 = vadd.f32 0.0, %v5891
  %5893 = vmatprep.mubr.bf16.mxu0 0
  %5894 = vmatmul.mubr.bf16.gmra.mrb[0].mxu0 %v554
  %v5895 = vpop.f32.mrb[0].mxu0
  %v5896 = vadd.f32 0.0, %v5895
  %v5897 = vpop.f32.mrb[0].mxu0
  %v5898 = vadd.f32 0.0, %v5897
  %v5899 = vpop.f32.mrb[0].mxu0
  %v5900 = vadd.f32 0.0, %v5899
  %v5901 = vpop.f32.mrb[0].mxu0
  %v5902 = vadd.f32 0.0, %v5901
  %5903 = vmatprep.mubr.bf16.mxu0 0
  %5904 = vmatmul.mubr.bf16.gmra.mrb[0].mxu0 %v555
  %v5905 = vpop.f32.mrb[0].mxu0
  %v5906 = vadd.f32 0.0, %v5905
  %v5907 = vpop.f32.mrb[0].mxu0
  %v5908 = vadd.f32 0.0, %v5907
  %v5909 = vpop.f32.mrb[0].mxu0
  %v5910 = vadd.f32 0.0, %v5909
  %v5911 = vpop.f32.mrb[0].mxu0
  %v5912 = vadd.f32 0.0, %v5911
  %5913 = vmatprep.mubr.bf16.mxu0 0
  %5914 = vmatmul.mubr.bf16.gmra.mrb[0].mxu0 %v556
  %v5915 = vpop.f32.mrb[0].mxu0
  %v5916 = vadd.f32 0.0, %v5915
  %v5917 = vpop.f32.mrb[0].mxu0
  %v5918 = vadd.f32 0.0, %v5917
  %v5919 = vpop.f32.mrb[0].mxu0
  %v5920 = vadd.f32 0.0, %v5919
  %v5921 = vpop.f32.mrb[0].mxu0
  %v5922 = vadd.f32 0.0, %v5921
  %5923 = vmatprep.mubr.bf16.mxu0 0
  %5924 = vmatmul.mubr.bf16.gmra.mrb[0].mxu0 %v557
  %v5925 = vpop.f32.mrb[0].mxu0
  %v5926 = vadd.f32 0.0, %v5925
  %v5927 = vpop.f32.mrb[0].mxu0
  %v5928 = vadd.f32 0.0, %v5927
  %v5929 = vpop.f32.mrb[0].mxu0
  %v5930 = vadd.f32 0.0, %v5929
  %v5931 = vpop.f32.mrb[0].mxu0
  %v5932 = vadd.f32 0.0, %v5931
  %5933 = vmatprep.mubr.bf16.mxu0 0
  %5934 = vmatmul.mubr.bf16.gmra.mrb[0].mxu0 %v558
  %v5935 = vpop.f32.mrb[0].mxu0
  %v5936 = vadd.f32 0.0, %v5935
  %v5937 = vpop.f32.mrb[0].mxu0
  %v5938 = vadd.f32 0.0, %v5937
  %v5939 = vpop.f32.mrb[0].mxu0
  %v5940 = vadd.f32 0.0, %v5939
  %v5941 = vpop.f32.mrb[0].mxu0
  %v5942 = vadd.f32 0.0, %v5941
  %5943 = vmatprep.mubr.bf16.mxu0 0
  %5944 = vmatmul.mubr.bf16.gmra.mrb[0].mxu0 %v559
  %v5945 = vpop.f32.mrb[0].mxu0
  %v5946 = vadd.f32 0.0, %v5945
  %v5947 = vpop.f32.mrb[0].mxu0
  %v5948 = vadd.f32 0.0, %v5947
  %v5949 = vpop.f32.mrb[0].mxu0
  %v5950 = vadd.f32 0.0, %v5949
  %v5951 = vpop.f32.mrb[0].mxu0
  %v5952 = vadd.f32 0.0, %v5951
  %5953 = vmatprep.mubr.bf16.mxu0 0
  %5954 = vmatmul.mubr.bf16.gmra.mrb[0].mxu0 %v560
  %v5955 = vpop.f32.mrb[0].mxu0
  %v5956 = vadd.f32 0.0, %v5955
  %v5957 = vpop.f32.mrb[0].mxu0
  %v5958 = vadd.f32 0.0, %v5957
  %v5959 = vpop.f32.mrb[0].mxu0
  %v5960 = vadd.f32 0.0, %v5959
  %v5961 = vpop.f32.mrb[0].mxu0
  %v5962 = vadd.f32 0.0, %v5961
  %5963 = vmatprep.mubr.bf16.mxu0 0
  %5964 = vmatmul.mubr.bf16.gmra.mrb[0].mxu0 %v561
  %v5965 = vpop.f32.mrb[0].mxu0
  %v5966 = vadd.f32 0.0, %v5965
  %v5967 = vpop.f32.mrb[0].mxu0
  %v5968 = vadd.f32 0.0, %v5967
  %v5969 = vpop.f32.mrb[0].mxu0
  %v5970 = vadd.f32 0.0, %v5969
  %v5971 = vpop.f32.mrb[0].mxu0
  %v5972 = vadd.f32 0.0, %v5971
  %5973 = vmatprep.mubr.bf16.mxu0 0
  %5974 = vmatmul.mubr.bf16.gmra.mrb[0].mxu0 %v562
  %v5975 = vpop.f32.mrb[0].mxu0
  %v5976 = vadd.f32 0.0, %v5975
  %v5977 = vpop.f32.mrb[0].mxu0
  %v5978 = vadd.f32 0.0, %v5977
  %v5979 = vpop.f32.mrb[0].mxu0
  %v5980 = vadd.f32 0.0, %v5979
  %v5981 = vpop.f32.mrb[0].mxu0
  %v5982 = vadd.f32 0.0, %v5981
  %5983 = vmatprep.mubr.bf16.mxu0 0
  %5984 = vmatmul.mubr.bf16.gmra.mrb[0].mxu0 %v563
  %v5985 = vpop.f32.mrb[0].mxu0
  %v5986 = vadd.f32 0.0, %v5985
  %v5987 = vpop.f32.mrb[0].mxu0
  %v5988 = vadd.f32 0.0, %v5987
  %v5989 = vpop.f32.mrb[0].mxu0
  %v5990 = vadd.f32 0.0, %v5989
  %v5991 = vpop.f32.mrb[0].mxu0
  %v5992 = vadd.f32 0.0, %v5991
  %5993 = vmatprep.mubr.bf16.mxu0 0
  %5994 = vmatmul.mubr.bf16.gmra.mrb[0].mxu0 %v564
  %v5995 = vpop.f32.mrb[0].mxu0
  %v5996 = vadd.f32 0.0, %v5995
  %v5997 = vpop.f32.mrb[0].mxu0
  %v5998 = vadd.f32 0.0, %v5997
  %v5999 = vpop.f32.mrb[0].mxu0
  %v6000 = vadd.f32 0.0, %v5999
  %v6001 = vpop.f32.mrb[0].mxu0
  %v6002 = vadd.f32 0.0, %v6001
  %6003 = vmatprep.mubr.bf16.mxu0 0
  %6004 = vmatmul.mubr.bf16.gmra.mrb[0].mxu0 %v565
  %v6005 = vpop.f32.mrb[0].mxu0
  %v6006 = vadd.f32 0.0, %v6005
  %v6007 = vpop.f32.mrb[0].mxu0
  %v6008 = vadd.f32 0.0, %v6007
  %v6009 = vpop.f32.mrb[0].mxu0
  %v6010 = vadd.f32 0.0, %v6009
  %v6011 = vpop.f32.mrb[0].mxu0
  %v6012 = vadd.f32 0.0, %v6011
  %6013 = vmatprep.mubr.bf16.mxu0 0
  %6014 = vmatmul.mubr.bf16.gmra.mrb[0].mxu0 %v566
  %v6015 = vpop.f32.mrb[0].mxu0
  %v6016 = vadd.f32 0.0, %v6015
  %v6017 = vpop.f32.mrb[0].mxu0
  %v6018 = vadd.f32 0.0, %v6017
  %v6019 = vpop.f32.mrb[0].mxu0
  %v6020 = vadd.f32 0.0, %v6019
  %v6021 = vpop.f32.mrb[0].mxu0
  %v6022 = vadd.f32 0.0, %v6021
  %6023 = vdwg.mxu0
  %6024 = vmatprep.subr.bf16.mxu0 %v1964
  %6025 = vmatpush1.bf16.msra.mxu0 %v1963
  %6026 = vmatprep.subr.bf16.mxu0 %v2020
  %6027 = vmatpush1.bf16.msra.mxu0 %v2019
  %6028 = vmatprep.subr.bf16.mxu0 %v2076
  %6029 = vmatpush1.bf16.msra.mxu0 %v2075
  %6030 = vmatprep.subr.bf16.mxu0 %v2132
  %6031 = vmatpush1.bf16.msra.mxu0 %v2131
  %6032 = vmatprep.subr.bf16.mxu0 %v2188
  %6033 = vmatpush1.bf16.msra.mxu0 %v2187
  %6034 = vmatprep.subr.bf16.mxu0 %v2244
  %6035 = vmatpush1.bf16.msra.mxu0 %v2243
  %6036 = vmatprep.subr.bf16.mxu0 %v2300
  %6037 = vmatpush1.bf16.msra.mxu0 %v2299
  %6038 = vmatprep.subr.bf16.mxu0 %v2356
  %6039 = vmatpush1.bf16.msra.mxu0 %v2355
  %6040 = vmatprep.subr.bf16.mxu0 0
  %6041 = vmatpush1.bf16.msra.mxu0 0
  %6042 = vmatprep.subr.bf16.mxu0 0
  %6043 = vmatpush1.bf16.msra.mxu0 0
  %6044 = vmatprep.subr.bf16.mxu0 0
  %6045 = vmatpush1.bf16.msra.mxu0 0
  %6046 = vmatprep.subr.bf16.mxu0 0
  %6047 = vmatpush1.bf16.msra.mxu0 0
  %6048 = vmatprep.subr.bf16.mxu0 0
  %6049 = vmatpush1.bf16.msra.mxu0 0
  %6050 = vmatprep.subr.bf16.mxu0 0
  %6051 = vmatpush1.bf16.msra.mxu0 0
  %6052 = vmatprep.subr.bf16.mxu0 0
  %6053 = vmatpush1.bf16.msra.mxu0 0
  %6054 = vmatprep.subr.bf16.mxu0 0
  %6055 = vmatpush1.bf16.msra.mxu0 0
  %6056 = vmatprep.mubr.bf16.mxu0 0
  %6057 = vmatmul.mubr.bf16.gmra.mrb[0].mxu0 %v553
  %v6058 = vpop.f32.mrb[0].mxu0
  %v6059 = vadd.f32 0.0, %v6058
  %v6060 = vpop.f32.mrb[0].mxu0
  %v6061 = vadd.f32 0.0, %v6060
  %v6062 = vpop.f32.mrb[0].mxu0
  %v6063 = vadd.f32 0.0, %v6062
  %v6064 = vpop.f32.mrb[0].mxu0
  %v6065 = vadd.f32 0.0, %v6064
  %6066 = vmatprep.mubr.bf16.mxu0 0
  %6067 = vmatmul.mubr.bf16.gmra.mrb[0].mxu0 %v554
  %v6068 = vpop.f32.mrb[0].mxu0
  %v6069 = vadd.f32 0.0, %v6068
  %v6070 = vpop.f32.mrb[0].mxu0
  %v6071 = vadd.f32 0.0, %v6070
  %v6072 = vpop.f32.mrb[0].mxu0
  %v6073 = vadd.f32 0.0, %v6072
  %v6074 = vpop.f32.mrb[0].mxu0
  %v6075 = vadd.f32 0.0, %v6074
  %6076 = vmatprep.mubr.bf16.mxu0 0
  %6077 = vmatmul.mubr.bf16.gmra.mrb[0].mxu0 %v555
  %v6078 = vpop.f32.mrb[0].mxu0
  %v6079 = vadd.f32 0.0, %v6078
  %v6080 = vpop.f32.mrb[0].mxu0
  %v6081 = vadd.f32 0.0, %v6080
  %v6082 = vpop.f32.mrb[0].mxu0
  %v6083 = vadd.f32 0.0, %v6082
  %v6084 = vpop.f32.mrb[0].mxu0
  %v6085 = vadd.f32 0.0, %v6084
  %6086 = vmatprep.mubr.bf16.mxu0 0
  %6087 = vmatmul.mubr.bf16.gmra.mrb[0].mxu0 %v556
  %v6088 = vpop.f32.mrb[0].mxu0
  %v6089 = vadd.f32 0.0, %v6088
  %v6090 = vpop.f32.mrb[0].mxu0
  %v6091 = vadd.f32 0.0, %v6090
  %v6092 = vpop.f32.mrb[0].mxu0
  %v6093 = vadd.f32 0.0, %v6092
  %v6094 = vpop.f32.mrb[0].mxu0
  %v6095 = vadd.f32 0.0, %v6094
  %6096 = vmatprep.mubr.bf16.mxu0 0
  %6097 = vmatmul.mubr.bf16.gmra.mrb[0].mxu0 %v557
  %v6098 = vpop.f32.mrb[0].mxu0
  %v6099 = vadd.f32 0.0, %v6098
  %v6100 = vpop.f32.mrb[0].mxu0
  %v6101 = vadd.f32 0.0, %v6100
  %v6102 = vpop.f32.mrb[0].mxu0
  %v6103 = vadd.f32 0.0, %v6102
  %v6104 = vpop.f32.mrb[0].mxu0
  %v6105 = vadd.f32 0.0, %v6104
  %6106 = vmatprep.mubr.bf16.mxu0 0
  %6107 = vmatmul.mubr.bf16.gmra.mrb[0].mxu0 %v558
  %v6108 = vpop.f32.mrb[0].mxu0
  %v6109 = vadd.f32 0.0, %v6108
  %v6110 = vpop.f32.mrb[0].mxu0
  %v6111 = vadd.f32 0.0, %v6110
  %v6112 = vpop.f32.mrb[0].mxu0
  %v6113 = vadd.f32 0.0, %v6112
  %v6114 = vpop.f32.mrb[0].mxu0
  %v6115 = vadd.f32 0.0, %v6114
  %6116 = vmatprep.mubr.bf16.mxu0 0
  %6117 = vmatmul.mubr.bf16.gmra.mrb[0].mxu0 %v559
  %v6118 = vpop.f32.mrb[0].mxu0
  %v6119 = vadd.f32 0.0, %v6118
  %v6120 = vpop.f32.mrb[0].mxu0
  %v6121 = vadd.f32 0.0, %v6120
  %v6122 = vpop.f32.mrb[0].mxu0
  %v6123 = vadd.f32 0.0, %v6122
  %v6124 = vpop.f32.mrb[0].mxu0
  %v6125 = vadd.f32 0.0, %v6124
  %6126 = vmatprep.mubr.bf16.mxu0 0
  %6127 = vmatmul.mubr.bf16.gmra.mrb[0].mxu0 %v560
  %v6128 = vpop.f32.mrb[0].mxu0
  %v6129 = vadd.f32 0.0, %v6128
  %v6130 = vpop.f32.mrb[0].mxu0
  %v6131 = vadd.f32 0.0, %v6130
  %v6132 = vpop.f32.mrb[0].mxu0
  %v6133 = vadd.f32 0.0, %v6132
  %v6134 = vpop.f32.mrb[0].mxu0
  %v6135 = vadd.f32 0.0, %v6134
  %6136 = vmatprep.mubr.bf16.mxu0 0
  %6137 = vmatmul.mubr.bf16.gmra.mrb[0].mxu0 %v561
  %v6138 = vpop.f32.mrb[0].mxu0
  %v6139 = vadd.f32 0.0, %v6138
  %v6140 = vpop.f32.mrb[0].mxu0
  %v6141 = vadd.f32 0.0, %v6140
  %v6142 = vpop.f32.mrb[0].mxu0
  %v6143 = vadd.f32 0.0, %v6142
  %v6144 = vpop.f32.mrb[0].mxu0
  %v6145 = vadd.f32 0.0, %v6144
  %6146 = vmatprep.mubr.bf16.mxu0 0
  %6147 = vmatmul.mubr.bf16.gmra.mrb[0].mxu0 %v562
  %v6148 = vpop.f32.mrb[0].mxu0
  %v6149 = vadd.f32 0.0, %v6148
  %v6150 = vpop.f32.mrb[0].mxu0
  %v6151 = vadd.f32 0.0, %v6150
  %v6152 = vpop.f32.mrb[0].mxu0
  %v6153 = vadd.f32 0.0, %v6152
  %v6154 = vpop.f32.mrb[0].mxu0
  %v6155 = vadd.f32 0.0, %v6154
  %6156 = vmatprep.mubr.bf16.mxu0 0
  %6157 = vmatmul.mubr.bf16.gmra.mrb[0].mxu0 %v563
  %v6158 = vpop.f32.mrb[0].mxu0
  %v6159 = vadd.f32 0.0, %v6158
  %v6160 = vpop.f32.mrb[0].mxu0
  %v6161 = vadd.f32 0.0, %v6160
  %v6162 = vpop.f32.mrb[0].mxu0
  %v6163 = vadd.f32 0.0, %v6162
  %v6164 = vpop.f32.mrb[0].mxu0
  %v6165 = vadd.f32 0.0, %v6164
  %6166 = vmatprep.mubr.bf16.mxu0 0
  %6167 = vmatmul.mubr.bf16.gmra.mrb[0].mxu0 %v564
  %v6168 = vpop.f32.mrb[0].mxu0
  %v6169 = vadd.f32 0.0, %v6168
  %v6170 = vpop.f32.mrb[0].mxu0
  %v6171 = vadd.f32 0.0, %v6170
  %v6172 = vpop.f32.mrb[0].mxu0
  %v6173 = vadd.f32 0.0, %v6172
  %v6174 = vpop.f32.mrb[0].mxu0
  %v6175 = vadd.f32 0.0, %v6174
  %6176 = vmatprep.mubr.bf16.mxu0 0
  %6177 = vmatmul.mubr.bf16.gmra.mrb[0].mxu0 %v565
  %v6178 = vpop.f32.mrb[0].mxu0
  %v6179 = vadd.f32 0.0, %v6178
  %v6180 = vpop.f32.mrb[0].mxu0
  %v6181 = vadd.f32 0.0, %v6180
  %v6182 = vpop.f32.mrb[0].mxu0
  %v6183 = vadd.f32 0.0, %v6182
  %v6184 = vpop.f32.mrb[0].mxu0
  %v6185 = vadd.f32 0.0, %v6184
  %6186 = vmatprep.mubr.bf16.mxu0 0
  %6187 = vmatmul.mubr.bf16.gmra.mrb[0].mxu0 %v566
  %v6188 = vpop.f32.mrb[0].mxu0
  %v6189 = vadd.f32 0.0, %v6188
  %v6190 = vpop.f32.mrb[0].mxu0
  %v6191 = vadd.f32 0.0, %v6190
  %v6192 = vpop.f32.mrb[0].mxu0
  %v6193 = vadd.f32 0.0, %v6192
  %v6194 = vpop.f32.mrb[0].mxu0
  %v6195 = vadd.f32 0.0, %v6194
  %6196 = vdwg.mxu0
  %6197 = vmatprep.subr.bf16.mxu0 %v1966
  %6198 = vmatpush1.bf16.msra.mxu0 %v1965
  %6199 = vmatprep.subr.bf16.mxu0 %v2022
  %6200 = vmatpush1.bf16.msra.mxu0 %v2021
  %6201 = vmatprep.subr.bf16.mxu0 %v2078
  %6202 = vmatpush1.bf16.msra.mxu0 %v2077
  %6203 = vmatprep.subr.bf16.mxu0 %v2134
  %6204 = vmatpush1.bf16.msra.mxu0 %v2133
  %6205 = vmatprep.subr.bf16.mxu0 %v2190
  %6206 = vmatpush1.bf16.msra.mxu0 %v2189
  %6207 = vmatprep.subr.bf16.mxu0 %v2246
  %6208 = vmatpush1.bf16.msra.mxu0 %v2245
  %6209 = vmatprep.subr.bf16.mxu0 %v2302
  %6210 = vmatpush1.bf16.msra.mxu0 %v2301
  %6211 = vmatprep.subr.bf16.mxu0 %v2358
  %6212 = vmatpush1.bf16.msra.mxu0 %v2357
  %6213 = vmatprep.subr.bf16.mxu0 0
  %6214 = vmatpush1.bf16.msra.mxu0 0
  %6215 = vmatprep.subr.bf16.mxu0 0
  %6216 = vmatpush1.bf16.msra.mxu0 0
  %6217 = vmatprep.subr.bf16.mxu0 0
  %6218 = vmatpush1.bf16.msra.mxu0 0
  %6219 = vmatprep.subr.bf16.mxu0 0
  %6220 = vmatpush1.bf16.msra.mxu0 0
  %6221 = vmatprep.subr.bf16.mxu0 0
  %6222 = vmatpush1.bf16.msra.mxu0 0
  %6223 = vmatprep.subr.bf16.mxu0 0
  %6224 = vmatpush1.bf16.msra.mxu0 0
  %6225 = vmatprep.subr.bf16.mxu0 0
  %6226 = vmatpush1.bf16.msra.mxu0 0
  %6227 = vmatprep.subr.bf16.mxu0 0
  %6228 = vmatpush1.bf16.msra.mxu0 0
  %6229 = vmatprep.mubr.bf16.mxu0 0
  %6230 = vmatmul.mubr.bf16.gmra.mrb[0].mxu0 %v553
  %v6231 = vpop.f32.mrb[0].mxu0
  %v6232 = vadd.f32 0.0, %v6231
  %v6233 = vpop.f32.mrb[0].mxu0
  %v6234 = vadd.f32 0.0, %v6233
  %v6235 = vpop.f32.mrb[0].mxu0
  %v6236 = vadd.f32 0.0, %v6235
  %v6237 = vpop.f32.mrb[0].mxu0
  %v6238 = vadd.f32 0.0, %v6237
  %6239 = vmatprep.mubr.bf16.mxu0 0
  %6240 = vmatmul.mubr.bf16.gmra.mrb[0].mxu0 %v554
  %v6241 = vpop.f32.mrb[0].mxu0
  %v6242 = vadd.f32 0.0, %v6241
  %v6243 = vpop.f32.mrb[0].mxu0
  %v6244 = vadd.f32 0.0, %v6243
  %v6245 = vpop.f32.mrb[0].mxu0
  %v6246 = vadd.f32 0.0, %v6245
  %v6247 = vpop.f32.mrb[0].mxu0
  %v6248 = vadd.f32 0.0, %v6247
  %6249 = vmatprep.mubr.bf16.mxu0 0
  %6250 = vmatmul.mubr.bf16.gmra.mrb[0].mxu0 %v555
  %v6251 = vpop.f32.mrb[0].mxu0
  %v6252 = vadd.f32 0.0, %v6251
  %v6253 = vpop.f32.mrb[0].mxu0
  %v6254 = vadd.f32 0.0, %v6253
  %v6255 = vpop.f32.mrb[0].mxu0
  %v6256 = vadd.f32 0.0, %v6255
  %v6257 = vpop.f32.mrb[0].mxu0
  %v6258 = vadd.f32 0.0, %v6257
  %6259 = vmatprep.mubr.bf16.mxu0 0
  %6260 = vmatmul.mubr.bf16.gmra.mrb[0].mxu0 %v556
  %v6261 = vpop.f32.mrb[0].mxu0
  %v6262 = vadd.f32 0.0, %v6261
  %v6263 = vpop.f32.mrb[0].mxu0
  %v6264 = vadd.f32 0.0, %v6263
  %v6265 = vpop.f32.mrb[0].mxu0
  %v6266 = vadd.f32 0.0, %v6265
  %v6267 = vpop.f32.mrb[0].mxu0
  %v6268 = vadd.f32 0.0, %v6267
  %6269 = vmatprep.mubr.bf16.mxu0 0
  %6270 = vmatmul.mubr.bf16.gmra.mrb[0].mxu0 %v557
  %v6271 = vpop.f32.mrb[0].mxu0
  %v6272 = vadd.f32 0.0, %v6271
  %v6273 = vpop.f32.mrb[0].mxu0
  %v6274 = vadd.f32 0.0, %v6273
  %v6275 = vpop.f32.mrb[0].mxu0
  %v6276 = vadd.f32 0.0, %v6275
  %v6277 = vpop.f32.mrb[0].mxu0
  %v6278 = vadd.f32 0.0, %v6277
  %6279 = vmatprep.mubr.bf16.mxu0 0
  %6280 = vmatmul.mubr.bf16.gmra.mrb[0].mxu0 %v558
  %v6281 = vpop.f32.mrb[0].mxu0
  %v6282 = vadd.f32 0.0, %v6281
  %v6283 = vpop.f32.mrb[0].mxu0
  %v6284 = vadd.f32 0.0, %v6283
  %v6285 = vpop.f32.mrb[0].mxu0
  %v6286 = vadd.f32 0.0, %v6285
  %v6287 = vpop.f32.mrb[0].mxu0
  %v6288 = vadd.f32 0.0, %v6287
  %6289 = vmatprep.mubr.bf16.mxu0 0
  %6290 = vmatmul.mubr.bf16.gmra.mrb[0].mxu0 %v559
  %v6291 = vpop.f32.mrb[0].mxu0
  %v6292 = vadd.f32 0.0, %v6291
  %v6293 = vpop.f32.mrb[0].mxu0
  %v6294 = vadd.f32 0.0, %v6293
  %v6295 = vpop.f32.mrb[0].mxu0
  %v6296 = vadd.f32 0.0, %v6295
  %v6297 = vpop.f32.mrb[0].mxu0
  %v6298 = vadd.f32 0.0, %v6297
  %6299 = vmatprep.mubr.bf16.mxu0 0
  %6300 = vmatmul.mubr.bf16.gmra.mrb[0].mxu0 %v560
  %v6301 = vpop.f32.mrb[0].mxu0
  %v6302 = vadd.f32 0.0, %v6301
  %v6303 = vpop.f32.mrb[0].mxu0
  %v6304 = vadd.f32 0.0, %v6303
  %v6305 = vpop.f32.mrb[0].mxu0
  %v6306 = vadd.f32 0.0, %v6305
  %v6307 = vpop.f32.mrb[0].mxu0
  %v6308 = vadd.f32 0.0, %v6307
  %6309 = vmatprep.mubr.bf16.mxu0 0
  %6310 = vmatmul.mubr.bf16.gmra.mrb[0].mxu0 %v561
  %v6311 = vpop.f32.mrb[0].mxu0
  %v6312 = vadd.f32 0.0, %v6311
  %v6313 = vpop.f32.mrb[0].mxu0
  %v6314 = vadd.f32 0.0, %v6313
  %v6315 = vpop.f32.mrb[0].mxu0
  %v6316 = vadd.f32 0.0, %v6315
  %v6317 = vpop.f32.mrb[0].mxu0
  %v6318 = vadd.f32 0.0, %v6317
  %6319 = vmatprep.mubr.bf16.mxu0 0
  %6320 = vmatmul.mubr.bf16.gmra.mrb[0].mxu0 %v562
  %v6321 = vpop.f32.mrb[0].mxu0
  %v6322 = vadd.f32 0.0, %v6321
  %v6323 = vpop.f32.mrb[0].mxu0
  %v6324 = vadd.f32 0.0, %v6323
  %v6325 = vpop.f32.mrb[0].mxu0
  %v6326 = vadd.f32 0.0, %v6325
  %v6327 = vpop.f32.mrb[0].mxu0
  %v6328 = vadd.f32 0.0, %v6327
  %6329 = vmatprep.mubr.bf16.mxu0 0
  %6330 = vmatmul.mubr.bf16.gmra.mrb[0].mxu0 %v563
  %v6331 = vpop.f32.mrb[0].mxu0
  %v6332 = vadd.f32 0.0, %v6331
  %v6333 = vpop.f32.mrb[0].mxu0
  %v6334 = vadd.f32 0.0, %v6333
  %v6335 = vpop.f32.mrb[0].mxu0
  %v6336 = vadd.f32 0.0, %v6335
  %v6337 = vpop.f32.mrb[0].mxu0
  %v6338 = vadd.f32 0.0, %v6337
  %6339 = vmatprep.mubr.bf16.mxu0 0
  %6340 = vmatmul.mubr.bf16.gmra.mrb[0].mxu0 %v564
  %v6341 = vpop.f32.mrb[0].mxu0
  %v6342 = vadd.f32 0.0, %v6341
  %v6343 = vpop.f32.mrb[0].mxu0
  %v6344 = vadd.f32 0.0, %v6343
  %v6345 = vpop.f32.mrb[0].mxu0
  %v6346 = vadd.f32 0.0, %v6345
  %v6347 = vpop.f32.mrb[0].mxu0
  %v6348 = vadd.f32 0.0, %v6347
  %6349 = vmatprep.mubr.bf16.mxu0 0
  %6350 = vmatmul.mubr.bf16.gmra.mrb[0].mxu0 %v565
  %v6351 = vpop.f32.mrb[0].mxu0
  %v6352 = vadd.f32 0.0, %v6351
  %v6353 = vpop.f32.mrb[0].mxu0
  %v6354 = vadd.f32 0.0, %v6353
  %v6355 = vpop.f32.mrb[0].mxu0
  %v6356 = vadd.f32 0.0, %v6355
  %v6357 = vpop.f32.mrb[0].mxu0
  %v6358 = vadd.f32 0.0, %v6357
  %6359 = vmatprep.mubr.bf16.mxu0 0
  %6360 = vmatmul.mubr.bf16.gmra.mrb[0].mxu0 %v566
  %v6361 = vpop.f32.mrb[0].mxu0
  %v6362 = vadd.f32 0.0, %v6361
  %v6363 = vpop.f32.mrb[0].mxu0
  %v6364 = vadd.f32 0.0, %v6363
  %v6365 = vpop.f32.mrb[0].mxu0
  %v6366 = vadd.f32 0.0, %v6365
  %v6367 = vpop.f32.mrb[0].mxu0
  %v6368 = vadd.f32 0.0, %v6367
  %6369 = vdwg.mxu0
  %6370 = vmatprep.subr.bf16.mxu0 %v1968
  %6371 = vmatpush1.bf16.msra.mxu0 %v1967
  %6372 = vmatprep.subr.bf16.mxu0 %v2024
  %6373 = vmatpush1.bf16.msra.mxu0 %v2023
  %6374 = vmatprep.subr.bf16.mxu0 %v2080
  %6375 = vmatpush1.bf16.msra.mxu0 %v2079
  %6376 = vmatprep.subr.bf16.mxu0 %v2136
  %6377 = vmatpush1.bf16.msra.mxu0 %v2135
  %6378 = vmatprep.subr.bf16.mxu0 %v2192
  %6379 = vmatpush1.bf16.msra.mxu0 %v2191
  %6380 = vmatprep.subr.bf16.mxu0 %v2248
  %6381 = vmatpush1.bf16.msra.mxu0 %v2247
  %6382 = vmatprep.subr.bf16.mxu0 %v2304
  %6383 = vmatpush1.bf16.msra.mxu0 %v2303
  %6384 = vmatprep.subr.bf16.mxu0 %v2360
  %6385 = vmatpush1.bf16.msra.mxu0 %v2359
  %6386 = vmatprep.subr.bf16.mxu0 0
  %6387 = vmatpush1.bf16.msra.mxu0 0
  %6388 = vmatprep.subr.bf16.mxu0 0
  %6389 = vmatpush1.bf16.msra.mxu0 0
  %6390 = vmatprep.subr.bf16.mxu0 0
  %6391 = vmatpush1.bf16.msra.mxu0 0
  %6392 = vmatprep.subr.bf16.mxu0 0
  %6393 = vmatpush1.bf16.msra.mxu0 0
  %6394 = vmatprep.subr.bf16.mxu0 0
  %6395 = vmatpush1.bf16.msra.mxu0 0
  %6396 = vmatprep.subr.bf16.mxu0 0
  %6397 = vmatpush1.bf16.msra.mxu0 0
  %6398 = vmatprep.subr.bf16.mxu0 0
  %6399 = vmatpush1.bf16.msra.mxu0 0
  %6400 = vmatprep.subr.bf16.mxu0 0
  %6401 = vmatpush1.bf16.msra.mxu0 0
  %6402 = vmatprep.mubr.bf16.mxu0 0
  %6403 = vmatmul.mubr.bf16.gmra.mrb[0].mxu0 %v553
  %v6404 = vpop.f32.mrb[0].mxu0
  %v6405 = vadd.f32 0.0, %v6404
  %v6406 = vpop.f32.mrb[0].mxu0
  %v6407 = vadd.f32 0.0, %v6406
  %v6408 = vpop.f32.mrb[0].mxu0
  %v6409 = vadd.f32 0.0, %v6408
  %v6410 = vpop.f32.mrb[0].mxu0
  %v6411 = vadd.f32 0.0, %v6410
  %6412 = vmatprep.mubr.bf16.mxu0 0
  %6413 = vmatmul.mubr.bf16.gmra.mrb[0].mxu0 %v554
  %v6414 = vpop.f32.mrb[0].mxu0
  %v6415 = vadd.f32 0.0, %v6414
  %v6416 = vpop.f32.mrb[0].mxu0
  %v6417 = vadd.f32 0.0, %v6416
  %v6418 = vpop.f32.mrb[0].mxu0
  %v6419 = vadd.f32 0.0, %v6418
  %v6420 = vpop.f32.mrb[0].mxu0
  %v6421 = vadd.f32 0.0, %v6420
  %6422 = vmatprep.mubr.bf16.mxu0 0
  %6423 = vmatmul.mubr.bf16.gmra.mrb[0].mxu0 %v555
  %v6424 = vpop.f32.mrb[0].mxu0
  %v6425 = vadd.f32 0.0, %v6424
  %v6426 = vpop.f32.mrb[0].mxu0
  %v6427 = vadd.f32 0.0, %v6426
  %v6428 = vpop.f32.mrb[0].mxu0
  %v6429 = vadd.f32 0.0, %v6428
  %v6430 = vpop.f32.mrb[0].mxu0
  %v6431 = vadd.f32 0.0, %v6430
  %6432 = vmatprep.mubr.bf16.mxu0 0
  %6433 = vmatmul.mubr.bf16.gmra.mrb[0].mxu0 %v556
  %v6434 = vpop.f32.mrb[0].mxu0
  %v6435 = vadd.f32 0.0, %v6434
  %v6436 = vpop.f32.mrb[0].mxu0
  %v6437 = vadd.f32 0.0, %v6436
  %v6438 = vpop.f32.mrb[0].mxu0
  %v6439 = vadd.f32 0.0, %v6438
  %v6440 = vpop.f32.mrb[0].mxu0
  %v6441 = vadd.f32 0.0, %v6440
  %6442 = vmatprep.mubr.bf16.mxu0 0
  %6443 = vmatmul.mubr.bf16.gmra.mrb[0].mxu0 %v557
  %v6444 = vpop.f32.mrb[0].mxu0
  %v6445 = vadd.f32 0.0, %v6444
  %v6446 = vpop.f32.mrb[0].mxu0
  %v6447 = vadd.f32 0.0, %v6446
  %v6448 = vpop.f32.mrb[0].mxu0
  %v6449 = vadd.f32 0.0, %v6448
  %v6450 = vpop.f32.mrb[0].mxu0
  %v6451 = vadd.f32 0.0, %v6450
  %6452 = vmatprep.mubr.bf16.mxu0 0
  %6453 = vmatmul.mubr.bf16.gmra.mrb[0].mxu0 %v558
  %v6454 = vpop.f32.mrb[0].mxu0
  %v6455 = vadd.f32 0.0, %v6454
  %v6456 = vpop.f32.mrb[0].mxu0
  %v6457 = vadd.f32 0.0, %v6456
  %v6458 = vpop.f32.mrb[0].mxu0
  %v6459 = vadd.f32 0.0, %v6458
  %v6460 = vpop.f32.mrb[0].mxu0
  %v6461 = vadd.f32 0.0, %v6460
  %6462 = vmatprep.mubr.bf16.mxu0 0
  %6463 = vmatmul.mubr.bf16.gmra.mrb[0].mxu0 %v559
  %v6464 = vpop.f32.mrb[0].mxu0
  %v6465 = vadd.f32 0.0, %v6464
  %v6466 = vpop.f32.mrb[0].mxu0
  %v6467 = vadd.f32 0.0, %v6466
  %v6468 = vpop.f32.mrb[0].mxu0
  %v6469 = vadd.f32 0.0, %v6468
  %v6470 = vpop.f32.mrb[0].mxu0
  %v6471 = vadd.f32 0.0, %v6470
  %6472 = vmatprep.mubr.bf16.mxu0 0
  %6473 = vmatmul.mubr.bf16.gmra.mrb[0].mxu0 %v560
  %v6474 = vpop.f32.mrb[0].mxu0
  %v6475 = vadd.f32 0.0, %v6474
  %v6476 = vpop.f32.mrb[0].mxu0
  %v6477 = vadd.f32 0.0, %v6476
  %v6478 = vpop.f32.mrb[0].mxu0
  %v6479 = vadd.f32 0.0, %v6478
  %v6480 = vpop.f32.mrb[0].mxu0
  %v6481 = vadd.f32 0.0, %v6480
  %6482 = vmatprep.mubr.bf16.mxu0 0
  %6483 = vmatmul.mubr.bf16.gmra.mrb[0].mxu0 %v561
  %v6484 = vpop.f32.mrb[0].mxu0
  %v6485 = vadd.f32 0.0, %v6484
  %v6486 = vpop.f32.mrb[0].mxu0
  %v6487 = vadd.f32 0.0, %v6486
  %v6488 = vpop.f32.mrb[0].mxu0
  %v6489 = vadd.f32 0.0, %v6488
  %v6490 = vpop.f32.mrb[0].mxu0
  %v6491 = vadd.f32 0.0, %v6490
  %6492 = vmatprep.mubr.bf16.mxu0 0
  %6493 = vmatmul.mubr.bf16.gmra.mrb[0].mxu0 %v562
  %v6494 = vpop.f32.mrb[0].mxu0
  %v6495 = vadd.f32 0.0, %v6494
  %v6496 = vpop.f32.mrb[0].mxu0
  %v6497 = vadd.f32 0.0, %v6496
  %v6498 = vpop.f32.mrb[0].mxu0
  %v6499 = vadd.f32 0.0, %v6498
  %v6500 = vpop.f32.mrb[0].mxu0
  %v6501 = vadd.f32 0.0, %v6500
  %6502 = vmatprep.mubr.bf16.mxu0 0
  %6503 = vmatmul.mubr.bf16.gmra.mrb[0].mxu0 %v563
  %v6504 = vpop.f32.mrb[0].mxu0
  %v6505 = vadd.f32 0.0, %v6504
  %v6506 = vpop.f32.mrb[0].mxu0
  %v6507 = vadd.f32 0.0, %v6506
  %v6508 = vpop.f32.mrb[0].mxu0
  %v6509 = vadd.f32 0.0, %v6508
  %v6510 = vpop.f32.mrb[0].mxu0
  %v6511 = vadd.f32 0.0, %v6510
  %6512 = vmatprep.mubr.bf16.mxu0 0
  %6513 = vmatmul.mubr.bf16.gmra.mrb[0].mxu0 %v564
  %v6514 = vpop.f32.mrb[0].mxu0
  %v6515 = vadd.f32 0.0, %v6514
  %v6516 = vpop.f32.mrb[0].mxu0
  %v6517 = vadd.f32 0.0, %v6516
  %v6518 = vpop.f32.mrb[0].mxu0
  %v6519 = vadd.f32 0.0, %v6518
  %v6520 = vpop.f32.mrb[0].mxu0
  %v6521 = vadd.f32 0.0, %v6520
  %6522 = vmatprep.mubr.bf16.mxu0 0
  %6523 = vmatmul.mubr.bf16.gmra.mrb[0].mxu0 %v565
  %v6524 = vpop.f32.mrb[0].mxu0
  %v6525 = vadd.f32 0.0, %v6524
  %v6526 = vpop.f32.mrb[0].mxu0
  %v6527 = vadd.f32 0.0, %v6526
  %v6528 = vpop.f32.mrb[0].mxu0
  %v6529 = vadd.f32 0.0, %v6528
  %v6530 = vpop.f32.mrb[0].mxu0
  %v6531 = vadd.f32 0.0, %v6530
  %6532 = vmatprep.mubr.bf16.mxu0 0
  %6533 = vmatmul.mubr.bf16.gmra.mrb[0].mxu0 %v566
  %v6534 = vpop.f32.mrb[0].mxu0
  %v6535 = vadd.f32 0.0, %v6534
  %v6536 = vpop.f32.mrb[0].mxu0
  %v6537 = vadd.f32 0.0, %v6536
  %v6538 = vpop.f32.mrb[0].mxu0
  %v6539 = vadd.f32 0.0, %v6538
  %v6540 = vpop.f32.mrb[0].mxu0
  %v6541 = vadd.f32 0.0, %v6540
  %6542 = vdwg.mxu0
  %6543 = vmatprep.subr.bf16.mxu0 %v1970
  %6544 = vmatpush1.bf16.msra.mxu0 %v1969
  %6545 = vmatprep.subr.bf16.mxu0 %v2026
  %6546 = vmatpush1.bf16.msra.mxu0 %v2025
  %6547 = vmatprep.subr.bf16.mxu0 %v2082
  %6548 = vmatpush1.bf16.msra.mxu0 %v2081
  %6549 = vmatprep.subr.bf16.mxu0 %v2138
  %6550 = vmatpush1.bf16.msra.mxu0 %v2137
  %6551 = vmatprep.subr.bf16.mxu0 %v2194
  %6552 = vmatpush1.bf16.msra.mxu0 %v2193
  %6553 = vmatprep.subr.bf16.mxu0 %v2250
  %6554 = vmatpush1.bf16.msra.mxu0 %v2249
  %6555 = vmatprep.subr.bf16.mxu0 %v2306
  %6556 = vmatpush1.bf16.msra.mxu0 %v2305
  %6557 = vmatprep.subr.bf16.mxu0 %v2362
  %6558 = vmatpush1.bf16.msra.mxu0 %v2361
  %6559 = vmatprep.subr.bf16.mxu0 0
  %6560 = vmatpush1.bf16.msra.mxu0 0
  %6561 = vmatprep.subr.bf16.mxu0 0
  %6562 = vmatpush1.bf16.msra.mxu0 0
  %6563 = vmatprep.subr.bf16.mxu0 0
  %6564 = vmatpush1.bf16.msra.mxu0 0
  %6565 = vmatprep.subr.bf16.mxu0 0
  %6566 = vmatpush1.bf16.msra.mxu0 0
  %6567 = vmatprep.subr.bf16.mxu0 0
  %6568 = vmatpush1.bf16.msra.mxu0 0
  %6569 = vmatprep.subr.bf16.mxu0 0
  %6570 = vmatpush1.bf16.msra.mxu0 0
  %6571 = vmatprep.subr.bf16.mxu0 0
  %6572 = vmatpush1.bf16.msra.mxu0 0
  %6573 = vmatprep.subr.bf16.mxu0 0
  %6574 = vmatpush1.bf16.msra.mxu0 0
  %6575 = vmatprep.mubr.bf16.mxu0 0
  %6576 = vmatmul.mubr.bf16.gmra.mrb[0].mxu0 %v553
  %v6577 = vpop.f32.mrb[0].mxu0
  %v6578 = vadd.f32 0.0, %v6577
  %v6579 = vpop.f32.mrb[0].mxu0
  %v6580 = vadd.f32 0.0, %v6579
  %v6581 = vpop.f32.mrb[0].mxu0
  %v6582 = vadd.f32 0.0, %v6581
  %v6583 = vpop.f32.mrb[0].mxu0
  %v6584 = vadd.f32 0.0, %v6583
  %6585 = vmatprep.mubr.bf16.mxu0 0
  %6586 = vmatmul.mubr.bf16.gmra.mrb[0].mxu0 %v554
  %v6587 = vpop.f32.mrb[0].mxu0
  %v6588 = vadd.f32 0.0, %v6587
  %v6589 = vpop.f32.mrb[0].mxu0
  %v6590 = vadd.f32 0.0, %v6589
  %v6591 = vpop.f32.mrb[0].mxu0
  %v6592 = vadd.f32 0.0, %v6591
  %v6593 = vpop.f32.mrb[0].mxu0
  %v6594 = vadd.f32 0.0, %v6593
  %6595 = vmatprep.mubr.bf16.mxu0 0
  %6596 = vmatmul.mubr.bf16.gmra.mrb[0].mxu0 %v555
  %v6597 = vpop.f32.mrb[0].mxu0
  %v6598 = vadd.f32 0.0, %v6597
  %v6599 = vpop.f32.mrb[0].mxu0
  %v6600 = vadd.f32 0.0, %v6599
  %v6601 = vpop.f32.mrb[0].mxu0
  %v6602 = vadd.f32 0.0, %v6601
  %v6603 = vpop.f32.mrb[0].mxu0
  %v6604 = vadd.f32 0.0, %v6603
  %6605 = vmatprep.mubr.bf16.mxu0 0
  %6606 = vmatmul.mubr.bf16.gmra.mrb[0].mxu0 %v556
  %v6607 = vpop.f32.mrb[0].mxu0
  %v6608 = vadd.f32 0.0, %v6607
  %v6609 = vpop.f32.mrb[0].mxu0
  %v6610 = vadd.f32 0.0, %v6609
  %v6611 = vpop.f32.mrb[0].mxu0
  %v6612 = vadd.f32 0.0, %v6611
  %v6613 = vpop.f32.mrb[0].mxu0
  %v6614 = vadd.f32 0.0, %v6613
  %6615 = vmatprep.mubr.bf16.mxu0 0
  %6616 = vmatmul.mubr.bf16.gmra.mrb[0].mxu0 %v557
  %v6617 = vpop.f32.mrb[0].mxu0
  %v6618 = vadd.f32 0.0, %v6617
  %v6619 = vpop.f32.mrb[0].mxu0
  %v6620 = vadd.f32 0.0, %v6619
  %v6621 = vpop.f32.mrb[0].mxu0
  %v6622 = vadd.f32 0.0, %v6621
  %v6623 = vpop.f32.mrb[0].mxu0
  %v6624 = vadd.f32 0.0, %v6623
  %6625 = vmatprep.mubr.bf16.mxu0 0
  %6626 = vmatmul.mubr.bf16.gmra.mrb[0].mxu0 %v558
  %v6627 = vpop.f32.mrb[0].mxu0
  %v6628 = vadd.f32 0.0, %v6627
  %v6629 = vpop.f32.mrb[0].mxu0
  %v6630 = vadd.f32 0.0, %v6629
  %v6631 = vpop.f32.mrb[0].mxu0
  %v6632 = vadd.f32 0.0, %v6631
  %v6633 = vpop.f32.mrb[0].mxu0
  %v6634 = vadd.f32 0.0, %v6633
  %6635 = vmatprep.mubr.bf16.mxu0 0
  %6636 = vmatmul.mubr.bf16.gmra.mrb[0].mxu0 %v559
  %v6637 = vpop.f32.mrb[0].mxu0
  %v6638 = vadd.f32 0.0, %v6637
  %v6639 = vpop.f32.mrb[0].mxu0
  %v6640 = vadd.f32 0.0, %v6639
  %v6641 = vpop.f32.mrb[0].mxu0
  %v6642 = vadd.f32 0.0, %v6641
  %v6643 = vpop.f32.mrb[0].mxu0
  %v6644 = vadd.f32 0.0, %v6643
  %6645 = vmatprep.mubr.bf16.mxu0 0
  %6646 = vmatmul.mubr.bf16.gmra.mrb[0].mxu0 %v560
  %v6647 = vpop.f32.mrb[0].mxu0
  %v6648 = vadd.f32 0.0, %v6647
  %v6649 = vpop.f32.mrb[0].mxu0
  %v6650 = vadd.f32 0.0, %v6649
  %v6651 = vpop.f32.mrb[0].mxu0
  %v6652 = vadd.f32 0.0, %v6651
  %v6653 = vpop.f32.mrb[0].mxu0
  %v6654 = vadd.f32 0.0, %v6653
  %6655 = vmatprep.mubr.bf16.mxu0 0
  %6656 = vmatmul.mubr.bf16.gmra.mrb[0].mxu0 %v561
  %v6657 = vpop.f32.mrb[0].mxu0
  %v6658 = vadd.f32 0.0, %v6657
  %v6659 = vpop.f32.mrb[0].mxu0
  %v6660 = vadd.f32 0.0, %v6659
  %v6661 = vpop.f32.mrb[0].mxu0
  %v6662 = vadd.f32 0.0, %v6661
  %v6663 = vpop.f32.mrb[0].mxu0
  %v6664 = vadd.f32 0.0, %v6663
  %6665 = vmatprep.mubr.bf16.mxu0 0
  %6666 = vmatmul.mubr.bf16.gmra.mrb[0].mxu0 %v562
  %v6667 = vpop.f32.mrb[0].mxu0
  %v6668 = vadd.f32 0.0, %v6667
  %v6669 = vpop.f32.mrb[0].mxu0
  %v6670 = vadd.f32 0.0, %v6669
  %v6671 = vpop.f32.mrb[0].mxu0
  %v6672 = vadd.f32 0.0, %v6671
  %v6673 = vpop.f32.mrb[0].mxu0
  %v6674 = vadd.f32 0.0, %v6673
  %6675 = vmatprep.mubr.bf16.mxu0 0
  %6676 = vmatmul.mubr.bf16.gmra.mrb[0].mxu0 %v563
  %v6677 = vpop.f32.mrb[0].mxu0
  %v6678 = vadd.f32 0.0, %v6677
  %v6679 = vpop.f32.mrb[0].mxu0
  %v6680 = vadd.f32 0.0, %v6679
  %v6681 = vpop.f32.mrb[0].mxu0
  %v6682 = vadd.f32 0.0, %v6681
  %v6683 = vpop.f32.mrb[0].mxu0
  %v6684 = vadd.f32 0.0, %v6683
  %6685 = vmatprep.mubr.bf16.mxu0 0
  %6686 = vmatmul.mubr.bf16.gmra.mrb[0].mxu0 %v564
  %v6687 = vpop.f32.mrb[0].mxu0
  %v6688 = vadd.f32 0.0, %v6687
  %v6689 = vpop.f32.mrb[0].mxu0
  %v6690 = vadd.f32 0.0, %v6689
  %v6691 = vpop.f32.mrb[0].mxu0
  %v6692 = vadd.f32 0.0, %v6691
  %v6693 = vpop.f32.mrb[0].mxu0
  %v6694 = vadd.f32 0.0, %v6693
  %6695 = vmatprep.mubr.bf16.mxu0 0
  %6696 = vmatmul.mubr.bf16.gmra.mrb[0].mxu0 %v565
  %v6697 = vpop.f32.mrb[0].mxu0
  %v6698 = vadd.f32 0.0, %v6697
  %v6699 = vpop.f32.mrb[0].mxu0
  %v6700 = vadd.f32 0.0, %v6699
  %v6701 = vpop.f32.mrb[0].mxu0
  %v6702 = vadd.f32 0.0, %v6701
  %v6703 = vpop.f32.mrb[0].mxu0
  %v6704 = vadd.f32 0.0, %v6703
  %6705 = vmatprep.mubr.bf16.mxu0 0
  %6706 = vmatmul.mubr.bf16.gmra.mrb[0].mxu0 %v566
  %v6707 = vpop.f32.mrb[0].mxu0
  %v6708 = vadd.f32 0.0, %v6707
  %v6709 = vpop.f32.mrb[0].mxu0
  %v6710 = vadd.f32 0.0, %v6709
  %v6711 = vpop.f32.mrb[0].mxu0
  %v6712 = vadd.f32 0.0, %v6711
  %v6713 = vpop.f32.mrb[0].mxu0
  %v6714 = vadd.f32 0.0, %v6713
  %6715 = vdwg.mxu0
  %6716 = vmatprep.subr.bf16.mxu0 %v1972
  %6717 = vmatpush1.bf16.msra.mxu0 %v1971
  %6718 = vmatprep.subr.bf16.mxu0 %v2028
  %6719 = vmatpush1.bf16.msra.mxu0 %v2027
  %6720 = vmatprep.subr.bf16.mxu0 %v2084
  %6721 = vmatpush1.bf16.msra.mxu0 %v2083
  %6722 = vmatprep.subr.bf16.mxu0 %v2140
  %6723 = vmatpush1.bf16.msra.mxu0 %v2139
  %6724 = vmatprep.subr.bf16.mxu0 %v2196
  %6725 = vmatpush1.bf16.msra.mxu0 %v2195
  %6726 = vmatprep.subr.bf16.mxu0 %v2252
  %6727 = vmatpush1.bf16.msra.mxu0 %v2251
  %6728 = vmatprep.subr.bf16.mxu0 %v2308
  %6729 = vmatpush1.bf16.msra.mxu0 %v2307
  %6730 = vmatprep.subr.bf16.mxu0 %v2364
  %6731 = vmatpush1.bf16.msra.mxu0 %v2363
  %6732 = vmatprep.subr.bf16.mxu0 0
  %6733 = vmatpush1.bf16.msra.mxu0 0
  %6734 = vmatprep.subr.bf16.mxu0 0
  %6735 = vmatpush1.bf16.msra.mxu0 0
  %6736 = vmatprep.subr.bf16.mxu0 0
  %6737 = vmatpush1.bf16.msra.mxu0 0
  %6738 = vmatprep.subr.bf16.mxu0 0
  %6739 = vmatpush1.bf16.msra.mxu0 0
  %6740 = vmatprep.subr.bf16.mxu0 0
  %6741 = vmatpush1.bf16.msra.mxu0 0
  %6742 = vmatprep.subr.bf16.mxu0 0
  %6743 = vmatpush1.bf16.msra.mxu0 0
  %6744 = vmatprep.subr.bf16.mxu0 0
  %6745 = vmatpush1.bf16.msra.mxu0 0
  %6746 = vmatprep.subr.bf16.mxu0 0
  %6747 = vmatpush1.bf16.msra.mxu0 0
  %6748 = vmatprep.mubr.bf16.mxu0 0
  %6749 = vmatmul.mubr.bf16.gmra.mrb[0].mxu0 %v553
  %v6750 = vpop.f32.mrb[0].mxu0
  %v6751 = vadd.f32 0.0, %v6750
  %v6752 = vpop.f32.mrb[0].mxu0
  %v6753 = vadd.f32 0.0, %v6752
  %v6754 = vpop.f32.mrb[0].mxu0
  %v6755 = vadd.f32 0.0, %v6754
  %v6756 = vpop.f32.mrb[0].mxu0
  %v6757 = vadd.f32 0.0, %v6756
  %6758 = vmatprep.mubr.bf16.mxu0 0
  %6759 = vmatmul.mubr.bf16.gmra.mrb[0].mxu0 %v554
  %v6760 = vpop.f32.mrb[0].mxu0
  %v6761 = vadd.f32 0.0, %v6760
  %v6762 = vpop.f32.mrb[0].mxu0
  %v6763 = vadd.f32 0.0, %v6762
  %v6764 = vpop.f32.mrb[0].mxu0
  %v6765 = vadd.f32 0.0, %v6764
  %v6766 = vpop.f32.mrb[0].mxu0
  %v6767 = vadd.f32 0.0, %v6766
  %6768 = vmatprep.mubr.bf16.mxu0 0
  %6769 = vmatmul.mubr.bf16.gmra.mrb[0].mxu0 %v555
  %v6770 = vpop.f32.mrb[0].mxu0
  %v6771 = vadd.f32 0.0, %v6770
  %v6772 = vpop.f32.mrb[0].mxu0
  %v6773 = vadd.f32 0.0, %v6772
  %v6774 = vpop.f32.mrb[0].mxu0
  %v6775 = vadd.f32 0.0, %v6774
  %v6776 = vpop.f32.mrb[0].mxu0
  %v6777 = vadd.f32 0.0, %v6776
  %6778 = vmatprep.mubr.bf16.mxu0 0
  %6779 = vmatmul.mubr.bf16.gmra.mrb[0].mxu0 %v556
  %v6780 = vpop.f32.mrb[0].mxu0
  %v6781 = vadd.f32 0.0, %v6780
  %v6782 = vpop.f32.mrb[0].mxu0
  %v6783 = vadd.f32 0.0, %v6782
  %v6784 = vpop.f32.mrb[0].mxu0
  %v6785 = vadd.f32 0.0, %v6784
  %v6786 = vpop.f32.mrb[0].mxu0
  %v6787 = vadd.f32 0.0, %v6786
  %6788 = vmatprep.mubr.bf16.mxu0 0
  %6789 = vmatmul.mubr.bf16.gmra.mrb[0].mxu0 %v557
  %v6790 = vpop.f32.mrb[0].mxu0
  %v6791 = vadd.f32 0.0, %v6790
  %v6792 = vpop.f32.mrb[0].mxu0
  %v6793 = vadd.f32 0.0, %v6792
  %v6794 = vpop.f32.mrb[0].mxu0
  %v6795 = vadd.f32 0.0, %v6794
  %v6796 = vpop.f32.mrb[0].mxu0
  %v6797 = vadd.f32 0.0, %v6796
  %6798 = vmatprep.mubr.bf16.mxu0 0
  %6799 = vmatmul.mubr.bf16.gmra.mrb[0].mxu0 %v558
  %v6800 = vpop.f32.mrb[0].mxu0
  %v6801 = vadd.f32 0.0, %v6800
  %v6802 = vpop.f32.mrb[0].mxu0
  %v6803 = vadd.f32 0.0, %v6802
  %v6804 = vpop.f32.mrb[0].mxu0
  %v6805 = vadd.f32 0.0, %v6804
  %v6806 = vpop.f32.mrb[0].mxu0
  %v6807 = vadd.f32 0.0, %v6806
  %6808 = vmatprep.mubr.bf16.mxu0 0
  %6809 = vmatmul.mubr.bf16.gmra.mrb[0].mxu0 %v559
  %v6810 = vpop.f32.mrb[0].mxu0
  %v6811 = vadd.f32 0.0, %v6810
  %v6812 = vpop.f32.mrb[0].mxu0
  %v6813 = vadd.f32 0.0, %v6812
  %v6814 = vpop.f32.mrb[0].mxu0
  %v6815 = vadd.f32 0.0, %v6814
  %v6816 = vpop.f32.mrb[0].mxu0
  %v6817 = vadd.f32 0.0, %v6816
  %6818 = vmatprep.mubr.bf16.mxu0 0
  %6819 = vmatmul.mubr.bf16.gmra.mrb[0].mxu0 %v560
  %v6820 = vpop.f32.mrb[0].mxu0
  %v6821 = vadd.f32 0.0, %v6820
  %v6822 = vpop.f32.mrb[0].mxu0
  %v6823 = vadd.f32 0.0, %v6822
  %v6824 = vpop.f32.mrb[0].mxu0
  %v6825 = vadd.f32 0.0, %v6824
  %v6826 = vpop.f32.mrb[0].mxu0
  %v6827 = vadd.f32 0.0, %v6826
  %6828 = vmatprep.mubr.bf16.mxu0 0
  %6829 = vmatmul.mubr.bf16.gmra.mrb[0].mxu0 %v561
  %v6830 = vpop.f32.mrb[0].mxu0
  %v6831 = vadd.f32 0.0, %v6830
  %v6832 = vpop.f32.mrb[0].mxu0
  %v6833 = vadd.f32 0.0, %v6832
  %v6834 = vpop.f32.mrb[0].mxu0
  %v6835 = vadd.f32 0.0, %v6834
  %v6836 = vpop.f32.mrb[0].mxu0
  %v6837 = vadd.f32 0.0, %v6836
  %6838 = vmatprep.mubr.bf16.mxu0 0
  %6839 = vmatmul.mubr.bf16.gmra.mrb[0].mxu0 %v562
  %v6840 = vpop.f32.mrb[0].mxu0
  %v6841 = vadd.f32 0.0, %v6840
  %v6842 = vpop.f32.mrb[0].mxu0
  %v6843 = vadd.f32 0.0, %v6842
  %v6844 = vpop.f32.mrb[0].mxu0
  %v6845 = vadd.f32 0.0, %v6844
  %v6846 = vpop.f32.mrb[0].mxu0
  %v6847 = vadd.f32 0.0, %v6846
  %6848 = vmatprep.mubr.bf16.mxu0 0
  %6849 = vmatmul.mubr.bf16.gmra.mrb[0].mxu0 %v563
  %v6850 = vpop.f32.mrb[0].mxu0
  %v6851 = vadd.f32 0.0, %v6850
  %v6852 = vpop.f32.mrb[0].mxu0
  %v6853 = vadd.f32 0.0, %v6852
  %v6854 = vpop.f32.mrb[0].mxu0
  %v6855 = vadd.f32 0.0, %v6854
  %v6856 = vpop.f32.mrb[0].mxu0
  %v6857 = vadd.f32 0.0, %v6856
  %6858 = vmatprep.mubr.bf16.mxu0 0
  %6859 = vmatmul.mubr.bf16.gmra.mrb[0].mxu0 %v564
  %v6860 = vpop.f32.mrb[0].mxu0
  %v6861 = vadd.f32 0.0, %v6860
  %v6862 = vpop.f32.mrb[0].mxu0
  %v6863 = vadd.f32 0.0, %v6862
  %v6864 = vpop.f32.mrb[0].mxu0
  %v6865 = vadd.f32 0.0, %v6864
  %v6866 = vpop.f32.mrb[0].mxu0
  %v6867 = vadd.f32 0.0, %v6866
  %6868 = vmatprep.mubr.bf16.mxu0 0
  %6869 = vmatmul.mubr.bf16.gmra.mrb[0].mxu0 %v565
  %v6870 = vpop.f32.mrb[0].mxu0
  %v6871 = vadd.f32 0.0, %v6870
  %v6872 = vpop.f32.mrb[0].mxu0
  %v6873 = vadd.f32 0.0, %v6872
  %v6874 = vpop.f32.mrb[0].mxu0
  %v6875 = vadd.f32 0.0, %v6874
  %v6876 = vpop.f32.mrb[0].mxu0
  %v6877 = vadd.f32 0.0, %v6876
  %6878 = vmatprep.mubr.bf16.mxu0 0
  %6879 = vmatmul.mubr.bf16.gmra.mrb[0].mxu0 %v566
  %v6880 = vpop.f32.mrb[0].mxu0
  %v6881 = vadd.f32 0.0, %v6880
  %v6882 = vpop.f32.mrb[0].mxu0
  %v6883 = vadd.f32 0.0, %v6882
  %v6884 = vpop.f32.mrb[0].mxu0
  %v6885 = vadd.f32 0.0, %v6884
  %v6886 = vpop.f32.mrb[0].mxu0
  %v6887 = vadd.f32 0.0, %v6886
  %6888 = vdwg.mxu0
  %6889 = vmatprep.subr.bf16.mxu0 %v1974
  %6890 = vmatpush1.bf16.msra.mxu0 %v1973
  %6891 = vmatprep.subr.bf16.mxu0 %v2030
  %6892 = vmatpush1.bf16.msra.mxu0 %v2029
  %6893 = vmatprep.subr.bf16.mxu0 %v2086
  %6894 = vmatpush1.bf16.msra.mxu0 %v2085
  %6895 = vmatprep.subr.bf16.mxu0 %v2142
  %6896 = vmatpush1.bf16.msra.mxu0 %v2141
  %6897 = vmatprep.subr.bf16.mxu0 %v2198
  %6898 = vmatpush1.bf16.msra.mxu0 %v2197
  %6899 = vmatprep.subr.bf16.mxu0 %v2254
  %6900 = vmatpush1.bf16.msra.mxu0 %v2253
  %6901 = vmatprep.subr.bf16.mxu0 %v2310
  %6902 = vmatpush1.bf16.msra.mxu0 %v2309
  %6903 = vmatprep.subr.bf16.mxu0 %v2366
  %6904 = vmatpush1.bf16.msra.mxu0 %v2365
  %6905 = vmatprep.subr.bf16.mxu0 0
  %6906 = vmatpush1.bf16.msra.mxu0 0
  %6907 = vmatprep.subr.bf16.mxu0 0
  %6908 = vmatpush1.bf16.msra.mxu0 0
  %6909 = vmatprep.subr.bf16.mxu0 0
  %6910 = vmatpush1.bf16.msra.mxu0 0
  %6911 = vmatprep.subr.bf16.mxu0 0
  %6912 = vmatpush1.bf16.msra.mxu0 0
  %6913 = vmatprep.subr.bf16.mxu0 0
  %6914 = vmatpush1.bf16.msra.mxu0 0
  %6915 = vmatprep.subr.bf16.mxu0 0
  %6916 = vmatpush1.bf16.msra.mxu0 0
  %6917 = vmatprep.subr.bf16.mxu0 0
  %6918 = vmatpush1.bf16.msra.mxu0 0
  %6919 = vmatprep.subr.bf16.mxu0 0
  %6920 = vmatpush1.bf16.msra.mxu0 0
  %6921 = vmatprep.mubr.bf16.mxu0 0
  %6922 = vmatmul.mubr.bf16.gmra.mrb[0].mxu0 %v553
  %v6923 = vpop.f32.mrb[0].mxu0
  %v6924 = vadd.f32 0.0, %v6923
  %v6925 = vpop.f32.mrb[0].mxu0
  %v6926 = vadd.f32 0.0, %v6925
  %v6927 = vpop.f32.mrb[0].mxu0
  %v6928 = vadd.f32 0.0, %v6927
  %v6929 = vpop.f32.mrb[0].mxu0
  %v6930 = vadd.f32 0.0, %v6929
  %6931 = vmatprep.mubr.bf16.mxu0 0
  %6932 = vmatmul.mubr.bf16.gmra.mrb[0].mxu0 %v554
  %v6933 = vpop.f32.mrb[0].mxu0
  %v6934 = vadd.f32 0.0, %v6933
  %v6935 = vpop.f32.mrb[0].mxu0
  %v6936 = vadd.f32 0.0, %v6935
  %v6937 = vpop.f32.mrb[0].mxu0
  %v6938 = vadd.f32 0.0, %v6937
  %v6939 = vpop.f32.mrb[0].mxu0
  %v6940 = vadd.f32 0.0, %v6939
  %6941 = vmatprep.mubr.bf16.mxu0 0
  %6942 = vmatmul.mubr.bf16.gmra.mrb[0].mxu0 %v555
  %v6943 = vpop.f32.mrb[0].mxu0
  %v6944 = vadd.f32 0.0, %v6943
  %v6945 = vpop.f32.mrb[0].mxu0
  %v6946 = vadd.f32 0.0, %v6945
  %v6947 = vpop.f32.mrb[0].mxu0
  %v6948 = vadd.f32 0.0, %v6947
  %v6949 = vpop.f32.mrb[0].mxu0
  %v6950 = vadd.f32 0.0, %v6949
  %6951 = vmatprep.mubr.bf16.mxu0 0
  %6952 = vmatmul.mubr.bf16.gmra.mrb[0].mxu0 %v556
  %v6953 = vpop.f32.mrb[0].mxu0
  %v6954 = vadd.f32 0.0, %v6953
  %v6955 = vpop.f32.mrb[0].mxu0
  %v6956 = vadd.f32 0.0, %v6955
  %v6957 = vpop.f32.mrb[0].mxu0
  %v6958 = vadd.f32 0.0, %v6957
  %v6959 = vpop.f32.mrb[0].mxu0
  %v6960 = vadd.f32 0.0, %v6959
  %6961 = vmatprep.mubr.bf16.mxu0 0
  %6962 = vmatmul.mubr.bf16.gmra.mrb[0].mxu0 %v557
  %v6963 = vpop.f32.mrb[0].mxu0
  %v6964 = vadd.f32 0.0, %v6963
  %v6965 = vpop.f32.mrb[0].mxu0
  %v6966 = vadd.f32 0.0, %v6965
  %v6967 = vpop.f32.mrb[0].mxu0
  %v6968 = vadd.f32 0.0, %v6967
  %v6969 = vpop.f32.mrb[0].mxu0
  %v6970 = vadd.f32 0.0, %v6969
  %6971 = vmatprep.mubr.bf16.mxu0 0
  %6972 = vmatmul.mubr.bf16.gmra.mrb[0].mxu0 %v558
  %v6973 = vpop.f32.mrb[0].mxu0
  %v6974 = vadd.f32 0.0, %v6973
  %v6975 = vpop.f32.mrb[0].mxu0
  %v6976 = vadd.f32 0.0, %v6975
  %v6977 = vpop.f32.mrb[0].mxu0
  %v6978 = vadd.f32 0.0, %v6977
  %v6979 = vpop.f32.mrb[0].mxu0
  %v6980 = vadd.f32 0.0, %v6979
  %6981 = vmatprep.mubr.bf16.mxu0 0
  %6982 = vmatmul.mubr.bf16.gmra.mrb[0].mxu0 %v559
  %v6983 = vpop.f32.mrb[0].mxu0
  %v6984 = vadd.f32 0.0, %v6983
  %v6985 = vpop.f32.mrb[0].mxu0
  %v6986 = vadd.f32 0.0, %v6985
  %v6987 = vpop.f32.mrb[0].mxu0
  %v6988 = vadd.f32 0.0, %v6987
  %v6989 = vpop.f32.mrb[0].mxu0
  %v6990 = vadd.f32 0.0, %v6989
  %6991 = vmatprep.mubr.bf16.mxu0 0
  %6992 = vmatmul.mubr.bf16.gmra.mrb[0].mxu0 %v560
  %v6993 = vpop.f32.mrb[0].mxu0
  %v6994 = vadd.f32 0.0, %v6993
  %v6995 = vpop.f32.mrb[0].mxu0
  %v6996 = vadd.f32 0.0, %v6995
  %v6997 = vpop.f32.mrb[0].mxu0
  %v6998 = vadd.f32 0.0, %v6997
  %v6999 = vpop.f32.mrb[0].mxu0
  %v7000 = vadd.f32 0.0, %v6999
  %7001 = vmatprep.mubr.bf16.mxu0 0
  %7002 = vmatmul.mubr.bf16.gmra.mrb[0].mxu0 %v561
  %v7003 = vpop.f32.mrb[0].mxu0
  %v7004 = vadd.f32 0.0, %v7003
  %v7005 = vpop.f32.mrb[0].mxu0
  %v7006 = vadd.f32 0.0, %v7005
  %v7007 = vpop.f32.mrb[0].mxu0
  %v7008 = vadd.f32 0.0, %v7007
  %v7009 = vpop.f32.mrb[0].mxu0
  %v7010 = vadd.f32 0.0, %v7009
  %7011 = vmatprep.mubr.bf16.mxu0 0
  %7012 = vmatmul.mubr.bf16.gmra.mrb[0].mxu0 %v562
  %v7013 = vpop.f32.mrb[0].mxu0
  %v7014 = vadd.f32 0.0, %v7013
  %v7015 = vpop.f32.mrb[0].mxu0
  %v7016 = vadd.f32 0.0, %v7015
  %v7017 = vpop.f32.mrb[0].mxu0
  %v7018 = vadd.f32 0.0, %v7017
  %v7019 = vpop.f32.mrb[0].mxu0
  %v7020 = vadd.f32 0.0, %v7019
  %7021 = vmatprep.mubr.bf16.mxu0 0
  %7022 = vmatmul.mubr.bf16.gmra.mrb[0].mxu0 %v563
  %v7023 = vpop.f32.mrb[0].mxu0
  %v7024 = vadd.f32 0.0, %v7023
  %v7025 = vpop.f32.mrb[0].mxu0
  %v7026 = vadd.f32 0.0, %v7025
  %v7027 = vpop.f32.mrb[0].mxu0
  %v7028 = vadd.f32 0.0, %v7027
  %v7029 = vpop.f32.mrb[0].mxu0
  %v7030 = vadd.f32 0.0, %v7029
  %7031 = vmatprep.mubr.bf16.mxu0 0
  %7032 = vmatmul.mubr.bf16.gmra.mrb[0].mxu0 %v564
  %v7033 = vpop.f32.mrb[0].mxu0
  %v7034 = vadd.f32 0.0, %v7033
  %v7035 = vpop.f32.mrb[0].mxu0
  %v7036 = vadd.f32 0.0, %v7035
  %v7037 = vpop.f32.mrb[0].mxu0
  %v7038 = vadd.f32 0.0, %v7037
  %v7039 = vpop.f32.mrb[0].mxu0
  %v7040 = vadd.f32 0.0, %v7039
  %7041 = vmatprep.mubr.bf16.mxu0 0
  %7042 = vmatmul.mubr.bf16.gmra.mrb[0].mxu0 %v565
  %v7043 = vpop.f32.mrb[0].mxu0
  %v7044 = vadd.f32 0.0, %v7043
  %v7045 = vpop.f32.mrb[0].mxu0
  %v7046 = vadd.f32 0.0, %v7045
  %v7047 = vpop.f32.mrb[0].mxu0
  %v7048 = vadd.f32 0.0, %v7047
  %v7049 = vpop.f32.mrb[0].mxu0
  %v7050 = vadd.f32 0.0, %v7049
  %7051 = vmatprep.mubr.bf16.mxu0 0
  %7052 = vmatmul.mubr.bf16.gmra.mrb[0].mxu0 %v566
  %v7053 = vpop.f32.mrb[0].mxu0
  %v7054 = vadd.f32 0.0, %v7053
  %v7055 = vpop.f32.mrb[0].mxu0
  %v7056 = vadd.f32 0.0, %v7055
  %v7057 = vpop.f32.mrb[0].mxu0
  %v7058 = vadd.f32 0.0, %v7057
  %v7059 = vpop.f32.mrb[0].mxu0
  %v7060 = vadd.f32 0.0, %v7059
  %7061 = vdwg.mxu0
  %7062 = vmatprep.subr.bf16.mxu0 %v1976
  %7063 = vmatpush1.bf16.msra.mxu0 %v1975
  %7064 = vmatprep.subr.bf16.mxu0 %v2032
  %7065 = vmatpush1.bf16.msra.mxu0 %v2031
  %7066 = vmatprep.subr.bf16.mxu0 %v2088
  %7067 = vmatpush1.bf16.msra.mxu0 %v2087
  %7068 = vmatprep.subr.bf16.mxu0 %v2144
  %7069 = vmatpush1.bf16.msra.mxu0 %v2143
  %7070 = vmatprep.subr.bf16.mxu0 %v2200
  %7071 = vmatpush1.bf16.msra.mxu0 %v2199
  %7072 = vmatprep.subr.bf16.mxu0 %v2256
  %7073 = vmatpush1.bf16.msra.mxu0 %v2255
  %7074 = vmatprep.subr.bf16.mxu0 %v2312
  %7075 = vmatpush1.bf16.msra.mxu0 %v2311
  %7076 = vmatprep.subr.bf16.mxu0 %v2368
  %7077 = vmatpush1.bf16.msra.mxu0 %v2367
  %7078 = vmatprep.subr.bf16.mxu0 0
  %7079 = vmatpush1.bf16.msra.mxu0 0
  %7080 = vmatprep.subr.bf16.mxu0 0
  %7081 = vmatpush1.bf16.msra.mxu0 0
  %7082 = vmatprep.subr.bf16.mxu0 0
  %7083 = vmatpush1.bf16.msra.mxu0 0
  %7084 = vmatprep.subr.bf16.mxu0 0
  %7085 = vmatpush1.bf16.msra.mxu0 0
  %7086 = vmatprep.subr.bf16.mxu0 0
  %7087 = vmatpush1.bf16.msra.mxu0 0
  %7088 = vmatprep.subr.bf16.mxu0 0
  %7089 = vmatpush1.bf16.msra.mxu0 0
  %7090 = vmatprep.subr.bf16.mxu0 0
  %7091 = vmatpush1.bf16.msra.mxu0 0
  %7092 = vmatprep.subr.bf16.mxu0 0
  %7093 = vmatpush1.bf16.msra.mxu0 0
  %7094 = vmatprep.mubr.bf16.mxu0 0
  %7095 = vmatmul.mubr.bf16.gmra.mrb[0].mxu0 %v553
  %v7096 = vpop.f32.mrb[0].mxu0
  %v7097 = vpop.f32.mrb[0].mxu0
  %v7098 = vpop.f32.mrb[0].mxu0
  %v7099 = vpop.f32.mrb[0].mxu0
  %7100 = vmatprep.mubr.bf16.mxu0 0
  %7101 = vmatmul.mubr.bf16.gmra.mrb[0].mxu0 %v554
  %v7102 = vpop.f32.mrb[0].mxu0
  %v7103 = vpop.f32.mrb[0].mxu0
  %v7104 = vpop.f32.mrb[0].mxu0
  %v7105 = vpop.f32.mrb[0].mxu0
  %7106 = vmatprep.mubr.bf16.mxu0 0
  %7107 = vmatmul.mubr.bf16.gmra.mrb[0].mxu0 %v555
  %v7108 = vpop.f32.mrb[0].mxu0
  %v7109 = vadd.f32 0.0, %v7108
  %v7110 = vpop.f32.mrb[0].mxu0
  %v7111 = vpop.f32.mrb[0].mxu0
  %v7112 = vadd.f32 0.0, %v7111
  %v7113 = vpop.f32.mrb[0].mxu0
  %7114 = vmatprep.mubr.bf16.mxu0 0
  %7115 = vmatmul.mubr.bf16.gmra.mrb[0].mxu0 %v556
  %v7116 = vpop.f32.mrb[0].mxu0
  %v7117 = vadd.f32 0.0, %v7116
  %v7118 = vpop.f32.mrb[0].mxu0
  %v7119 = vpop.f32.mrb[0].mxu0
  %v7120 = vadd.f32 0.0, %v7119
  %v7121 = vpop.f32.mrb[0].mxu0
  %7122 = vmatprep.mubr.bf16.mxu0 0
  %7123 = vmatmul.mubr.bf16.gmra.mrb[0].mxu0 %v557
  %v7124 = vpop.f32.mrb[0].mxu0
  %v7125 = vadd.f32 0.0, %v7124
  %v7126 = vpop.f32.mrb[0].mxu0
  %v7127 = vadd.f32 0.0, %v7126
  %v7128 = vpop.f32.mrb[0].mxu0
  %v7129 = vadd.f32 0.0, %v7128
  %v7130 = vpop.f32.mrb[0].mxu0
  %v7131 = vadd.f32 0.0, %v7130
  %7132 = vmatprep.mubr.bf16.mxu0 0
  %7133 = vmatmul.mubr.bf16.gmra.mrb[0].mxu0 %v558
  %v7134 = vpop.f32.mrb[0].mxu0
  %v7135 = vadd.f32 0.0, %v7134
  %v7136 = vpop.f32.mrb[0].mxu0
  %v7137 = vadd.f32 0.0, %v7136
  %v7138 = vpop.f32.mrb[0].mxu0
  %v7139 = vadd.f32 0.0, %v7138
  %v7140 = vpop.f32.mrb[0].mxu0
  %v7141 = vadd.f32 0.0, %v7140
  %7142 = vmatprep.mubr.bf16.mxu0 0
  %7143 = vmatmul.mubr.bf16.gmra.mrb[0].mxu0 %v559
  %v7144 = vpop.f32.mrb[0].mxu0
  %v7145 = vadd.f32 0.0, %v7144
  %v7146 = vpop.f32.mrb[0].mxu0
  %v7147 = vadd.f32 0.0, %v7146
  %v7148 = vpop.f32.mrb[0].mxu0
  %v7149 = vadd.f32 0.0, %v7148
  %v7150 = vpop.f32.mrb[0].mxu0
  %v7151 = vadd.f32 0.0, %v7150
  %7152 = vmatprep.mubr.bf16.mxu0 0
  %7153 = vmatmul.mubr.bf16.gmra.mrb[0].mxu0 %v560
  %v7154 = vpop.f32.mrb[0].mxu0
  %v7155 = vadd.f32 0.0, %v7154
  %v7156 = vpop.f32.mrb[0].mxu0
  %v7157 = vadd.f32 0.0, %v7156
  %v7158 = vpop.f32.mrb[0].mxu0
  %v7159 = vadd.f32 0.0, %v7158
  %v7160 = vpop.f32.mrb[0].mxu0
  %v7161 = vadd.f32 0.0, %v7160
  %7162 = vmatprep.mubr.bf16.mxu0 0
  %7163 = vmatmul.mubr.bf16.gmra.mrb[0].mxu0 %v561
  %v7164 = vpop.f32.mrb[0].mxu0
  %v7165 = vadd.f32 0.0, %v7164
  %v7166 = vpop.f32.mrb[0].mxu0
  %v7167 = vadd.f32 0.0, %v7166
  %v7168 = vpop.f32.mrb[0].mxu0
  %v7169 = vadd.f32 0.0, %v7168
  %v7170 = vpop.f32.mrb[0].mxu0
  %v7171 = vadd.f32 0.0, %v7170
  %7172 = vmatprep.mubr.bf16.mxu0 0
  %7173 = vmatmul.mubr.bf16.gmra.mrb[0].mxu0 %v562
  %v7174 = vpop.f32.mrb[0].mxu0
  %v7175 = vadd.f32 0.0, %v7174
  %v7176 = vpop.f32.mrb[0].mxu0
  %v7177 = vadd.f32 0.0, %v7176
  %v7178 = vpop.f32.mrb[0].mxu0
  %v7179 = vadd.f32 0.0, %v7178
  %v7180 = vpop.f32.mrb[0].mxu0
  %v7181 = vadd.f32 0.0, %v7180
  %7182 = vmatprep.mubr.bf16.mxu0 0
  %7183 = vmatmul.mubr.bf16.gmra.mrb[0].mxu0 %v563
  %v7184 = vpop.f32.mrb[0].mxu0
  %v7185 = vadd.f32 0.0, %v7184
  %v7186 = vpop.f32.mrb[0].mxu0
  %v7187 = vadd.f32 0.0, %v7186
  %v7188 = vpop.f32.mrb[0].mxu0
  %v7189 = vadd.f32 0.0, %v7188
  %v7190 = vpop.f32.mrb[0].mxu0
  %v7191 = vadd.f32 0.0, %v7190
  %7192 = vmatprep.mubr.bf16.mxu0 0
  %7193 = vmatmul.mubr.bf16.gmra.mrb[0].mxu0 %v564
  %v7194 = vpop.f32.mrb[0].mxu0
  %v7195 = vadd.f32 0.0, %v7194
  %v7196 = vpop.f32.mrb[0].mxu0
  %v7197 = vadd.f32 0.0, %v7196
  %v7198 = vpop.f32.mrb[0].mxu0
  %v7199 = vadd.f32 0.0, %v7198
  %v7200 = vpop.f32.mrb[0].mxu0
  %v7201 = vadd.f32 0.0, %v7200
  %7202 = vmatprep.mubr.bf16.mxu0 0
  %7203 = vmatmul.mubr.bf16.gmra.mrb[0].mxu0 %v565
  %v7204 = vpop.f32.mrb[0].mxu0
  %v7205 = vadd.f32 0.0, %v7204
  %v7206 = vpop.f32.mrb[0].mxu0
  %v7207 = vadd.f32 0.0, %v7206
  %v7208 = vpop.f32.mrb[0].mxu0
  %v7209 = vadd.f32 0.0, %v7208
  %v7210 = vpop.f32.mrb[0].mxu0
  %v7211 = vadd.f32 0.0, %v7210
  %7212 = vmatprep.mubr.bf16.mxu0 0
  %7213 = vmatmul.mubr.bf16.gmra.mrb[0].mxu0 %v566
  %v7214 = vpop.f32.mrb[0].mxu0
  %v7215 = vadd.f32 0.0, %v7214
  %v7216 = vpop.f32.mrb[0].mxu0
  %v7217 = vadd.f32 0.0, %v7216
  %v7218 = vpop.f32.mrb[0].mxu0
  %v7219 = vadd.f32 0.0, %v7218
  %v7220 = vpop.f32.mrb[0].mxu0
  %v7221 = vadd.f32 0.0, %v7220
  %7222 = vdwg.mxu0
  %7223 = vmatprep.subr.bf16.mxu0 %v1978
  %7224 = vmatpush1.bf16.msra.mxu0 %v1977
  %7225 = vmatprep.subr.bf16.mxu0 %v2034
  %7226 = vmatpush1.bf16.msra.mxu0 %v2033
  %7227 = vmatprep.subr.bf16.mxu0 %v2090
  %7228 = vmatpush1.bf16.msra.mxu0 %v2089
  %7229 = vmatprep.subr.bf16.mxu0 %v2146
  %7230 = vmatpush1.bf16.msra.mxu0 %v2145
  %7231 = vmatprep.subr.bf16.mxu0 %v2202
  %7232 = vmatpush1.bf16.msra.mxu0 %v2201
  %7233 = vmatprep.subr.bf16.mxu0 %v2258
  %7234 = vmatpush1.bf16.msra.mxu0 %v2257
  %7235 = vmatprep.subr.bf16.mxu0 %v2314
  %7236 = vmatpush1.bf16.msra.mxu0 %v2313
  %7237 = vmatprep.subr.bf16.mxu0 %v2370
  %7238 = vmatpush1.bf16.msra.mxu0 %v2369
  %7239 = vmatprep.subr.bf16.mxu0 0
  %7240 = vmatpush1.bf16.msra.mxu0 0
  %7241 = vmatprep.subr.bf16.mxu0 0
  %7242 = vmatpush1.bf16.msra.mxu0 0
  %7243 = vmatprep.subr.bf16.mxu0 0
  %7244 = vmatpush1.bf16.msra.mxu0 0
  %7245 = vmatprep.subr.bf16.mxu0 0
  %7246 = vmatpush1.bf16.msra.mxu0 0
  %7247 = vmatprep.subr.bf16.mxu0 0
  %7248 = vmatpush1.bf16.msra.mxu0 0
  %7249 = vmatprep.subr.bf16.mxu0 0
  %7250 = vmatpush1.bf16.msra.mxu0 0
  %7251 = vmatprep.subr.bf16.mxu0 0
  %7252 = vmatpush1.bf16.msra.mxu0 0
  %7253 = vmatprep.subr.bf16.mxu0 0
  %7254 = vmatpush1.bf16.msra.mxu0 0
  %7255 = vmatprep.mubr.bf16.mxu0 0
  %7256 = vmatmul.mubr.bf16.gmra.mrb[0].mxu0 %v553
  %v7257 = vpop.f32.mrb[0].mxu0
  %v7258 = vpop.f32.mrb[0].mxu0
  %v7259 = vpop.f32.mrb[0].mxu0
  %v7260 = vpop.f32.mrb[0].mxu0
  %7261 = vmatprep.mubr.bf16.mxu0 0
  %7262 = vmatmul.mubr.bf16.gmra.mrb[0].mxu0 %v554
  %v7263 = vpop.f32.mrb[0].mxu0
  %v7264 = vpop.f32.mrb[0].mxu0
  %v7265 = vpop.f32.mrb[0].mxu0
  %v7266 = vpop.f32.mrb[0].mxu0
  %7267 = vmatprep.mubr.bf16.mxu0 0
  %7268 = vmatmul.mubr.bf16.gmra.mrb[0].mxu0 %v555
  %v7269 = vpop.f32.mrb[0].mxu0
  %v7270 = vpop.f32.mrb[0].mxu0
  %v7271 = vpop.f32.mrb[0].mxu0
  %v7272 = vpop.f32.mrb[0].mxu0
  %7273 = vmatprep.mubr.bf16.mxu0 0
  %7274 = vmatmul.mubr.bf16.gmra.mrb[0].mxu0 %v556
  %v7275 = vpop.f32.mrb[0].mxu0
  %v7276 = vpop.f32.mrb[0].mxu0
  %v7277 = vpop.f32.mrb[0].mxu0
  %v7278 = vpop.f32.mrb[0].mxu0
  %7279 = vmatprep.mubr.bf16.mxu0 0
  %7280 = vmatmul.mubr.bf16.gmra.mrb[0].mxu0 %v557
  %v7281 = vpop.f32.mrb[0].mxu0
  %v7282 = vpop.f32.mrb[0].mxu0
  %v7283 = vpop.f32.mrb[0].mxu0
  %v7284 = vpop.f32.mrb[0].mxu0
  %7285 = vmatprep.mubr.bf16.mxu0 0
  %7286 = vmatmul.mubr.bf16.gmra.mrb[0].mxu0 %v558
  %v7287 = vpop.f32.mrb[0].mxu0
  %v7288 = vpop.f32.mrb[0].mxu0
  %v7289 = vpop.f32.mrb[0].mxu0
  %v7290 = vpop.f32.mrb[0].mxu0
  %7291 = vmatprep.mubr.bf16.mxu0 0
  %7292 = vmatmul.mubr.bf16.gmra.mrb[0].mxu0 %v559
  %v7293 = vpop.f32.mrb[0].mxu0
  %v7294 = vadd.f32 0.0, %v7293
  %v7295 = vpop.f32.mrb[0].mxu0
  %v7296 = vpop.f32.mrb[0].mxu0
  %v7297 = vadd.f32 0.0, %v7296
  %v7298 = vpop.f32.mrb[0].mxu0
  %7299 = vmatprep.mubr.bf16.mxu0 0
  %7300 = vmatmul.mubr.bf16.gmra.mrb[0].mxu0 %v560
  %v7301 = vpop.f32.mrb[0].mxu0
  %v7302 = vadd.f32 0.0, %v7301
  %v7303 = vpop.f32.mrb[0].mxu0
  %v7304 = vpop.f32.mrb[0].mxu0
  %v7305 = vadd.f32 0.0, %v7304
  %v7306 = vpop.f32.mrb[0].mxu0
  %7307 = vmatprep.mubr.bf16.mxu0 0
  %7308 = vmatmul.mubr.bf16.gmra.mrb[0].mxu0 %v561
  %v7309 = vpop.f32.mrb[0].mxu0
  %v7310 = vadd.f32 0.0, %v7309
  %v7311 = vpop.f32.mrb[0].mxu0
  %v7312 = vadd.f32 0.0, %v7311
  %v7313 = vpop.f32.mrb[0].mxu0
  %v7314 = vadd.f32 0.0, %v7313
  %v7315 = vpop.f32.mrb[0].mxu0
  %v7316 = vadd.f32 0.0, %v7315
  %7317 = vmatprep.mubr.bf16.mxu0 0
  %7318 = vmatmul.mubr.bf16.gmra.mrb[0].mxu0 %v562
  %v7319 = vpop.f32.mrb[0].mxu0
  %v7320 = vadd.f32 0.0, %v7319
  %v7321 = vpop.f32.mrb[0].mxu0
  %v7322 = vadd.f32 0.0, %v7321
  %v7323 = vpop.f32.mrb[0].mxu0
  %v7324 = vadd.f32 0.0, %v7323
  %v7325 = vpop.f32.mrb[0].mxu0
  %v7326 = vadd.f32 0.0, %v7325
  %7327 = vmatprep.mubr.bf16.mxu0 0
  %7328 = vmatmul.mubr.bf16.gmra.mrb[0].mxu0 %v563
  %v7329 = vpop.f32.mrb[0].mxu0
  %v7330 = vadd.f32 0.0, %v7329
  %v7331 = vpop.f32.mrb[0].mxu0
  %v7332 = vadd.f32 0.0, %v7331
  %v7333 = vpop.f32.mrb[0].mxu0
  %v7334 = vadd.f32 0.0, %v7333
  %v7335 = vpop.f32.mrb[0].mxu0
  %v7336 = vadd.f32 0.0, %v7335
  %7337 = vmatprep.mubr.bf16.mxu0 0
  %7338 = vmatmul.mubr.bf16.gmra.mrb[0].mxu0 %v564
  %v7339 = vpop.f32.mrb[0].mxu0
  %v7340 = vadd.f32 0.0, %v7339
  %v7341 = vpop.f32.mrb[0].mxu0
  %v7342 = vadd.f32 0.0, %v7341
  %v7343 = vpop.f32.mrb[0].mxu0
  %v7344 = vadd.f32 0.0, %v7343
  %v7345 = vpop.f32.mrb[0].mxu0
  %v7346 = vadd.f32 0.0, %v7345
  %7347 = vmatprep.mubr.bf16.mxu0 0
  %7348 = vmatmul.mubr.bf16.gmra.mrb[0].mxu0 %v565
  %v7349 = vpop.f32.mrb[0].mxu0
  %v7350 = vadd.f32 0.0, %v7349
  %v7351 = vpop.f32.mrb[0].mxu0
  %v7352 = vadd.f32 0.0, %v7351
  %v7353 = vpop.f32.mrb[0].mxu0
  %v7354 = vadd.f32 0.0, %v7353
  %v7355 = vpop.f32.mrb[0].mxu0
  %v7356 = vadd.f32 0.0, %v7355
  %7357 = vmatprep.mubr.bf16.mxu0 0
  %7358 = vmatmul.mubr.bf16.gmra.mrb[0].mxu0 %v566
  %v7359 = vpop.f32.mrb[0].mxu0
  %v7360 = vadd.f32 0.0, %v7359
  %v7361 = vpop.f32.mrb[0].mxu0
  %v7362 = vadd.f32 0.0, %v7361
  %v7363 = vpop.f32.mrb[0].mxu0
  %v7364 = vadd.f32 0.0, %v7363
  %v7365 = vpop.f32.mrb[0].mxu0
  %v7366 = vadd.f32 0.0, %v7365
  %7367 = vdwg.mxu0
  %7368 = vmatprep.subr.bf16.mxu0 %v1980
  %7369 = vmatpush1.bf16.msra.mxu0 %v1979
  %7370 = vmatprep.subr.bf16.mxu0 %v2036
  %7371 = vmatpush1.bf16.msra.mxu0 %v2035
  %7372 = vmatprep.subr.bf16.mxu0 %v2092
  %7373 = vmatpush1.bf16.msra.mxu0 %v2091
  %7374 = vmatprep.subr.bf16.mxu0 %v2148
  %7375 = vmatpush1.bf16.msra.mxu0 %v2147
  %7376 = vmatprep.subr.bf16.mxu0 %v2204
  %7377 = vmatpush1.bf16.msra.mxu0 %v2203
  %7378 = vmatprep.subr.bf16.mxu0 %v2260
  %7379 = vmatpush1.bf16.msra.mxu0 %v2259
  %7380 = vmatprep.subr.bf16.mxu0 %v2316
  %7381 = vmatpush1.bf16.msra.mxu0 %v2315
  %7382 = vmatprep.subr.bf16.mxu0 %v2372
  %7383 = vmatpush1.bf16.msra.mxu0 %v2371
  %7384 = vmatprep.subr.bf16.mxu0 0
  %7385 = vmatpush1.bf16.msra.mxu0 0
  %7386 = vmatprep.subr.bf16.mxu0 0
  %7387 = vmatpush1.bf16.msra.mxu0 0
  %7388 = vmatprep.subr.bf16.mxu0 0
  %7389 = vmatpush1.bf16.msra.mxu0 0
  %7390 = vmatprep.subr.bf16.mxu0 0
  %7391 = vmatpush1.bf16.msra.mxu0 0
  %7392 = vmatprep.subr.bf16.mxu0 0
  %7393 = vmatpush1.bf16.msra.mxu0 0
  %7394 = vmatprep.subr.bf16.mxu0 0
  %7395 = vmatpush1.bf16.msra.mxu0 0
  %7396 = vmatprep.subr.bf16.mxu0 0
  %7397 = vmatpush1.bf16.msra.mxu0 0
  %7398 = vmatprep.subr.bf16.mxu0 0
  %7399 = vmatpush1.bf16.msra.mxu0 0
  %7400 = vmatprep.mubr.bf16.mxu0 0
  %7401 = vmatmul.mubr.bf16.gmra.mrb[0].mxu0 %v553
  %v7402 = vpop.f32.mrb[0].mxu0
  %v7403 = vpop.f32.mrb[0].mxu0
  %v7404 = vpop.f32.mrb[0].mxu0
  %v7405 = vpop.f32.mrb[0].mxu0
  %7406 = vmatprep.mubr.bf16.mxu0 0
  %7407 = vmatmul.mubr.bf16.gmra.mrb[0].mxu0 %v554
  %v7408 = vpop.f32.mrb[0].mxu0
  %v7409 = vpop.f32.mrb[0].mxu0
  %v7410 = vpop.f32.mrb[0].mxu0
  %v7411 = vpop.f32.mrb[0].mxu0
  %7412 = vmatprep.mubr.bf16.mxu0 0
  %7413 = vmatmul.mubr.bf16.gmra.mrb[0].mxu0 %v555
  %v7414 = vpop.f32.mrb[0].mxu0
  %v7415 = vpop.f32.mrb[0].mxu0
  %v7416 = vpop.f32.mrb[0].mxu0
  %v7417 = vpop.f32.mrb[0].mxu0
  %7418 = vmatprep.mubr.bf16.mxu0 0
  %7419 = vmatmul.mubr.bf16.gmra.mrb[0].mxu0 %v556
  %v7420 = vpop.f32.mrb[0].mxu0
  %v7421 = vpop.f32.mrb[0].mxu0
  %v7422 = vpop.f32.mrb[0].mxu0
  %v7423 = vpop.f32.mrb[0].mxu0
  %7424 = vmatprep.mubr.bf16.mxu0 0
  %7425 = vmatmul.mubr.bf16.gmra.mrb[0].mxu0 %v557
  %v7426 = vpop.f32.mrb[0].mxu0
  %v7427 = vpop.f32.mrb[0].mxu0
  %v7428 = vpop.f32.mrb[0].mxu0
  %v7429 = vpop.f32.mrb[0].mxu0
  %7430 = vmatprep.mubr.bf16.mxu0 0
  %7431 = vmatmul.mubr.bf16.gmra.mrb[0].mxu0 %v558
  %v7432 = vpop.f32.mrb[0].mxu0
  %v7433 = vpop.f32.mrb[0].mxu0
  %v7434 = vpop.f32.mrb[0].mxu0
  %v7435 = vpop.f32.mrb[0].mxu0
  %7436 = vmatprep.mubr.bf16.mxu0 0
  %7437 = vmatmul.mubr.bf16.gmra.mrb[0].mxu0 %v559
  %v7438 = vpop.f32.mrb[0].mxu0
  %v7439 = vpop.f32.mrb[0].mxu0
  %v7440 = vpop.f32.mrb[0].mxu0
  %v7441 = vpop.f32.mrb[0].mxu0
  %7442 = vmatprep.mubr.bf16.mxu0 0
  %7443 = vmatmul.mubr.bf16.gmra.mrb[0].mxu0 %v560
  %v7444 = vpop.f32.mrb[0].mxu0
  %v7445 = vpop.f32.mrb[0].mxu0
  %v7446 = vpop.f32.mrb[0].mxu0
  %v7447 = vpop.f32.mrb[0].mxu0
  %7448 = vmatprep.mubr.bf16.mxu0 0
  %7449 = vmatmul.mubr.bf16.gmra.mrb[0].mxu0 %v561
  %v7450 = vpop.f32.mrb[0].mxu0
  %v7451 = vpop.f32.mrb[0].mxu0
  %v7452 = vpop.f32.mrb[0].mxu0
  %v7453 = vpop.f32.mrb[0].mxu0
  %7454 = vmatprep.mubr.bf16.mxu0 0
  %7455 = vmatmul.mubr.bf16.gmra.mrb[0].mxu0 %v562
  %v7456 = vpop.f32.mrb[0].mxu0
  %v7457 = vpop.f32.mrb[0].mxu0
  %v7458 = vpop.f32.mrb[0].mxu0
  %v7459 = vpop.f32.mrb[0].mxu0
  %7460 = vmatprep.mubr.bf16.mxu0 0
  %7461 = vmatmul.mubr.bf16.gmra.mrb[0].mxu0 %v563
  %v7462 = vpop.f32.mrb[0].mxu0
  %v7463 = vadd.f32 0.0, %v7462
  %v7464 = vpop.f32.mrb[0].mxu0
  %v7465 = vpop.f32.mrb[0].mxu0
  %v7466 = vadd.f32 0.0, %v7465
  %v7467 = vpop.f32.mrb[0].mxu0
  %7468 = vmatprep.mubr.bf16.mxu0 0
  %7469 = vmatmul.mubr.bf16.gmra.mrb[0].mxu0 %v564
  %v7470 = vpop.f32.mrb[0].mxu0
  %v7471 = vadd.f32 0.0, %v7470
  %v7472 = vpop.f32.mrb[0].mxu0
  %v7473 = vpop.f32.mrb[0].mxu0
  %v7474 = vadd.f32 0.0, %v7473
  %v7475 = vpop.f32.mrb[0].mxu0
  %7476 = vmatprep.mubr.bf16.mxu0 0
  %7477 = vmatmul.mubr.bf16.gmra.mrb[0].mxu0 %v565
  %v7478 = vpop.f32.mrb[0].mxu0
  %v7479 = vadd.f32 0.0, %v7478
  %v7480 = vpop.f32.mrb[0].mxu0
  %v7481 = vadd.f32 0.0, %v7480
  %v7482 = vpop.f32.mrb[0].mxu0
  %v7483 = vadd.f32 0.0, %v7482
  %v7484 = vpop.f32.mrb[0].mxu0
  %v7485 = vadd.f32 0.0, %v7484
  %7486 = vmatprep.mubr.bf16.mxu0 0
  %7487 = vmatmul.mubr.bf16.gmra.mrb[0].mxu0 %v566
  %v7488 = vpop.f32.mrb[0].mxu0
  %v7489 = vadd.f32 0.0, %v7488
  %v7490 = vpop.f32.mrb[0].mxu0
  %v7491 = vadd.f32 0.0, %v7490
  %v7492 = vpop.f32.mrb[0].mxu0
  %v7493 = vadd.f32 0.0, %v7492
  %v7494 = vpop.f32.mrb[0].mxu0
  %v7495 = vadd.f32 0.0, %v7494
  %7496 = vdwg.mxu0
  %v7497 = vadd.f32 %v2856, %v2877
  %v7498 = vadd.f32 %v2860, %v2880
  %v7499 = vadd.f32 %v2866, %v2885
  %v7500 = vadd.f32 %v2870, %v2888
  %v7501 = vadd.f32 %v7497, %v3025
  %v7502 = vadd.f32 %v7498, %v3029
  %v7503 = vadd.f32 %v7499, %v3035
  %v7504 = vadd.f32 %v7500, %v3039
  %v7505 = vadd.f32 %v7501, %v3046
  %v7506 = vadd.f32 %v7502, %v3049
  %v7507 = vadd.f32 %v7503, %v3054
  %v7508 = vadd.f32 %v7504, %v3057
  %v7509 = vadd.f32 %v7505, %v3210
  %v7510 = vadd.f32 %v7506, %v3214
  %v7511 = vadd.f32 %v7507, %v3220
  %v7512 = vadd.f32 %v7508, %v3224
  %v7513 = vadd.f32 %v7509, %v3231
  %v7514 = vadd.f32 %v7510, %v3234
  %v7515 = vadd.f32 %v7511, %v3239
  %v7516 = vadd.f32 %v7512, %v3242
  %v7517 = vadd.f32 %v7513, %v3411
  %v7518 = vadd.f32 %v7514, %v3415
  %v7519 = vadd.f32 %v7515, %v3421
  %v7520 = vadd.f32 %v7516, %v3425
  %v7521 = vadd.f32 %v2858, %v3005
  %v7522 = vadd.f32 %v2862, %v3009
  %v7523 = vadd.f32 %v2868, %v3015
  %v7524 = vadd.f32 %v2872, %v3019
  %v7525 = vadd.f32 %v7521, %v3027
  %v7526 = vadd.f32 %v7522, %v3031
  %v7527 = vadd.f32 %v7523, %v3037
  %v7528 = vadd.f32 %v7524, %v3041
  %v7529 = vadd.f32 %v7525, %v3190
  %v7530 = vadd.f32 %v7526, %v3194
  %v7531 = vadd.f32 %v7527, %v3200
  %v7532 = vadd.f32 %v7528, %v3204
  %v7533 = vadd.f32 %v7529, %v3212
  %v7534 = vadd.f32 %v7530, %v3216
  %v7535 = vadd.f32 %v7531, %v3222
  %v7536 = vadd.f32 %v7532, %v3226
  %v7537 = vadd.f32 %v7533, %v3391
  %v7538 = vadd.f32 %v7534, %v3395
  %v7539 = vadd.f32 %v7535, %v3401
  %v7540 = vadd.f32 %v7536, %v3405
  %v7541 = vadd.f32 %v7537, %v3413
  %v7542 = vadd.f32 %v7538, %v3417
  %v7543 = vadd.f32 %v7539, %v3423
  %v7544 = vadd.f32 %v7540, %v3427
  %v7545 = vmax.f32 %v7517, %v7541
  %v7546 = vmax.f32 %v7518, %v7542
  %v7547 = vmax.f32 %v7519, %v7543
  %v7548 = vmax.f32 %v7520, %v7544
  %v7549 = vadd.f32 %v2985, %v3007
  %v7550 = vadd.f32 %v2989, %v3011
  %v7551 = vadd.f32 %v2995, %v3017
  %v7552 = vadd.f32 %v2999, %v3021
  %v7553 = vadd.f32 %v7549, %v3170
  %v7554 = vadd.f32 %v7550, %v3174
  %v7555 = vadd.f32 %v7551, %v3180
  %v7556 = vadd.f32 %v7552, %v3184
  %v7557 = vadd.f32 %v7553, %v3192
  %v7558 = vadd.f32 %v7554, %v3196
  %v7559 = vadd.f32 %v7555, %v3202
  %v7560 = vadd.f32 %v7556, %v3206
  %v7561 = vadd.f32 %v7557, %v3371
  %v7562 = vadd.f32 %v7558, %v3375
  %v7563 = vadd.f32 %v7559, %v3381
  %v7564 = vadd.f32 %v7560, %v3385
  %v7565 = vadd.f32 %v7561, %v3393
  %v7566 = vadd.f32 %v7562, %v3397
  %v7567 = vadd.f32 %v7563, %v3403
  %v7568 = vadd.f32 %v7564, %v3407
  %v7569 = vadd.f32 %v7565, %v3584
  %v7570 = vadd.f32 %v7566, %v3588
  %v7571 = vadd.f32 %v7567, %v3594
  %v7572 = vadd.f32 %v7568, %v3598
  %v7573 = vmax.f32 %v7545, %v7569
  %v7574 = vmax.f32 %v7546, %v7570
  %v7575 = vmax.f32 %v7547, %v7571
  %v7576 = vmax.f32 %v7548, %v7572
  %v7577 = vadd.f32 %v2987, %v3150
  %v7578 = vadd.f32 %v2991, %v3154
  %v7579 = vadd.f32 %v2997, %v3160
  %v7580 = vadd.f32 %v3001, %v3164
  %v7581 = vadd.f32 %v7577, %v3172
  %v7582 = vadd.f32 %v7578, %v3176
  %v7583 = vadd.f32 %v7579, %v3182
  %v7584 = vadd.f32 %v7580, %v3186
  %v7585 = vadd.f32 %v7581, %v3351
  %v7586 = vadd.f32 %v7582, %v3355
  %v7587 = vadd.f32 %v7583, %v3361
  %v7588 = vadd.f32 %v7584, %v3365
  %v7589 = vadd.f32 %v7585, %v3373
  %v7590 = vadd.f32 %v7586, %v3377
  %v7591 = vadd.f32 %v7587, %v3383
  %v7592 = vadd.f32 %v7588, %v3387
  %v7593 = vadd.f32 %v7589, %v3564
  %v7594 = vadd.f32 %v7590, %v3568
  %v7595 = vadd.f32 %v7591, %v3574
  %v7596 = vadd.f32 %v7592, %v3578
  %v7597 = vadd.f32 %v7593, %v3586
  %v7598 = vadd.f32 %v7594, %v3590
  %v7599 = vadd.f32 %v7595, %v3596
  %v7600 = vadd.f32 %v7596, %v3600
  %v7601 = vmax.f32 %v7573, %v7597
  %v7602 = vmax.f32 %v7574, %v7598
  %v7603 = vmax.f32 %v7575, %v7599
  %v7604 = vmax.f32 %v7576, %v7600
  %v7605 = vadd.f32 %v3130, %v3152
  %v7606 = vadd.f32 %v3134, %v3156
  %v7607 = vadd.f32 %v3140, %v3162
  %v7608 = vadd.f32 %v3144, %v3166
  %v7609 = vadd.f32 %v7605, %v3331
  %v7610 = vadd.f32 %v7606, %v3335
  %v7611 = vadd.f32 %v7607, %v3341
  %v7612 = vadd.f32 %v7608, %v3345
  %v7613 = vadd.f32 %v7609, %v3353
  %v7614 = vadd.f32 %v7610, %v3357
  %v7615 = vadd.f32 %v7611, %v3363
  %v7616 = vadd.f32 %v7612, %v3367
  %v7617 = vadd.f32 %v7613, %v3544
  %v7618 = vadd.f32 %v7614, %v3548
  %v7619 = vadd.f32 %v7615, %v3554
  %v7620 = vadd.f32 %v7616, %v3558
  %v7621 = vadd.f32 %v7617, %v3566
  %v7622 = vadd.f32 %v7618, %v3570
  %v7623 = vadd.f32 %v7619, %v3576
  %v7624 = vadd.f32 %v7620, %v3580
  %v7625 = vadd.f32 %v7621, %v3757
  %v7626 = vadd.f32 %v7622, %v3761
  %v7627 = vadd.f32 %v7623, %v3767
  %v7628 = vadd.f32 %v7624, %v3771
  %v7629 = vmax.f32 %v7601, %v7625
  %v7630 = vmax.f32 %v7602, %v7626
  %v7631 = vmax.f32 %v7603, %v7627
  %v7632 = vmax.f32 %v7604, %v7628
  %v7633 = vadd.f32 %v3132, %v3311
  %v7634 = vadd.f32 %v3136, %v3315
  %v7635 = vadd.f32 %v3142, %v3321
  %v7636 = vadd.f32 %v3146, %v3325
  %v7637 = vadd.f32 %v7633, %v3333
  %v7638 = vadd.f32 %v7634, %v3337
  %v7639 = vadd.f32 %v7635, %v3343
  %v7640 = vadd.f32 %v7636, %v3347
  %v7641 = vadd.f32 %v7637, %v3524
  %v7642 = vadd.f32 %v7638, %v3528
  %v7643 = vadd.f32 %v7639, %v3534
  %v7644 = vadd.f32 %v7640, %v3538
  %v7645 = vadd.f32 %v7641, %v3546
  %v7646 = vadd.f32 %v7642, %v3550
  %v7647 = vadd.f32 %v7643, %v3556
  %v7648 = vadd.f32 %v7644, %v3560
  %v7649 = vadd.f32 %v7645, %v3737
  %v7650 = vadd.f32 %v7646, %v3741
  %v7651 = vadd.f32 %v7647, %v3747
  %v7652 = vadd.f32 %v7648, %v3751
  %v7653 = vadd.f32 %v7649, %v3759
  %v7654 = vadd.f32 %v7650, %v3763
  %v7655 = vadd.f32 %v7651, %v3769
  %v7656 = vadd.f32 %v7652, %v3773
  %v7657 = vmax.f32 %v7629, %v7653
  %v7658 = vmax.f32 %v7630, %v7654
  %v7659 = vmax.f32 %v7631, %v7655
  %v7660 = vmax.f32 %v7632, %v7656
  %v7661 = vadd.f32 %v3291, %v3313
  %v7662 = vadd.f32 %v3295, %v3317
  %v7663 = vadd.f32 %v3301, %v3323
  %v7664 = vadd.f32 %v3305, %v3327
  %v7665 = vadd.f32 %v7661, %v3504
  %v7666 = vadd.f32 %v7662, %v3508
  %v7667 = vadd.f32 %v7663, %v3514
  %v7668 = vadd.f32 %v7664, %v3518
  %v7669 = vadd.f32 %v7665, %v3526
  %v7670 = vadd.f32 %v7666, %v3530
  %v7671 = vadd.f32 %v7667, %v3536
  %v7672 = vadd.f32 %v7668, %v3540
  %v7673 = vadd.f32 %v7669, %v3717
  %v7674 = vadd.f32 %v7670, %v3721
  %v7675 = vadd.f32 %v7671, %v3727
  %v7676 = vadd.f32 %v7672, %v3731
  %v7677 = vadd.f32 %v7673, %v3739
  %v7678 = vadd.f32 %v7674, %v3743
  %v7679 = vadd.f32 %v7675, %v3749
  %v7680 = vadd.f32 %v7676, %v3753
  %v7681 = vadd.f32 %v7677, %v3930
  %v7682 = vadd.f32 %v7678, %v3934
  %v7683 = vadd.f32 %v7679, %v3940
  %v7684 = vadd.f32 %v7680, %v3944
  %v7685 = vmax.f32 %v7657, %v7681
  %v7686 = vmax.f32 %v7658, %v7682
  %v7687 = vmax.f32 %v7659, %v7683
  %v7688 = vmax.f32 %v7660, %v7684
  %v7689 = vadd.f32 %v3293, %v3484
  %v7690 = vadd.f32 %v3297, %v3488
  %v7691 = vadd.f32 %v3303, %v3494
  %v7692 = vadd.f32 %v3307, %v3498
  %v7693 = vadd.f32 %v7689, %v3506
  %v7694 = vadd.f32 %v7690, %v3510
  %v7695 = vadd.f32 %v7691, %v3516
  %v7696 = vadd.f32 %v7692, %v3520
  %v7697 = vadd.f32 %v7693, %v3697
  %v7698 = vadd.f32 %v7694, %v3701
  %v7699 = vadd.f32 %v7695, %v3707
  %v7700 = vadd.f32 %v7696, %v3711
  %v7701 = vadd.f32 %v7697, %v3719
  %v7702 = vadd.f32 %v7698, %v3723
  %v7703 = vadd.f32 %v7699, %v3729
  %v7704 = vadd.f32 %v7700, %v3733
  %v7705 = vadd.f32 %v7701, %v3910
  %v7706 = vadd.f32 %v7702, %v3914
  %v7707 = vadd.f32 %v7703, %v3920
  %v7708 = vadd.f32 %v7704, %v3924
  %v7709 = vadd.f32 %v7705, %v3932
  %v7710 = vadd.f32 %v7706, %v3936
  %v7711 = vadd.f32 %v7707, %v3942
  %v7712 = vadd.f32 %v7708, %v3946
  %v7713 = vmax.f32 %v7685, %v7709
  %v7714 = vmax.f32 %v7686, %v7710
  %v7715 = vmax.f32 %v7687, %v7711
  %v7716 = vmax.f32 %v7688, %v7712
  %v7717 = vadd.f32 %v3464, %v3486
  %v7718 = vadd.f32 %v3468, %v3490
  %v7719 = vadd.f32 %v3474, %v3496
  %v7720 = vadd.f32 %v3478, %v3500
  %v7721 = vadd.f32 %v7717, %v3677
  %v7722 = vadd.f32 %v7718, %v3681
  %v7723 = vadd.f32 %v7719, %v3687
  %v7724 = vadd.f32 %v7720, %v3691
  %v7725 = vadd.f32 %v7721, %v3699
  %v7726 = vadd.f32 %v7722, %v3703
  %v7727 = vadd.f32 %v7723, %v3709
  %v7728 = vadd.f32 %v7724, %v3713
  %v7729 = vadd.f32 %v7725, %v3890
  %v7730 = vadd.f32 %v7726, %v3894
  %v7731 = vadd.f32 %v7727, %v3900
  %v7732 = vadd.f32 %v7728, %v3904
  %v7733 = vadd.f32 %v7729, %v3912
  %v7734 = vadd.f32 %v7730, %v3916
  %v7735 = vadd.f32 %v7731, %v3922
  %v7736 = vadd.f32 %v7732, %v3926
  %v7737 = vadd.f32 %v7733, %v4103
  %v7738 = vadd.f32 %v7734, %v4107
  %v7739 = vadd.f32 %v7735, %v4113
  %v7740 = vadd.f32 %v7736, %v4117
  %v7741 = vmax.f32 %v7713, %v7737
  %v7742 = vmax.f32 %v7714, %v7738
  %v7743 = vmax.f32 %v7715, %v7739
  %v7744 = vmax.f32 %v7716, %v7740
  %v7745 = vadd.f32 %v3466, %v3657
  %v7746 = vadd.f32 %v3470, %v3661
  %v7747 = vadd.f32 %v3476, %v3667
  %v7748 = vadd.f32 %v3480, %v3671
  %v7749 = vadd.f32 %v7745, %v3679
  %v7750 = vadd.f32 %v7746, %v3683
  %v7751 = vadd.f32 %v7747, %v3689
  %v7752 = vadd.f32 %v7748, %v3693
  %v7753 = vadd.f32 %v7749, %v3870
  %v7754 = vadd.f32 %v7750, %v3874
  %v7755 = vadd.f32 %v7751, %v3880
  %v7756 = vadd.f32 %v7752, %v3884
  %v7757 = vadd.f32 %v7753, %v3892
  %v7758 = vadd.f32 %v7754, %v3896
  %v7759 = vadd.f32 %v7755, %v3902
  %v7760 = vadd.f32 %v7756, %v3906
  %v7761 = vadd.f32 %v7757, %v4083
  %v7762 = vadd.f32 %v7758, %v4087
  %v7763 = vadd.f32 %v7759, %v4093
  %v7764 = vadd.f32 %v7760, %v4097
  %v7765 = vadd.f32 %v7761, %v4105
  %v7766 = vadd.f32 %v7762, %v4109
  %v7767 = vadd.f32 %v7763, %v4115
  %v7768 = vadd.f32 %v7764, %v4119
  %v7769 = vmax.f32 %v7741, %v7765
  %v7770 = vmax.f32 %v7742, %v7766
  %v7771 = vmax.f32 %v7743, %v7767
  %v7772 = vmax.f32 %v7744, %v7768
  %v7773 = vadd.f32 %v3637, %v3659
  %v7774 = vadd.f32 %v3641, %v3663
  %v7775 = vadd.f32 %v3647, %v3669
  %v7776 = vadd.f32 %v3651, %v3673
  %v7777 = vadd.f32 %v7773, %v3850
  %v7778 = vadd.f32 %v7774, %v3854
  %v7779 = vadd.f32 %v7775, %v3860
  %v7780 = vadd.f32 %v7776, %v3864
  %v7781 = vadd.f32 %v7777, %v3872
  %v7782 = vadd.f32 %v7778, %v3876
  %v7783 = vadd.f32 %v7779, %v3882
  %v7784 = vadd.f32 %v7780, %v3886
  %v7785 = vadd.f32 %v7781, %v4063
  %v7786 = vadd.f32 %v7782, %v4067
  %v7787 = vadd.f32 %v7783, %v4073
  %v7788 = vadd.f32 %v7784, %v4077
  %v7789 = vadd.f32 %v7785, %v4085
  %v7790 = vadd.f32 %v7786, %v4089
  %v7791 = vadd.f32 %v7787, %v4095
  %v7792 = vadd.f32 %v7788, %v4099
  %v7793 = vadd.f32 %v7789, %v4276
  %v7794 = vadd.f32 %v7790, %v4280
  %v7795 = vadd.f32 %v7791, %v4286
  %v7796 = vadd.f32 %v7792, %v4290
  %v7797 = vmax.f32 %v7769, %v7793
  %v7798 = vmax.f32 %v7770, %v7794
  %v7799 = vmax.f32 %v7771, %v7795
  %v7800 = vmax.f32 %v7772, %v7796
  %v7801 = vadd.f32 %v3639, %v3830
  %v7802 = vadd.f32 %v3643, %v3834
  %v7803 = vadd.f32 %v3649, %v3840
  %v7804 = vadd.f32 %v3653, %v3844
  %v7805 = vadd.f32 %v7801, %v3852
  %v7806 = vadd.f32 %v7802, %v3856
  %v7807 = vadd.f32 %v7803, %v3862
  %v7808 = vadd.f32 %v7804, %v3866
  %v7809 = vadd.f32 %v7805, %v4043
  %v7810 = vadd.f32 %v7806, %v4047
  %v7811 = vadd.f32 %v7807, %v4053
  %v7812 = vadd.f32 %v7808, %v4057
  %v7813 = vadd.f32 %v7809, %v4065
  %v7814 = vadd.f32 %v7810, %v4069
  %v7815 = vadd.f32 %v7811, %v4075
  %v7816 = vadd.f32 %v7812, %v4079
  %v7817 = vadd.f32 %v7813, %v4256
  %v7818 = vadd.f32 %v7814, %v4260
  %v7819 = vadd.f32 %v7815, %v4266
  %v7820 = vadd.f32 %v7816, %v4270
  %v7821 = vadd.f32 %v7817, %v4278
  %v7822 = vadd.f32 %v7818, %v4282
  %v7823 = vadd.f32 %v7819, %v4288
  %v7824 = vadd.f32 %v7820, %v4292
  %v7825 = vmax.f32 %v7797, %v7821
  %v7826 = vmax.f32 %v7798, %v7822
  %v7827 = vmax.f32 %v7799, %v7823
  %v7828 = vmax.f32 %v7800, %v7824
  %v7829 = vadd.f32 %v3810, %v3832
  %v7830 = vadd.f32 %v3814, %v3836
  %v7831 = vadd.f32 %v3820, %v3842
  %v7832 = vadd.f32 %v3824, %v3846
  %v7833 = vadd.f32 %v7829, %v4023
  %v7834 = vadd.f32 %v7830, %v4027
  %v7835 = vadd.f32 %v7831, %v4033
  %v7836 = vadd.f32 %v7832, %v4037
  %v7837 = vadd.f32 %v7833, %v4045
  %v7838 = vadd.f32 %v7834, %v4049
  %v7839 = vadd.f32 %v7835, %v4055
  %v7840 = vadd.f32 %v7836, %v4059
  %v7841 = vadd.f32 %v7837, %v4236
  %v7842 = vadd.f32 %v7838, %v4240
  %v7843 = vadd.f32 %v7839, %v4246
  %v7844 = vadd.f32 %v7840, %v4250
  %v7845 = vadd.f32 %v7841, %v4258
  %v7846 = vadd.f32 %v7842, %v4262
  %v7847 = vadd.f32 %v7843, %v4268
  %v7848 = vadd.f32 %v7844, %v4272
  %v7849 = vadd.f32 %v7845, %v4449
  %v7850 = vadd.f32 %v7846, %v4453
  %v7851 = vadd.f32 %v7847, %v4459
  %v7852 = vadd.f32 %v7848, %v4463
  %v7853 = vmax.f32 %v7825, %v7849
  %v7854 = vmax.f32 %v7826, %v7850
  %v7855 = vmax.f32 %v7827, %v7851
  %v7856 = vmax.f32 %v7828, %v7852
  %v7857 = vadd.f32 %v3812, %v4003
  %v7858 = vadd.f32 %v3816, %v4007
  %v7859 = vadd.f32 %v3822, %v4013
  %v7860 = vadd.f32 %v3826, %v4017
  %v7861 = vadd.f32 %v7857, %v4025
  %v7862 = vadd.f32 %v7858, %v4029
  %v7863 = vadd.f32 %v7859, %v4035
  %v7864 = vadd.f32 %v7860, %v4039
  %v7865 = vadd.f32 %v7861, %v4216
  %v7866 = vadd.f32 %v7862, %v4220
  %v7867 = vadd.f32 %v7863, %v4226
  %v7868 = vadd.f32 %v7864, %v4230
  %v7869 = vadd.f32 %v7865, %v4238
  %v7870 = vadd.f32 %v7866, %v4242
  %v7871 = vadd.f32 %v7867, %v4248
  %v7872 = vadd.f32 %v7868, %v4252
  %v7873 = vadd.f32 %v7869, %v4429
  %v7874 = vadd.f32 %v7870, %v4433
  %v7875 = vadd.f32 %v7871, %v4439
  %v7876 = vadd.f32 %v7872, %v4443
  %v7877 = vadd.f32 %v7873, %v4451
  %v7878 = vadd.f32 %v7874, %v4455
  %v7879 = vadd.f32 %v7875, %v4461
  %v7880 = vadd.f32 %v7876, %v4465
  %v7881 = vmax.f32 %v7853, %v7877
  %v7882 = vmax.f32 %v7854, %v7878
  %v7883 = vmax.f32 %v7855, %v7879
  %v7884 = vmax.f32 %v7856, %v7880
  %v7885 = vadd.f32 %v3983, %v4005
  %v7886 = vadd.f32 %v3987, %v4009
  %v7887 = vadd.f32 %v3993, %v4015
  %v7888 = vadd.f32 %v3997, %v4019
  %v7889 = vadd.f32 %v7885, %v4196
  %v7890 = vadd.f32 %v7886, %v4200
  %v7891 = vadd.f32 %v7887, %v4206
  %v7892 = vadd.f32 %v7888, %v4210
  %v7893 = vadd.f32 %v7889, %v4218
  %v7894 = vadd.f32 %v7890, %v4222
  %v7895 = vadd.f32 %v7891, %v4228
  %v7896 = vadd.f32 %v7892, %v4232
  %v7897 = vadd.f32 %v7893, %v4409
  %v7898 = vadd.f32 %v7894, %v4413
  %v7899 = vadd.f32 %v7895, %v4419
  %v7900 = vadd.f32 %v7896, %v4423
  %v7901 = vadd.f32 %v7897, %v4431
  %v7902 = vadd.f32 %v7898, %v4435
  %v7903 = vadd.f32 %v7899, %v4441
  %v7904 = vadd.f32 %v7900, %v4445
  %v7905 = vadd.f32 %v7901, %v4622
  %v7906 = vadd.f32 %v7902, %v4626
  %v7907 = vadd.f32 %v7903, %v4632
  %v7908 = vadd.f32 %v7904, %v4636
  %v7909 = vmax.f32 %v7881, %v7905
  %v7910 = vmax.f32 %v7882, %v7906
  %v7911 = vmax.f32 %v7883, %v7907
  %v7912 = vmax.f32 %v7884, %v7908
  %v7913 = vadd.f32 %v3985, %v4176
  %v7914 = vadd.f32 %v3989, %v4180
  %v7915 = vadd.f32 %v3995, %v4186
  %v7916 = vadd.f32 %v3999, %v4190
  %v7917 = vadd.f32 %v7913, %v4198
  %v7918 = vadd.f32 %v7914, %v4202
  %v7919 = vadd.f32 %v7915, %v4208
  %v7920 = vadd.f32 %v7916, %v4212
  %v7921 = vadd.f32 %v7917, %v4389
  %v7922 = vadd.f32 %v7918, %v4393
  %v7923 = vadd.f32 %v7919, %v4399
  %v7924 = vadd.f32 %v7920, %v4403
  %v7925 = vadd.f32 %v7921, %v4411
  %v7926 = vadd.f32 %v7922, %v4415
  %v7927 = vadd.f32 %v7923, %v4421
  %v7928 = vadd.f32 %v7924, %v4425
  %v7929 = vadd.f32 %v7925, %v4602
  %v7930 = vadd.f32 %v7926, %v4606
  %v7931 = vadd.f32 %v7927, %v4612
  %v7932 = vadd.f32 %v7928, %v4616
  %v7933 = vadd.f32 %v7929, %v4624
  %v7934 = vadd.f32 %v7930, %v4628
  %v7935 = vadd.f32 %v7931, %v4634
  %v7936 = vadd.f32 %v7932, %v4638
  %v7937 = vmax.f32 %v7909, %v7933
  %v7938 = vmax.f32 %v7910, %v7934
  %v7939 = vmax.f32 %v7911, %v7935
  %v7940 = vmax.f32 %v7912, %v7936
  %v7941 = vadd.f32 %v4156, %v4178
  %v7942 = vadd.f32 %v4160, %v4182
  %v7943 = vadd.f32 %v4166, %v4188
  %v7944 = vadd.f32 %v4170, %v4192
  %v7945 = vadd.f32 %v7941, %v4369
  %v7946 = vadd.f32 %v7942, %v4373
  %v7947 = vadd.f32 %v7943, %v4379
  %v7948 = vadd.f32 %v7944, %v4383
  %v7949 = vadd.f32 %v7945, %v4391
  %v7950 = vadd.f32 %v7946, %v4395
  %v7951 = vadd.f32 %v7947, %v4401
  %v7952 = vadd.f32 %v7948, %v4405
  %v7953 = vadd.f32 %v7949, %v4582
  %v7954 = vadd.f32 %v7950, %v4586
  %v7955 = vadd.f32 %v7951, %v4592
  %v7956 = vadd.f32 %v7952, %v4596
  %v7957 = vadd.f32 %v7953, %v4604
  %v7958 = vadd.f32 %v7954, %v4608
  %v7959 = vadd.f32 %v7955, %v4614
  %v7960 = vadd.f32 %v7956, %v4618
  %v7961 = vadd.f32 %v7957, %v4795
  %v7962 = vadd.f32 %v7958, %v4799
  %v7963 = vadd.f32 %v7959, %v4805
  %v7964 = vadd.f32 %v7960, %v4809
  %v7965 = vmax.f32 %v7937, %v7961
  %v7966 = vmax.f32 %v7938, %v7962
  %v7967 = vmax.f32 %v7939, %v7963
  %v7968 = vmax.f32 %v7940, %v7964
  %v7969 = vadd.f32 %v4158, %v4349
  %v7970 = vadd.f32 %v4162, %v4353
  %v7971 = vadd.f32 %v4168, %v4359
  %v7972 = vadd.f32 %v4172, %v4363
  %v7973 = vadd.f32 %v7969, %v4371
  %v7974 = vadd.f32 %v7970, %v4375
  %v7975 = vadd.f32 %v7971, %v4381
  %v7976 = vadd.f32 %v7972, %v4385
  %v7977 = vadd.f32 %v7973, %v4562
  %v7978 = vadd.f32 %v7974, %v4566
  %v7979 = vadd.f32 %v7975, %v4572
  %v7980 = vadd.f32 %v7976, %v4576
  %v7981 = vadd.f32 %v7977, %v4584
  %v7982 = vadd.f32 %v7978, %v4588
  %v7983 = vadd.f32 %v7979, %v4594
  %v7984 = vadd.f32 %v7980, %v4598
  %v7985 = vadd.f32 %v7981, %v4775
  %v7986 = vadd.f32 %v7982, %v4779
  %v7987 = vadd.f32 %v7983, %v4785
  %v7988 = vadd.f32 %v7984, %v4789
  %v7989 = vadd.f32 %v7985, %v4797
  %v7990 = vadd.f32 %v7986, %v4801
  %v7991 = vadd.f32 %v7987, %v4807
  %v7992 = vadd.f32 %v7988, %v4811
  %v7993 = vmax.f32 %v7965, %v7989
  %v7994 = vmax.f32 %v7966, %v7990
  %v7995 = vmax.f32 %v7967, %v7991
  %v7996 = vmax.f32 %v7968, %v7992
  %v7997 = vadd.f32 %v4329, %v4351
  %v7998 = vadd.f32 %v4333, %v4355
  %v7999 = vadd.f32 %v4339, %v4361
  %v8000 = vadd.f32 %v4343, %v4365
  %v8001 = vadd.f32 %v7997, %v4542
  %v8002 = vadd.f32 %v7998, %v4546
  %v8003 = vadd.f32 %v7999, %v4552
  %v8004 = vadd.f32 %v8000, %v4556
  %v8005 = vadd.f32 %v8001, %v4564
  %v8006 = vadd.f32 %v8002, %v4568
  %v8007 = vadd.f32 %v8003, %v4574
  %v8008 = vadd.f32 %v8004, %v4578
  %v8009 = vadd.f32 %v8005, %v4755
  %v8010 = vadd.f32 %v8006, %v4759
  %v8011 = vadd.f32 %v8007, %v4765
  %v8012 = vadd.f32 %v8008, %v4769
  %v8013 = vadd.f32 %v8009, %v4777
  %v8014 = vadd.f32 %v8010, %v4781
  %v8015 = vadd.f32 %v8011, %v4787
  %v8016 = vadd.f32 %v8012, %v4791
  %v8017 = vadd.f32 %v8013, %v4968
  %v8018 = vadd.f32 %v8014, %v4972
  %v8019 = vadd.f32 %v8015, %v4978
  %v8020 = vadd.f32 %v8016, %v4982
  %v8021 = vmax.f32 %v7993, %v8017
  %v8022 = vmax.f32 %v7994, %v8018
  %v8023 = vmax.f32 %v7995, %v8019
  %v8024 = vmax.f32 %v7996, %v8020
  %v8025 = vadd.f32 %v4331, %v4522
  %v8026 = vadd.f32 %v4335, %v4526
  %v8027 = vadd.f32 %v4341, %v4532
  %v8028 = vadd.f32 %v4345, %v4536
  %v8029 = vadd.f32 %v8025, %v4544
  %v8030 = vadd.f32 %v8026, %v4548
  %v8031 = vadd.f32 %v8027, %v4554
  %v8032 = vadd.f32 %v8028, %v4558
  %v8033 = vadd.f32 %v8029, %v4735
  %v8034 = vadd.f32 %v8030, %v4739
  %v8035 = vadd.f32 %v8031, %v4745
  %v8036 = vadd.f32 %v8032, %v4749
  %v8037 = vadd.f32 %v8033, %v4757
  %v8038 = vadd.f32 %v8034, %v4761
  %v8039 = vadd.f32 %v8035, %v4767
  %v8040 = vadd.f32 %v8036, %v4771
  %v8041 = vadd.f32 %v8037, %v4948
  %v8042 = vadd.f32 %v8038, %v4952
  %v8043 = vadd.f32 %v8039, %v4958
  %v8044 = vadd.f32 %v8040, %v4962
  %v8045 = vadd.f32 %v8041, %v4970
  %v8046 = vadd.f32 %v8042, %v4974
  %v8047 = vadd.f32 %v8043, %v4980
  %v8048 = vadd.f32 %v8044, %v4984
  %v8049 = vmax.f32 %v8021, %v8045
  %v8050 = vmax.f32 %v8022, %v8046
  %v8051 = vmax.f32 %v8023, %v8047
  %v8052 = vmax.f32 %v8024, %v8048
  %v8053 = vadd.f32 %v4502, %v4524
  %v8054 = vadd.f32 %v4506, %v4528
  %v8055 = vadd.f32 %v4512, %v4534
  %v8056 = vadd.f32 %v4516, %v4538
  %v8057 = vadd.f32 %v8053, %v4715
  %v8058 = vadd.f32 %v8054, %v4719
  %v8059 = vadd.f32 %v8055, %v4725
  %v8060 = vadd.f32 %v8056, %v4729
  %v8061 = vadd.f32 %v8057, %v4737
  %v8062 = vadd.f32 %v8058, %v4741
  %v8063 = vadd.f32 %v8059, %v4747
  %v8064 = vadd.f32 %v8060, %v4751
  %v8065 = vadd.f32 %v8061, %v4928
  %v8066 = vadd.f32 %v8062, %v4932
  %v8067 = vadd.f32 %v8063, %v4938
  %v8068 = vadd.f32 %v8064, %v4942
  %v8069 = vadd.f32 %v8065, %v4950
  %v8070 = vadd.f32 %v8066, %v4954
  %v8071 = vadd.f32 %v8067, %v4960
  %v8072 = vadd.f32 %v8068, %v4964
  %v8073 = vadd.f32 %v8069, %v5141
  %v8074 = vadd.f32 %v8070, %v5145
  %v8075 = vadd.f32 %v8071, %v5151
  %v8076 = vadd.f32 %v8072, %v5155
  %v8077 = vmax.f32 %v8049, %v8073
  %v8078 = vmax.f32 %v8050, %v8074
  %v8079 = vmax.f32 %v8051, %v8075
  %v8080 = vmax.f32 %v8052, %v8076
  %v8081 = vadd.f32 %v4504, %v4695
  %v8082 = vadd.f32 %v4508, %v4699
  %v8083 = vadd.f32 %v4514, %v4705
  %v8084 = vadd.f32 %v4518, %v4709
  %v8085 = vadd.f32 %v8081, %v4717
  %v8086 = vadd.f32 %v8082, %v4721
  %v8087 = vadd.f32 %v8083, %v4727
  %v8088 = vadd.f32 %v8084, %v4731
  %v8089 = vadd.f32 %v8085, %v4908
  %v8090 = vadd.f32 %v8086, %v4912
  %v8091 = vadd.f32 %v8087, %v4918
  %v8092 = vadd.f32 %v8088, %v4922
  %v8093 = vadd.f32 %v8089, %v4930
  %v8094 = vadd.f32 %v8090, %v4934
  %v8095 = vadd.f32 %v8091, %v4940
  %v8096 = vadd.f32 %v8092, %v4944
  %v8097 = vadd.f32 %v8093, %v5121
  %v8098 = vadd.f32 %v8094, %v5125
  %v8099 = vadd.f32 %v8095, %v5131
  %v8100 = vadd.f32 %v8096, %v5135
  %v8101 = vadd.f32 %v8097, %v5143
  %v8102 = vadd.f32 %v8098, %v5147
  %v8103 = vadd.f32 %v8099, %v5153
  %v8104 = vadd.f32 %v8100, %v5157
  %v8105 = vmax.f32 %v8077, %v8101
  %v8106 = vmax.f32 %v8078, %v8102
  %v8107 = vmax.f32 %v8079, %v8103
  %v8108 = vmax.f32 %v8080, %v8104
  %v8109 = vadd.f32 %v4675, %v4697
  %v8110 = vadd.f32 %v4679, %v4701
  %v8111 = vadd.f32 %v4685, %v4707
  %v8112 = vadd.f32 %v4689, %v4711
  %v8113 = vadd.f32 %v8109, %v4888
  %v8114 = vadd.f32 %v8110, %v4892
  %v8115 = vadd.f32 %v8111, %v4898
  %v8116 = vadd.f32 %v8112, %v4902
  %v8117 = vadd.f32 %v8113, %v4910
  %v8118 = vadd.f32 %v8114, %v4914
  %v8119 = vadd.f32 %v8115, %v4920
  %v8120 = vadd.f32 %v8116, %v4924
  %v8121 = vadd.f32 %v8117, %v5101
  %v8122 = vadd.f32 %v8118, %v5105
  %v8123 = vadd.f32 %v8119, %v5111
  %v8124 = vadd.f32 %v8120, %v5115
  %v8125 = vadd.f32 %v8121, %v5123
  %v8126 = vadd.f32 %v8122, %v5127
  %v8127 = vadd.f32 %v8123, %v5133
  %v8128 = vadd.f32 %v8124, %v5137
  %v8129 = vadd.f32 %v8125, %v5314
  %v8130 = vadd.f32 %v8126, %v5318
  %v8131 = vadd.f32 %v8127, %v5324
  %v8132 = vadd.f32 %v8128, %v5328
  %v8133 = vmax.f32 %v8105, %v8129
  %v8134 = vmax.f32 %v8106, %v8130
  %v8135 = vmax.f32 %v8107, %v8131
  %v8136 = vmax.f32 %v8108, %v8132
  %v8137 = vadd.f32 %v4677, %v4868
  %v8138 = vadd.f32 %v4681, %v4872
  %v8139 = vadd.f32 %v4687, %v4878
  %v8140 = vadd.f32 %v4691, %v4882
  %v8141 = vadd.f32 %v8137, %v4890
  %v8142 = vadd.f32 %v8138, %v4894
  %v8143 = vadd.f32 %v8139, %v4900
  %v8144 = vadd.f32 %v8140, %v4904
  %v8145 = vadd.f32 %v8141, %v5081
  %v8146 = vadd.f32 %v8142, %v5085
  %v8147 = vadd.f32 %v8143, %v5091
  %v8148 = vadd.f32 %v8144, %v5095
  %v8149 = vadd.f32 %v8145, %v5103
  %v8150 = vadd.f32 %v8146, %v5107
  %v8151 = vadd.f32 %v8147, %v5113
  %v8152 = vadd.f32 %v8148, %v5117
  %v8153 = vadd.f32 %v8149, %v5294
  %v8154 = vadd.f32 %v8150, %v5298
  %v8155 = vadd.f32 %v8151, %v5304
  %v8156 = vadd.f32 %v8152, %v5308
  %v8157 = vadd.f32 %v8153, %v5316
  %v8158 = vadd.f32 %v8154, %v5320
  %v8159 = vadd.f32 %v8155, %v5326
  %v8160 = vadd.f32 %v8156, %v5330
  %v8161 = vmax.f32 %v8133, %v8157
  %v8162 = vmax.f32 %v8134, %v8158
  %v8163 = vmax.f32 %v8135, %v8159
  %v8164 = vmax.f32 %v8136, %v8160
  %v8165 = vadd.f32 %v4848, %v4870
  %v8166 = vadd.f32 %v4852, %v4874
  %v8167 = vadd.f32 %v4858, %v4880
  %v8168 = vadd.f32 %v4862, %v4884
  %v8169 = vadd.f32 %v8165, %v5061
  %v8170 = vadd.f32 %v8166, %v5065
  %v8171 = vadd.f32 %v8167, %v5071
  %v8172 = vadd.f32 %v8168, %v5075
  %v8173 = vadd.f32 %v8169, %v5083
  %v8174 = vadd.f32 %v8170, %v5087
  %v8175 = vadd.f32 %v8171, %v5093
  %v8176 = vadd.f32 %v8172, %v5097
  %v8177 = vadd.f32 %v8173, %v5274
  %v8178 = vadd.f32 %v8174, %v5278
  %v8179 = vadd.f32 %v8175, %v5284
  %v8180 = vadd.f32 %v8176, %v5288
  %v8181 = vadd.f32 %v8177, %v5296
  %v8182 = vadd.f32 %v8178, %v5300
  %v8183 = vadd.f32 %v8179, %v5306
  %v8184 = vadd.f32 %v8180, %v5310
  %v8185 = vadd.f32 %v8181, %v5487
  %v8186 = vadd.f32 %v8182, %v5491
  %v8187 = vadd.f32 %v8183, %v5497
  %v8188 = vadd.f32 %v8184, %v5501
  %v8189 = vmax.f32 %v8161, %v8185
  %v8190 = vmax.f32 %v8162, %v8186
  %v8191 = vmax.f32 %v8163, %v8187
  %v8192 = vmax.f32 %v8164, %v8188
  %v8193 = vadd.f32 %v4850, %v5041
  %v8194 = vadd.f32 %v4854, %v5045
  %v8195 = vadd.f32 %v4860, %v5051
  %v8196 = vadd.f32 %v4864, %v5055
  %v8197 = vadd.f32 %v8193, %v5063
  %v8198 = vadd.f32 %v8194, %v5067
  %v8199 = vadd.f32 %v8195, %v5073
  %v8200 = vadd.f32 %v8196, %v5077
  %v8201 = vadd.f32 %v8197, %v5254
  %v8202 = vadd.f32 %v8198, %v5258
  %v8203 = vadd.f32 %v8199, %v5264
  %v8204 = vadd.f32 %v8200, %v5268
  %v8205 = vadd.f32 %v8201, %v5276
  %v8206 = vadd.f32 %v8202, %v5280
  %v8207 = vadd.f32 %v8203, %v5286
  %v8208 = vadd.f32 %v8204, %v5290
  %v8209 = vadd.f32 %v8205, %v5467
  %v8210 = vadd.f32 %v8206, %v5471
  %v8211 = vadd.f32 %v8207, %v5477
  %v8212 = vadd.f32 %v8208, %v5481
  %v8213 = vadd.f32 %v8209, %v5489
  %v8214 = vadd.f32 %v8210, %v5493
  %v8215 = vadd.f32 %v8211, %v5499
  %v8216 = vadd.f32 %v8212, %v5503
  %v8217 = vmax.f32 %v8189, %v8213
  %v8218 = vmax.f32 %v8190, %v8214
  %v8219 = vmax.f32 %v8191, %v8215
  %v8220 = vmax.f32 %v8192, %v8216
  %v8221 = vadd.f32 %v5021, %v5043
  %v8222 = vadd.f32 %v5025, %v5047
  %v8223 = vadd.f32 %v5031, %v5053
  %v8224 = vadd.f32 %v5035, %v5057
  %v8225 = vadd.f32 %v8221, %v5234
  %v8226 = vadd.f32 %v8222, %v5238
  %v8227 = vadd.f32 %v8223, %v5244
  %v8228 = vadd.f32 %v8224, %v5248
  %v8229 = vadd.f32 %v8225, %v5256
  %v8230 = vadd.f32 %v8226, %v5260
  %v8231 = vadd.f32 %v8227, %v5266
  %v8232 = vadd.f32 %v8228, %v5270
  %v8233 = vadd.f32 %v8229, %v5447
  %v8234 = vadd.f32 %v8230, %v5451
  %v8235 = vadd.f32 %v8231, %v5457
  %v8236 = vadd.f32 %v8232, %v5461
  %v8237 = vadd.f32 %v8233, %v5469
  %v8238 = vadd.f32 %v8234, %v5473
  %v8239 = vadd.f32 %v8235, %v5479
  %v8240 = vadd.f32 %v8236, %v5483
  %v8241 = vadd.f32 %v8237, %v5660
  %v8242 = vadd.f32 %v8238, %v5664
  %v8243 = vadd.f32 %v8239, %v5670
  %v8244 = vadd.f32 %v8240, %v5674
  %v8245 = vmax.f32 %v8217, %v8241
  %v8246 = vmax.f32 %v8218, %v8242
  %v8247 = vmax.f32 %v8219, %v8243
  %v8248 = vmax.f32 %v8220, %v8244
  %v8249 = vadd.f32 %v5023, %v5214
  %v8250 = vadd.f32 %v5027, %v5218
  %v8251 = vadd.f32 %v5033, %v5224
  %v8252 = vadd.f32 %v5037, %v5228
  %v8253 = vadd.f32 %v8249, %v5236
  %v8254 = vadd.f32 %v8250, %v5240
  %v8255 = vadd.f32 %v8251, %v5246
  %v8256 = vadd.f32 %v8252, %v5250
  %v8257 = vadd.f32 %v8253, %v5427
  %v8258 = vadd.f32 %v8254, %v5431
  %v8259 = vadd.f32 %v8255, %v5437
  %v8260 = vadd.f32 %v8256, %v5441
  %v8261 = vadd.f32 %v8257, %v5449
  %v8262 = vadd.f32 %v8258, %v5453
  %v8263 = vadd.f32 %v8259, %v5459
  %v8264 = vadd.f32 %v8260, %v5463
  %v8265 = vadd.f32 %v8261, %v5640
  %v8266 = vadd.f32 %v8262, %v5644
  %v8267 = vadd.f32 %v8263, %v5650
  %v8268 = vadd.f32 %v8264, %v5654
  %v8269 = vadd.f32 %v8265, %v5662
  %v8270 = vadd.f32 %v8266, %v5666
  %v8271 = vadd.f32 %v8267, %v5672
  %v8272 = vadd.f32 %v8268, %v5676
  %v8273 = vmax.f32 %v8245, %v8269
  %v8274 = vmax.f32 %v8246, %v8270
  %v8275 = vmax.f32 %v8247, %v8271
  %v8276 = vmax.f32 %v8248, %v8272
  %v8277 = vadd.f32 %v5194, %v5216
  %v8278 = vadd.f32 %v5198, %v5220
  %v8279 = vadd.f32 %v5204, %v5226
  %v8280 = vadd.f32 %v5208, %v5230
  %v8281 = vadd.f32 %v8277, %v5407
  %v8282 = vadd.f32 %v8278, %v5411
  %v8283 = vadd.f32 %v8279, %v5417
  %v8284 = vadd.f32 %v8280, %v5421
  %v8285 = vadd.f32 %v8281, %v5429
  %v8286 = vadd.f32 %v8282, %v5433
  %v8287 = vadd.f32 %v8283, %v5439
  %v8288 = vadd.f32 %v8284, %v5443
  %v8289 = vadd.f32 %v8285, %v5620
  %v8290 = vadd.f32 %v8286, %v5624
  %v8291 = vadd.f32 %v8287, %v5630
  %v8292 = vadd.f32 %v8288, %v5634
  %v8293 = vadd.f32 %v8289, %v5642
  %v8294 = vadd.f32 %v8290, %v5646
  %v8295 = vadd.f32 %v8291, %v5652
  %v8296 = vadd.f32 %v8292, %v5656
  %v8297 = vadd.f32 %v8293, %v5833
  %v8298 = vadd.f32 %v8294, %v5837
  %v8299 = vadd.f32 %v8295, %v5843
  %v8300 = vadd.f32 %v8296, %v5847
  %v8301 = vmax.f32 %v8273, %v8297
  %v8302 = vmax.f32 %v8274, %v8298
  %v8303 = vmax.f32 %v8275, %v8299
  %v8304 = vmax.f32 %v8276, %v8300
  %v8305 = vadd.f32 %v5196, %v5387
  %v8306 = vadd.f32 %v5200, %v5391
  %v8307 = vadd.f32 %v5206, %v5397
  %v8308 = vadd.f32 %v5210, %v5401
  %v8309 = vadd.f32 %v8305, %v5409
  %v8310 = vadd.f32 %v8306, %v5413
  %v8311 = vadd.f32 %v8307, %v5419
  %v8312 = vadd.f32 %v8308, %v5423
  %v8313 = vadd.f32 %v8309, %v5600
  %v8314 = vadd.f32 %v8310, %v5604
  %v8315 = vadd.f32 %v8311, %v5610
  %v8316 = vadd.f32 %v8312, %v5614
  %v8317 = vadd.f32 %v8313, %v5622
  %v8318 = vadd.f32 %v8314, %v5626
  %v8319 = vadd.f32 %v8315, %v5632
  %v8320 = vadd.f32 %v8316, %v5636
  %v8321 = vadd.f32 %v8317, %v5813
  %v8322 = vadd.f32 %v8318, %v5817
  %v8323 = vadd.f32 %v8319, %v5823
  %v8324 = vadd.f32 %v8320, %v5827
  %v8325 = vadd.f32 %v8321, %v5835
  %v8326 = vadd.f32 %v8322, %v5839
  %v8327 = vadd.f32 %v8323, %v5845
  %v8328 = vadd.f32 %v8324, %v5849
  %v8329 = vmax.f32 %v8301, %v8325
  %v8330 = vmax.f32 %v8302, %v8326
  %v8331 = vmax.f32 %v8303, %v8327
  %v8332 = vmax.f32 %v8304, %v8328
  %v8333 = vadd.f32 %v5367, %v5389
  %v8334 = vadd.f32 %v5371, %v5393
  %v8335 = vadd.f32 %v5377, %v5399
  %v8336 = vadd.f32 %v5381, %v5403
  %v8337 = vadd.f32 %v8333, %v5580
  %v8338 = vadd.f32 %v8334, %v5584
  %v8339 = vadd.f32 %v8335, %v5590
  %v8340 = vadd.f32 %v8336, %v5594
  %v8341 = vadd.f32 %v8337, %v5602
  %v8342 = vadd.f32 %v8338, %v5606
  %v8343 = vadd.f32 %v8339, %v5612
  %v8344 = vadd.f32 %v8340, %v5616
  %v8345 = vadd.f32 %v8341, %v5793
  %v8346 = vadd.f32 %v8342, %v5797
  %v8347 = vadd.f32 %v8343, %v5803
  %v8348 = vadd.f32 %v8344, %v5807
  %v8349 = vadd.f32 %v8345, %v5815
  %v8350 = vadd.f32 %v8346, %v5819
  %v8351 = vadd.f32 %v8347, %v5825
  %v8352 = vadd.f32 %v8348, %v5829
  %v8353 = vadd.f32 %v8349, %v6006
  %v8354 = vadd.f32 %v8350, %v6010
  %v8355 = vadd.f32 %v8351, %v6016
  %v8356 = vadd.f32 %v8352, %v6020
  %v8357 = vmax.f32 %v8329, %v8353
  %v8358 = vmax.f32 %v8330, %v8354
  %v8359 = vmax.f32 %v8331, %v8355
  %v8360 = vmax.f32 %v8332, %v8356
  %v8361 = vadd.f32 %v5369, %v5560
  %v8362 = vadd.f32 %v5373, %v5564
  %v8363 = vadd.f32 %v5379, %v5570
  %v8364 = vadd.f32 %v5383, %v5574
  %v8365 = vadd.f32 %v8361, %v5582
  %v8366 = vadd.f32 %v8362, %v5586
  %v8367 = vadd.f32 %v8363, %v5592
  %v8368 = vadd.f32 %v8364, %v5596
  %v8369 = vadd.f32 %v8365, %v5773
  %v8370 = vadd.f32 %v8366, %v5777
  %v8371 = vadd.f32 %v8367, %v5783
  %v8372 = vadd.f32 %v8368, %v5787
  %v8373 = vadd.f32 %v8369, %v5795
  %v8374 = vadd.f32 %v8370, %v5799
  %v8375 = vadd.f32 %v8371, %v5805
  %v8376 = vadd.f32 %v8372, %v5809
  %v8377 = vadd.f32 %v8373, %v5986
  %v8378 = vadd.f32 %v8374, %v5990
  %v8379 = vadd.f32 %v8375, %v5996
  %v8380 = vadd.f32 %v8376, %v6000
  %v8381 = vadd.f32 %v8377, %v6008
  %v8382 = vadd.f32 %v8378, %v6012
  %v8383 = vadd.f32 %v8379, %v6018
  %v8384 = vadd.f32 %v8380, %v6022
  %v8385 = vmax.f32 %v8357, %v8381
  %v8386 = vmax.f32 %v8358, %v8382
  %v8387 = vmax.f32 %v8359, %v8383
  %v8388 = vmax.f32 %v8360, %v8384
  %v8389 = vadd.f32 %v5540, %v5562
  %v8390 = vadd.f32 %v5544, %v5566
  %v8391 = vadd.f32 %v5550, %v5572
  %v8392 = vadd.f32 %v5554, %v5576
  %v8393 = vadd.f32 %v8389, %v5753
  %v8394 = vadd.f32 %v8390, %v5757
  %v8395 = vadd.f32 %v8391, %v5763
  %v8396 = vadd.f32 %v8392, %v5767
  %v8397 = vadd.f32 %v8393, %v5775
  %v8398 = vadd.f32 %v8394, %v5779
  %v8399 = vadd.f32 %v8395, %v5785
  %v8400 = vadd.f32 %v8396, %v5789
  %v8401 = vadd.f32 %v8397, %v5966
  %v8402 = vadd.f32 %v8398, %v5970
  %v8403 = vadd.f32 %v8399, %v5976
  %v8404 = vadd.f32 %v8400, %v5980
  %v8405 = vadd.f32 %v8401, %v5988
  %v8406 = vadd.f32 %v8402, %v5992
  %v8407 = vadd.f32 %v8403, %v5998
  %v8408 = vadd.f32 %v8404, %v6002
  %v8409 = vadd.f32 %v8405, %v6179
  %v8410 = vadd.f32 %v8406, %v6183
  %v8411 = vadd.f32 %v8407, %v6189
  %v8412 = vadd.f32 %v8408, %v6193
  %v8413 = vmax.f32 %v8385, %v8409
  %v8414 = vmax.f32 %v8386, %v8410
  %v8415 = vmax.f32 %v8387, %v8411
  %v8416 = vmax.f32 %v8388, %v8412
  %v8417 = vadd.f32 %v5542, %v5733
  %v8418 = vadd.f32 %v5546, %v5737
  %v8419 = vadd.f32 %v5552, %v5743
  %v8420 = vadd.f32 %v5556, %v5747
  %v8421 = vadd.f32 %v8417, %v5755
  %v8422 = vadd.f32 %v8418, %v5759
  %v8423 = vadd.f32 %v8419, %v5765
  %v8424 = vadd.f32 %v8420, %v5769
  %v8425 = vadd.f32 %v8421, %v5946
  %v8426 = vadd.f32 %v8422, %v5950
  %v8427 = vadd.f32 %v8423, %v5956
  %v8428 = vadd.f32 %v8424, %v5960
  %v8429 = vadd.f32 %v8425, %v5968
  %v8430 = vadd.f32 %v8426, %v5972
  %v8431 = vadd.f32 %v8427, %v5978
  %v8432 = vadd.f32 %v8428, %v5982
  %v8433 = vadd.f32 %v8429, %v6159
  %v8434 = vadd.f32 %v8430, %v6163
  %v8435 = vadd.f32 %v8431, %v6169
  %v8436 = vadd.f32 %v8432, %v6173
  %v8437 = vadd.f32 %v8433, %v6181
  %v8438 = vadd.f32 %v8434, %v6185
  %v8439 = vadd.f32 %v8435, %v6191
  %v8440 = vadd.f32 %v8436, %v6195
  %v8441 = vmax.f32 %v8413, %v8437
  %v8442 = vmax.f32 %v8414, %v8438
  %v8443 = vmax.f32 %v8415, %v8439
  %v8444 = vmax.f32 %v8416, %v8440
  %v8445 = vadd.f32 %v5713, %v5735
  %v8446 = vadd.f32 %v5717, %v5739
  %v8447 = vadd.f32 %v5723, %v5745
  %v8448 = vadd.f32 %v5727, %v5749
  %v8449 = vadd.f32 %v8445, %v5926
  %v8450 = vadd.f32 %v8446, %v5930
  %v8451 = vadd.f32 %v8447, %v5936
  %v8452 = vadd.f32 %v8448, %v5940
  %v8453 = vadd.f32 %v8449, %v5948
  %v8454 = vadd.f32 %v8450, %v5952
  %v8455 = vadd.f32 %v8451, %v5958
  %v8456 = vadd.f32 %v8452, %v5962
  %v8457 = vadd.f32 %v8453, %v6139
  %v8458 = vadd.f32 %v8454, %v6143
  %v8459 = vadd.f32 %v8455, %v6149
  %v8460 = vadd.f32 %v8456, %v6153
  %v8461 = vadd.f32 %v8457, %v6161
  %v8462 = vadd.f32 %v8458, %v6165
  %v8463 = vadd.f32 %v8459, %v6171
  %v8464 = vadd.f32 %v8460, %v6175
  %v8465 = vadd.f32 %v8461, %v6352
  %v8466 = vadd.f32 %v8462, %v6356
  %v8467 = vadd.f32 %v8463, %v6362
  %v8468 = vadd.f32 %v8464, %v6366
  %v8469 = vmax.f32 %v8441, %v8465
  %v8470 = vmax.f32 %v8442, %v8466
  %v8471 = vmax.f32 %v8443, %v8467
  %v8472 = vmax.f32 %v8444, %v8468
  %v8473 = vadd.f32 %v5715, %v5906
  %v8474 = vadd.f32 %v5719, %v5910
  %v8475 = vadd.f32 %v5725, %v5916
  %v8476 = vadd.f32 %v5729, %v5920
  %v8477 = vadd.f32 %v8473, %v5928
  %v8478 = vadd.f32 %v8474, %v5932
  %v8479 = vadd.f32 %v8475, %v5938
  %v8480 = vadd.f32 %v8476, %v5942
  %v8481 = vadd.f32 %v8477, %v6119
  %v8482 = vadd.f32 %v8478, %v6123
  %v8483 = vadd.f32 %v8479, %v6129
  %v8484 = vadd.f32 %v8480, %v6133
  %v8485 = vadd.f32 %v8481, %v6141
  %v8486 = vadd.f32 %v8482, %v6145
  %v8487 = vadd.f32 %v8483, %v6151
  %v8488 = vadd.f32 %v8484, %v6155
  %v8489 = vadd.f32 %v8485, %v6332
  %v8490 = vadd.f32 %v8486, %v6336
  %v8491 = vadd.f32 %v8487, %v6342
  %v8492 = vadd.f32 %v8488, %v6346
  %v8493 = vadd.f32 %v8489, %v6354
  %v8494 = vadd.f32 %v8490, %v6358
  %v8495 = vadd.f32 %v8491, %v6364
  %v8496 = vadd.f32 %v8492, %v6368
  %v8497 = vmax.f32 %v8469, %v8493
  %v8498 = vmax.f32 %v8470, %v8494
  %v8499 = vmax.f32 %v8471, %v8495
  %v8500 = vmax.f32 %v8472, %v8496
  %v8501 = vadd.f32 %v5886, %v5908
  %v8502 = vadd.f32 %v5890, %v5912
  %v8503 = vadd.f32 %v5896, %v5918
  %v8504 = vadd.f32 %v5900, %v5922
  %v8505 = vadd.f32 %v8501, %v6099
  %v8506 = vadd.f32 %v8502, %v6103
  %v8507 = vadd.f32 %v8503, %v6109
  %v8508 = vadd.f32 %v8504, %v6113
  %v8509 = vadd.f32 %v8505, %v6121
  %v8510 = vadd.f32 %v8506, %v6125
  %v8511 = vadd.f32 %v8507, %v6131
  %v8512 = vadd.f32 %v8508, %v6135
  %v8513 = vadd.f32 %v8509, %v6312
  %v8514 = vadd.f32 %v8510, %v6316
  %v8515 = vadd.f32 %v8511, %v6322
  %v8516 = vadd.f32 %v8512, %v6326
  %v8517 = vadd.f32 %v8513, %v6334
  %v8518 = vadd.f32 %v8514, %v6338
  %v8519 = vadd.f32 %v8515, %v6344
  %v8520 = vadd.f32 %v8516, %v6348
  %v8521 = vadd.f32 %v8517, %v6525
  %v8522 = vadd.f32 %v8518, %v6529
  %v8523 = vadd.f32 %v8519, %v6535
  %v8524 = vadd.f32 %v8520, %v6539
  %v8525 = vmax.f32 %v8497, %v8521
  %v8526 = vmax.f32 %v8498, %v8522
  %v8527 = vmax.f32 %v8499, %v8523
  %v8528 = vmax.f32 %v8500, %v8524
  %v8529 = vadd.f32 %v5888, %v6079
  %v8530 = vadd.f32 %v5892, %v6083
  %v8531 = vadd.f32 %v5898, %v6089
  %v8532 = vadd.f32 %v5902, %v6093
  %v8533 = vadd.f32 %v8529, %v6101
  %v8534 = vadd.f32 %v8530, %v6105
  %v8535 = vadd.f32 %v8531, %v6111
  %v8536 = vadd.f32 %v8532, %v6115
  %v8537 = vadd.f32 %v8533, %v6292
  %v8538 = vadd.f32 %v8534, %v6296
  %v8539 = vadd.f32 %v8535, %v6302
  %v8540 = vadd.f32 %v8536, %v6306
  %v8541 = vadd.f32 %v8537, %v6314
  %v8542 = vadd.f32 %v8538, %v6318
  %v8543 = vadd.f32 %v8539, %v6324
  %v8544 = vadd.f32 %v8540, %v6328
  %v8545 = vadd.f32 %v8541, %v6505
  %v8546 = vadd.f32 %v8542, %v6509
  %v8547 = vadd.f32 %v8543, %v6515
  %v8548 = vadd.f32 %v8544, %v6519
  %v8549 = vadd.f32 %v8545, %v6527
  %v8550 = vadd.f32 %v8546, %v6531
  %v8551 = vadd.f32 %v8547, %v6537
  %v8552 = vadd.f32 %v8548, %v6541
  %v8553 = vmax.f32 %v8525, %v8549
  %v8554 = vmax.f32 %v8526, %v8550
  %v8555 = vmax.f32 %v8527, %v8551
  %v8556 = vmax.f32 %v8528, %v8552
  %v8557 = vadd.f32 %v6059, %v6081
  %v8558 = vadd.f32 %v6063, %v6085
  %v8559 = vadd.f32 %v6069, %v6091
  %v8560 = vadd.f32 %v6073, %v6095
  %v8561 = vadd.f32 %v8557, %v6272
  %v8562 = vadd.f32 %v8558, %v6276
  %v8563 = vadd.f32 %v8559, %v6282
  %v8564 = vadd.f32 %v8560, %v6286
  %v8565 = vadd.f32 %v8561, %v6294
  %v8566 = vadd.f32 %v8562, %v6298
  %v8567 = vadd.f32 %v8563, %v6304
  %v8568 = vadd.f32 %v8564, %v6308
  %v8569 = vadd.f32 %v8565, %v6485
  %v8570 = vadd.f32 %v8566, %v6489
  %v8571 = vadd.f32 %v8567, %v6495
  %v8572 = vadd.f32 %v8568, %v6499
  %v8573 = vadd.f32 %v8569, %v6507
  %v8574 = vadd.f32 %v8570, %v6511
  %v8575 = vadd.f32 %v8571, %v6517
  %v8576 = vadd.f32 %v8572, %v6521
  %v8577 = vadd.f32 %v8573, %v6698
  %v8578 = vadd.f32 %v8574, %v6702
  %v8579 = vadd.f32 %v8575, %v6708
  %v8580 = vadd.f32 %v8576, %v6712
  %v8581 = vmax.f32 %v8553, %v8577
  %v8582 = vmax.f32 %v8554, %v8578
  %v8583 = vmax.f32 %v8555, %v8579
  %v8584 = vmax.f32 %v8556, %v8580
  %v8585 = vadd.f32 %v6061, %v6252
  %v8586 = vadd.f32 %v6065, %v6256
  %v8587 = vadd.f32 %v6071, %v6262
  %v8588 = vadd.f32 %v6075, %v6266
  %v8589 = vadd.f32 %v8585, %v6274
  %v8590 = vadd.f32 %v8586, %v6278
  %v8591 = vadd.f32 %v8587, %v6284
  %v8592 = vadd.f32 %v8588, %v6288
  %v8593 = vadd.f32 %v8589, %v6465
  %v8594 = vadd.f32 %v8590, %v6469
  %v8595 = vadd.f32 %v8591, %v6475
  %v8596 = vadd.f32 %v8592, %v6479
  %v8597 = vadd.f32 %v8593, %v6487
  %v8598 = vadd.f32 %v8594, %v6491
  %v8599 = vadd.f32 %v8595, %v6497
  %v8600 = vadd.f32 %v8596, %v6501
  %v8601 = vadd.f32 %v8597, %v6678
  %v8602 = vadd.f32 %v8598, %v6682
  %v8603 = vadd.f32 %v8599, %v6688
  %v8604 = vadd.f32 %v8600, %v6692
  %v8605 = vadd.f32 %v8601, %v6700
  %v8606 = vadd.f32 %v8602, %v6704
  %v8607 = vadd.f32 %v8603, %v6710
  %v8608 = vadd.f32 %v8604, %v6714
  %v8609 = vmax.f32 %v8581, %v8605
  %v8610 = vmax.f32 %v8582, %v8606
  %v8611 = vmax.f32 %v8583, %v8607
  %v8612 = vmax.f32 %v8584, %v8608
  %v8613 = vadd.f32 %v6232, %v6254
  %v8614 = vadd.f32 %v6236, %v6258
  %v8615 = vadd.f32 %v6242, %v6264
  %v8616 = vadd.f32 %v6246, %v6268
  %v8617 = vadd.f32 %v8613, %v6445
  %v8618 = vadd.f32 %v8614, %v6449
  %v8619 = vadd.f32 %v8615, %v6455
  %v8620 = vadd.f32 %v8616, %v6459
  %v8621 = vadd.f32 %v8617, %v6467
  %v8622 = vadd.f32 %v8618, %v6471
  %v8623 = vadd.f32 %v8619, %v6477
  %v8624 = vadd.f32 %v8620, %v6481
  %v8625 = vadd.f32 %v8621, %v6658
  %v8626 = vadd.f32 %v8622, %v6662
  %v8627 = vadd.f32 %v8623, %v6668
  %v8628 = vadd.f32 %v8624, %v6672
  %v8629 = vadd.f32 %v8625, %v6680
  %v8630 = vadd.f32 %v8626, %v6684
  %v8631 = vadd.f32 %v8627, %v6690
  %v8632 = vadd.f32 %v8628, %v6694
  %v8633 = vadd.f32 %v8629, %v6871
  %v8634 = vadd.f32 %v8630, %v6875
  %v8635 = vadd.f32 %v8631, %v6881
  %v8636 = vadd.f32 %v8632, %v6885
  %v8637 = vmax.f32 %v8609, %v8633
  %v8638 = vmax.f32 %v8610, %v8634
  %v8639 = vmax.f32 %v8611, %v8635
  %v8640 = vmax.f32 %v8612, %v8636
  %v8641 = vadd.f32 %v6234, %v6425
  %v8642 = vadd.f32 %v6238, %v6429
  %v8643 = vadd.f32 %v6244, %v6435
  %v8644 = vadd.f32 %v6248, %v6439
  %v8645 = vadd.f32 %v8641, %v6447
  %v8646 = vadd.f32 %v8642, %v6451
  %v8647 = vadd.f32 %v8643, %v6457
  %v8648 = vadd.f32 %v8644, %v6461
  %v8649 = vadd.f32 %v8645, %v6638
  %v8650 = vadd.f32 %v8646, %v6642
  %v8651 = vadd.f32 %v8647, %v6648
  %v8652 = vadd.f32 %v8648, %v6652
  %v8653 = vadd.f32 %v8649, %v6660
  %v8654 = vadd.f32 %v8650, %v6664
  %v8655 = vadd.f32 %v8651, %v6670
  %v8656 = vadd.f32 %v8652, %v6674
  %v8657 = vadd.f32 %v8653, %v6851
  %v8658 = vadd.f32 %v8654, %v6855
  %v8659 = vadd.f32 %v8655, %v6861
  %v8660 = vadd.f32 %v8656, %v6865
  %v8661 = vadd.f32 %v8657, %v6873
  %v8662 = vadd.f32 %v8658, %v6877
  %v8663 = vadd.f32 %v8659, %v6883
  %v8664 = vadd.f32 %v8660, %v6887
  %v8665 = vmax.f32 %v8637, %v8661
  %v8666 = vmax.f32 %v8638, %v8662
  %v8667 = vmax.f32 %v8639, %v8663
  %v8668 = vmax.f32 %v8640, %v8664
  %v8669 = vadd.f32 %v6405, %v6427
  %v8670 = vadd.f32 %v6409, %v6431
  %v8671 = vadd.f32 %v6415, %v6437
  %v8672 = vadd.f32 %v6419, %v6441
  %v8673 = vadd.f32 %v8669, %v6618
  %v8674 = vadd.f32 %v8670, %v6622
  %v8675 = vadd.f32 %v8671, %v6628
  %v8676 = vadd.f32 %v8672, %v6632
  %v8677 = vadd.f32 %v8673, %v6640
  %v8678 = vadd.f32 %v8674, %v6644
  %v8679 = vadd.f32 %v8675, %v6650
  %v8680 = vadd.f32 %v8676, %v6654
  %v8681 = vadd.f32 %v8677, %v6831
  %v8682 = vadd.f32 %v8678, %v6835
  %v8683 = vadd.f32 %v8679, %v6841
  %v8684 = vadd.f32 %v8680, %v6845
  %v8685 = vadd.f32 %v8681, %v6853
  %v8686 = vadd.f32 %v8682, %v6857
  %v8687 = vadd.f32 %v8683, %v6863
  %v8688 = vadd.f32 %v8684, %v6867
  %v8689 = vadd.f32 %v8685, %v7044
  %v8690 = vadd.f32 %v8686, %v7048
  %v8691 = vadd.f32 %v8687, %v7054
  %v8692 = vadd.f32 %v8688, %v7058
  %v8693 = vmax.f32 %v8665, %v8689
  %v8694 = vmax.f32 %v8666, %v8690
  %v8695 = vmax.f32 %v8667, %v8691
  %v8696 = vmax.f32 %v8668, %v8692
  %v8697 = vadd.f32 %v6407, %v6598
  %v8698 = vadd.f32 %v6411, %v6602
  %v8699 = vadd.f32 %v6417, %v6608
  %v8700 = vadd.f32 %v6421, %v6612
  %v8701 = vadd.f32 %v8697, %v6620
  %v8702 = vadd.f32 %v8698, %v6624
  %v8703 = vadd.f32 %v8699, %v6630
  %v8704 = vadd.f32 %v8700, %v6634
  %v8705 = vadd.f32 %v8701, %v6811
  %v8706 = vadd.f32 %v8702, %v6815
  %v8707 = vadd.f32 %v8703, %v6821
  %v8708 = vadd.f32 %v8704, %v6825
  %v8709 = vadd.f32 %v8705, %v6833
  %v8710 = vadd.f32 %v8706, %v6837
  %v8711 = vadd.f32 %v8707, %v6843
  %v8712 = vadd.f32 %v8708, %v6847
  %v8713 = vadd.f32 %v8709, %v7024
  %v8714 = vadd.f32 %v8710, %v7028
  %v8715 = vadd.f32 %v8711, %v7034
  %v8716 = vadd.f32 %v8712, %v7038
  %v8717 = vadd.f32 %v8713, %v7046
  %v8718 = vadd.f32 %v8714, %v7050
  %v8719 = vadd.f32 %v8715, %v7056
  %v8720 = vadd.f32 %v8716, %v7060
  %v8721 = vmax.f32 %v8693, %v8717
  %v8722 = vmax.f32 %v8694, %v8718
  %v8723 = vmax.f32 %v8695, %v8719
  %v8724 = vmax.f32 %v8696, %v8720
  %v8725 = vadd.f32 %v6578, %v6600
  %v8726 = vadd.f32 %v6582, %v6604
  %v8727 = vadd.f32 %v6588, %v6610
  %v8728 = vadd.f32 %v6592, %v6614
  %v8729 = vadd.f32 %v8725, %v6791
  %v8730 = vadd.f32 %v8726, %v6795
  %v8731 = vadd.f32 %v8727, %v6801
  %v8732 = vadd.f32 %v8728, %v6805
  %v8733 = vadd.f32 %v8729, %v6813
  %v8734 = vadd.f32 %v8730, %v6817
  %v8735 = vadd.f32 %v8731, %v6823
  %v8736 = vadd.f32 %v8732, %v6827
  %v8737 = vadd.f32 %v8733, %v7004
  %v8738 = vadd.f32 %v8734, %v7008
  %v8739 = vadd.f32 %v8735, %v7014
  %v8740 = vadd.f32 %v8736, %v7018
  %v8741 = vadd.f32 %v8737, %v7026
  %v8742 = vadd.f32 %v8738, %v7030
  %v8743 = vadd.f32 %v8739, %v7036
  %v8744 = vadd.f32 %v8740, %v7040
  %v8745 = vadd.f32 %v8741, %v7205
  %v8746 = vadd.f32 %v8742, %v7209
  %v8747 = vadd.f32 %v8743, %v7215
  %v8748 = vadd.f32 %v8744, %v7219
  %v8749 = vmax.f32 %v8721, %v8745
  %v8750 = vmax.f32 %v8722, %v8746
  %v8751 = vmax.f32 %v8723, %v8747
  %v8752 = vmax.f32 %v8724, %v8748
  %v8753 = vadd.f32 %v6580, %v6771
  %v8754 = vadd.f32 %v6584, %v6775
  %v8755 = vadd.f32 %v6590, %v6781
  %v8756 = vadd.f32 %v6594, %v6785
  %v8757 = vadd.f32 %v8753, %v6793
  %v8758 = vadd.f32 %v8754, %v6797
  %v8759 = vadd.f32 %v8755, %v6803
  %v8760 = vadd.f32 %v8756, %v6807
  %v8761 = vadd.f32 %v8757, %v6984
  %v8762 = vadd.f32 %v8758, %v6988
  %v8763 = vadd.f32 %v8759, %v6994
  %v8764 = vadd.f32 %v8760, %v6998
  %v8765 = vadd.f32 %v8761, %v7006
  %v8766 = vadd.f32 %v8762, %v7010
  %v8767 = vadd.f32 %v8763, %v7016
  %v8768 = vadd.f32 %v8764, %v7020
  %v8769 = vadd.f32 %v8765, %v7185
  %v8770 = vadd.f32 %v8766, %v7189
  %v8771 = vadd.f32 %v8767, %v7195
  %v8772 = vadd.f32 %v8768, %v7199
  %v8773 = vadd.f32 %v8769, %v7207
  %v8774 = vadd.f32 %v8770, %v7211
  %v8775 = vadd.f32 %v8771, %v7217
  %v8776 = vadd.f32 %v8772, %v7221
  %v8777 = vmax.f32 %v8749, %v8773
  %v8778 = vmax.f32 %v8750, %v8774
  %v8779 = vmax.f32 %v8751, %v8775
  %v8780 = vmax.f32 %v8752, %v8776
  %v8781 = vadd.f32 %v6751, %v6773
  %v8782 = vadd.f32 %v6755, %v6777
  %v8783 = vadd.f32 %v6761, %v6783
  %v8784 = vadd.f32 %v6765, %v6787
  %v8785 = vadd.f32 %v8781, %v6964
  %v8786 = vadd.f32 %v8782, %v6968
  %v8787 = vadd.f32 %v8783, %v6974
  %v8788 = vadd.f32 %v8784, %v6978
  %v8789 = vadd.f32 %v8785, %v6986
  %v8790 = vadd.f32 %v8786, %v6990
  %v8791 = vadd.f32 %v8787, %v6996
  %v8792 = vadd.f32 %v8788, %v7000
  %v8793 = vadd.f32 %v8789, %v7165
  %v8794 = vadd.f32 %v8790, %v7169
  %v8795 = vadd.f32 %v8791, %v7175
  %v8796 = vadd.f32 %v8792, %v7179
  %v8797 = vadd.f32 %v8793, %v7187
  %v8798 = vadd.f32 %v8794, %v7191
  %v8799 = vadd.f32 %v8795, %v7197
  %v8800 = vadd.f32 %v8796, %v7201
  %v8801 = vadd.f32 %v8797, %v7350
  %v8802 = vadd.f32 %v8798, %v7354
  %v8803 = vadd.f32 %v8799, %v7360
  %v8804 = vadd.f32 %v8800, %v7364
  %v8805 = vmax.f32 %v8777, %v8801
  %v8806 = vmax.f32 %v8778, %v8802
  %v8807 = vmax.f32 %v8779, %v8803
  %v8808 = vmax.f32 %v8780, %v8804
  %v8809 = vadd.f32 %v6753, %v6944
  %v8810 = vadd.f32 %v6757, %v6948
  %v8811 = vadd.f32 %v6763, %v6954
  %v8812 = vadd.f32 %v6767, %v6958
  %v8813 = vadd.f32 %v8809, %v6966
  %v8814 = vadd.f32 %v8810, %v6970
  %v8815 = vadd.f32 %v8811, %v6976
  %v8816 = vadd.f32 %v8812, %v6980
  %v8817 = vadd.f32 %v8813, %v7145
  %v8818 = vadd.f32 %v8814, %v7149
  %v8819 = vadd.f32 %v8815, %v7155
  %v8820 = vadd.f32 %v8816, %v7159
  %v8821 = vadd.f32 %v8817, %v7167
  %v8822 = vadd.f32 %v8818, %v7171
  %v8823 = vadd.f32 %v8819, %v7177
  %v8824 = vadd.f32 %v8820, %v7181
  %v8825 = vadd.f32 %v8821, %v7330
  %v8826 = vadd.f32 %v8822, %v7334
  %v8827 = vadd.f32 %v8823, %v7340
  %v8828 = vadd.f32 %v8824, %v7344
  %v8829 = vadd.f32 %v8825, %v7352
  %v8830 = vadd.f32 %v8826, %v7356
  %v8831 = vadd.f32 %v8827, %v7362
  %v8832 = vadd.f32 %v8828, %v7366
  %v8833 = vmax.f32 %v8805, %v8829
  %v8834 = vmax.f32 %v8806, %v8830
  %v8835 = vmax.f32 %v8807, %v8831
  %v8836 = vmax.f32 %v8808, %v8832
  %v8837 = vadd.f32 %v6924, %v6946
  %v8838 = vadd.f32 %v6928, %v6950
  %v8839 = vadd.f32 %v6934, %v6956
  %v8840 = vadd.f32 %v6938, %v6960
  %v8841 = vadd.f32 %v8837, %v7125
  %v8842 = vadd.f32 %v8838, %v7129
  %v8843 = vadd.f32 %v8839, %v7135
  %v8844 = vadd.f32 %v8840, %v7139
  %v8845 = vadd.f32 %v8841, %v7147
  %v8846 = vadd.f32 %v8842, %v7151
  %v8847 = vadd.f32 %v8843, %v7157
  %v8848 = vadd.f32 %v8844, %v7161
  %v8849 = vadd.f32 %v8845, %v7310
  %v8850 = vadd.f32 %v8846, %v7314
  %v8851 = vadd.f32 %v8847, %v7320
  %v8852 = vadd.f32 %v8848, %v7324
  %v8853 = vadd.f32 %v8849, %v7332
  %v8854 = vadd.f32 %v8850, %v7336
  %v8855 = vadd.f32 %v8851, %v7342
  %v8856 = vadd.f32 %v8852, %v7346
  %v8857 = vadd.f32 %v8853, %v7479
  %v8858 = vadd.f32 %v8854, %v7483
  %v8859 = vadd.f32 %v8855, %v7489
  %v8860 = vadd.f32 %v8856, %v7493
  %v8861 = vmax.f32 %v8833, %v8857
  %v8862 = vmax.f32 %v8834, %v8858
  %v8863 = vmax.f32 %v8835, %v8859
  %v8864 = vmax.f32 %v8836, %v8860
  %v8865 = vadd.f32 %v6926, %v7109
  %v8866 = vadd.f32 %v6930, %v7112
  %v8867 = vadd.f32 %v6936, %v7117
  %v8868 = vadd.f32 %v6940, %v7120
  %v8869 = vadd.f32 %v8865, %v7127
  %v8870 = vadd.f32 %v8866, %v7131
  %v8871 = vadd.f32 %v8867, %v7137
  %v8872 = vadd.f32 %v8868, %v7141
  %v8873 = vadd.f32 %v8869, %v7294
  %v8874 = vadd.f32 %v8870, %v7297
  %v8875 = vadd.f32 %v8871, %v7302
  %v8876 = vadd.f32 %v8872, %v7305
  %v8877 = vadd.f32 %v8873, %v7312
  %v8878 = vadd.f32 %v8874, %v7316
  %v8879 = vadd.f32 %v8875, %v7322
  %v8880 = vadd.f32 %v8876, %v7326
  %v8881 = vadd.f32 %v8877, %v7463
  %v8882 = vadd.f32 %v8878, %v7466
  %v8883 = vadd.f32 %v8879, %v7471
  %v8884 = vadd.f32 %v8880, %v7474
  %v8885 = vadd.f32 %v8881, %v7481
  %v8886 = vadd.f32 %v8882, %v7485
  %v8887 = vadd.f32 %v8883, %v7491
  %v8888 = vadd.f32 %v8884, %v7495
  %v8889 = vmax.f32 %v8861, %v8885
  %v8890 = vmax.f32 %v8862, %v8886
  %v8891 = vmax.f32 %v8863, %v8887
  %v8892 = vmax.f32 %v8864, %v8888
  %v8893 = vld [vmem:[%s2] sm:$0xff]
  %v8894 = vld [vmem:[%s2 + $0x8] sm:$0xff]
  %v8895 = vld [vmem:[%s2 + $0x10] sm:$0xff]
  %v8896 = vld [vmem:[%s2 + $0x18] sm:$0xff]
  %8898 = vset.pattern.permute.xlu0 0
  %8899 = vperm.xlu0 %8898, %v8893
  %v8900 = vpop.permute.xlu0 %8899
  %8903 = vset.pattern.permute.xlu0 0
  %8904 = vperm.xlu0 %8903, %v8894
  %v8905 = vpop.permute.xlu0 %8904
  %8908 = vset.pattern.permute.xlu0 0
  %8909 = vperm.xlu0 %8908, %v8895
  %v8910 = vpop.permute.xlu0 %8909
  %8913 = vset.pattern.permute.xlu0 0
  %8914 = vperm.xlu0 %8913, %v8896
  %v8915 = vpop.permute.xlu0 %8914
  %v8917 = vadd.f32 %v8889, %v8900
  %v8918 = vadd.f32 %v8890, %v8905
  %v8919 = vadd.f32 %v8891, %v8910
  %v8920 = vadd.f32 %v8892, %v8915
  %v8921 = vmax.f32 %v8917, 0.0
  %v8922 = vmax.f32 %v8918, 0.0
  %v8923 = vmax.f32 %v8919, 0.0
  %v8924 = vmax.f32 %v8920, 0.0
  %v8925 = vld [vmem:[%s3] sm:$0xff]
  %v8926 = vld [vmem:[%s4] sm:$0xff]
  %8928 = vset.pattern.permute.xlu0 0
  %8929 = vperm.xlu0 %8928, %v8926
  %v8930 = vpop.permute.xlu0 %8929
  %vm8932 = vcmask 261120
  %v8934 = vsel %vm8932, %v8925, 0
  %8936 = vmatprep.subr.mxu0 0.0
  %8937 = vmatpush1.msra.mxu0 %v8921
  %8938 = vmatprep.subr.mxu0 0.0
  %8939 = vmatpush1.msra.mxu0 %v8922
  %8940 = vmatprep.subr.mxu0 0.0
  %8941 = vmatpush1.msra.mxu0 %v8923
  %8942 = vmatprep.subr.mxu0 0.0
  %8943 = vmatpush1.msra.mxu0 %v8924
  %8944 = vmatprep.subr.mxu0 0.0
  %8945 = vmatpush1.msra.mxu0 0.0
  %8946 = vmatprep.subr.mxu0 0.0
  %8947 = vmatpush1.msra.mxu0 0.0
  %8948 = vmatprep.subr.mxu0 0.0
  %8949 = vmatpush1.msra.mxu0 0.0
  %8950 = vmatprep.subr.mxu0 0.0
  %8951 = vmatpush1.msra.mxu0 0.0
  %8952 = vmatprep.subr.mxu0 0.0
  %8953 = vmatpush1.msra.mxu0 0.0
  %8954 = vmatprep.subr.mxu0 0.0
  %8955 = vmatpush1.msra.mxu0 0.0
  %8956 = vmatprep.subr.mxu0 0.0
  %8957 = vmatpush1.msra.mxu0 0.0
  %8958 = vmatprep.subr.mxu0 0.0
  %8959 = vmatpush1.msra.mxu0 0.0
  %8960 = vmatprep.subr.mxu0 0.0
  %8961 = vmatpush1.msra.mxu0 0.0
  %8962 = vmatprep.subr.mxu0 0.0
  %8963 = vmatpush1.msra.mxu0 0.0
  %8964 = vmatprep.subr.mxu0 0.0
  %8965 = vmatpush1.msra.mxu0 0.0
  %8966 = vmatprep.subr.mxu0 0.0
  %8967 = vmatpush1.msra.mxu0 0.0
  %8968 = vmatprep.subr.mxu0 0.0
  %8969 = vmatpush1.msra.mxu0 0.0
  %8970 = vmatprep.subr.mxu0 0.0
  %8971 = vmatpush1.msra.mxu0 0.0
  %8972 = vmatprep.subr.mxu0 0.0
  %8973 = vmatpush1.msra.mxu0 0.0
  %8974 = vmatprep.subr.mxu0 0.0
  %8975 = vmatpush1.msra.mxu0 0.0
  %8976 = vmatprep.subr.mxu0 0.0
  %8977 = vmatpush1.msra.mxu0 0.0
  %8978 = vmatprep.subr.mxu0 0.0
  %8979 = vmatpush1.msra.mxu0 0.0
  %8980 = vmatprep.subr.mxu0 0.0
  %8981 = vmatpush1.msra.mxu0 0.0
  %8982 = vmatprep.subr.mxu0 0.0
  %8983 = vmatpush1.msra.mxu0 0.0
  %8984 = vmatprep.subr.mxu0 0.0
  %8985 = vmatpush1.msra.mxu0 0.0
  %8986 = vmatprep.subr.mxu0 0.0
  %8987 = vmatpush1.msra.mxu0 0.0
  %8988 = vmatprep.subr.mxu0 0.0
  %8989 = vmatpush1.msra.mxu0 0.0
  %8990 = vmatprep.subr.mxu0 0.0
  %8991 = vmatpush1.msra.mxu0 0.0
  %8992 = vmatprep.subr.mxu0 0.0
  %8993 = vmatpush1.msra.mxu0 0.0
  %8994 = vmatprep.subr.mxu0 0.0
  %8995 = vmatpush1.msra.mxu0 0.0
  %8996 = vmatprep.subr.mxu0 0.0
  %8997 = vmatpush1.msra.mxu0 0.0
  %8998 = vmatprep.subr.mxu0 0.0
  %8999 = vmatpush1.msra.mxu0 0.0
  %9000 = vmatprep.mubr.f32.mxu0 0.0
  %9001 = vmatmul.mubr.f32.gmra.mrb[0].mxu0 %v8934
  %v9002 = vpop.f32.mrb[0].mxu0
  %v9003 = vadd.f32 %v8930, %v9002
  %v9004 = vpop.f32.mrb[0].mxu0
  %9005 = vdwg.mxu0
  %9006 = vst [vmem:[%s5] sm:$0xff] %v9003
  // Predicated region
  $region22: #{cnn_forward.1} parent=0 // pred_check
    _
  $region23: #{cnn_forward.1} parent=0 // pred_check_branch
    %9008 = sbr.rel (0) target = $region25
  $region24: #{cnn_forward.1} parent=0 // pred_region
    _
  $region25: #{cnn_forward.1} parent=0 // pred_fallthru
    _
  // Predicated region
  $region26: #{cnn_forward.1} parent=0 // pred_check
    _
  $region27: #{cnn_forward.1} parent=0 // pred_check_branch
    %9010 = sbr.rel (0) target = $region29
  $region28: #{cnn_forward.1} parent=0 // pred_region
    _
  $region29: #{cnn_forward.1} parent=0 // pred_fallthru
    _

</llo_original>
